<compile_context>
chip_gen: v6e
topology: v6e:2x2x1
jax: 0.10.0
libtpu: 0.0.40
codegen_flags: <defaults>
</compile_context>

<pallas_src>
import numpy as np
import jax
import jax.numpy as jnp
from jax.experimental import pallas as pl
from jax.experimental.pallas import tpu as pltpu

DIM_EMBED = 64          # dim_embedding_key
CH_IN = 2
CH_OUT = 16
KER = 3
IM2COL = KER * CH_IN    # 6
MLP_HIDDEN = (1024, 512, 1024)
NMP_MLP_DIM = 1024
NMP_PRE_HID = 512
NMP_LAYERS = 2
PAD_OUT = 128           # lane-dense padded decoder output width

_VMEM = pl.BlockSpec(memory_space=pltpu.MemorySpace.VMEM)


# ----------------------------------------------------------------------------
# Shared st_encoder core: Conv1d (single im2col matmul) + ReLU + GRU(16->64).
# Input-gate matmuls are precomputed for all timesteps; the sequential loop
# only carries the three 64-lane recurrent matmuls.
# ----------------------------------------------------------------------------
def _st_core(xcat_flat, wc, bc, wir, wiz, win, whr, whz, whn,
             br, bz, bin_n, bhn_n, n_rows, t_steps, t_valid=None):
    conv = jnp.maximum(
        jnp.dot(xcat_flat, wc, preferred_element_type=jnp.float32) + bc, 0.0)
    gir = (jnp.dot(conv, wir, preferred_element_type=jnp.float32)
           + br).reshape(n_rows, t_steps, DIM_EMBED)
    giz = (jnp.dot(conv, wiz, preferred_element_type=jnp.float32)
           + bz).reshape(n_rows, t_steps, DIM_EMBED)
    gin = (jnp.dot(conv, win, preferred_element_type=jnp.float32)
           + bin_n).reshape(n_rows, t_steps, DIM_EMBED)

    h = jnp.zeros((n_rows, DIM_EMBED), jnp.float32)
    for t in range(t_steps):   # unrolled static loop (T is small)
        r = jax.nn.sigmoid(
            gir[:, t, :] + jnp.dot(h, whr, preferred_element_type=jnp.float32))
        z = jax.nn.sigmoid(
            giz[:, t, :] + jnp.dot(h, whz, preferred_element_type=jnp.float32))
        n = jnp.tanh(
            gin[:, t, :] +
            r * (jnp.dot(h, whn, preferred_element_type=jnp.float32) + bhn_n))
        h_new = (1.0 - z) * n + z * h
        if t_valid is None:
            h = h_new
        else:
            keep = (t < t_valid).astype(jnp.float32)   # mask padded timesteps
            h = keep * h_new + (1.0 - keep) * h
    return h


def im2col_conv1d(x, t_out):
    """(B, T, 2) -> (B, t_out, 6) im2col for Conv1d(k=3, pad=1); time axis is
    zero-padded up to t_out (extra steps are masked inside the GRU)."""
    B, T, _ = x.shape
    x = x.astype(jnp.float32)
    if T < t_out:
        x = jnp.pad(x, ((0, 0), (0, t_out - T), (0, 0)))
    xpad = jnp.pad(x, ((0, 0), (1, 1), (0, 0)))
    return jnp.concatenate([xpad[:, k:k + t_out, :] for k in range(KER)],
                           axis=-1)


# ----------------------------------------------------------------------------
# Call 1: the three first-stage st_encoders as a single 3-wide parallel grid
# over stacked weights.  Output (3, N, 64).
# ----------------------------------------------------------------------------
def encode3_apply(stacked, xcat_stack, t_past, t_fut):
    n_enc, N, t_max, _ = xcat_stack.shape
    D = DIM_EMBED

    def kernel(xc_ref, wc_ref, bc_ref, wir_ref, wiz_ref, win_ref,
               whr_ref, whz_ref, whn_ref, br_ref, bz_ref, bin_ref, bhn_ref,
               out_ref):
        # encoder 0/1 run past_len steps, encoder 2 runs future_len steps.
        t_valid = jnp.where(pl.program_id(0) == 2, t_fut, t_past)
        xcat = xc_ref[0].reshape(N * t_max, IM2COL)
        h = _st_core(xcat, wc_ref[0], bc_ref[0],
                     wir_ref[0], wiz_ref[0], win_ref[0],
                     whr_ref[0], whz_ref[0], whn_ref[0],
                     br_ref[0], bz_ref[0], bin_ref[0], bhn_ref[0],
                     N, t_max, t_valid)
        out_ref[0] = h

    def wspec(r, c):
        return pl.BlockSpec((1, r, c), lambda e: (e, 0, 0))

    in_specs = [
        pl.BlockSpec((1, N, t_max, IM2COL), lambda e: (e, 0, 0, 0)),
        wspec(IM2COL, CH_OUT), wspec(1, CH_OUT),
        wspec(CH_OUT, D), wspec(CH_OUT, D), wspec(CH_OUT, D),
        wspec(D, D), wspec(D, D), wspec(D, D),
        wspec(1, D), wspec(1, D), wspec(1, D), wspec(1, D),
    ]
    return pl.pallas_call(
        kernel,
        out_shape=jax.ShapeDtypeStruct((n_enc, N, D), jnp.float32),
        grid_spec=pltpu.PrefetchScalarGridSpec(
            num_scalar_prefetch=0, grid=(n_enc,),
            in_specs=in_specs,
            out_specs=pl.BlockSpec((1, N, D), lambda e: (e, 0, 0))),
        compiler_params=pltpu.CompilerParams(
            dimension_semantics=("parallel",)),
    )(xcat_stack, stacked['conv_w'], stacked['conv_b'],
      stacked['w_ih_r'], stacked['w_ih_z'], stacked['w_ih_n'],
      stacked['w_hh_r'], stacked['w_hh_z'], stacked['w_hh_n'],
      stacked['b_r'], stacked['b_z'], stacked['b_in_n'], stacked['b_hn_n'])


# ----------------------------------------------------------------------------
# Call 4: res_past_encoder (single, grid-less).  Output (N, 64).
# ----------------------------------------------------------------------------
def res_encoder_apply(params, xcat, t_past):
    N = xcat.shape[0]

    def kernel(xc_ref, wc_ref, bc_ref, wir_ref, wiz_ref, win_ref,
               whr_ref, whz_ref, whn_ref, br_ref, bz_ref, bin_ref, bhn_ref,
               out_ref):
        xf = xc_ref[...].reshape(N * t_past, IM2COL)
        out_ref[...] = _st_core(
            xf, wc_ref[...], bc_ref[...],
            wir_ref[...], wiz_ref[...], win_ref[...],
            whr_ref[...], whz_ref[...], whn_ref[...],
            br_ref[...], bz_ref[...], bin_ref[...], bhn_ref[...],
            N, t_past, None)

    return pl.pallas_call(
        kernel,
        out_shape=jax.ShapeDtypeStruct((N, DIM_EMBED), jnp.float32),
        in_specs=[_VMEM] * 13,
        out_specs=_VMEM,
    )(xcat, params['conv_w'], params['conv_b'],
      params['w_ih_r'], params['w_ih_z'], params['w_ih_n'],
      params['w_hh_r'], params['w_hh_z'], params['w_hh_n'],
      params['b_r'], params['b_z'], params['b_in_n'], params['b_hn_n'])


# ----------------------------------------------------------------------------
# Call 2: NmpNet social pooling (relative-position embedding on the VPU,
# masked max pooling over same-scene agents, 2 node-update layers).
# bf16 weights for the large matmuls, f32 accumulation.
# ----------------------------------------------------------------------------
def nmp_apply(params, enc_out, scene_mask, end_pos):
    N = enc_out.shape[1]
    D = DIM_EMBED

    def kernel(enc_ref, pos_ref, mask_ref, ws_ref, bs_ref,
               wp0e_ref, wp0h_ref, bp0_ref, wp1_ref, bp1_ref,
               wninp_ref, wninh_ref, bnin_ref, wnout_ref, bnout_ref, out_ref):
        h = enc_ref[1]                                    # abs_past_state (N,64)
        pos = pos_ref[...]                                # (N, 2)
        mask = mask_ref[...]                              # (N, N)
        rel = pos[None, :, :] - pos[:, None, :]           # (N, N, 2)
        ws = ws_ref[...]                                  # (2, 64)
        # relative-position embedding: VPU broadcast-FMA instead of a K=2 matmul
        e = (rel[:, :, 0:1] * ws[0:1, :] +
             rel[:, :, 1:2] * ws[1:2, :] + bs_ref[...])   # (N, N, 64) f32

        h_bf = h.astype(jnp.bfloat16)
        e_bf = e.reshape(N * N, D).astype(jnp.bfloat16)
        z = (jnp.dot(e_bf, wp0e_ref[...],
                     preferred_element_type=jnp.float32).reshape(N, N, NMP_PRE_HID)
             + jnp.dot(h_bf, wp0h_ref[...],
                       preferred_element_type=jnp.float32)[None, :, :]
             + bp0_ref[...].reshape(1, 1, NMP_PRE_HID))
        z = jnp.maximum(z, 0.0).reshape(N * N, NMP_PRE_HID)
        m = jnp.maximum(
            jnp.dot(z.astype(jnp.bfloat16), wp1_ref[...],
                    preferred_element_type=jnp.float32) + bp1_ref[...], 0.0)
        m = m.reshape(N, N, D)
        m = jnp.where(mask[:, :, None] > 0.5, m, -1e30)
        pooled = jnp.max(m, axis=1)                       # masked max over agents

        for layer in range(NMP_LAYERS):
            u = jnp.maximum(
                jnp.dot(pooled.astype(jnp.bfloat16), wninp_ref[layer],
                        preferred_element_type=jnp.float32)
                + jnp.dot(h_bf, wninh_ref[layer],
                          preferred_element_type=jnp.float32)
                + bnin_ref[layer], 0.0)
            pooled = jnp.maximum(
                jnp.dot(u.astype(jnp.bfloat16), wnout_ref[layer],
                        preferred_element_type=jnp.float32)
                + bnout_ref[layer], 0.0)
        out_ref[...] = pooled

    args = (enc_out, end_pos.astype(jnp.float32), scene_mask,
            params['ws'], params['bs'], params['wp0_e'], params['wp0_h'],
            params['bp0'], params['wp1'], params['bp1'],
            params['wn_in_p'], params['wn_in_h'], params['bn_in'],
            params['wn_out'], params['bn_out'])
    return pl.pallas_call(
        kernel,
        out_shape=jax.ShapeDtypeStruct((N, D), jnp.float32),
        in_specs=[_VMEM] * len(args),
        out_specs=_VMEM,
    )(*args)


# ----------------------------------------------------------------------------
# Calls 3 & 5: two MLP decoders fused as a 2-wide parallel grid over stacked
# bf16 weights.  Output (2, N, 128) lane-dense, sliced in the wrapper.
# ----------------------------------------------------------------------------
def decoder_pair_apply(stacked, x):
    N, in_dim = x.shape
    w0, b0, w1, b1, w2, b2, w3, b3 = stacked
    H0, H1, H2, PO = w0.shape[2], w1.shape[2], w2.shape[2], w3.shape[2]

    def kernel(x_ref, w0_ref, b0_ref, w1_ref, b1_ref, w2_ref, b2_ref,
               w3_ref, b3_ref, out_ref):
        h = x_ref[...]
        h = jnp.maximum(jnp.dot(h.astype(jnp.bfloat16), w0_ref[0],
                                preferred_element_type=jnp.float32)
                        + b0_ref[0], 0.0)
        h = jnp.maximum(jnp.dot(h.astype(jnp.bfloat16), w1_ref[0],
                                preferred_element_type=jnp.float32)
                        + b1_ref[0], 0.0)
        h = jnp.maximum(jnp.dot(h.astype(jnp.bfloat16), w2_ref[0],
                                preferred_element_type=jnp.float32)
                        + b2_ref[0], 0.0)
        out_ref[0] = (jnp.dot(h.astype(jnp.bfloat16), w3_ref[0],
                              preferred_element_type=jnp.float32) + b3_ref[0])

    def blk(r, c):
        return pl.BlockSpec((1, r, c), lambda d: (d, 0, 0))

    return pl.pallas_call(
        kernel,
        out_shape=jax.ShapeDtypeStruct((2, N, PO), jnp.float32),
        grid_spec=pltpu.PrefetchScalarGridSpec(
            num_scalar_prefetch=0, grid=(2,),
            in_specs=[pl.BlockSpec((N, in_dim), lambda d: (0, 0)),
                      blk(in_dim, H0), blk(1, H0),
                      blk(H0, H1), blk(1, H1),
                      blk(H1, H2), blk(1, H2),
                      blk(H2, PO), blk(1, PO)],
            out_specs=pl.BlockSpec((1, N, PO), lambda d: (d, 0, 0))),
        compiler_params=pltpu.CompilerParams(
            dimension_semantics=("parallel",)),
    )(x, w0, b0, w1, b1, w2, b2, w3, b3)


# ----------------------------------------------------------------------------
# Parameter init (deterministic, synthetic)
# ----------------------------------------------------------------------------
def _normal(key, shape, scale):
    return scale * jax.random.normal(key, shape, dtype=jnp.float32)


def init_st_encoder(key):
    ks = jax.random.split(key, 6)
    D = DIM_EMBED
    conv_w = _normal(ks[0], (KER, CH_IN, CH_OUT), 0.2).reshape(IM2COL, CH_OUT)
    w_ih = _normal(ks[2], (CH_OUT, 3 * D), 0.2)
    w_hh = _normal(ks[3], (D, 3 * D), 0.1)
    b_ih = _normal(ks[4], (1, 3 * D), 0.1)
    b_hh = _normal(ks[5], (1, 3 * D), 0.1)
    return {
        'conv_w': conv_w,
        'conv_b': _normal(ks[1], (1, CH_OUT), 0.1),
        # PyTorch GRU gate order (r, z, n), split into 64-lane blocks.
        'w_ih_r': w_ih[:, 0:D], 'w_ih_z': w_ih[:, D:2 * D],
        'w_ih_n': w_ih[:, 2 * D:3 * D],
        'w_hh_r': w_hh[:, 0:D], 'w_hh_z': w_hh[:, D:2 * D],
        'w_hh_n': w_hh[:, 2 * D:3 * D],
        'b_r': b_ih[:, 0:D] + b_hh[:, 0:D],
        'b_z': b_ih[:, D:2 * D] + b_hh[:, D:2 * D],
        'b_in_n': b_ih[:, 2 * D:3 * D],   # added to the input gate
        'b_hn_n': b_hh[:, 2 * D:3 * D],   # stays inside the r * (.) term
    }


def init_nmp(key):
    ks = jax.random.split(key, 10)
    D = DIM_EMBED
    wp0 = _normal(ks[2], (2 * D, NMP_PRE_HID), 1.0 / np.sqrt(2 * D))
    wn_in = _normal(ks[6], (NMP_LAYERS, 2 * D, NMP_MLP_DIM), 1.0 / np.sqrt(2 * D))
    return {
        'ws': _normal(ks[0], (2, D), 0.5),
        'bs': _normal(ks[1], (1, D), 0.1),
        'wp0_e': wp0[:D].astype(jnp.bfloat16),
        'wp0_h': wp0[D:].astype(jnp.bfloat16),
        'bp0': _normal(ks[3], (1, NMP_PRE_HID), 0.1),
        'wp1': _normal(ks[4], (NMP_PRE_HID, D),
                       1.0 / np.sqrt(NMP_PRE_HID)).astype(jnp.bfloat16),
        'bp1': _normal(ks[5], (1, D), 0.1),
        'wn_in_p': wn_in[:, :D, :].astype(jnp.bfloat16),
        'wn_in_h': wn_in[:, D:, :].astype(jnp.bfloat16),
        'bn_in': _normal(ks[7], (NMP_LAYERS, 1, NMP_MLP_DIM), 0.1),
        'wn_out': _normal(ks[8], (NMP_LAYERS, NMP_MLP_DIM, D),
                          1.0 / np.sqrt(NMP_MLP_DIM)).astype(jnp.bfloat16),
        'bn_out': _normal(ks[9], (NMP_LAYERS, 1, D), 0.1),
    }


def init_mlp_pair(key_a, key_b, in_dim, out_a, out_b,
                  pad_out=PAD_OUT, hidden=MLP_HIDDEN):
    """Two MLPs (192 -> 1024 -> 512 -> 1024 -> out) with the last layer padded
    to `pad_out` lanes, stacked along a leading axis of 2; bf16 weights."""
    def one(key, out_dim):
        dims = (in_dim,) + tuple(hidden) + (out_dim,)
        ks = jax.random.split(key, len(dims) - 1)
        ws, bs = [], []
        for i in range(len(dims) - 1):
            kw, kb = jax.random.split(ks[i])
            scale = 1.0 / np.sqrt(dims[i])
            ws.append(_normal(kw, (dims[i], dims[i + 1]), scale))
            bs.append(_normal(kb, (1, dims[i + 1]), scale))
        ws[-1] = jnp.pad(ws[-1], ((0, 0), (0, pad_out - out_dim)))
        bs[-1] = jnp.pad(bs[-1], ((0, 0), (0, pad_out - out_dim)))
        return ws, bs

    wa, ba = one(key_a, out_a)
    wb, bb = one(key_b, out_b)
    stacked = []
    for i in range(len(wa)):
        stacked.append(jnp.stack([wa[i], wb[i]], axis=0).astype(jnp.bfloat16))
        stacked.append(jnp.stack([ba[i], bb[i]], axis=0))   # f32 biases
    return tuple(stacked)


def build_scene_mask(seq_start_end, n):
    mask = np.zeros((n, n), dtype=np.float32)
    for s, e in np.asarray(seq_start_end):
        mask[int(s):int(e), int(s):int(e)] = 1.0
    return jnp.asarray(mask)


# ----------------------------------------------------------------------------
# The full model (mirrors model_encdec.forward)
# ----------------------------------------------------------------------------
class ModelEncDecSocial:
    def __init__(self, settings, key):
        self.past_len = settings['past_len']
        self.future_len = settings['future_len']
        D3 = DIM_EMBED * 3
        ks = jax.random.split(key, 9)
        norm_past_encoder = init_st_encoder(ks[0])
        abs_past_encoder = init_st_encoder(ks[1])
        norm_fut_encoder = init_st_encoder(ks[2])
        self.res_past_encoder = init_st_encoder(ks[3])
        # stacked (3, ...) params for the fused 3-encoder call
        # order: [norm_past, abs_past, norm_fut]
        self.enc3_params = {
            k: jnp.stack([norm_past_encoder[k], abs_past_encoder[k],
                          norm_fut_encoder[k]], axis=0)
            for k in norm_past_encoder}
        self.social_pooling_X = init_nmp(ks[4])
        self.dec_pair1 = init_mlp_pair(ks[5], ks[6], D3,
                                       self.future_len * 2, self.past_len * 2)
        self.dec_pair2 = init_mlp_pair(ks[7], ks[8], D3,
                                       self.future_len * 2, self.past_len * 2)

    def __call__(self, past, abs_past, seq_start_end, end_pose, future):
        n = past.shape[0]
        scene_mask = build_scene_mask(seq_start_end, n)
        t_max = max(self.past_len, self.future_len)

        # call 1: three first-stage st_encoders as one 3-wide parallel grid
        xcat_stack = jnp.stack([im2col_conv1d(past, t_max),
                                im2col_conv1d(abs_past, t_max),
                                im2col_conv1d(future, t_max)], axis=0)
        enc = encode3_apply(self.enc3_params, xcat_stack,
                            self.past_len, self.future_len)        # (3, n, 64)
        norm_past_state = enc[0]
        norm_fut_state = enc[2]

        # call 2: social pooling on abs_past_state (enc[1], read in-kernel)
        abs_past_state_social = nmp_apply(self.social_pooling_X, enc,
                                          scene_mask, end_pose)     # (n, 64)

        input_fut = jnp.concatenate(
            [norm_past_state, abs_past_state_social, norm_fut_state], axis=1)

        # call 3: decoder + decoder_x fused (shared input_fut)
        dec1 = decoder_pair_apply(self.dec_pair1, input_fut)        # (2, n, 128)
        prediction_y1 = dec1[0, :, :self.future_len * 2].reshape(
            -1, self.future_len, 2)
        reconstruction_x1 = dec1[1, :, :self.past_len * 2].reshape(
            -1, self.past_len, 2)

        # call 4: residual-past encoder
        diff_past = past - reconstruction_x1
        diff_embed = res_encoder_apply(
            self.res_past_encoder, im2col_conv1d(diff_past, self.past_len),
            self.past_len)                                          # (n, 64)

        state_conc_diff = jnp.concatenate(
            [diff_embed, abs_past_state_social, norm_fut_state], axis=1)

        # call 5: decoder_2 + decoder_2_x fused
        dec2 = decoder_pair_apply(self.dec_pair2, state_conc_diff)
        prediction_y2 = dec2[0, :, :self.future_len * 2].reshape(
            -1, self.future_len, 2)
        reconstruction_x2 = dec2[1, :, :self.past_len * 2].reshape(
            -1, self.past_len, 2)

        prediction = prediction_y1 + prediction_y2
        reconstruction = reconstruction_x1 + reconstruction_x2
        return prediction, reconstruction


if __name__ == "__main__":
    key = jax.random.PRNGKey(0)
    kmodel, kdata = jax.random.split(key)

    settings = {'use_cuda': False, 'past_len': 8, 'future_len': 12}
    N = 8  # pedestrians (2 scenes of 4)

    model = ModelEncDecSocial(settings, kmodel)

    kp, ka, ke, kf = jax.random.split(kdata, 4)
    past = jax.random.normal(kp, (N, settings['past_len'], 2), jnp.float32)
    abs_past = jax.random.normal(ka, (N, settings['past_len'], 2), jnp.float32)
    future = jax.random.normal(kf, (N, settings['future_len'], 2), jnp.float32)
    end_pose = jax.random.normal(ke, (N, 2), jnp.float32)
    seq_start_end = np.array([[0, 4], [4, 8]], dtype=np.int32)

    prediction, reconstruction = model(past, abs_past, seq_start_end,
                                       end_pose, future)
    jax.block_until_ready((prediction, reconstruction))

    assert prediction.shape == (N, settings['future_len'], 2)
    assert reconstruction.shape == (N, settings['past_len'], 2)
    assert bool(jnp.all(jnp.isfinite(prediction)))
    assert bool(jnp.all(jnp.isfinite(reconstruction)))
    print("KERNEL_OK")
</pallas_src>

<mosaic_0001>
module attributes {stable_mosaic.version = 11 : i64} {
  func.func @kernel(%arg0: i32, %arg1: memref<1x8x12x6xf32, #tpu.memory_space<vmem>>, %arg2: memref<1x6x16xf32, #tpu.memory_space<vmem>>, %arg3: memref<1x1x16xf32, #tpu.memory_space<vmem>>, %arg4: memref<1x16x64xf32, #tpu.memory_space<vmem>>, %arg5: memref<1x16x64xf32, #tpu.memory_space<vmem>>, %arg6: memref<1x16x64xf32, #tpu.memory_space<vmem>>, %arg7: memref<1x64x64xf32, #tpu.memory_space<vmem>>, %arg8: memref<1x64x64xf32, #tpu.memory_space<vmem>>, %arg9: memref<1x64x64xf32, #tpu.memory_space<vmem>>, %arg10: memref<1x1x64xf32, #tpu.memory_space<vmem>>, %arg11: memref<1x1x64xf32, #tpu.memory_space<vmem>>, %arg12: memref<1x1x64xf32, #tpu.memory_space<vmem>>, %arg13: memref<1x1x64xf32, #tpu.memory_space<vmem>>, %arg14: memref<1x8x64xf32, #tpu.memory_space<vmem>>) attributes {dimension_semantics = [#tpu.dimension_semantics<parallel>], iteration_bounds = array<i64: 3>, scalar_prefetch = 0 : i64, scratch_operands = 0 : i64, tpu.core_type = #tpu.core_type<tc>, window_params = [{transform_indices = @transform_0, window_bounds = array<i64: 1, 8, 12, 6>}, {transform_indices = @transform_1, window_bounds = array<i64: 1, 6, 16>}, {transform_indices = @transform_2, window_bounds = array<i64: 1, 1, 16>}, {transform_indices = @transform_3, window_bounds = array<i64: 1, 16, 64>}, {transform_indices = @transform_4, window_bounds = array<i64: 1, 16, 64>}, {transform_indices = @transform_5, window_bounds = array<i64: 1, 16, 64>}, {transform_indices = @transform_6, window_bounds = array<i64: 1, 64, 64>}, {transform_indices = @transform_7, window_bounds = array<i64: 1, 64, 64>}, {transform_indices = @transform_8, window_bounds = array<i64: 1, 64, 64>}, {transform_indices = @transform_9, window_bounds = array<i64: 1, 1, 64>}, {transform_indices = @transform_10, window_bounds = array<i64: 1, 1, 64>}, {transform_indices = @transform_11, window_bounds = array<i64: 1, 1, 64>}, {transform_indices = @transform_12, window_bounds = array<i64: 1, 1, 64>}, {transform_indices = @transform_13, window_bounds = array<i64: 1, 8, 64>}]} {
    %c2_i32 = arith.constant 2 : i32
    %0 = arith.cmpi eq, %arg0, %c2_i32 : i32
    %c12_i32 = arith.constant 12 : i32
    %c8_i32 = arith.constant 8 : i32
    %1 = arith.select %0, %c12_i32, %c8_i32 : i32
    %c0 = arith.constant 0 : index
    %c0_0 = arith.constant 0 : index
    %c0_1 = arith.constant 0 : index
    %c0_2 = arith.constant 0 : index
    %2 = vector.load %arg1[%c0, %c0_0, %c0_1, %c0_2] : memref<1x8x12x6xf32, #tpu.memory_space<vmem>>, vector<1x8x12x6xf32>
    %3 = vector.shape_cast %2 : vector<1x8x12x6xf32> to vector<8x12x6xf32>
    %4 = vector.shape_cast %3 : vector<8x12x6xf32> to vector<96x6xf32>
    %c0_3 = arith.constant 0 : index
    %c0_4 = arith.constant 0 : index
    %c0_5 = arith.constant 0 : index
    %5 = vector.load %arg2[%c0_3, %c0_4, %c0_5] : memref<1x6x16xf32, #tpu.memory_space<vmem>>, vector<1x6x16xf32>
    %6 = vector.shape_cast %5 : vector<1x6x16xf32> to vector<6x16xf32>
    %c0_6 = arith.constant 0 : index
    %c0_7 = arith.constant 0 : index
    %c0_8 = arith.constant 0 : index
    %7 = vector.load %arg3[%c0_6, %c0_7, %c0_8] : memref<1x1x16xf32, #tpu.memory_space<vmem>>, vector<1x1x16xf32>
    %8 = vector.shape_cast %7 : vector<1x1x16xf32> to vector<1x16xf32>
    %c0_9 = arith.constant 0 : index
    %c0_10 = arith.constant 0 : index
    %c0_11 = arith.constant 0 : index
    %9 = vector.load %arg4[%c0_9, %c0_10, %c0_11] : memref<1x16x64xf32, #tpu.memory_space<vmem>>, vector<1x16x64xf32>
    %10 = vector.shape_cast %9 : vector<1x16x64xf32> to vector<16x64xf32>
    %c0_12 = arith.constant 0 : index
    %c0_13 = arith.constant 0 : index
    %c0_14 = arith.constant 0 : index
    %11 = vector.load %arg5[%c0_12, %c0_13, %c0_14] : memref<1x16x64xf32, #tpu.memory_space<vmem>>, vector<1x16x64xf32>
    %12 = vector.shape_cast %11 : vector<1x16x64xf32> to vector<16x64xf32>
    %c0_15 = arith.constant 0 : index
    %c0_16 = arith.constant 0 : index
    %c0_17 = arith.constant 0 : index
    %13 = vector.load %arg6[%c0_15, %c0_16, %c0_17] : memref<1x16x64xf32, #tpu.memory_space<vmem>>, vector<1x16x64xf32>
    %14 = vector.shape_cast %13 : vector<1x16x64xf32> to vector<16x64xf32>
    %c0_18 = arith.constant 0 : index
    %c0_19 = arith.constant 0 : index
    %c0_20 = arith.constant 0 : index
    %15 = vector.load %arg7[%c0_18, %c0_19, %c0_20] : memref<1x64x64xf32, #tpu.memory_space<vmem>>, vector<1x64x64xf32>
    %16 = vector.shape_cast %15 : vector<1x64x64xf32> to vector<64x64xf32>
    %c0_21 = arith.constant 0 : index
    %c0_22 = arith.constant 0 : index
    %c0_23 = arith.constant 0 : index
    %17 = vector.load %arg8[%c0_21, %c0_22, %c0_23] : memref<1x64x64xf32, #tpu.memory_space<vmem>>, vector<1x64x64xf32>
    %18 = vector.shape_cast %17 : vector<1x64x64xf32> to vector<64x64xf32>
    %c0_24 = arith.constant 0 : index
    %c0_25 = arith.constant 0 : index
    %c0_26 = arith.constant 0 : index
    %19 = vector.load %arg9[%c0_24, %c0_25, %c0_26] : memref<1x64x64xf32, #tpu.memory_space<vmem>>, vector<1x64x64xf32>
    %20 = vector.shape_cast %19 : vector<1x64x64xf32> to vector<64x64xf32>
    %c0_27 = arith.constant 0 : index
    %c0_28 = arith.constant 0 : index
    %c0_29 = arith.constant 0 : index
    %21 = vector.load %arg10[%c0_27, %c0_28, %c0_29] : memref<1x1x64xf32, #tpu.memory_space<vmem>>, vector<1x1x64xf32>
    %22 = vector.shape_cast %21 : vector<1x1x64xf32> to vector<1x64xf32>
    %c0_30 = arith.constant 0 : index
    %c0_31 = arith.constant 0 : index
    %c0_32 = arith.constant 0 : index
    %23 = vector.load %arg11[%c0_30, %c0_31, %c0_32] : memref<1x1x64xf32, #tpu.memory_space<vmem>>, vector<1x1x64xf32>
    %24 = vector.shape_cast %23 : vector<1x1x64xf32> to vector<1x64xf32>
    %c0_33 = arith.constant 0 : index
    %c0_34 = arith.constant 0 : index
    %c0_35 = arith.constant 0 : index
    %25 = vector.load %arg12[%c0_33, %c0_34, %c0_35] : memref<1x1x64xf32, #tpu.memory_space<vmem>>, vector<1x1x64xf32>
    %26 = vector.shape_cast %25 : vector<1x1x64xf32> to vector<1x64xf32>
    %c0_36 = arith.constant 0 : index
    %c0_37 = arith.constant 0 : index
    %c0_38 = arith.constant 0 : index
    %27 = vector.load %arg13[%c0_36, %c0_37, %c0_38] : memref<1x1x64xf32, #tpu.memory_space<vmem>>, vector<1x1x64xf32>
    %28 = vector.shape_cast %27 : vector<1x1x64xf32> to vector<1x64xf32>
    %cst = arith.constant dense<0.000000e+00> : vector<96x16xf32>
    %29 = tpu.matmul %4, %6, %cst {dimension_numbers = #tpu.dot_dimension_numbers<[1], [0], [0], [1], [0, 0, 1, 1], [], []>} : vector<96x6xf32>, vector<6x16xf32>, vector<96x16xf32> -> vector<96x16xf32>
    %30 = vector.broadcast %8 : vector<1x16xf32> to vector<96x16xf32>
    %31 = arith.addf %29, %30 : vector<96x16xf32>
    %cst_39 = arith.constant 0.000000e+00 : f32
    %32 = vector.broadcast %cst_39 : f32 to vector<96x16xf32>
    %33 = arith.maximumf %31, %32 : vector<96x16xf32>
    %cst_40 = arith.constant dense<0.000000e+00> : vector<96x64xf32>
    %34 = tpu.matmul %33, %10, %cst_40 {dimension_numbers = #tpu.dot_dimension_numbers<[1], [0], [0], [1], [0, 0, 1, 1], [], []>} : vector<96x16xf32>, vector<16x64xf32>, vector<96x64xf32> -> vector<96x64xf32>
    %35 = vector.broadcast %22 : vector<1x64xf32> to vector<96x64xf32>
    %36 = arith.addf %34, %35 : vector<96x64xf32>
    %37 = vector.shape_cast %36 : vector<96x64xf32> to vector<8x12x64xf32>
    %cst_41 = arith.constant dense<0.000000e+00> : vector<96x64xf32>
    %38 = tpu.matmul %33, %12, %cst_41 {dimension_numbers = #tpu.dot_dimension_numbers<[1], [0], [0], [1], [0, 0, 1, 1], [], []>} : vector<96x16xf32>, vector<16x64xf32>, vector<96x64xf32> -> vector<96x64xf32>
    %39 = vector.broadcast %24 : vector<1x64xf32> to vector<96x64xf32>
    %40 = arith.addf %38, %39 : vector<96x64xf32>
    %41 = vector.shape_cast %40 : vector<96x64xf32> to vector<8x12x64xf32>
    %cst_42 = arith.constant dense<0.000000e+00> : vector<96x64xf32>
    %42 = tpu.matmul %33, %14, %cst_42 {dimension_numbers = #tpu.dot_dimension_numbers<[1], [0], [0], [1], [0, 0, 1, 1], [], []>} : vector<96x16xf32>, vector<16x64xf32>, vector<96x64xf32> -> vector<96x64xf32>
    %43 = vector.broadcast %26 : vector<1x64xf32> to vector<96x64xf32>
    %44 = arith.addf %42, %43 : vector<96x64xf32>
    %45 = vector.shape_cast %44 : vector<96x64xf32> to vector<8x12x64xf32>
    %cst_43 = arith.constant 0.000000e+00 : f32
    %46 = vector.broadcast %cst_43 : f32 to vector<8x64xf32>
    %47 = vector.extract_strided_slice %37 {offsets = [0, 0, 0], sizes = [8, 1, 64], strides = [1, 1, 1]} : vector<8x12x64xf32> to vector<8x1x64xf32>
    %48 = vector.shape_cast %47 : vector<8x1x64xf32> to vector<8x64xf32>
    %cst_44 = arith.constant dense<0.000000e+00> : vector<8x64xf32>
    %49 = tpu.matmul %46, %16, %cst_44 {dimension_numbers = #tpu.dot_dimension_numbers<[1], [0], [0], [1], [0, 0, 1, 1], [], []>} : vector<8x64xf32>, vector<64x64xf32>, vector<8x64xf32> -> vector<8x64xf32>
    %50 = arith.addf %48, %49 : vector<8x64xf32>
    %51 = arith.negf %50 : vector<8x64xf32>
    %52 = math.exp %51 : vector<8x64xf32>
    %cst_45 = arith.constant 1.000000e+00 : f32
    %53 = vector.broadcast %cst_45 : f32 to vector<8x64xf32>
    %54 = arith.addf %53, %52 : vector<8x64xf32>
    %55 = arith.divf %53, %54 : vector<8x64xf32>
    %56 = vector.extract_strided_slice %41 {offsets = [0, 0, 0], sizes = [8, 1, 64], strides = [1, 1, 1]} : vector<8x12x64xf32> to vector<8x1x64xf32>
    %57 = vector.shape_cast %56 : vector<8x1x64xf32> to vector<8x64xf32>
    %cst_46 = arith.constant dense<0.000000e+00> : vector<8x64xf32>
    %58 = tpu.matmul %46, %18, %cst_46 {dimension_numbers = #tpu.dot_dimension_numbers<[1], [0], [0], [1], [0, 0, 1, 1], [], []>} : vector<8x64xf32>, vector<64x64xf32>, vector<8x64xf32> -> vector<8x64xf32>
    %59 = arith.addf %57, %58 : vector<8x64xf32>
    %60 = arith.negf %59 : vector<8x64xf32>
    %61 = math.exp %60 : vector<8x64xf32>
    %cst_47 = arith.constant 1.000000e+00 : f32
    %62 = vector.broadcast %cst_47 : f32 to vector<8x64xf32>
    %63 = arith.addf %62, %61 : vector<8x64xf32>
    %64 = arith.divf %62, %63 : vector<8x64xf32>
    %65 = vector.extract_strided_slice %45 {offsets = [0, 0, 0], sizes = [8, 1, 64], strides = [1, 1, 1]} : vector<8x12x64xf32> to vector<8x1x64xf32>
    %66 = vector.shape_cast %65 : vector<8x1x64xf32> to vector<8x64xf32>
    %cst_48 = arith.constant dense<0.000000e+00> : vector<8x64xf32>
    %67 = tpu.matmul %46, %20, %cst_48 {dimension_numbers = #tpu.dot_dimension_numbers<[1], [0], [0], [1], [0, 0, 1, 1], [], []>} : vector<8x64xf32>, vector<64x64xf32>, vector<8x64xf32> -> vector<8x64xf32>
    %68 = vector.broadcast %28 : vector<1x64xf32> to vector<8x64xf32>
    %69 = arith.addf %67, %68 : vector<8x64xf32>
    %70 = arith.mulf %55, %69 : vector<8x64xf32>
    %71 = arith.addf %66, %70 : vector<8x64xf32>
    %72 = math.tanh %71 : vector<8x64xf32>
    %cst_49 = arith.constant 1.000000e+00 : f32
    %73 = vector.broadcast %cst_49 : f32 to vector<8x64xf32>
    %74 = arith.subf %73, %64 : vector<8x64xf32>
    %75 = arith.mulf %74, %72 : vector<8x64xf32>
    %76 = arith.mulf %64, %46 : vector<8x64xf32>
    %77 = arith.addf %75, %76 : vector<8x64xf32>
    %c0_i32 = arith.constant 0 : i32
    %78 = arith.cmpi sgt, %1, %c0_i32 : i32
    %79 = arith.extui %78 : i1 to i32
    %80 = arith.sitofp %79 : i32 to f32
    %81 = vector.broadcast %80 : f32 to vector<8x64xf32>
    %82 = arith.mulf %81, %77 : vector<8x64xf32>
    %cst_50 = arith.constant 1.000000e+00 : f32
    %83 = arith.subf %cst_50, %80 : f32
    %84 = vector.broadcast %83 : f32 to vector<8x64xf32>
    %85 = arith.mulf %84, %46 : vector<8x64xf32>
    %86 = arith.addf %82, %85 : vector<8x64xf32>
    %87 = vector.extract_strided_slice %37 {offsets = [0, 1, 0], sizes = [8, 1, 64], strides = [1, 1, 1]} : vector<8x12x64xf32> to vector<8x1x64xf32>
    %88 = vector.shape_cast %87 : vector<8x1x64xf32> to vector<8x64xf32>
    %cst_51 = arith.constant dense<0.000000e+00> : vector<8x64xf32>
    %89 = tpu.matmul %86, %16, %cst_51 {dimension_numbers = #tpu.dot_dimension_numbers<[1], [0], [0], [1], [0, 0, 1, 1], [], []>} : vector<8x64xf32>, vector<64x64xf32>, vector<8x64xf32> -> vector<8x64xf32>
    %90 = arith.addf %88, %89 : vector<8x64xf32>
    %91 = arith.negf %90 : vector<8x64xf32>
    %92 = math.exp %91 : vector<8x64xf32>
    %cst_52 = arith.constant 1.000000e+00 : f32
    %93 = vector.broadcast %cst_52 : f32 to vector<8x64xf32>
    %94 = arith.addf %93, %92 : vector<8x64xf32>
    %95 = arith.divf %93, %94 : vector<8x64xf32>
    %96 = vector.extract_strided_slice %41 {offsets = [0, 1, 0], sizes = [8, 1, 64], strides = [1, 1, 1]} : vector<8x12x64xf32> to vector<8x1x64xf32>
    %97 = vector.shape_cast %96 : vector<8x1x64xf32> to vector<8x64xf32>
    %cst_53 = arith.constant dense<0.000000e+00> : vector<8x64xf32>
    %98 = tpu.matmul %86, %18, %cst_53 {dimension_numbers = #tpu.dot_dimension_numbers<[1], [0], [0], [1], [0, 0, 1, 1], [], []>} : vector<8x64xf32>, vector<64x64xf32>, vector<8x64xf32> -> vector<8x64xf32>
    %99 = arith.addf %97, %98 : vector<8x64xf32>
    %100 = arith.negf %99 : vector<8x64xf32>
    %101 = math.exp %100 : vector<8x64xf32>
    %cst_54 = arith.constant 1.000000e+00 : f32
    %102 = vector.broadcast %cst_54 : f32 to vector<8x64xf32>
    %103 = arith.addf %102, %101 : vector<8x64xf32>
    %104 = arith.divf %102, %103 : vector<8x64xf32>
    %105 = vector.extract_strided_slice %45 {offsets = [0, 1, 0], sizes = [8, 1, 64], strides = [1, 1, 1]} : vector<8x12x64xf32> to vector<8x1x64xf32>
    %106 = vector.shape_cast %105 : vector<8x1x64xf32> to vector<8x64xf32>
    %cst_55 = arith.constant dense<0.000000e+00> : vector<8x64xf32>
    %107 = tpu.matmul %86, %20, %cst_55 {dimension_numbers = #tpu.dot_dimension_numbers<[1], [0], [0], [1], [0, 0, 1, 1], [], []>} : vector<8x64xf32>, vector<64x64xf32>, vector<8x64xf32> -> vector<8x64xf32>
    %108 = vector.broadcast %28 : vector<1x64xf32> to vector<8x64xf32>
    %109 = arith.addf %107, %108 : vector<8x64xf32>
    %110 = arith.mulf %95, %109 : vector<8x64xf32>
    %111 = arith.addf %106, %110 : vector<8x64xf32>
    %112 = math.tanh %111 : vector<8x64xf32>
    %cst_56 = arith.constant 1.000000e+00 : f32
    %113 = vector.broadcast %cst_56 : f32 to vector<8x64xf32>
    %114 = arith.subf %113, %104 : vector<8x64xf32>
    %115 = arith.mulf %114, %112 : vector<8x64xf32>
    %116 = arith.mulf %104, %86 : vector<8x64xf32>
    %117 = arith.addf %115, %116 : vector<8x64xf32>
    %c1_i32 = arith.constant 1 : i32
    %118 = arith.cmpi sgt, %1, %c1_i32 : i32
    %119 = arith.extui %118 : i1 to i32
    %120 = arith.sitofp %119 : i32 to f32
    %121 = vector.broadcast %120 : f32 to vector<8x64xf32>
    %122 = arith.mulf %121, %117 : vector<8x64xf32>
    %cst_57 = arith.constant 1.000000e+00 : f32
    %123 = arith.subf %cst_57, %120 : f32
    %124 = vector.broadcast %123 : f32 to vector<8x64xf32>
    %125 = arith.mulf %124, %86 : vector<8x64xf32>
    %126 = arith.addf %122, %125 : vector<8x64xf32>
    %127 = vector.extract_strided_slice %37 {offsets = [0, 2, 0], sizes = [8, 1, 64], strides = [1, 1, 1]} : vector<8x12x64xf32> to vector<8x1x64xf32>
    %128 = vector.shape_cast %127 : vector<8x1x64xf32> to vector<8x64xf32>
    %cst_58 = arith.constant dense<0.000000e+00> : vector<8x64xf32>
    %129 = tpu.matmul %126, %16, %cst_58 {dimension_numbers = #tpu.dot_dimension_numbers<[1], [0], [0], [1], [0, 0, 1, 1], [], []>} : vector<8x64xf32>, vector<64x64xf32>, vector<8x64xf32> -> vector<8x64xf32>
    %130 = arith.addf %128, %129 : vector<8x64xf32>
    %131 = arith.negf %130 : vector<8x64xf32>
    %132 = math.exp %131 : vector<8x64xf32>
    %cst_59 = arith.constant 1.000000e+00 : f32
    %133 = vector.broadcast %cst_59 : f32 to vector<8x64xf32>
    %134 = arith.addf %133, %132 : vector<8x64xf32>
    %135 = arith.divf %133, %134 : vector<8x64xf32>
    %136 = vector.extract_strided_slice %41 {offsets = [0, 2, 0], sizes = [8, 1, 64], strides = [1, 1, 1]} : vector<8x12x64xf32> to vector<8x1x64xf32>
    %137 = vector.shape_cast %136 : vector<8x1x64xf32> to vector<8x64xf32>
    %cst_60 = arith.constant dense<0.000000e+00> : vector<8x64xf32>
    %138 = tpu.matmul %126, %18, %cst_60 {dimension_numbers = #tpu.dot_dimension_numbers<[1], [0], [0], [1], [0, 0, 1, 1], [], []>} : vector<8x64xf32>, vector<64x64xf32>, vector<8x64xf32> -> vector<8x64xf32>
    %139 = arith.addf %137, %138 : vector<8x64xf32>
    %140 = arith.negf %139 : vector<8x64xf32>
    %141 = math.exp %140 : vector<8x64xf32>
    %cst_61 = arith.constant 1.000000e+00 : f32
    %142 = vector.broadcast %cst_61 : f32 to vector<8x64xf32>
    %143 = arith.addf %142, %141 : vector<8x64xf32>
    %144 = arith.divf %142, %143 : vector<8x64xf32>
    %145 = vector.extract_strided_slice %45 {offsets = [0, 2, 0], sizes = [8, 1, 64], strides = [1, 1, 1]} : vector<8x12x64xf32> to vector<8x1x64xf32>
    %146 = vector.shape_cast %145 : vector<8x1x64xf32> to vector<8x64xf32>
    %cst_62 = arith.constant dense<0.000000e+00> : vector<8x64xf32>
    %147 = tpu.matmul %126, %20, %cst_62 {dimension_numbers = #tpu.dot_dimension_numbers<[1], [0], [0], [1], [0, 0, 1, 1], [], []>} : vector<8x64xf32>, vector<64x64xf32>, vector<8x64xf32> -> vector<8x64xf32>
    %148 = vector.broadcast %28 : vector<1x64xf32> to vector<8x64xf32>
    %149 = arith.addf %147, %148 : vector<8x64xf32>
    %150 = arith.mulf %135, %149 : vector<8x64xf32>
    %151 = arith.addf %146, %150 : vector<8x64xf32>
    %152 = math.tanh %151 : vector<8x64xf32>
    %cst_63 = arith.constant 1.000000e+00 : f32
    %153 = vector.broadcast %cst_63 : f32 to vector<8x64xf32>
    %154 = arith.subf %153, %144 : vector<8x64xf32>
    %155 = arith.mulf %154, %152 : vector<8x64xf32>
    %156 = arith.mulf %144, %126 : vector<8x64xf32>
    %157 = arith.addf %155, %156 : vector<8x64xf32>
    %c2_i32_64 = arith.constant 2 : i32
    %158 = arith.cmpi sgt, %1, %c2_i32_64 : i32
    %159 = arith.extui %158 : i1 to i32
    %160 = arith.sitofp %159 : i32 to f32
    %161 = vector.broadcast %160 : f32 to vector<8x64xf32>
    %162 = arith.mulf %161, %157 : vector<8x64xf32>
    %cst_65 = arith.constant 1.000000e+00 : f32
    %163 = arith.subf %cst_65, %160 : f32
    %164 = vector.broadcast %163 : f32 to vector<8x64xf32>
    %165 = arith.mulf %164, %126 : vector<8x64xf32>
    %166 = arith.addf %162, %165 : vector<8x64xf32>
    %167 = vector.extract_strided_slice %37 {offsets = [0, 3, 0], sizes = [8, 1, 64], strides = [1, 1, 1]} : vector<8x12x64xf32> to vector<8x1x64xf32>
    %168 = vector.shape_cast %167 : vector<8x1x64xf32> to vector<8x64xf32>
    %cst_66 = arith.constant dense<0.000000e+00> : vector<8x64xf32>
    %169 = tpu.matmul %166, %16, %cst_66 {dimension_numbers = #tpu.dot_dimension_numbers<[1], [0], [0], [1], [0, 0, 1, 1], [], []>} : vector<8x64xf32>, vector<64x64xf32>, vector<8x64xf32> -> vector<8x64xf32>
    %170 = arith.addf %168, %169 : vector<8x64xf32>
    %171 = arith.negf %170 : vector<8x64xf32>
    %172 = math.exp %171 : vector<8x64xf32>
    %cst_67 = arith.constant 1.000000e+00 : f32
    %173 = vector.broadcast %cst_67 : f32 to vector<8x64xf32>
    %174 = arith.addf %173, %172 : vector<8x64xf32>
    %175 = arith.divf %173, %174 : vector<8x64xf32>
    %176 = vector.extract_strided_slice %41 {offsets = [0, 3, 0], sizes = [8, 1, 64], strides = [1, 1, 1]} : vector<8x12x64xf32> to vector<8x1x64xf32>
    %177 = vector.shape_cast %176 : vector<8x1x64xf32> to vector<8x64xf32>
    %cst_68 = arith.constant dense<0.000000e+00> : vector<8x64xf32>
    %178 = tpu.matmul %166, %18, %cst_68 {dimension_numbers = #tpu.dot_dimension_numbers<[1], [0], [0], [1], [0, 0, 1, 1], [], []>} : vector<8x64xf32>, vector<64x64xf32>, vector<8x64xf32> -> vector<8x64xf32>
    %179 = arith.addf %177, %178 : vector<8x64xf32>
    %180 = arith.negf %179 : vector<8x64xf32>
    %181 = math.exp %180 : vector<8x64xf32>
    %cst_69 = arith.constant 1.000000e+00 : f32
    %182 = vector.broadcast %cst_69 : f32 to vector<8x64xf32>
    %183 = arith.addf %182, %181 : vector<8x64xf32>
    %184 = arith.divf %182, %183 : vector<8x64xf32>
    %185 = vector.extract_strided_slice %45 {offsets = [0, 3, 0], sizes = [8, 1, 64], strides = [1, 1, 1]} : vector<8x12x64xf32> to vector<8x1x64xf32>
    %186 = vector.shape_cast %185 : vector<8x1x64xf32> to vector<8x64xf32>
    %cst_70 = arith.constant dense<0.000000e+00> : vector<8x64xf32>
    %187 = tpu.matmul %166, %20, %cst_70 {dimension_numbers = #tpu.dot_dimension_numbers<[1], [0], [0], [1], [0, 0, 1, 1], [], []>} : vector<8x64xf32>, vector<64x64xf32>, vector<8x64xf32> -> vector<8x64xf32>
    %188 = vector.broadcast %28 : vector<1x64xf32> to vector<8x64xf32>
    %189 = arith.addf %187, %188 : vector<8x64xf32>
    %190 = arith.mulf %175, %189 : vector<8x64xf32>
    %191 = arith.addf %186, %190 : vector<8x64xf32>
    %192 = math.tanh %191 : vector<8x64xf32>
    %cst_71 = arith.constant 1.000000e+00 : f32
    %193 = vector.broadcast %cst_71 : f32 to vector<8x64xf32>
    %194 = arith.subf %193, %184 : vector<8x64xf32>
    %195 = arith.mulf %194, %192 : vector<8x64xf32>
    %196 = arith.mulf %184, %166 : vector<8x64xf32>
    %197 = arith.addf %195, %196 : vector<8x64xf32>
    %c3_i32 = arith.constant 3 : i32
    %198 = arith.cmpi sgt, %1, %c3_i32 : i32
    %199 = arith.extui %198 : i1 to i32
    %200 = arith.sitofp %199 : i32 to f32
    %201 = vector.broadcast %200 : f32 to vector<8x64xf32>
    %202 = arith.mulf %201, %197 : vector<8x64xf32>
    %cst_72 = arith.constant 1.000000e+00 : f32
    %203 = arith.subf %cst_72, %200 : f32
    %204 = vector.broadcast %203 : f32 to vector<8x64xf32>
    %205 = arith.mulf %204, %166 : vector<8x64xf32>
    %206 = arith.addf %202, %205 : vector<8x64xf32>
    %207 = vector.extract_strided_slice %37 {offsets = [0, 4, 0], sizes = [8, 1, 64], strides = [1, 1, 1]} : vector<8x12x64xf32> to vector<8x1x64xf32>
    %208 = vector.shape_cast %207 : vector<8x1x64xf32> to vector<8x64xf32>
    %cst_73 = arith.constant dense<0.000000e+00> : vector<8x64xf32>
    %209 = tpu.matmul %206, %16, %cst_73 {dimension_numbers = #tpu.dot_dimension_numbers<[1], [0], [0], [1], [0, 0, 1, 1], [], []>} : vector<8x64xf32>, vector<64x64xf32>, vector<8x64xf32> -> vector<8x64xf32>
    %210 = arith.addf %208, %209 : vector<8x64xf32>
    %211 = arith.negf %210 : vector<8x64xf32>
    %212 = math.exp %211 : vector<8x64xf32>
    %cst_74 = arith.constant 1.000000e+00 : f32
    %213 = vector.broadcast %cst_74 : f32 to vector<8x64xf32>
    %214 = arith.addf %213, %212 : vector<8x64xf32>
    %215 = arith.divf %213, %214 : vector<8x64xf32>
    %216 = vector.extract_strided_slice %41 {offsets = [0, 4, 0], sizes = [8, 1, 64], strides = [1, 1, 1]} : vector<8x12x64xf32> to vector<8x1x64xf32>
    %217 = vector.shape_cast %216 : vector<8x1x64xf32> to vector<8x64xf32>
    %cst_75 = arith.constant dense<0.000000e+00> : vector<8x64xf32>
    %218 = tpu.matmul %206, %18, %cst_75 {dimension_numbers = #tpu.dot_dimension_numbers<[1], [0], [0], [1], [0, 0, 1, 1], [], []>} : vector<8x64xf32>, vector<64x64xf32>, vector<8x64xf32> -> vector<8x64xf32>
    %219 = arith.addf %217, %218 : vector<8x64xf32>
    %220 = arith.negf %219 : vector<8x64xf32>
    %221 = math.exp %220 : vector<8x64xf32>
    %cst_76 = arith.constant 1.000000e+00 : f32
    %222 = vector.broadcast %cst_76 : f32 to vector<8x64xf32>
    %223 = arith.addf %222, %221 : vector<8x64xf32>
    %224 = arith.divf %222, %223 : vector<8x64xf32>
    %225 = vector.extract_strided_slice %45 {offsets = [0, 4, 0], sizes = [8, 1, 64], strides = [1, 1, 1]} : vector<8x12x64xf32> to vector<8x1x64xf32>
    %226 = vector.shape_cast %225 : vector<8x1x64xf32> to vector<8x64xf32>
    %cst_77 = arith.constant dense<0.000000e+00> : vector<8x64xf32>
    %227 = tpu.matmul %206, %20, %cst_77 {dimension_numbers = #tpu.dot_dimension_numbers<[1], [0], [0], [1], [0, 0, 1, 1], [], []>} : vector<8x64xf32>, vector<64x64xf32>, vector<8x64xf32> -> vector<8x64xf32>
    %228 = vector.broadcast %28 : vector<1x64xf32> to vector<8x64xf32>
    %229 = arith.addf %227, %228 : vector<8x64xf32>
    %230 = arith.mulf %215, %229 : vector<8x64xf32>
    %231 = arith.addf %226, %230 : vector<8x64xf32>
    %232 = math.tanh %231 : vector<8x64xf32>
    %cst_78 = arith.constant 1.000000e+00 : f32
    %233 = vector.broadcast %cst_78 : f32 to vector<8x64xf32>
    %234 = arith.subf %233, %224 : vector<8x64xf32>
    %235 = arith.mulf %234, %232 : vector<8x64xf32>
    %236 = arith.mulf %224, %206 : vector<8x64xf32>
    %237 = arith.addf %235, %236 : vector<8x64xf32>
    %c4_i32 = arith.constant 4 : i32
    %238 = arith.cmpi sgt, %1, %c4_i32 : i32
    %239 = arith.extui %238 : i1 to i32
    %240 = arith.sitofp %239 : i32 to f32
    %241 = vector.broadcast %240 : f32 to vector<8x64xf32>
    %242 = arith.mulf %241, %237 : vector<8x64xf32>
    %cst_79 = arith.constant 1.000000e+00 : f32
    %243 = arith.subf %cst_79, %240 : f32
    %244 = vector.broadcast %243 : f32 to vector<8x64xf32>
    %245 = arith.mulf %244, %206 : vector<8x64xf32>
    %246 = arith.addf %242, %245 : vector<8x64xf32>
    %247 = vector.extract_strided_slice %37 {offsets = [0, 5, 0], sizes = [8, 1, 64], strides = [1, 1, 1]} : vector<8x12x64xf32> to vector<8x1x64xf32>
    %248 = vector.shape_cast %247 : vector<8x1x64xf32> to vector<8x64xf32>
    %cst_80 = arith.constant dense<0.000000e+00> : vector<8x64xf32>
    %249 = tpu.matmul %246, %16, %cst_80 {dimension_numbers = #tpu.dot_dimension_numbers<[1], [0], [0], [1], [0, 0, 1, 1], [], []>} : vector<8x64xf32>, vector<64x64xf32>, vector<8x64xf32> -> vector<8x64xf32>
    %250 = arith.addf %248, %249 : vector<8x64xf32>
    %251 = arith.negf %250 : vector<8x64xf32>
    %252 = math.exp %251 : vector<8x64xf32>
    %cst_81 = arith.constant 1.000000e+00 : f32
    %253 = vector.broadcast %cst_81 : f32 to vector<8x64xf32>
    %254 = arith.addf %253, %252 : vector<8x64xf32>
    %255 = arith.divf %253, %254 : vector<8x64xf32>
    %256 = vector.extract_strided_slice %41 {offsets = [0, 5, 0], sizes = [8, 1, 64], strides = [1, 1, 1]} : vector<8x12x64xf32> to vector<8x1x64xf32>
    %257 = vector.shape_cast %256 : vector<8x1x64xf32> to vector<8x64xf32>
    %cst_82 = arith.constant dense<0.000000e+00> : vector<8x64xf32>
    %258 = tpu.matmul %246, %18, %cst_82 {dimension_numbers = #tpu.dot_dimension_numbers<[1], [0], [0], [1], [0, 0, 1, 1], [], []>} : vector<8x64xf32>, vector<64x64xf32>, vector<8x64xf32> -> vector<8x64xf32>
    %259 = arith.addf %257, %258 : vector<8x64xf32>
    %260 = arith.negf %259 : vector<8x64xf32>
    %261 = math.exp %260 : vector<8x64xf32>
    %cst_83 = arith.constant 1.000000e+00 : f32
    %262 = vector.broadcast %cst_83 : f32 to vector<8x64xf32>
    %263 = arith.addf %262, %261 : vector<8x64xf32>
    %264 = arith.divf %262, %263 : vector<8x64xf32>
    %265 = vector.extract_strided_slice %45 {offsets = [0, 5, 0], sizes = [8, 1, 64], strides = [1, 1, 1]} : vector<8x12x64xf32> to vector<8x1x64xf32>
    %266 = vector.shape_cast %265 : vector<8x1x64xf32> to vector<8x64xf32>
    %cst_84 = arith.constant dense<0.000000e+00> : vector<8x64xf32>
    %267 = tpu.matmul %246, %20, %cst_84 {dimension_numbers = #tpu.dot_dimension_numbers<[1], [0], [0], [1], [0, 0, 1, 1], [], []>} : vector<8x64xf32>, vector<64x64xf32>, vector<8x64xf32> -> vector<8x64xf32>
    %268 = vector.broadcast %28 : vector<1x64xf32> to vector<8x64xf32>
    %269 = arith.addf %267, %268 : vector<8x64xf32>
    %270 = arith.mulf %255, %269 : vector<8x64xf32>
    %271 = arith.addf %266, %270 : vector<8x64xf32>
    %272 = math.tanh %271 : vector<8x64xf32>
    %cst_85 = arith.constant 1.000000e+00 : f32
    %273 = vector.broadcast %cst_85 : f32 to vector<8x64xf32>
    %274 = arith.subf %273, %264 : vector<8x64xf32>
    %275 = arith.mulf %274, %272 : vector<8x64xf32>
    %276 = arith.mulf %264, %246 : vector<8x64xf32>
    %277 = arith.addf %275, %276 : vector<8x64xf32>
    %c5_i32 = arith.constant 5 : i32
    %278 = arith.cmpi sgt, %1, %c5_i32 : i32
    %279 = arith.extui %278 : i1 to i32
    %280 = arith.sitofp %279 : i32 to f32
    %281 = vector.broadcast %280 : f32 to vector<8x64xf32>
    %282 = arith.mulf %281, %277 : vector<8x64xf32>
    %cst_86 = arith.constant 1.000000e+00 : f32
    %283 = arith.subf %cst_86, %280 : f32
    %284 = vector.broadcast %283 : f32 to vector<8x64xf32>
    %285 = arith.mulf %284, %246 : vector<8x64xf32>
    %286 = arith.addf %282, %285 : vector<8x64xf32>
    %287 = vector.extract_strided_slice %37 {offsets = [0, 6, 0], sizes = [8, 1, 64], strides = [1, 1, 1]} : vector<8x12x64xf32> to vector<8x1x64xf32>
    %288 = vector.shape_cast %287 : vector<8x1x64xf32> to vector<8x64xf32>
    %cst_87 = arith.constant dense<0.000000e+00> : vector<8x64xf32>
    %289 = tpu.matmul %286, %16, %cst_87 {dimension_numbers = #tpu.dot_dimension_numbers<[1], [0], [0], [1], [0, 0, 1, 1], [], []>} : vector<8x64xf32>, vector<64x64xf32>, vector<8x64xf32> -> vector<8x64xf32>
    %290 = arith.addf %288, %289 : vector<8x64xf32>
    %291 = arith.negf %290 : vector<8x64xf32>
    %292 = math.exp %291 : vector<8x64xf32>
    %cst_88 = arith.constant 1.000000e+00 : f32
    %293 = vector.broadcast %cst_88 : f32 to vector<8x64xf32>
    %294 = arith.addf %293, %292 : vector<8x64xf32>
    %295 = arith.divf %293, %294 : vector<8x64xf32>
    %296 = vector.extract_strided_slice %41 {offsets = [0, 6, 0], sizes = [8, 1, 64], strides = [1, 1, 1]} : vector<8x12x64xf32> to vector<8x1x64xf32>
    %297 = vector.shape_cast %296 : vector<8x1x64xf32> to vector<8x64xf32>
    %cst_89 = arith.constant dense<0.000000e+00> : vector<8x64xf32>
    %298 = tpu.matmul %286, %18, %cst_89 {dimension_numbers = #tpu.dot_dimension_numbers<[1], [0], [0], [1], [0, 0, 1, 1], [], []>} : vector<8x64xf32>, vector<64x64xf32>, vector<8x64xf32> -> vector<8x64xf32>
    %299 = arith.addf %297, %298 : vector<8x64xf32>
    %300 = arith.negf %299 : vector<8x64xf32>
    %301 = math.exp %300 : vector<8x64xf32>
    %cst_90 = arith.constant 1.000000e+00 : f32
    %302 = vector.broadcast %cst_90 : f32 to vector<8x64xf32>
    %303 = arith.addf %302, %301 : vector<8x64xf32>
    %304 = arith.divf %302, %303 : vector<8x64xf32>
    %305 = vector.extract_strided_slice %45 {offsets = [0, 6, 0], sizes = [8, 1, 64], strides = [1, 1, 1]} : vector<8x12x64xf32> to vector<8x1x64xf32>
    %306 = vector.shape_cast %305 : vector<8x1x64xf32> to vector<8x64xf32>
    %cst_91 = arith.constant dense<0.000000e+00> : vector<8x64xf32>
    %307 = tpu.matmul %286, %20, %cst_91 {dimension_numbers = #tpu.dot_dimension_numbers<[1], [0], [0], [1], [0, 0, 1, 1], [], []>} : vector<8x64xf32>, vector<64x64xf32>, vector<8x64xf32> -> vector<8x64xf32>
    %308 = vector.broadcast %28 : vector<1x64xf32> to vector<8x64xf32>
    %309 = arith.addf %307, %308 : vector<8x64xf32>
    %310 = arith.mulf %295, %309 : vector<8x64xf32>
    %311 = arith.addf %306, %310 : vector<8x64xf32>
    %312 = math.tanh %311 : vector<8x64xf32>
    %cst_92 = arith.constant 1.000000e+00 : f32
    %313 = vector.broadcast %cst_92 : f32 to vector<8x64xf32>
    %314 = arith.subf %313, %304 : vector<8x64xf32>
    %315 = arith.mulf %314, %312 : vector<8x64xf32>
    %316 = arith.mulf %304, %286 : vector<8x64xf32>
    %317 = arith.addf %315, %316 : vector<8x64xf32>
    %c6_i32 = arith.constant 6 : i32
    %318 = arith.cmpi sgt, %1, %c6_i32 : i32
    %319 = arith.extui %318 : i1 to i32
    %320 = arith.sitofp %319 : i32 to f32
    %321 = vector.broadcast %320 : f32 to vector<8x64xf32>
    %322 = arith.mulf %321, %317 : vector<8x64xf32>
    %cst_93 = arith.constant 1.000000e+00 : f32
    %323 = arith.subf %cst_93, %320 : f32
    %324 = vector.broadcast %323 : f32 to vector<8x64xf32>
    %325 = arith.mulf %324, %286 : vector<8x64xf32>
    %326 = arith.addf %322, %325 : vector<8x64xf32>
    %327 = vector.extract_strided_slice %37 {offsets = [0, 7, 0], sizes = [8, 1, 64], strides = [1, 1, 1]} : vector<8x12x64xf32> to vector<8x1x64xf32>
    %328 = vector.shape_cast %327 : vector<8x1x64xf32> to vector<8x64xf32>
    %cst_94 = arith.constant dense<0.000000e+00> : vector<8x64xf32>
    %329 = tpu.matmul %326, %16, %cst_94 {dimension_numbers = #tpu.dot_dimension_numbers<[1], [0], [0], [1], [0, 0, 1, 1], [], []>} : vector<8x64xf32>, vector<64x64xf32>, vector<8x64xf32> -> vector<8x64xf32>
    %330 = arith.addf %328, %329 : vector<8x64xf32>
    %331 = arith.negf %330 : vector<8x64xf32>
    %332 = math.exp %331 : vector<8x64xf32>
    %cst_95 = arith.constant 1.000000e+00 : f32
    %333 = vector.broadcast %cst_95 : f32 to vector<8x64xf32>
    %334 = arith.addf %333, %332 : vector<8x64xf32>
    %335 = arith.divf %333, %334 : vector<8x64xf32>
    %336 = vector.extract_strided_slice %41 {offsets = [0, 7, 0], sizes = [8, 1, 64], strides = [1, 1, 1]} : vector<8x12x64xf32> to vector<8x1x64xf32>
    %337 = vector.shape_cast %336 : vector<8x1x64xf32> to vector<8x64xf32>
    %cst_96 = arith.constant dense<0.000000e+00> : vector<8x64xf32>
    %338 = tpu.matmul %326, %18, %cst_96 {dimension_numbers = #tpu.dot_dimension_numbers<[1], [0], [0], [1], [0, 0, 1, 1], [], []>} : vector<8x64xf32>, vector<64x64xf32>, vector<8x64xf32> -> vector<8x64xf32>
    %339 = arith.addf %337, %338 : vector<8x64xf32>
    %340 = arith.negf %339 : vector<8x64xf32>
    %341 = math.exp %340 : vector<8x64xf32>
    %cst_97 = arith.constant 1.000000e+00 : f32
    %342 = vector.broadcast %cst_97 : f32 to vector<8x64xf32>
    %343 = arith.addf %342, %341 : vector<8x64xf32>
    %344 = arith.divf %342, %343 : vector<8x64xf32>
    %345 = vector.extract_strided_slice %45 {offsets = [0, 7, 0], sizes = [8, 1, 64], strides = [1, 1, 1]} : vector<8x12x64xf32> to vector<8x1x64xf32>
    %346 = vector.shape_cast %345 : vector<8x1x64xf32> to vector<8x64xf32>
    %cst_98 = arith.constant dense<0.000000e+00> : vector<8x64xf32>
    %347 = tpu.matmul %326, %20, %cst_98 {dimension_numbers = #tpu.dot_dimension_numbers<[1], [0], [0], [1], [0, 0, 1, 1], [], []>} : vector<8x64xf32>, vector<64x64xf32>, vector<8x64xf32> -> vector<8x64xf32>
    %348 = vector.broadcast %28 : vector<1x64xf32> to vector<8x64xf32>
    %349 = arith.addf %347, %348 : vector<8x64xf32>
    %350 = arith.mulf %335, %349 : vector<8x64xf32>
    %351 = arith.addf %346, %350 : vector<8x64xf32>
    %352 = math.tanh %351 : vector<8x64xf32>
    %cst_99 = arith.constant 1.000000e+00 : f32
    %353 = vector.broadcast %cst_99 : f32 to vector<8x64xf32>
    %354 = arith.subf %353, %344 : vector<8x64xf32>
    %355 = arith.mulf %354, %352 : vector<8x64xf32>
    %356 = arith.mulf %344, %326 : vector<8x64xf32>
    %357 = arith.addf %355, %356 : vector<8x64xf32>
    %c7_i32 = arith.constant 7 : i32
    %358 = arith.cmpi sgt, %1, %c7_i32 : i32
    %359 = arith.extui %358 : i1 to i32
    %360 = arith.sitofp %359 : i32 to f32
    %361 = vector.broadcast %360 : f32 to vector<8x64xf32>
    %362 = arith.mulf %361, %357 : vector<8x64xf32>
    %cst_100 = arith.constant 1.000000e+00 : f32
    %363 = arith.subf %cst_100, %360 : f32
    %364 = vector.broadcast %363 : f32 to vector<8x64xf32>
    %365 = arith.mulf %364, %326 : vector<8x64xf32>
    %366 = arith.addf %362, %365 : vector<8x64xf32>
    %367 = vector.extract_strided_slice %37 {offsets = [0, 8, 0], sizes = [8, 1, 64], strides = [1, 1, 1]} : vector<8x12x64xf32> to vector<8x1x64xf32>
    %368 = vector.shape_cast %367 : vector<8x1x64xf32> to vector<8x64xf32>
    %cst_101 = arith.constant dense<0.000000e+00> : vector<8x64xf32>
    %369 = tpu.matmul %366, %16, %cst_101 {dimension_numbers = #tpu.dot_dimension_numbers<[1], [0], [0], [1], [0, 0, 1, 1], [], []>} : vector<8x64xf32>, vector<64x64xf32>, vector<8x64xf32> -> vector<8x64xf32>
    %370 = arith.addf %368, %369 : vector<8x64xf32>
    %371 = arith.negf %370 : vector<8x64xf32>
    %372 = math.exp %371 : vector<8x64xf32>
    %cst_102 = arith.constant 1.000000e+00 : f32
    %373 = vector.broadcast %cst_102 : f32 to vector<8x64xf32>
    %374 = arith.addf %373, %372 : vector<8x64xf32>
    %375 = arith.divf %373, %374 : vector<8x64xf32>
    %376 = vector.extract_strided_slice %41 {offsets = [0, 8, 0], sizes = [8, 1, 64], strides = [1, 1, 1]} : vector<8x12x64xf32> to vector<8x1x64xf32>
    %377 = vector.shape_cast %376 : vector<8x1x64xf32> to vector<8x64xf32>
    %cst_103 = arith.constant dense<0.000000e+00> : vector<8x64xf32>
    %378 = tpu.matmul %366, %18, %cst_103 {dimension_numbers = #tpu.dot_dimension_numbers<[1], [0], [0], [1], [0, 0, 1, 1], [], []>} : vector<8x64xf32>, vector<64x64xf32>, vector<8x64xf32> -> vector<8x64xf32>
    %379 = arith.addf %377, %378 : vector<8x64xf32>
    %380 = arith.negf %379 : vector<8x64xf32>
    %381 = math.exp %380 : vector<8x64xf32>
    %cst_104 = arith.constant 1.000000e+00 : f32
    %382 = vector.broadcast %cst_104 : f32 to vector<8x64xf32>
    %383 = arith.addf %382, %381 : vector<8x64xf32>
    %384 = arith.divf %382, %383 : vector<8x64xf32>
    %385 = vector.extract_strided_slice %45 {offsets = [0, 8, 0], sizes = [8, 1, 64], strides = [1, 1, 1]} : vector<8x12x64xf32> to vector<8x1x64xf32>
    %386 = vector.shape_cast %385 : vector<8x1x64xf32> to vector<8x64xf32>
    %cst_105 = arith.constant dense<0.000000e+00> : vector<8x64xf32>
    %387 = tpu.matmul %366, %20, %cst_105 {dimension_numbers = #tpu.dot_dimension_numbers<[1], [0], [0], [1], [0, 0, 1, 1], [], []>} : vector<8x64xf32>, vector<64x64xf32>, vector<8x64xf32> -> vector<8x64xf32>
    %388 = vector.broadcast %28 : vector<1x64xf32> to vector<8x64xf32>
    %389 = arith.addf %387, %388 : vector<8x64xf32>
    %390 = arith.mulf %375, %389 : vector<8x64xf32>
    %391 = arith.addf %386, %390 : vector<8x64xf32>
    %392 = math.tanh %391 : vector<8x64xf32>
    %cst_106 = arith.constant 1.000000e+00 : f32
    %393 = vector.broadcast %cst_106 : f32 to vector<8x64xf32>
    %394 = arith.subf %393, %384 : vector<8x64xf32>
    %395 = arith.mulf %394, %392 : vector<8x64xf32>
    %396 = arith.mulf %384, %366 : vector<8x64xf32>
    %397 = arith.addf %395, %396 : vector<8x64xf32>
    %c8_i32_107 = arith.constant 8 : i32
    %398 = arith.cmpi sgt, %1, %c8_i32_107 : i32
    %399 = arith.extui %398 : i1 to i32
    %400 = arith.sitofp %399 : i32 to f32
    %401 = vector.broadcast %400 : f32 to vector<8x64xf32>
    %402 = arith.mulf %401, %397 : vector<8x64xf32>
    %cst_108 = arith.constant 1.000000e+00 : f32
    %403 = arith.subf %cst_108, %400 : f32
    %404 = vector.broadcast %403 : f32 to vector<8x64xf32>
    %405 = arith.mulf %404, %366 : vector<8x64xf32>
    %406 = arith.addf %402, %405 : vector<8x64xf32>
    %407 = vector.extract_strided_slice %37 {offsets = [0, 9, 0], sizes = [8, 1, 64], strides = [1, 1, 1]} : vector<8x12x64xf32> to vector<8x1x64xf32>
    %408 = vector.shape_cast %407 : vector<8x1x64xf32> to vector<8x64xf32>
    %cst_109 = arith.constant dense<0.000000e+00> : vector<8x64xf32>
    %409 = tpu.matmul %406, %16, %cst_109 {dimension_numbers = #tpu.dot_dimension_numbers<[1], [0], [0], [1], [0, 0, 1, 1], [], []>} : vector<8x64xf32>, vector<64x64xf32>, vector<8x64xf32> -> vector<8x64xf32>
    %410 = arith.addf %408, %409 : vector<8x64xf32>
    %411 = arith.negf %410 : vector<8x64xf32>
    %412 = math.exp %411 : vector<8x64xf32>
    %cst_110 = arith.constant 1.000000e+00 : f32
    %413 = vector.broadcast %cst_110 : f32 to vector<8x64xf32>
    %414 = arith.addf %413, %412 : vector<8x64xf32>
    %415 = arith.divf %413, %414 : vector<8x64xf32>
    %416 = vector.extract_strided_slice %41 {offsets = [0, 9, 0], sizes = [8, 1, 64], strides = [1, 1, 1]} : vector<8x12x64xf32> to vector<8x1x64xf32>
    %417 = vector.shape_cast %416 : vector<8x1x64xf32> to vector<8x64xf32>
    %cst_111 = arith.constant dense<0.000000e+00> : vector<8x64xf32>
    %418 = tpu.matmul %406, %18, %cst_111 {dimension_numbers = #tpu.dot_dimension_numbers<[1], [0], [0], [1], [0, 0, 1, 1], [], []>} : vector<8x64xf32>, vector<64x64xf32>, vector<8x64xf32> -> vector<8x64xf32>
    %419 = arith.addf %417, %418 : vector<8x64xf32>
    %420 = arith.negf %419 : vector<8x64xf32>
    %421 = math.exp %420 : vector<8x64xf32>
    %cst_112 = arith.constant 1.000000e+00 : f32
    %422 = vector.broadcast %cst_112 : f32 to vector<8x64xf32>
    %423 = arith.addf %422, %421 : vector<8x64xf32>
    %424 = arith.divf %422, %423 : vector<8x64xf32>
    %425 = vector.extract_strided_slice %45 {offsets = [0, 9, 0], sizes = [8, 1, 64], strides = [1, 1, 1]} : vector<8x12x64xf32> to vector<8x1x64xf32>
    %426 = vector.shape_cast %425 : vector<8x1x64xf32> to vector<8x64xf32>
    %cst_113 = arith.constant dense<0.000000e+00> : vector<8x64xf32>
    %427 = tpu.matmul %406, %20, %cst_113 {dimension_numbers = #tpu.dot_dimension_numbers<[1], [0], [0], [1], [0, 0, 1, 1], [], []>} : vector<8x64xf32>, vector<64x64xf32>, vector<8x64xf32> -> vector<8x64xf32>
    %428 = vector.broadcast %28 : vector<1x64xf32> to vector<8x64xf32>
    %429 = arith.addf %427, %428 : vector<8x64xf32>
    %430 = arith.mulf %415, %429 : vector<8x64xf32>
    %431 = arith.addf %426, %430 : vector<8x64xf32>
    %432 = math.tanh %431 : vector<8x64xf32>
    %cst_114 = arith.constant 1.000000e+00 : f32
    %433 = vector.broadcast %cst_114 : f32 to vector<8x64xf32>
    %434 = arith.subf %433, %424 : vector<8x64xf32>
    %435 = arith.mulf %434, %432 : vector<8x64xf32>
    %436 = arith.mulf %424, %406 : vector<8x64xf32>
    %437 = arith.addf %435, %436 : vector<8x64xf32>
    %c9_i32 = arith.constant 9 : i32
    %438 = arith.cmpi sgt, %1, %c9_i32 : i32
    %439 = arith.extui %438 : i1 to i32
    %440 = arith.sitofp %439 : i32 to f32
    %441 = vector.broadcast %440 : f32 to vector<8x64xf32>
    %442 = arith.mulf %441, %437 : vector<8x64xf32>
    %cst_115 = arith.constant 1.000000e+00 : f32
    %443 = arith.subf %cst_115, %440 : f32
    %444 = vector.broadcast %443 : f32 to vector<8x64xf32>
    %445 = arith.mulf %444, %406 : vector<8x64xf32>
    %446 = arith.addf %442, %445 : vector<8x64xf32>
    %447 = vector.extract_strided_slice %37 {offsets = [0, 10, 0], sizes = [8, 1, 64], strides = [1, 1, 1]} : vector<8x12x64xf32> to vector<8x1x64xf32>
    %448 = vector.shape_cast %447 : vector<8x1x64xf32> to vector<8x64xf32>
    %cst_116 = arith.constant dense<0.000000e+00> : vector<8x64xf32>
    %449 = tpu.matmul %446, %16, %cst_116 {dimension_numbers = #tpu.dot_dimension_numbers<[1], [0], [0], [1], [0, 0, 1, 1], [], []>} : vector<8x64xf32>, vector<64x64xf32>, vector<8x64xf32> -> vector<8x64xf32>
    %450 = arith.addf %448, %449 : vector<8x64xf32>
    %451 = arith.negf %450 : vector<8x64xf32>
    %452 = math.exp %451 : vector<8x64xf32>
    %cst_117 = arith.constant 1.000000e+00 : f32
    %453 = vector.broadcast %cst_117 : f32 to vector<8x64xf32>
    %454 = arith.addf %453, %452 : vector<8x64xf32>
    %455 = arith.divf %453, %454 : vector<8x64xf32>
    %456 = vector.extract_strided_slice %41 {offsets = [0, 10, 0], sizes = [8, 1, 64], strides = [1, 1, 1]} : vector<8x12x64xf32> to vector<8x1x64xf32>
    %457 = vector.shape_cast %456 : vector<8x1x64xf32> to vector<8x64xf32>
    %cst_118 = arith.constant dense<0.000000e+00> : vector<8x64xf32>
    %458 = tpu.matmul %446, %18, %cst_118 {dimension_numbers = #tpu.dot_dimension_numbers<[1], [0], [0], [1], [0, 0, 1, 1], [], []>} : vector<8x64xf32>, vector<64x64xf32>, vector<8x64xf32> -> vector<8x64xf32>
    %459 = arith.addf %457, %458 : vector<8x64xf32>
    %460 = arith.negf %459 : vector<8x64xf32>
    %461 = math.exp %460 : vector<8x64xf32>
    %cst_119 = arith.constant 1.000000e+00 : f32
    %462 = vector.broadcast %cst_119 : f32 to vector<8x64xf32>
    %463 = arith.addf %462, %461 : vector<8x64xf32>
    %464 = arith.divf %462, %463 : vector<8x64xf32>
    %465 = vector.extract_strided_slice %45 {offsets = [0, 10, 0], sizes = [8, 1, 64], strides = [1, 1, 1]} : vector<8x12x64xf32> to vector<8x1x64xf32>
    %466 = vector.shape_cast %465 : vector<8x1x64xf32> to vector<8x64xf32>
    %cst_120 = arith.constant dense<0.000000e+00> : vector<8x64xf32>
    %467 = tpu.matmul %446, %20, %cst_120 {dimension_numbers = #tpu.dot_dimension_numbers<[1], [0], [0], [1], [0, 0, 1, 1], [], []>} : vector<8x64xf32>, vector<64x64xf32>, vector<8x64xf32> -> vector<8x64xf32>
    %468 = vector.broadcast %28 : vector<1x64xf32> to vector<8x64xf32>
    %469 = arith.addf %467, %468 : vector<8x64xf32>
    %470 = arith.mulf %455, %469 : vector<8x64xf32>
    %471 = arith.addf %466, %470 : vector<8x64xf32>
    %472 = math.tanh %471 : vector<8x64xf32>
    %cst_121 = arith.constant 1.000000e+00 : f32
    %473 = vector.broadcast %cst_121 : f32 to vector<8x64xf32>
    %474 = arith.subf %473, %464 : vector<8x64xf32>
    %475 = arith.mulf %474, %472 : vector<8x64xf32>
    %476 = arith.mulf %464, %446 : vector<8x64xf32>
    %477 = arith.addf %475, %476 : vector<8x64xf32>
    %c10_i32 = arith.constant 10 : i32
    %478 = arith.cmpi sgt, %1, %c10_i32 : i32
    %479 = arith.extui %478 : i1 to i32
    %480 = arith.sitofp %479 : i32 to f32
    %481 = vector.broadcast %480 : f32 to vector<8x64xf32>
    %482 = arith.mulf %481, %477 : vector<8x64xf32>
    %cst_122 = arith.constant 1.000000e+00 : f32
    %483 = arith.subf %cst_122, %480 : f32
    %484 = vector.broadcast %483 : f32 to vector<8x64xf32>
    %485 = arith.mulf %484, %446 : vector<8x64xf32>
    %486 = arith.addf %482, %485 : vector<8x64xf32>
    %487 = vector.extract_strided_slice %37 {offsets = [0, 11, 0], sizes = [8, 1, 64], strides = [1, 1, 1]} : vector<8x12x64xf32> to vector<8x1x64xf32>
    %488 = vector.shape_cast %487 : vector<8x1x64xf32> to vector<8x64xf32>
    %cst_123 = arith.constant dense<0.000000e+00> : vector<8x64xf32>
    %489 = tpu.matmul %486, %16, %cst_123 {dimension_numbers = #tpu.dot_dimension_numbers<[1], [0], [0], [1], [0, 0, 1, 1], [], []>} : vector<8x64xf32>, vector<64x64xf32>, vector<8x64xf32> -> vector<8x64xf32>
    %490 = arith.addf %488, %489 : vector<8x64xf32>
    %491 = arith.negf %490 : vector<8x64xf32>
    %492 = math.exp %491 : vector<8x64xf32>
    %cst_124 = arith.constant 1.000000e+00 : f32
    %493 = vector.broadcast %cst_124 : f32 to vector<8x64xf32>
    %494 = arith.addf %493, %492 : vector<8x64xf32>
    %495 = arith.divf %493, %494 : vector<8x64xf32>
    %496 = vector.extract_strided_slice %41 {offsets = [0, 11, 0], sizes = [8, 1, 64], strides = [1, 1, 1]} : vector<8x12x64xf32> to vector<8x1x64xf32>
    %497 = vector.shape_cast %496 : vector<8x1x64xf32> to vector<8x64xf32>
    %cst_125 = arith.constant dense<0.000000e+00> : vector<8x64xf32>
    %498 = tpu.matmul %486, %18, %cst_125 {dimension_numbers = #tpu.dot_dimension_numbers<[1], [0], [0], [1], [0, 0, 1, 1], [], []>} : vector<8x64xf32>, vector<64x64xf32>, vector<8x64xf32> -> vector<8x64xf32>
    %499 = arith.addf %497, %498 : vector<8x64xf32>
    %500 = arith.negf %499 : vector<8x64xf32>
    %501 = math.exp %500 : vector<8x64xf32>
    %cst_126 = arith.constant 1.000000e+00 : f32
    %502 = vector.broadcast %cst_126 : f32 to vector<8x64xf32>
    %503 = arith.addf %502, %501 : vector<8x64xf32>
    %504 = arith.divf %502, %503 : vector<8x64xf32>
    %505 = vector.extract_strided_slice %45 {offsets = [0, 11, 0], sizes = [8, 1, 64], strides = [1, 1, 1]} : vector<8x12x64xf32> to vector<8x1x64xf32>
    %506 = vector.shape_cast %505 : vector<8x1x64xf32> to vector<8x64xf32>
    %cst_127 = arith.constant dense<0.000000e+00> : vector<8x64xf32>
    %507 = tpu.matmul %486, %20, %cst_127 {dimension_numbers = #tpu.dot_dimension_numbers<[1], [0], [0], [1], [0, 0, 1, 1], [], []>} : vector<8x64xf32>, vector<64x64xf32>, vector<8x64xf32> -> vector<8x64xf32>
    %508 = vector.broadcast %28 : vector<1x64xf32> to vector<8x64xf32>
    %509 = arith.addf %507, %508 : vector<8x64xf32>
    %510 = arith.mulf %495, %509 : vector<8x64xf32>
    %511 = arith.addf %506, %510 : vector<8x64xf32>
    %512 = math.tanh %511 : vector<8x64xf32>
    %cst_128 = arith.constant 1.000000e+00 : f32
    %513 = vector.broadcast %cst_128 : f32 to vector<8x64xf32>
    %514 = arith.subf %513, %504 : vector<8x64xf32>
    %515 = arith.mulf %514, %512 : vector<8x64xf32>
    %516 = arith.mulf %504, %486 : vector<8x64xf32>
    %517 = arith.addf %515, %516 : vector<8x64xf32>
    %c11_i32 = arith.constant 11 : i32
    %518 = arith.cmpi sgt, %1, %c11_i32 : i32
    %519 = arith.extui %518 : i1 to i32
    %520 = arith.sitofp %519 : i32 to f32
    %521 = vector.broadcast %520 : f32 to vector<8x64xf32>
    %522 = arith.mulf %521, %517 : vector<8x64xf32>
    %cst_129 = arith.constant 1.000000e+00 : f32
    %523 = arith.subf %cst_129, %520 : f32
    %524 = vector.broadcast %523 : f32 to vector<8x64xf32>
    %525 = arith.mulf %524, %486 : vector<8x64xf32>
    %526 = arith.addf %522, %525 : vector<8x64xf32>
    %c0_130 = arith.constant 0 : index
    %c0_131 = arith.constant 0 : index
    %c0_132 = arith.constant 0 : index
    %527 = vector.load %arg14[%c0_130, %c0_131, %c0_132] : memref<1x8x64xf32, #tpu.memory_space<vmem>>, vector<1x8x64xf32>
    %528 = vector.shape_cast %527 : vector<1x8x64xf32> to vector<8x64xf32>
    %529 = vector.shape_cast %526 : vector<8x64xf32> to vector<1x8x64xf32>
    tpu.vector_store %arg14[%c0_130, %c0_131, %c0_132], %529 {strides = array<i32>} : memref<1x8x64xf32, #tpu.memory_space<vmem>>, vector<1x8x64xf32>,
    return
  }
  func.func @transform_0(%arg0: i32) -> (i32, i32, i32, i32) {
    %c0_i32 = arith.constant 0 : i32
    %c0_i32_0 = arith.constant 0 : i32
    %c0_i32_1 = arith.constant 0 : i32
    %c0_i32_2 = arith.constant 0 : i32
    return %arg0, %c0_i32, %c0_i32_0, %c0_i32_1 : i32, i32, i32, i32
  }
  func.func @transform_1(%arg0: i32) -> (i32, i32, i32) {
    %c0_i32 = arith.constant 0 : i32
    %c0_i32_0 = arith.constant 0 : i32
    %c0_i32_1 = arith.constant 0 : i32
    return %arg0, %c0_i32, %c0_i32_0 : i32, i32, i32
  }
  func.func @transform_2(%arg0: i32) -> (i32, i32, i32) {
    %c0_i32 = arith.constant 0 : i32
    %c0_i32_0 = arith.constant 0 : i32
    %c0_i32_1 = arith.constant 0 : i32
    return %arg0, %c0_i32, %c0_i32_0 : i32, i32, i32
  }
  func.func @transform_3(%arg0: i32) -> (i32, i32, i32) {
    %c0_i32 = arith.constant 0 : i32
    %c0_i32_0 = arith.constant 0 : i32
    %c0_i32_1 = arith.constant 0 : i32
    return %arg0, %c0_i32, %c0_i32_0 : i32, i32, i32
  }
  func.func @transform_4(%arg0: i32) -> (i32, i32, i32) {
    %c0_i32 = arith.constant 0 : i32
    %c0_i32_0 = arith.constant 0 : i32
    %c0_i32_1 = arith.constant 0 : i32
    return %arg0, %c0_i32, %c0_i32_0 : i32, i32, i32
  }
  func.func @transform_5(%arg0: i32) -> (i32, i32, i32) {
    %c0_i32 = arith.constant 0 : i32
    %c0_i32_0 = arith.constant 0 : i32
    %c0_i32_1 = arith.constant 0 : i32
    return %arg0, %c0_i32, %c0_i32_0 : i32, i32, i32
  }
  func.func @transform_6(%arg0: i32) -> (i32, i32, i32) {
    %c0_i32 = arith.constant 0 : i32
    %c0_i32_0 = arith.constant 0 : i32
    %c0_i32_1 = arith.constant 0 : i32
    return %arg0, %c0_i32, %c0_i32_0 : i32, i32, i32
  }
  func.func @transform_7(%arg0: i32) -> (i32, i32, i32) {
    %c0_i32 = arith.constant 0 : i32
    %c0_i32_0 = arith.constant 0 : i32
    %c0_i32_1 = arith.constant 0 : i32
    return %arg0, %c0_i32, %c0_i32_0 : i32, i32, i32
  }
  func.func @transform_8(%arg0: i32) -> (i32, i32, i32) {
    %c0_i32 = arith.constant 0 : i32
    %c0_i32_0 = arith.constant 0 : i32
    %c0_i32_1 = arith.constant 0 : i32
    return %arg0, %c0_i32, %c0_i32_0 : i32, i32, i32
  }
  func.func @transform_9(%arg0: i32) -> (i32, i32, i32) {
    %c0_i32 = arith.constant 0 : i32
    %c0_i32_0 = arith.constant 0 : i32
    %c0_i32_1 = arith.constant 0 : i32
    return %arg0, %c0_i32, %c0_i32_0 : i32, i32, i32
  }
  func.func @transform_10(%arg0: i32) -> (i32, i32, i32) {
    %c0_i32 = arith.constant 0 : i32
    %c0_i32_0 = arith.constant 0 : i32
    %c0_i32_1 = arith.constant 0 : i32
    return %arg0, %c0_i32, %c0_i32_0 : i32, i32, i32
  }
  func.func @transform_11(%arg0: i32) -> (i32, i32, i32) {
    %c0_i32 = arith.constant 0 : i32
    %c0_i32_0 = arith.constant 0 : i32
    %c0_i32_1 = arith.constant 0 : i32
    return %arg0, %c0_i32, %c0_i32_0 : i32, i32, i32
  }
  func.func @transform_12(%arg0: i32) -> (i32, i32, i32) {
    %c0_i32 = arith.constant 0 : i32
    %c0_i32_0 = arith.constant 0 : i32
    %c0_i32_1 = arith.constant 0 : i32
    return %arg0, %c0_i32, %c0_i32_0 : i32, i32, i32
  }
  func.func @transform_13(%arg0: i32) -> (i32, i32, i32) {
    %c0_i32 = arith.constant 0 : i32
    %c0_i32_0 = arith.constant 0 : i32
    %c0_i32_1 = arith.constant 0 : i32
    return %arg0, %c0_i32, %c0_i32_0 : i32, i32, i32
  }
}

</mosaic_0001>

<llo_original>
// kernel: tpu_custom_call.1
$region0: #{tpu_custom_call.1}
  #allocation0 [shape = 'u32[]', space=smem, size = 0x4, offset = 0x4, fixed_abs, tag = 'smem constant byte address 0x4 - core index']
  #allocation1 [shape = 'u32[144,128]{1,0:T(1,128)}', space=vmem, size = 0x12000, scoped, tag = 'internal scratch']
  %s0 = inlined_call_operand.vmem [shape: f32[3,8,12,6], index: 0, kind: input, shape index: {}]
  %s1 = inlined_call_operand.hbm [shape: f32[3,6,16], index: 1, kind: input, shape index: {}]
  %s2 = inlined_call_operand.hbm [shape: f32[3,1,16], index: 2, kind: input, shape index: {}]
  %s3 = inlined_call_operand.vmem [shape: f32[3,16,64], index: 3, kind: input, shape index: {}]
  %s4 = inlined_call_operand.vmem [shape: f32[3,16,64], index: 4, kind: input, shape index: {}]
  %s5 = inlined_call_operand.vmem [shape: f32[3,16,64], index: 5, kind: input, shape index: {}]
  %s6 = inlined_call_operand.vmem [shape: f32[3,64,64], index: 6, kind: input, shape index: {}]
  %s7 = inlined_call_operand.vmem [shape: f32[3,64,64], index: 7, kind: input, shape index: {}]
  %s8 = inlined_call_operand.hbm [shape: f32[3,64,64], index: 8, kind: input, shape index: {}]
  %s9 = inlined_call_operand.vmem [shape: f32[3,1,64], index: 9, kind: input, shape index: {}]
  %s10 = inlined_call_operand.vmem [shape: f32[3,1,64], index: 10, kind: input, shape index: {}]
  %s11 = inlined_call_operand.vmem [shape: f32[3,1,64], index: 11, kind: input, shape index: {}]
  %s12 = inlined_call_operand.vmem [shape: f32[3,1,64], index: 12, kind: input, shape index: {}]
  %s13 = inlined_call_operand.hbm [shape: f32[3,8,64], index: 13, kind: output, shape index: {}]
  %s14 = sld [smem:[#allocation0]]
  $region97: #{tpu_custom_call.1} parent=0
    _
  %s16 = ssub.s32 1, %s14
  %s17 = scalar_select 0, %s16, %s14
  $region1: #{tpu_custom_call.1} parent=0
    #allocation2 [shape = 'u8[8192]{0}', space=vmem, size = 0x2000, scoped, tag = 'input window, operand 1']
    #allocation3 [shape = 's32[2]{0}', space=sflag, size = 0x8, scoped, tag = 'scoped memory for tpu_custom_call.1']
    #allocation4 [shape = 's32[2]{0}', space=sflag, size = 0x8, scoped, tag = 'scoped memory for tpu_custom_call.1']
    #allocation5 [shape = 'u8[1024]{0}', space=vmem, size = 0x400, scoped, tag = 'input window, operand 2']
    #allocation6 [shape = 's32[2]{0}', space=sflag, size = 0x8, scoped, tag = 'scoped memory for tpu_custom_call.1']
    #allocation7 [shape = 'u8[65536]{0}', space=vmem, size = 0x10000, scoped, tag = 'input window, operand 8']
    #allocation8 [shape = 'u8[8192]{0}', space=vmem, size = 0x2000, scoped, tag = 'output window, operand 0']
    %18 = vsyncpa [#allocation3], 0
    %s19 = scalar_lea.sflag [#allocation3], 1
    %20 = vsyncpa %s19, 0
    %21 = vsyncpa [#allocation6], 0
    %s22 = scalar_lea.sflag [#allocation6], 1
    %23 = vsyncpa %s22, 0
    %24 = vsyncpa [#allocation4], 0
    %s25 = scalar_lea.sflag [#allocation4], 1
    %26 = vsyncpa %s25, 0
    loop: start=0, step=1, limit=5
    $region2: #{tpu_custom_call.1} parent=1 // loop_pre_header
      _
    $region3: #{tpu_custom_call.1} parent=1 // loop_header
      %s28 = sphi 0, %s32
      %p29 = scmp.ge.s32.totalorder %s28, 5
      %s38 = sphi 0, %s40
      %s41 = sphi 0, %s38
      %s42 = sphi 0, %s41
      %s58 = sphi 0, %s42
      %s64 = sphi 0, %s66
      %s67 = sphi 0, %s64
      %s68 = sphi 0, %s67
      %s84 = sphi 0, %s68
      %s90 = sphi 0, %s92
      %s93 = sphi 0, %s90
      %s94 = sphi 0, %s93
      %s110 = sphi 0, %s94
      %s116 = sphi 0, %s118
      %s119 = sphi 0, %s116
      %s120 = sphi 0, %s119
      %s136 = sphi 0, %s120
      %s142 = sphi 0, %s144
      %s145 = sphi 0, %s142
      %s146 = sphi 0, %s145
      %s162 = sphi 0, %s146
      %s168 = sphi 0, %s170
      %s171 = sphi 0, %s168
      %s172 = sphi 0, %s171
      %s188 = sphi 0, %s172
      %s194 = sphi 0, %s196
      %s197 = sphi 0, %s194
      %s198 = sphi 0, %s197
      %s214 = sphi 0, %s198
      %s220 = sphi 0, %s222
      %s223 = sphi 0, %s220
      %s224 = sphi 0, %s223
      %s240 = sphi 0, %s224
      %s246 = sphi 0, %s248
      %s249 = sphi 0, %s246
      %s250 = sphi 0, %s249
      %s266 = sphi 0, %s250
      %s272 = sphi 0, %s274
      %s275 = sphi 0, %s272
      %s276 = sphi 0, %s275
      %s292 = sphi 0, %s276
      %s298 = sphi 0, %s300
      %s301 = sphi 0, %s298
      %s302 = sphi 0, %s301
      %s318 = sphi 0, %s302
      %s324 = sphi 0, %s326
      %s327 = sphi 0, %s324
      %s328 = sphi 0, %s327
      %s344 = sphi 0, %s328
      %s350 = sphi 0, %s352
      %s353 = sphi 0, %s350
      %s354 = sphi 0, %s353
      %s370 = sphi 0, %s354
      %s376 = sphi 0, %s378
      %s379 = sphi 0, %s376
      %s380 = sphi 0, %s379
      %s396 = sphi 0, %s380
    $region4: #{tpu_custom_call.1} parent=1 // loop_header_branch
      %31 = sbr.rel (%p29) target = $region8
    $region5: #{tpu_custom_call.1} parent=1 // loop_body
      %s33 = ssub.s32 %s28, 1
      %s34 = ssub.s32 %s28, 2
      %s35 = sadd.s32 %s28, 1
      %s36 = ssub.s32 %s28, %s35
      %p37 = scmp.eq.s32.totalorder %s36, 0
      %s39 = sadd.s32 %s38, 1
      %s40 = scalar_select %p37, %s38, %s39
      %p43 = pneg %p37
      %p44 = scmp.eq.s32.totalorder %s28, 2
      %p45 = por %p43, %p44
      %p46 = scmp.ne.s32.totalorder %s38, %s41
      %p47 = scmp.eq.s32.totalorder %s28, 0
      %p48 = por %p46, %p47
      %p49 = scmp.ne.s32.totalorder %s38, %s41
      %p50 = scmp.eq.s32.totalorder %s33, 2
      %p51 = por %p49, %p50
      %p52 = scmp.ne.s32.totalorder %s41, %s42
      %p53 = scmp.eq.s32.totalorder %s33, 0
      %p54 = por %p52, %p53
      %p55 = scmp.ne.s32.totalorder %s41, %s42
      %p56 = scmp.eq.s32.totalorder %s34, 2
      %p57 = por %p55, %p56
      %p59 = scmp.ne.s32.totalorder %s42, %s58
      %p60 = scmp.eq.s32.totalorder %s34, 0
      %p61 = por %p59, %p60
      %s62 = ssub.s32 %s28, %s35
      %p63 = scmp.eq.s32.totalorder %s62, 0
      %s65 = sadd.s32 %s64, 1
      %s66 = scalar_select %p63, %s64, %s65
      %p69 = pneg %p63
      %p70 = scmp.eq.s32.totalorder %s28, 2
      %p71 = por %p69, %p70
      %p72 = scmp.ne.s32.totalorder %s64, %s67
      %p73 = scmp.eq.s32.totalorder %s28, 0
      %p74 = por %p72, %p73
      %p75 = scmp.ne.s32.totalorder %s64, %s67
      %p76 = scmp.eq.s32.totalorder %s33, 2
      %p77 = por %p75, %p76
      %p78 = scmp.ne.s32.totalorder %s67, %s68
      %p79 = scmp.eq.s32.totalorder %s33, 0
      %p80 = por %p78, %p79
      %p81 = scmp.ne.s32.totalorder %s67, %s68
      %p82 = scmp.eq.s32.totalorder %s34, 2
      %p83 = por %p81, %p82
      %p85 = scmp.ne.s32.totalorder %s68, %s84
      %p86 = scmp.eq.s32.totalorder %s34, 0
      %p87 = por %p85, %p86
      %s88 = ssub.s32 %s28, %s35
      %p89 = scmp.eq.s32.totalorder %s88, 0
      %s91 = sadd.s32 %s90, 1
      %s92 = scalar_select %p89, %s90, %s91
      %p95 = pneg %p89
      %p96 = scmp.eq.s32.totalorder %s28, 2
      %p97 = por %p95, %p96
      %p98 = scmp.ne.s32.totalorder %s90, %s93
      %p99 = scmp.eq.s32.totalorder %s28, 0
      %p100 = por %p98, %p99
      %p101 = scmp.ne.s32.totalorder %s90, %s93
      %p102 = scmp.eq.s32.totalorder %s33, 2
      %p103 = por %p101, %p102
      %p104 = scmp.ne.s32.totalorder %s93, %s94
      %p105 = scmp.eq.s32.totalorder %s33, 0
      %p106 = por %p104, %p105
      %p107 = scmp.ne.s32.totalorder %s93, %s94
      %p108 = scmp.eq.s32.totalorder %s34, 2
      %p109 = por %p107, %p108
      %p111 = scmp.ne.s32.totalorder %s94, %s110
      %p112 = scmp.eq.s32.totalorder %s34, 0
      %p113 = por %p111, %p112
      %s114 = ssub.s32 %s28, %s35
      %p115 = scmp.eq.s32.totalorder %s114, 0
      %s117 = sadd.s32 %s116, 1
      %s118 = scalar_select %p115, %s116, %s117
      %p121 = pneg %p115
      %p122 = scmp.eq.s32.totalorder %s28, 2
      %p123 = por %p121, %p122
      %p124 = scmp.ne.s32.totalorder %s116, %s119
      %p125 = scmp.eq.s32.totalorder %s28, 0
      %p126 = por %p124, %p125
      %p127 = scmp.ne.s32.totalorder %s116, %s119
      %p128 = scmp.eq.s32.totalorder %s33, 2
      %p129 = por %p127, %p128
      %p130 = scmp.ne.s32.totalorder %s119, %s120
      %p131 = scmp.eq.s32.totalorder %s33, 0
      %p132 = por %p130, %p131
      %p133 = scmp.ne.s32.totalorder %s119, %s120
      %p134 = scmp.eq.s32.totalorder %s34, 2
      %p135 = por %p133, %p134
      %p137 = scmp.ne.s32.totalorder %s120, %s136
      %p138 = scmp.eq.s32.totalorder %s34, 0
      %p139 = por %p137, %p138
      %s140 = ssub.s32 %s28, %s35
      %p141 = scmp.eq.s32.totalorder %s140, 0
      %s143 = sadd.s32 %s142, 1
      %s144 = scalar_select %p141, %s142, %s143
      %p147 = pneg %p141
      %p148 = scmp.eq.s32.totalorder %s28, 2
      %p149 = por %p147, %p148
      %p150 = scmp.ne.s32.totalorder %s142, %s145
      %p151 = scmp.eq.s32.totalorder %s28, 0
      %p152 = por %p150, %p151
      %p153 = scmp.ne.s32.totalorder %s142, %s145
      %p154 = scmp.eq.s32.totalorder %s33, 2
      %p155 = por %p153, %p154
      %p156 = scmp.ne.s32.totalorder %s145, %s146
      %p157 = scmp.eq.s32.totalorder %s33, 0
      %p158 = por %p156, %p157
      %p159 = scmp.ne.s32.totalorder %s145, %s146
      %p160 = scmp.eq.s32.totalorder %s34, 2
      %p161 = por %p159, %p160
      %p163 = scmp.ne.s32.totalorder %s146, %s162
      %p164 = scmp.eq.s32.totalorder %s34, 0
      %p165 = por %p163, %p164
      %s166 = ssub.s32 %s28, %s35
      %p167 = scmp.eq.s32.totalorder %s166, 0
      %s169 = sadd.s32 %s168, 1
      %s170 = scalar_select %p167, %s168, %s169
      %p173 = pneg %p167
      %p174 = scmp.eq.s32.totalorder %s28, 2
      %p175 = por %p173, %p174
      %p176 = scmp.ne.s32.totalorder %s168, %s171
      %p177 = scmp.eq.s32.totalorder %s28, 0
      %p178 = por %p176, %p177
      %p179 = scmp.ne.s32.totalorder %s168, %s171
      %p180 = scmp.eq.s32.totalorder %s33, 2
      %p181 = por %p179, %p180
      %p182 = scmp.ne.s32.totalorder %s171, %s172
      %p183 = scmp.eq.s32.totalorder %s33, 0
      %p184 = por %p182, %p183
      %p185 = scmp.ne.s32.totalorder %s171, %s172
      %p186 = scmp.eq.s32.totalorder %s34, 2
      %p187 = por %p185, %p186
      %p189 = scmp.ne.s32.totalorder %s172, %s188
      %p190 = scmp.eq.s32.totalorder %s34, 0
      %p191 = por %p189, %p190
      %s192 = ssub.s32 %s28, %s35
      %p193 = scmp.eq.s32.totalorder %s192, 0
      %s195 = sadd.s32 %s194, 1
      %s196 = scalar_select %p193, %s194, %s195
      %p199 = pneg %p193
      %p200 = scmp.eq.s32.totalorder %s28, 2
      %p201 = por %p199, %p200
      %p202 = scmp.ne.s32.totalorder %s194, %s197
      %p203 = scmp.eq.s32.totalorder %s28, 0
      %p204 = por %p202, %p203
      %p205 = scmp.ne.s32.totalorder %s194, %s197
      %p206 = scmp.eq.s32.totalorder %s33, 2
      %p207 = por %p205, %p206
      %p208 = scmp.ne.s32.totalorder %s197, %s198
      %p209 = scmp.eq.s32.totalorder %s33, 0
      %p210 = por %p208, %p209
      %p211 = scmp.ne.s32.totalorder %s197, %s198
      %p212 = scmp.eq.s32.totalorder %s34, 2
      %p213 = por %p211, %p212
      %p215 = scmp.ne.s32.totalorder %s198, %s214
      %p216 = scmp.eq.s32.totalorder %s34, 0
      %p217 = por %p215, %p216
      %s218 = ssub.s32 %s28, %s35
      %p219 = scmp.eq.s32.totalorder %s218, 0
      %s221 = sadd.s32 %s220, 1
      %s222 = scalar_select %p219, %s220, %s221
      %p225 = pneg %p219
      %p226 = scmp.eq.s32.totalorder %s28, 2
      %p227 = por %p225, %p226
      %p228 = scmp.ne.s32.totalorder %s220, %s223
      %p229 = scmp.eq.s32.totalorder %s28, 0
      %p230 = por %p228, %p229
      %p231 = scmp.ne.s32.totalorder %s220, %s223
      %p232 = scmp.eq.s32.totalorder %s33, 2
      %p233 = por %p231, %p232
      %p234 = scmp.ne.s32.totalorder %s223, %s224
      %p235 = scmp.eq.s32.totalorder %s33, 0
      %p236 = por %p234, %p235
      %p237 = scmp.ne.s32.totalorder %s223, %s224
      %p238 = scmp.eq.s32.totalorder %s34, 2
      %p239 = por %p237, %p238
      %p241 = scmp.ne.s32.totalorder %s224, %s240
      %p242 = scmp.eq.s32.totalorder %s34, 0
      %p243 = por %p241, %p242
      %s244 = ssub.s32 %s28, %s35
      %p245 = scmp.eq.s32.totalorder %s244, 0
      %s247 = sadd.s32 %s246, 1
      %s248 = scalar_select %p245, %s246, %s247
      %p251 = pneg %p245
      %p252 = scmp.eq.s32.totalorder %s28, 2
      %p253 = por %p251, %p252
      %p254 = scmp.ne.s32.totalorder %s246, %s249
      %p255 = scmp.eq.s32.totalorder %s28, 0
      %p256 = por %p254, %p255
      %p257 = scmp.ne.s32.totalorder %s246, %s249
      %p258 = scmp.eq.s32.totalorder %s33, 2
      %p259 = por %p257, %p258
      %p260 = scmp.ne.s32.totalorder %s249, %s250
      %p261 = scmp.eq.s32.totalorder %s33, 0
      %p262 = por %p260, %p261
      %p263 = scmp.ne.s32.totalorder %s249, %s250
      %p264 = scmp.eq.s32.totalorder %s34, 2
      %p265 = por %p263, %p264
      %p267 = scmp.ne.s32.totalorder %s250, %s266
      %p268 = scmp.eq.s32.totalorder %s34, 0
      %p269 = por %p267, %p268
      %s270 = ssub.s32 %s28, %s35
      %p271 = scmp.eq.s32.totalorder %s270, 0
      %s273 = sadd.s32 %s272, 1
      %s274 = scalar_select %p271, %s272, %s273
      %p277 = pneg %p271
      %p278 = scmp.eq.s32.totalorder %s28, 2
      %p279 = por %p277, %p278
      %p280 = scmp.ne.s32.totalorder %s272, %s275
      %p281 = scmp.eq.s32.totalorder %s28, 0
      %p282 = por %p280, %p281
      %p283 = scmp.ne.s32.totalorder %s272, %s275
      %p284 = scmp.eq.s32.totalorder %s33, 2
      %p285 = por %p283, %p284
      %p286 = scmp.ne.s32.totalorder %s275, %s276
      %p287 = scmp.eq.s32.totalorder %s33, 0
      %p288 = por %p286, %p287
      %p289 = scmp.ne.s32.totalorder %s275, %s276
      %p290 = scmp.eq.s32.totalorder %s34, 2
      %p291 = por %p289, %p290
      %p293 = scmp.ne.s32.totalorder %s276, %s292
      %p294 = scmp.eq.s32.totalorder %s34, 0
      %p295 = por %p293, %p294
      %s296 = ssub.s32 %s28, %s35
      %p297 = scmp.eq.s32.totalorder %s296, 0
      %s299 = sadd.s32 %s298, 1
      %s300 = scalar_select %p297, %s298, %s299
      %p303 = pneg %p297
      %p304 = scmp.eq.s32.totalorder %s28, 2
      %p305 = por %p303, %p304
      %p306 = scmp.ne.s32.totalorder %s298, %s301
      %p307 = scmp.eq.s32.totalorder %s28, 0
      %p308 = por %p306, %p307
      %p309 = scmp.ne.s32.totalorder %s298, %s301
      %p310 = scmp.eq.s32.totalorder %s33, 2
      %p311 = por %p309, %p310
      %p312 = scmp.ne.s32.totalorder %s301, %s302
      %p313 = scmp.eq.s32.totalorder %s33, 0
      %p314 = por %p312, %p313
      %p315 = scmp.ne.s32.totalorder %s301, %s302
      %p316 = scmp.eq.s32.totalorder %s34, 2
      %p317 = por %p315, %p316
      %p319 = scmp.ne.s32.totalorder %s302, %s318
      %p320 = scmp.eq.s32.totalorder %s34, 0
      %p321 = por %p319, %p320
      %s322 = ssub.s32 %s28, %s35
      %p323 = scmp.eq.s32.totalorder %s322, 0
      %s325 = sadd.s32 %s324, 1
      %s326 = scalar_select %p323, %s324, %s325
      %p329 = pneg %p323
      %p330 = scmp.eq.s32.totalorder %s28, 2
      %p331 = por %p329, %p330
      %p332 = scmp.ne.s32.totalorder %s324, %s327
      %p333 = scmp.eq.s32.totalorder %s28, 0
      %p334 = por %p332, %p333
      %p335 = scmp.ne.s32.totalorder %s324, %s327
      %p336 = scmp.eq.s32.totalorder %s33, 2
      %p337 = por %p335, %p336
      %p338 = scmp.ne.s32.totalorder %s327, %s328
      %p339 = scmp.eq.s32.totalorder %s33, 0
      %p340 = por %p338, %p339
      %p341 = scmp.ne.s32.totalorder %s327, %s328
      %p342 = scmp.eq.s32.totalorder %s34, 2
      %p343 = por %p341, %p342
      %p345 = scmp.ne.s32.totalorder %s328, %s344
      %p346 = scmp.eq.s32.totalorder %s34, 0
      %p347 = por %p345, %p346
      %s348 = ssub.s32 %s28, %s35
      %p349 = scmp.eq.s32.totalorder %s348, 0
      %s351 = sadd.s32 %s350, 1
      %s352 = scalar_select %p349, %s350, %s351
      %p355 = pneg %p349
      %p356 = scmp.eq.s32.totalorder %s28, 2
      %p357 = por %p355, %p356
      %p358 = scmp.ne.s32.totalorder %s350, %s353
      %p359 = scmp.eq.s32.totalorder %s28, 0
      %p360 = por %p358, %p359
      %p361 = scmp.ne.s32.totalorder %s350, %s353
      %p362 = scmp.eq.s32.totalorder %s33, 2
      %p363 = por %p361, %p362
      %p364 = scmp.ne.s32.totalorder %s353, %s354
      %p365 = scmp.eq.s32.totalorder %s33, 0
      %p366 = por %p364, %p365
      %p367 = scmp.ne.s32.totalorder %s353, %s354
      %p368 = scmp.eq.s32.totalorder %s34, 2
      %p369 = por %p367, %p368
      %p371 = scmp.ne.s32.totalorder %s354, %s370
      %p372 = scmp.eq.s32.totalorder %s34, 0
      %p373 = por %p371, %p372
      %s374 = ssub.s32 %s28, %s35
      %p375 = scmp.eq.s32.totalorder %s374, 0
      %s377 = sadd.s32 %s376, 1
      %s378 = scalar_select %p375, %s376, %s377
      %p381 = pneg %p375
      %p382 = scmp.eq.s32.totalorder %s28, 2
      %p383 = por %p381, %p382
      %p384 = scmp.ne.s32.totalorder %s376, %s379
      %p385 = scmp.eq.s32.totalorder %s28, 0
      %p386 = por %p384, %p385
      %p387 = scmp.ne.s32.totalorder %s376, %s379
      %p388 = scmp.eq.s32.totalorder %s33, 2
      %p389 = por %p387, %p388
      %p390 = scmp.ne.s32.totalorder %s379, %s380
      %p391 = scmp.eq.s32.totalorder %s33, 0
      %p392 = por %p390, %p391
      %p393 = scmp.ne.s32.totalorder %s379, %s380
      %p394 = scmp.eq.s32.totalorder %s34, 2
      %p395 = por %p393, %p394
      %p397 = scmp.ne.s32.totalorder %s380, %s396
      %p398 = scmp.eq.s32.totalorder %s34, 0
      %p399 = por %p397, %p398
      %p400 = scmp.le.s32.totalorder 1, %s28
      %p401 = scmp.lt.s32.totalorder %s28, 4
      %p402 = pnand %p400, %p401
      %p403 = pneg %p402
      // Predicated region
      $region9: #{tpu_custom_call.1} parent=5 // pred_check
        _
      $region10: #{tpu_custom_call.1} parent=5 // pred_check_branch
        %405 = sbr.rel (%p402) target = $region12
      $region11: #{tpu_custom_call.1} parent=5 // pred_region
        %s406 = ssub.s32 %s28, 1
      $region12: #{tpu_custom_call.1} parent=5 // pred_fallthru
        _
      %p407 = scmp.lt.s32.totalorder %s28, 3
      // Predicated region
      $region13: #{tpu_custom_call.1} parent=5 // pred_check
        %p408 = pneg %p407
      $region14: #{tpu_custom_call.1} parent=5 // pred_check_branch
        %410 = sbr.rel (%p408) target = $region16
      $region15: #{tpu_custom_call.1} parent=5 // pred_region
        // Predicated region
        $region17: #{tpu_custom_call.1} parent=15 // pred_check
          %p411 = pneg %p48
        $region18: #{tpu_custom_call.1} parent=15 // pred_check_branch
          %413 = sbr.rel (%p411) target = $region20
        $region19: #{tpu_custom_call.1} parent=15 // pred_region
          %p414 = scmp.lt.s32.totalorder %s28, 2
          %s415 = scalar_select %p414, %s28, 2
          %s416 = smul.addr %s415, 16
          %s417 = smul.addr %s416, 8
          %s418 = scalar_lea.vmem %s0, %s417
        $region20: #{tpu_custom_call.1} parent=15 // pred_fallthru
          _
        // Predicated region
        $region21: #{tpu_custom_call.1} parent=15 // pred_check
          %p419 = pneg %p74
        $region22: #{tpu_custom_call.1} parent=15 // pred_check_branch
          %421 = sbr.rel (%p419) target = $region24
        $region23: #{tpu_custom_call.1} parent=15 // pred_region
          %s422 = sand.u32 %s64, 1
          %s423 = scalar_lea.sflag [#allocation3], %s422
          %s424 = sand.u32 %s64, 1
          %s425 = smul.addr %s424, 8
          %s426 = scalar_lea.vmem [#allocation2], %s425
          %s428 = ssub.s32 128, 128
          %429 = vsyncadd %s423, %s428
          %s430 = smul.addr %s28, 128
          %s431 = scalar_lea.hbm %s1, %s430
          %s433 = sshll.u32 %s426, 4
          %s434 = int_to_ptr.vmem [resolvable:$true] %s433
          %436 = dma.hbm_to_vmem [thread:$0]  %s431, 128, %s434, %s423
        $region24: #{tpu_custom_call.1} parent=15 // pred_fallthru
          _
        // Predicated region
        $region25: #{tpu_custom_call.1} parent=15 // pred_check
          %p437 = pneg %p100
        $region26: #{tpu_custom_call.1} parent=15 // pred_check_branch
          %439 = sbr.rel (%p437) target = $region28
        $region27: #{tpu_custom_call.1} parent=15 // pred_region
          %s440 = sand.u32 %s28, 1
          %s441 = scalar_lea.sflag [#allocation6], %s440
          %s442 = sand.u32 %s90, 1
          %s443 = scalar_lea.vmem [#allocation5], %s442
          %s445 = ssub.s32 16, 16
          %446 = vsyncadd %s441, %s445
          %s447 = smul.addr %s28, 16
          %s448 = scalar_lea.hbm %s2, %s447
          %s450 = sshll.u32 %s443, 4
          %s451 = int_to_ptr.vmem [resolvable:$true] %s450
          %453 = dma.hbm_to_vmem [thread:$0]  %s448, 16, %s451, %s441
        $region28: #{tpu_custom_call.1} parent=15 // pred_fallthru
          _
        // Predicated region
        $region29: #{tpu_custom_call.1} parent=15 // pred_check
          %p454 = pneg %p126
        $region30: #{tpu_custom_call.1} parent=15 // pred_check_branch
          %456 = sbr.rel (%p454) target = $region32
        $region31: #{tpu_custom_call.1} parent=15 // pred_region
          %p457 = scmp.lt.s32.totalorder %s28, 2
          %s458 = scalar_select %p457, %s28, 2
          %s459 = smul.addr %s458, 2
          %s460 = smul.addr %s459, 8
          %s461 = scalar_lea.vmem %s3, %s460
        $region32: #{tpu_custom_call.1} parent=15 // pred_fallthru
          _
        // Predicated region
        $region33: #{tpu_custom_call.1} parent=15 // pred_check
          %p462 = pneg %p152
        $region34: #{tpu_custom_call.1} parent=15 // pred_check_branch
          %464 = sbr.rel (%p462) target = $region36
        $region35: #{tpu_custom_call.1} parent=15 // pred_region
          %p465 = scmp.lt.s32.totalorder %s28, 2
          %s466 = scalar_select %p465, %s28, 2
          %s467 = smul.addr %s466, 2
          %s468 = smul.addr %s467, 8
          %s469 = scalar_lea.vmem %s4, %s468
        $region36: #{tpu_custom_call.1} parent=15 // pred_fallthru
          _
        // Predicated region
        $region37: #{tpu_custom_call.1} parent=15 // pred_check
          %p470 = pneg %p178
        $region38: #{tpu_custom_call.1} parent=15 // pred_check_branch
          %472 = sbr.rel (%p470) target = $region40
        $region39: #{tpu_custom_call.1} parent=15 // pred_region
          %p473 = scmp.lt.s32.totalorder %s28, 2
          %s474 = scalar_select %p473, %s28, 2
          %s475 = smul.addr %s474, 2
          %s476 = smul.addr %s475, 8
          %s477 = scalar_lea.vmem %s5, %s476
        $region40: #{tpu_custom_call.1} parent=15 // pred_fallthru
          _
        // Predicated region
        $region41: #{tpu_custom_call.1} parent=15 // pred_check
          %p478 = pneg %p204
        $region42: #{tpu_custom_call.1} parent=15 // pred_check_branch
          %480 = sbr.rel (%p478) target = $region44
        $region43: #{tpu_custom_call.1} parent=15 // pred_region
          %p481 = scmp.lt.s32.totalorder %s28, 2
          %s482 = scalar_select %p481, %s28, 2
          %s483 = smul.addr %s482, 8
          %s484 = smul.addr %s483, 8
          %s485 = scalar_lea.vmem %s6, %s484
        $region44: #{tpu_custom_call.1} parent=15 // pred_fallthru
          _
        // Predicated region
        $region45: #{tpu_custom_call.1} parent=15 // pred_check
          %p486 = pneg %p230
        $region46: #{tpu_custom_call.1} parent=15 // pred_check_branch
          %488 = sbr.rel (%p486) target = $region48
        $region47: #{tpu_custom_call.1} parent=15 // pred_region
          %p489 = scmp.lt.s32.totalorder %s28, 2
          %s490 = scalar_select %p489, %s28, 2
          %s491 = smul.addr %s490, 8
          %s492 = smul.addr %s491, 8
          %s493 = scalar_lea.vmem %s7, %s492
        $region48: #{tpu_custom_call.1} parent=15 // pred_fallthru
          _
        // Predicated region
        $region49: #{tpu_custom_call.1} parent=15 // pred_check
          %p494 = pneg %p256
        $region50: #{tpu_custom_call.1} parent=15 // pred_check_branch
          %496 = sbr.rel (%p494) target = $region52
        $region51: #{tpu_custom_call.1} parent=15 // pred_region
          %s497 = sand.u32 %s28, 1
          %s498 = scalar_lea.sflag [#allocation6], %s497
          %s499 = sand.u32 %s246, 1
          %s500 = smul.addr %s499, 64
          %s501 = scalar_lea.vmem [#allocation7], %s500
          %s503 = ssub.s32 1024, 1024
          %504 = vsyncadd %s498, %s503
          %s505 = smul.addr %s28, 8
          %s506 = smul.addr %s505, 128
          %s507 = scalar_lea.hbm %s8, %s506
          %s508 = sshll.u32 %s501, 4
          %s509 = int_to_ptr.vmem [resolvable:$true] %s508
          %514 = dma.hbm_to_vmem [thread:$0]  %s507, 1024, %s509, %s498, 128, 128, 8
        $region52: #{tpu_custom_call.1} parent=15 // pred_fallthru
          _
        // Predicated region
        $region53: #{tpu_custom_call.1} parent=15 // pred_check
          %p515 = pneg %p282
        $region54: #{tpu_custom_call.1} parent=15 // pred_check_branch
          %517 = sbr.rel (%p515) target = $region56
        $region55: #{tpu_custom_call.1} parent=15 // pred_region
          %p518 = scmp.lt.s32.totalorder %s28, 2
          %s519 = scalar_select %p518, %s28, 2
          %s520 = scalar_lea.vmem %s9, %s519
        $region56: #{tpu_custom_call.1} parent=15 // pred_fallthru
          _
        // Predicated region
        $region57: #{tpu_custom_call.1} parent=15 // pred_check
          %p521 = pneg %p308
        $region58: #{tpu_custom_call.1} parent=15 // pred_check_branch
          %523 = sbr.rel (%p521) target = $region60
        $region59: #{tpu_custom_call.1} parent=15 // pred_region
          %p524 = scmp.lt.s32.totalorder %s28, 2
          %s525 = scalar_select %p524, %s28, 2
          %s526 = scalar_lea.vmem %s10, %s525
        $region60: #{tpu_custom_call.1} parent=15 // pred_fallthru
          _
        // Predicated region
        $region61: #{tpu_custom_call.1} parent=15 // pred_check
          %p527 = pneg %p334
        $region62: #{tpu_custom_call.1} parent=15 // pred_check_branch
          %529 = sbr.rel (%p527) target = $region64
        $region63: #{tpu_custom_call.1} parent=15 // pred_region
          %p530 = scmp.lt.s32.totalorder %s28, 2
          %s531 = scalar_select %p530, %s28, 2
          %s532 = scalar_lea.vmem %s11, %s531
        $region64: #{tpu_custom_call.1} parent=15 // pred_fallthru
          _
        // Predicated region
        $region65: #{tpu_custom_call.1} parent=15 // pred_check
          %p533 = pneg %p360
        $region66: #{tpu_custom_call.1} parent=15 // pred_check_branch
          %535 = sbr.rel (%p533) target = $region68
        $region67: #{tpu_custom_call.1} parent=15 // pred_region
          %p536 = scmp.lt.s32.totalorder %s28, 2
          %s537 = scalar_select %p536, %s28, 2
          %s538 = scalar_lea.vmem %s12, %s537
        $region68: #{tpu_custom_call.1} parent=15 // pred_fallthru
          _
      $region16: #{tpu_custom_call.1} parent=5 // pred_fallthru
        _
      %p539 = scmp.le.s32.totalorder 1, %s28
      %p540 = scmp.lt.s32.totalorder %s28, 4
      %p541 = pnand %p539, %p540
      %p542 = pneg %p541
      // Predicated region
      $region69: #{tpu_custom_call.1} parent=5 // pred_check
        _
      $region70: #{tpu_custom_call.1} parent=5 // pred_check_branch
        %544 = sbr.rel (%p541) target = $region72
      $region71: #{tpu_custom_call.1} parent=5 // pred_region
        %s545 = ssub.s32 %s28, 1
        %s546 = sand.u32 %s67, 1
        %s547 = scalar_lea.sflag [#allocation3], %s546
        %s548 = sand.u32 %s67, 1
        %s549 = smul.addr %s548, 8
        %s550 = scalar_lea.vmem [#allocation2], %s549
        // Predicated region
        $region73: #{tpu_custom_call.1} parent=71 // pred_check
          %p551 = pneg %p80
        $region74: #{tpu_custom_call.1} parent=71 // pred_check_branch
          %553 = sbr.rel (%p551) target = $region76
        $region75: #{tpu_custom_call.1} parent=71 // pred_region
          %554 = dma.done %s547, 128
        $region76: #{tpu_custom_call.1} parent=71 // pred_fallthru
          _
        %s555 = sand.u32 %s33, 1
        %s556 = scalar_lea.sflag [#allocation6], %s555
        %s557 = sand.u32 %s93, 1
        %s558 = scalar_lea.vmem [#allocation5], %s557
        // Predicated region
        $region77: #{tpu_custom_call.1} parent=71 // pred_check
          %p559 = pneg %p106
        $region78: #{tpu_custom_call.1} parent=71 // pred_check_branch
          %561 = sbr.rel (%p559) target = $region80
        $region79: #{tpu_custom_call.1} parent=71 // pred_region
          %562 = dma.done %s556, 16
        $region80: #{tpu_custom_call.1} parent=71 // pred_fallthru
          _
        %s563 = sand.u32 %s33, 1
        %s564 = scalar_lea.sflag [#allocation6], %s563
        %s565 = sand.u32 %s249, 1
        %s566 = smul.addr %s565, 64
        %s567 = scalar_lea.vmem [#allocation7], %s566
        // Predicated region
        $region81: #{tpu_custom_call.1} parent=71 // pred_check
          %p568 = pneg %p262
        $region82: #{tpu_custom_call.1} parent=71 // pred_check_branch
          %570 = sbr.rel (%p568) target = $region84
        $region83: #{tpu_custom_call.1} parent=71 // pred_region
          %571 = dma.done %s564, 1024
        $region84: #{tpu_custom_call.1} parent=71 // pred_fallthru
          _
        %p572 = scmp.lt.s32.totalorder %s33, 2
        %s573 = scalar_select %p572, %s33, 2
        %s574 = smul.addr %s573, 16
        %s575 = smul.addr %s574, 8
        %s576 = scalar_lea.vmem %s0, %s575
        %p577 = pneg %p54
        %p578 = pneg %p51
        %s579 = sand.u32 %s67, 1
        %s580 = scalar_lea.sflag [#allocation3], %s579
        %s581 = sand.u32 %s67, 1
        %s582 = smul.addr %s581, 8
        %s583 = scalar_lea.vmem [#allocation2], %s582
        %p584 = pneg %p80
        %p585 = pneg %p77
        %s586 = sand.u32 %s33, 1
        %s587 = scalar_lea.sflag [#allocation6], %s586
        %s588 = sand.u32 %s93, 1
        %s589 = scalar_lea.vmem [#allocation5], %s588
        %p590 = pneg %p106
        %p591 = pneg %p103
        %p592 = scmp.lt.s32.totalorder %s33, 2
        %s593 = scalar_select %p592, %s33, 2
        %s594 = smul.addr %s593, 2
        %s595 = smul.addr %s594, 8
        %s596 = scalar_lea.vmem %s3, %s595
        %p597 = pneg %p132
        %p598 = pneg %p129
        %p599 = scmp.lt.s32.totalorder %s33, 2
        %s600 = scalar_select %p599, %s33, 2
        %s601 = smul.addr %s600, 2
        %s602 = smul.addr %s601, 8
        %s603 = scalar_lea.vmem %s4, %s602
        %p604 = pneg %p158
        %p605 = pneg %p155
        %p606 = scmp.lt.s32.totalorder %s33, 2
        %s607 = scalar_select %p606, %s33, 2
        %s608 = smul.addr %s607, 2
        %s609 = smul.addr %s608, 8
        %s610 = scalar_lea.vmem %s5, %s609
        %p611 = pneg %p184
        %p612 = pneg %p181
        %p613 = scmp.lt.s32.totalorder %s33, 2
        %s614 = scalar_select %p613, %s33, 2
        %s615 = smul.addr %s614, 8
        %s616 = smul.addr %s615, 8
        %s617 = scalar_lea.vmem %s6, %s616
        %p618 = pneg %p210
        %p619 = pneg %p207
        %p620 = scmp.lt.s32.totalorder %s33, 2
        %s621 = scalar_select %p620, %s33, 2
        %s622 = smul.addr %s621, 8
        %s623 = smul.addr %s622, 8
        %s624 = scalar_lea.vmem %s7, %s623
        %p625 = pneg %p236
        %p626 = pneg %p233
        %s627 = sand.u32 %s33, 1
        %s628 = scalar_lea.sflag [#allocation6], %s627
        %s629 = sand.u32 %s249, 1
        %s630 = smul.addr %s629, 64
        %s631 = scalar_lea.vmem [#allocation7], %s630
        %p632 = pneg %p262
        %p633 = pneg %p259
        %p634 = scmp.lt.s32.totalorder %s33, 2
        %s635 = scalar_select %p634, %s33, 2
        %s636 = scalar_lea.vmem %s9, %s635
        %p637 = pneg %p288
        %p638 = pneg %p285
        %p639 = scmp.lt.s32.totalorder %s33, 2
        %s640 = scalar_select %p639, %s33, 2
        %s641 = scalar_lea.vmem %s10, %s640
        %p642 = pneg %p314
        %p643 = pneg %p311
        %p644 = scmp.lt.s32.totalorder %s33, 2
        %s645 = scalar_select %p644, %s33, 2
        %s646 = scalar_lea.vmem %s11, %s645
        %p647 = pneg %p340
        %p648 = pneg %p337
        %p649 = scmp.lt.s32.totalorder %s33, 2
        %s650 = scalar_select %p649, %s33, 2
        %s651 = scalar_lea.vmem %s12, %s650
        %p652 = pneg %p366
        %p653 = pneg %p363
        %p654 = pneg %p392
        %p655 = pneg %p389
        %s656 = sand.u32 %s379, 1
        %s657 = scalar_lea.sflag [#allocation4], %s656
        %s658 = sand.u32 %s379, 1
        %s659 = smul.addr %s658, 8
        %s660 = scalar_lea.vmem [#allocation8], %s659
        %p661 = scmp.lt.s32.totalorder %s33, 2
        %s662 = scalar_select %p661, %s33, 2
        %s663 = smul.addr %s662, 16
        %s664 = smul.addr %s663, 8
        %s665 = scalar_lea.vmem %s0, %s664
        %p666 = scmp.lt.s32.totalorder %s33, 2
        %s667 = scalar_select %p666, %s33, 2
        %s668 = smul.addr %s667, 2
        %s669 = smul.addr %s668, 8
        %s670 = scalar_lea.vmem %s3, %s669
        %p671 = scmp.lt.s32.totalorder %s33, 2
        %s672 = scalar_select %p671, %s33, 2
        %s673 = smul.addr %s672, 2
        %s674 = smul.addr %s673, 8
        %s675 = scalar_lea.vmem %s4, %s674
        %p676 = scmp.lt.s32.totalorder %s33, 2
        %s677 = scalar_select %p676, %s33, 2
        %s678 = smul.addr %s677, 2
        %s679 = smul.addr %s678, 8
        %s680 = scalar_lea.vmem %s5, %s679
        %p681 = scmp.lt.s32.totalorder %s33, 2
        %s682 = scalar_select %p681, %s33, 2
        %s683 = smul.addr %s682, 8
        %s684 = smul.addr %s683, 8
        %s685 = scalar_lea.vmem %s6, %s684
        %p686 = scmp.lt.s32.totalorder %s33, 2
        %s687 = scalar_select %p686, %s33, 2
        %s688 = smul.addr %s687, 8
        %s689 = smul.addr %s688, 8
        %s690 = scalar_lea.vmem %s7, %s689
        %p691 = scmp.lt.s32.totalorder %s33, 2
        %s692 = scalar_select %p691, %s33, 2
        %s693 = scalar_lea.vmem %s9, %s692
        %p694 = scmp.lt.s32.totalorder %s33, 2
        %s695 = scalar_select %p694, %s33, 2
        %s696 = scalar_lea.vmem %s10, %s695
        %p697 = scmp.lt.s32.totalorder %s33, 2
        %s698 = scalar_select %p697, %s33, 2
        %s699 = scalar_lea.vmem %s11, %s698
        %p700 = scmp.lt.s32.totalorder %s33, 2
        %s701 = scalar_select %p700, %s33, 2
        %s702 = scalar_lea.vmem %s12, %s701
        %p703 = scmp.eq.s32.totalorder %s33, 2
        %s704 = scalar_select %p703, 12, 8
        %v705 = vld [vmem:[%s665] sm:$0xff]
        %v706 = vld [vmem:[%s665 + $0x8] sm:$0xf]
        %v707 = vld [vmem:[%s665 + $0x10] sm:$0xff]
        %v708 = vld [vmem:[%s665 + $0x18] sm:$0xf]
        %v709 = vld [vmem:[%s665 + $0x20] sm:$0xff]
        %v710 = vld [vmem:[%s665 + $0x28] sm:$0xf]
        %v711 = vld [vmem:[%s665 + $0x30] sm:$0xff]
        %v712 = vld [vmem:[%s665 + $0x38] sm:$0xf]
        %v713 = vld [vmem:[%s665 + $0x40] sm:$0xff]
        %v714 = vld [vmem:[%s665 + $0x48] sm:$0xf]
        %v715 = vld [vmem:[%s665 + $0x50] sm:$0xff]
        %v716 = vld [vmem:[%s665 + $0x58] sm:$0xf]
        %v717 = vld [vmem:[%s665 + $0x60] sm:$0xff]
        %v718 = vld [vmem:[%s665 + $0x68] sm:$0xf]
        %v719 = vld [vmem:[%s665 + $0x70] sm:$0xff]
        %v720 = vld [vmem:[%s665 + $0x78] sm:$0xf]
        %v737 = vcombine.high %v705, %v705
        %v738 = vcombine.high %v707, %v707
        %v739 = vcombine.high %v709, %v709
        %v740 = vcombine.high %v711, %v711
        %v741 = vcombine.high %v713, %v713
        %v742 = vcombine.high %v715, %v715
        %v743 = vcombine.high %v717, %v717
        %v744 = vcombine.high %v719, %v719
        %v745 = vld [vmem:[%s550] sm:$0x3f]
        %v746 = vld [vmem:[%s558] sm:$0x1]
        %v747 = vld [vmem:[%s670] sm:$0xff]
        %v748 = vld [vmem:[%s670 + $0x8] sm:$0xff]
        %v749 = vld [vmem:[%s675] sm:$0xff]
        %v750 = vld [vmem:[%s675 + $0x8] sm:$0xff]
        %v751 = vld [vmem:[%s680] sm:$0xff]
        %v752 = vld [vmem:[%s680 + $0x8] sm:$0xff]
        %v753 = vld [vmem:[%s685] sm:$0xff]
        %v754 = vld [vmem:[%s685 + $0x8] sm:$0xff]
        %v755 = vld [vmem:[%s685 + $0x10] sm:$0xff]
        %v756 = vld [vmem:[%s685 + $0x18] sm:$0xff]
        %v757 = vld [vmem:[%s685 + $0x20] sm:$0xff]
        %v758 = vld [vmem:[%s685 + $0x28] sm:$0xff]
        %v759 = vld [vmem:[%s685 + $0x30] sm:$0xff]
        %v760 = vld [vmem:[%s685 + $0x38] sm:$0xff]
        %v761 = vld [vmem:[%s690] sm:$0xff]
        %v762 = vld [vmem:[%s690 + $0x8] sm:$0xff]
        %v763 = vld [vmem:[%s690 + $0x10] sm:$0xff]
        %v764 = vld [vmem:[%s690 + $0x18] sm:$0xff]
        %v765 = vld [vmem:[%s690 + $0x20] sm:$0xff]
        %v766 = vld [vmem:[%s690 + $0x28] sm:$0xff]
        %v767 = vld [vmem:[%s690 + $0x30] sm:$0xff]
        %v768 = vld [vmem:[%s690 + $0x38] sm:$0xff]
        %v769 = vld [vmem:[%s567] sm:$0xff]
        %v770 = vld [vmem:[%s567 + $0x8] sm:$0xff]
        %v771 = vld [vmem:[%s567 + $0x10] sm:$0xff]
        %v772 = vld [vmem:[%s567 + $0x18] sm:$0xff]
        %v773 = vld [vmem:[%s567 + $0x20] sm:$0xff]
        %v774 = vld [vmem:[%s567 + $0x28] sm:$0xff]
        %v775 = vld [vmem:[%s567 + $0x30] sm:$0xff]
        %v776 = vld [vmem:[%s567 + $0x38] sm:$0xff]
        %v777 = vld [vmem:[%s693] sm:$0x1]
        %v778 = vld [vmem:[%s696] sm:$0x1]
        %v779 = vld [vmem:[%s699] sm:$0x1]
        %v780 = vld [vmem:[%s702] sm:$0x1]
        %v782 = vlaneseq
        %v783 = vshrl.u32 %v782, 7
        %v784 = vsub.s32 0, %v783
        %v785 = vrot.slane %v746, %v784
        %v787 = vcombine.low %v705, %v737
        %v788 = vcombine.low %v706, %v707
        %v789 = vcombine.low %v738, %v708
        %v790 = vcombine.low %v709, %v739
        %v791 = vcombine.low %v710, %v711
        %v792 = vcombine.low %v740, %v712
        %v793 = vcombine.low %v713, %v741
        %v794 = vcombine.low %v714, %v715
        %v795 = vcombine.low %v742, %v716
        %v796 = vcombine.low %v717, %v743
        %v797 = vcombine.low %v718, %v719
        %v798 = vcombine.low %v744, %v720
        %vm799 = vcmask 48128
        %v800 = vsel %vm799, %v787, 0
        %v802 = vsel %vm799, %v788, 0
        %v804 = vsel %vm799, %v789, 0
        %v806 = vsel %vm799, %v790, 0
        %v808 = vsel %vm799, %v791, 0
        %v810 = vsel %vm799, %v792, 0
        %v812 = vsel %vm799, %v793, 0
        %v814 = vsel %vm799, %v794, 0
        %v816 = vsel %vm799, %v795, 0
        %v818 = vsel %vm799, %v796, 0
        %v820 = vsel %vm799, %v797, 0
        %v822 = vsel %vm799, %v798, 0
        %vm824 = vcmask 1045504
        %v826 = vsel %vm824, %v745, 0
        %828 = vmatprep.subr.mxu0 0.0
        %829 = vmatpush1.msra.mxu0 0.0
        %830 = vmatprep.subr.mxu0 0.0
        %831 = vmatpush1.msra.mxu0 0.0
        %832 = vmatprep.subr.mxu0 0.0
        %833 = vmatpush1.msra.mxu0 0.0
        %834 = vmatprep.subr.mxu0 0.0
        %835 = vmatpush1.msra.mxu0 0.0
        %836 = vmatprep.subr.mxu0 0.0
        %837 = vmatpush1.msra.mxu0 0.0
        %838 = vmatprep.subr.mxu0 0.0
        %839 = vmatpush1.msra.mxu0 0.0
        %840 = vmatprep.subr.mxu0 0.0
        %841 = vmatpush1.msra.mxu0 0.0
        %842 = vmatprep.subr.mxu0 0.0
        %843 = vmatpush1.msra.mxu0 0.0
        %844 = vmatprep.subr.mxu0 0.0
        %845 = vmatpush1.msra.mxu0 0.0
        %846 = vmatprep.subr.mxu0 0.0
        %847 = vmatpush1.msra.mxu0 0.0
        %848 = vmatprep.subr.mxu0 0.0
        %849 = vmatpush1.msra.mxu0 0.0
        %850 = vmatprep.subr.mxu0 0.0
        %851 = vmatpush1.msra.mxu0 0.0
        %852 = vmatprep.subr.mxu0 0.0
        %853 = vmatpush1.msra.mxu0 0.0
        %854 = vmatprep.subr.mxu0 0.0
        %855 = vmatpush1.msra.mxu0 0.0
        %856 = vmatprep.subr.mxu0 0.0
        %857 = vmatpush1.msra.mxu0 0.0
        %858 = vmatprep.subr.mxu0 0.0
        %859 = vmatpush1.msra.mxu0 %v826
        %860 = vmatprep.subr.mxu0 0.0
        %861 = vmatpush2.msra.mxu0 0.0
        %862 = vmatprep.subr.mxu0 0.0
        %863 = vmatpush2.msra.mxu0 0.0
        %864 = vmatprep.subr.mxu0 0.0
        %865 = vmatpush2.msra.mxu0 0.0
        %866 = vmatprep.subr.mxu0 0.0
        %867 = vmatpush2.msra.mxu0 0.0
        %868 = vmatprep.subr.mxu0 0.0
        %869 = vmatpush2.msra.mxu0 0.0
        %870 = vmatprep.subr.mxu0 0.0
        %871 = vmatpush2.msra.mxu0 0.0
        %872 = vmatprep.subr.mxu0 0.0
        %873 = vmatpush2.msra.mxu0 0.0
        %874 = vmatprep.subr.mxu0 0.0
        %875 = vmatpush2.msra.mxu0 0.0
        %876 = vmatprep.subr.mxu0 0.0
        %877 = vmatpush2.msra.mxu0 0.0
        %878 = vmatprep.subr.mxu0 0.0
        %879 = vmatpush2.msra.mxu0 0.0
        %880 = vmatprep.subr.mxu0 0.0
        %881 = vmatpush2.msra.mxu0 0.0
        %882 = vmatprep.subr.mxu0 0.0
        %883 = vmatpush2.msra.mxu0 0.0
        %884 = vmatprep.subr.mxu0 0.0
        %885 = vmatpush2.msra.mxu0 0.0
        %886 = vmatprep.subr.mxu0 0.0
        %887 = vmatpush2.msra.mxu0 0.0
        %888 = vmatprep.subr.mxu0 0.0
        %889 = vmatpush2.msra.mxu0 0.0
        %890 = vmatprep.subr.mxu0 0.0
        %891 = vmatpush2.msra.mxu0 0.0
        %892 = vmatprep.mubr.f32.mxu0 0.0
        %893 = vmatmul.mubr.f32.gmra.mxu0 %v800
        %v894 = vpop.f32.mrf.mxu0
        %v895 = vadd.f32 %v785, %v894
        %v896 = vpop.f32.mrf.mxu0
        %897 = vmatprep.mubr.f32.mxu0 0.0
        %898 = vmatmul.mubr.f32.gmra.mxu0 %v802
        %v899 = vpop.f32.mrf.mxu0
        %v900 = vadd.f32 %v785, %v899
        %v901 = vpop.f32.mrf.mxu0
        %902 = vmatprep.mubr.f32.mxu0 0.0
        %903 = vmatmul.mubr.f32.gmra.mxu0 %v804
        %v904 = vpop.f32.mrf.mxu0
        %v905 = vadd.f32 %v785, %v904
        %v906 = vpop.f32.mrf.mxu0
        %907 = vmatprep.mubr.f32.mxu0 0.0
        %908 = vmatmul.mubr.f32.gmra.mxu0 %v806
        %v909 = vpop.f32.mrf.mxu0
        %v910 = vadd.f32 %v785, %v909
        %v911 = vpop.f32.mrf.mxu0
        %912 = vmatprep.mubr.f32.mxu0 0.0
        %913 = vmatmul.mubr.f32.gmra.mxu0 %v808
        %v914 = vpop.f32.mrf.mxu0
        %v915 = vadd.f32 %v785, %v914
        %v916 = vpop.f32.mrf.mxu0
        %917 = vmatprep.mubr.f32.mxu0 0.0
        %918 = vmatmul.mubr.f32.gmra.mxu0 %v810
        %v919 = vpop.f32.mrf.mxu0
        %v920 = vadd.f32 %v785, %v919
        %v921 = vpop.f32.mrf.mxu0
        %922 = vmatprep.mubr.f32.mxu0 0.0
        %923 = vmatmul.mubr.f32.gmra.mxu0 %v812
        %v924 = vpop.f32.mrf.mxu0
        %v925 = vadd.f32 %v785, %v924
        %v926 = vpop.f32.mrf.mxu0
        %927 = vmatprep.mubr.f32.mxu0 0.0
        %928 = vmatmul.mubr.f32.gmra.mxu0 %v814
        %v929 = vpop.f32.mrf.mxu0
        %v930 = vadd.f32 %v785, %v929
        %v931 = vpop.f32.mrf.mxu0
        %932 = vmatprep.mubr.f32.mxu0 0.0
        %933 = vmatmul.mubr.f32.gmra.mxu0 %v816
        %v934 = vpop.f32.mrf.mxu0
        %v935 = vadd.f32 %v785, %v934
        %v936 = vpop.f32.mrf.mxu0
        %937 = vmatprep.mubr.f32.mxu0 0.0
        %938 = vmatmul.mubr.f32.gmra.mxu0 %v818
        %v939 = vpop.f32.mrf.mxu0
        %v940 = vadd.f32 %v785, %v939
        %v941 = vpop.f32.mrf.mxu0
        %942 = vmatprep.mubr.f32.mxu0 0.0
        %943 = vmatmul.mubr.f32.gmra.mxu0 %v820
        %v944 = vpop.f32.mrf.mxu0
        %v945 = vadd.f32 %v785, %v944
        %v946 = vpop.f32.mrf.mxu0
        %947 = vmatprep.mubr.f32.mxu0 0.0
        %948 = vmatmul.mubr.f32.gmra.mxu0 %v822
        %v949 = vpop.f32.mrf.mxu0
        %v950 = vadd.f32 %v785, %v949
        %v951 = vpop.f32.mrf.mxu0
        %952 = vdwg.mxu0
        %v953 = vmax.f32 %v895, 0.0
        %v954 = vmax.f32 %v900, 0.0
        %v955 = vmax.f32 %v905, 0.0
        %v956 = vmax.f32 %v910, 0.0
        %v957 = vmax.f32 %v915, 0.0
        %v958 = vmax.f32 %v920, 0.0
        %v959 = vmax.f32 %v925, 0.0
        %v960 = vmax.f32 %v930, 0.0
        %v961 = vmax.f32 %v935, 0.0
        %v962 = vmax.f32 %v940, 0.0
        %v963 = vmax.f32 %v945, 0.0
        %v964 = vmax.f32 %v950, 0.0
        %v966 = vlaneseq
        %v967 = vshrl.u32 %v966, 7
        %v968 = vsub.s32 0, %v967
        %v969 = vrot.slane %v777, %v968
        %vm971 = vcmask 130048
        %v973 = vsel %vm971, %v953, 0
        %v976 = vsel %vm971, %v954, 0
        %v979 = vsel %vm971, %v955, 0
        %v982 = vsel %vm971, %v956, 0
        %v985 = vsel %vm971, %v957, 0
        %v988 = vsel %vm971, %v958, 0
        %v991 = vsel %vm971, %v959, 0
        %v994 = vsel %vm971, %v960, 0
        %v997 = vsel %vm971, %v961, 0
        %v1000 = vsel %vm971, %v962, 0
        %v1003 = vsel %vm971, %v963, 0
        %v1006 = vsel %vm971, %v964, 0
        %1008 = vmatprep.subr.mxu0 0.0
        %1009 = vmatpush1.msra.mxu0 0.0
        %1010 = vmatprep.subr.mxu0 0.0
        %1011 = vmatpush1.msra.mxu0 0.0
        %1012 = vmatprep.subr.mxu0 0.0
        %1013 = vmatpush1.msra.mxu0 0.0
        %1014 = vmatprep.subr.mxu0 0.0
        %1015 = vmatpush1.msra.mxu0 0.0
        %1016 = vmatprep.subr.mxu0 0.0
        %1017 = vmatpush1.msra.mxu0 0.0
        %1018 = vmatprep.subr.mxu0 0.0
        %1019 = vmatpush1.msra.mxu0 0.0
        %1020 = vmatprep.subr.mxu0 0.0
        %1021 = vmatpush1.msra.mxu0 0.0
        %1022 = vmatprep.subr.mxu0 0.0
        %1023 = vmatpush1.msra.mxu0 0.0
        %1024 = vmatprep.subr.mxu0 0.0
        %1025 = vmatpush1.msra.mxu0 0.0
        %1026 = vmatprep.subr.mxu0 0.0
        %1027 = vmatpush1.msra.mxu0 0.0
        %1028 = vmatprep.subr.mxu0 0.0
        %1029 = vmatpush1.msra.mxu0 0.0
        %1030 = vmatprep.subr.mxu0 0.0
        %1031 = vmatpush1.msra.mxu0 0.0
        %1032 = vmatprep.subr.mxu0 0.0
        %1033 = vmatpush1.msra.mxu0 0.0
        %1034 = vmatprep.subr.mxu0 0.0
        %1035 = vmatpush1.msra.mxu0 0.0
        %1036 = vmatprep.subr.mxu0 0.0
        %1037 = vmatpush1.msra.mxu0 %v748
        %1038 = vmatprep.subr.mxu0 0.0
        %1039 = vmatpush1.msra.mxu0 %v747
        %1040 = vmatprep.subr.mxu0 0.0
        %1041 = vmatpush2.msra.mxu0 0.0
        %1042 = vmatprep.subr.mxu0 0.0
        %1043 = vmatpush2.msra.mxu0 0.0
        %1044 = vmatprep.subr.mxu0 0.0
        %1045 = vmatpush2.msra.mxu0 0.0
        %1046 = vmatprep.subr.mxu0 0.0
        %1047 = vmatpush2.msra.mxu0 0.0
        %1048 = vmatprep.subr.mxu0 0.0
        %1049 = vmatpush2.msra.mxu0 0.0
        %1050 = vmatprep.subr.mxu0 0.0
        %1051 = vmatpush2.msra.mxu0 0.0
        %1052 = vmatprep.subr.mxu0 0.0
        %1053 = vmatpush2.msra.mxu0 0.0
        %1054 = vmatprep.subr.mxu0 0.0
        %1055 = vmatpush2.msra.mxu0 0.0
        %1056 = vmatprep.subr.mxu0 0.0
        %1057 = vmatpush2.msra.mxu0 0.0
        %1058 = vmatprep.subr.mxu0 0.0
        %1059 = vmatpush2.msra.mxu0 0.0
        %1060 = vmatprep.subr.mxu0 0.0
        %1061 = vmatpush2.msra.mxu0 0.0
        %1062 = vmatprep.subr.mxu0 0.0
        %1063 = vmatpush2.msra.mxu0 0.0
        %1064 = vmatprep.subr.mxu0 0.0
        %1065 = vmatpush2.msra.mxu0 0.0
        %1066 = vmatprep.subr.mxu0 0.0
        %1067 = vmatpush2.msra.mxu0 0.0
        %1068 = vmatprep.subr.mxu0 0.0
        %1069 = vmatpush2.msra.mxu0 0.0
        %1070 = vmatprep.subr.mxu0 0.0
        %1071 = vmatpush2.msra.mxu0 0.0
        %1072 = vmatprep.mubr.f32.mxu0 0.0
        %1073 = vmatmul.mubr.f32.gmra.mxu0 %v973
        %v1074 = vpop.f32.mrf.mxu0
        %v1075 = vadd.f32 %v969, %v1074
        %v1076 = vpop.f32.mrf.mxu0
        %1077 = vmatprep.mubr.f32.mxu0 0.0
        %1078 = vmatmul.mubr.f32.gmra.mxu0 %v976
        %v1079 = vpop.f32.mrf.mxu0
        %v1080 = vadd.f32 %v969, %v1079
        %v1081 = vpop.f32.mrf.mxu0
        %1082 = vmatprep.mubr.f32.mxu0 0.0
        %1083 = vmatmul.mubr.f32.gmra.mxu0 %v979
        %v1084 = vpop.f32.mrf.mxu0
        %v1085 = vadd.f32 %v969, %v1084
        %v1086 = vpop.f32.mrf.mxu0
        %1087 = vmatprep.mubr.f32.mxu0 0.0
        %1088 = vmatmul.mubr.f32.gmra.mxu0 %v982
        %v1089 = vpop.f32.mrf.mxu0
        %v1090 = vadd.f32 %v969, %v1089
        %v1091 = vpop.f32.mrf.mxu0
        %1092 = vmatprep.mubr.f32.mxu0 0.0
        %1093 = vmatmul.mubr.f32.gmra.mxu0 %v985
        %v1094 = vpop.f32.mrf.mxu0
        %v1095 = vadd.f32 %v969, %v1094
        %v1096 = vpop.f32.mrf.mxu0
        %1097 = vmatprep.mubr.f32.mxu0 0.0
        %1098 = vmatmul.mubr.f32.gmra.mxu0 %v988
        %v1099 = vpop.f32.mrf.mxu0
        %v1100 = vadd.f32 %v969, %v1099
        %v1101 = vpop.f32.mrf.mxu0
        %1102 = vmatprep.mubr.f32.mxu0 0.0
        %1103 = vmatmul.mubr.f32.gmra.mxu0 %v991
        %v1104 = vpop.f32.mrf.mxu0
        %v1105 = vadd.f32 %v969, %v1104
        %v1106 = vpop.f32.mrf.mxu0
        %1107 = vmatprep.mubr.f32.mxu0 0.0
        %1108 = vmatmul.mubr.f32.gmra.mxu0 %v994
        %v1109 = vpop.f32.mrf.mxu0
        %v1110 = vadd.f32 %v969, %v1109
        %v1111 = vpop.f32.mrf.mxu0
        %1112 = vmatprep.mubr.f32.mxu0 0.0
        %1113 = vmatmul.mubr.f32.gmra.mxu0 %v997
        %v1114 = vpop.f32.mrf.mxu0
        %v1115 = vadd.f32 %v969, %v1114
        %v1116 = vpop.f32.mrf.mxu0
        %1117 = vmatprep.mubr.f32.mxu0 0.0
        %1118 = vmatmul.mubr.f32.gmra.mxu0 %v1000
        %v1119 = vpop.f32.mrf.mxu0
        %v1120 = vadd.f32 %v969, %v1119
        %v1121 = vpop.f32.mrf.mxu0
        %1122 = vmatprep.mubr.f32.mxu0 0.0
        %1123 = vmatmul.mubr.f32.gmra.mxu0 %v1003
        %v1124 = vpop.f32.mrf.mxu0
        %v1125 = vadd.f32 %v969, %v1124
        %v1126 = vpop.f32.mrf.mxu0
        %1127 = vmatprep.mubr.f32.mxu0 0.0
        %1128 = vmatmul.mubr.f32.gmra.mxu0 %v1006
        %v1129 = vpop.f32.mrf.mxu0
        %v1130 = vadd.f32 %v969, %v1129
        %v1131 = vpop.f32.mrf.mxu0
        %1132 = vdwg.mxu0
        %v1145 = vcombine.high %v1075, %v1075
        %v1146 = vcombine.high %v1080, %v1080
        %v1147 = vcombine.high %v1085, %v1085
        %v1148 = vcombine.high %v1090, %v1090
        %v1149 = vcombine.high %v1095, %v1095
        %v1150 = vcombine.high %v1100, %v1100
        %v1151 = vcombine.high %v1105, %v1105
        %v1152 = vcombine.high %v1110, %v1110
        %v1153 = vcombine.high %v1115, %v1115
        %v1154 = vcombine.high %v1120, %v1120
        %v1155 = vcombine.high %v1125, %v1125
        %v1156 = vcombine.high %v1130, %v1130
        %v1170 = vlaneseq
        %v1171 = vshrl.u32 %v1170, 7
        %v1172 = vsub.s32 0, %v1171
        %v1173 = vrot.slane %v778, %v1172
        %1175 = vmatprep.subr.mxu0 0.0
        %1176 = vmatpush1.msra.mxu0 0.0
        %1177 = vmatprep.subr.mxu0 0.0
        %1178 = vmatpush1.msra.mxu0 0.0
        %1179 = vmatprep.subr.mxu0 0.0
        %1180 = vmatpush1.msra.mxu0 0.0
        %1181 = vmatprep.subr.mxu0 0.0
        %1182 = vmatpush1.msra.mxu0 0.0
        %1183 = vmatprep.subr.mxu0 0.0
        %1184 = vmatpush1.msra.mxu0 0.0
        %1185 = vmatprep.subr.mxu0 0.0
        %1186 = vmatpush1.msra.mxu0 0.0
        %1187 = vmatprep.subr.mxu0 0.0
        %1188 = vmatpush1.msra.mxu0 0.0
        %1189 = vmatprep.subr.mxu0 0.0
        %1190 = vmatpush1.msra.mxu0 0.0
        %1191 = vmatprep.subr.mxu0 0.0
        %1192 = vmatpush1.msra.mxu0 0.0
        %1193 = vmatprep.subr.mxu0 0.0
        %1194 = vmatpush1.msra.mxu0 0.0
        %1195 = vmatprep.subr.mxu0 0.0
        %1196 = vmatpush1.msra.mxu0 0.0
        %1197 = vmatprep.subr.mxu0 0.0
        %1198 = vmatpush1.msra.mxu0 0.0
        %1199 = vmatprep.subr.mxu0 0.0
        %1200 = vmatpush1.msra.mxu0 0.0
        %1201 = vmatprep.subr.mxu0 0.0
        %1202 = vmatpush1.msra.mxu0 0.0
        %1203 = vmatprep.subr.mxu0 0.0
        %1204 = vmatpush1.msra.mxu0 %v750
        %1205 = vmatprep.subr.mxu0 0.0
        %1206 = vmatpush1.msra.mxu0 %v749
        %1207 = vmatprep.subr.mxu0 0.0
        %1208 = vmatpush2.msra.mxu0 0.0
        %1209 = vmatprep.subr.mxu0 0.0
        %1210 = vmatpush2.msra.mxu0 0.0
        %1211 = vmatprep.subr.mxu0 0.0
        %1212 = vmatpush2.msra.mxu0 0.0
        %1213 = vmatprep.subr.mxu0 0.0
        %1214 = vmatpush2.msra.mxu0 0.0
        %1215 = vmatprep.subr.mxu0 0.0
        %1216 = vmatpush2.msra.mxu0 0.0
        %1217 = vmatprep.subr.mxu0 0.0
        %1218 = vmatpush2.msra.mxu0 0.0
        %1219 = vmatprep.subr.mxu0 0.0
        %1220 = vmatpush2.msra.mxu0 0.0
        %1221 = vmatprep.subr.mxu0 0.0
        %1222 = vmatpush2.msra.mxu0 0.0
        %1223 = vmatprep.subr.mxu0 0.0
        %1224 = vmatpush2.msra.mxu0 0.0
        %1225 = vmatprep.subr.mxu0 0.0
        %1226 = vmatpush2.msra.mxu0 0.0
        %1227 = vmatprep.subr.mxu0 0.0
        %1228 = vmatpush2.msra.mxu0 0.0
        %1229 = vmatprep.subr.mxu0 0.0
        %1230 = vmatpush2.msra.mxu0 0.0
        %1231 = vmatprep.subr.mxu0 0.0
        %1232 = vmatpush2.msra.mxu0 0.0
        %1233 = vmatprep.subr.mxu0 0.0
        %1234 = vmatpush2.msra.mxu0 0.0
        %1235 = vmatprep.subr.mxu0 0.0
        %1236 = vmatpush2.msra.mxu0 0.0
        %1237 = vmatprep.subr.mxu0 0.0
        %1238 = vmatpush2.msra.mxu0 0.0
        %1239 = vmatprep.mubr.f32.mxu0 0.0
        %1240 = vmatmul.mubr.f32.gmra.mxu0 %v973
        %v1241 = vpop.f32.mrf.mxu0
        %v1242 = vadd.f32 %v1173, %v1241
        %v1243 = vpop.f32.mrf.mxu0
        %1244 = vmatprep.mubr.f32.mxu0 0.0
        %1245 = vmatmul.mubr.f32.gmra.mxu0 %v976
        %v1246 = vpop.f32.mrf.mxu0
        %v1247 = vadd.f32 %v1173, %v1246
        %v1248 = vpop.f32.mrf.mxu0
        %1249 = vmatprep.mubr.f32.mxu0 0.0
        %1250 = vmatmul.mubr.f32.gmra.mxu0 %v979
        %v1251 = vpop.f32.mrf.mxu0
        %v1252 = vadd.f32 %v1173, %v1251
        %v1253 = vpop.f32.mrf.mxu0
        %1254 = vmatprep.mubr.f32.mxu0 0.0
        %1255 = vmatmul.mubr.f32.gmra.mxu0 %v982
        %v1256 = vpop.f32.mrf.mxu0
        %v1257 = vadd.f32 %v1173, %v1256
        %v1258 = vpop.f32.mrf.mxu0
        %1259 = vmatprep.mubr.f32.mxu0 0.0
        %1260 = vmatmul.mubr.f32.gmra.mxu0 %v985
        %v1261 = vpop.f32.mrf.mxu0
        %v1262 = vadd.f32 %v1173, %v1261
        %v1263 = vpop.f32.mrf.mxu0
        %1264 = vmatprep.mubr.f32.mxu0 0.0
        %1265 = vmatmul.mubr.f32.gmra.mxu0 %v988
        %v1266 = vpop.f32.mrf.mxu0
        %v1267 = vadd.f32 %v1173, %v1266
        %v1268 = vpop.f32.mrf.mxu0
        %1269 = vmatprep.mubr.f32.mxu0 0.0
        %1270 = vmatmul.mubr.f32.gmra.mxu0 %v991
        %v1271 = vpop.f32.mrf.mxu0
        %v1272 = vadd.f32 %v1173, %v1271
        %v1273 = vpop.f32.mrf.mxu0
        %1274 = vmatprep.mubr.f32.mxu0 0.0
        %1275 = vmatmul.mubr.f32.gmra.mxu0 %v994
        %v1276 = vpop.f32.mrf.mxu0
        %v1277 = vadd.f32 %v1173, %v1276
        %v1278 = vpop.f32.mrf.mxu0
        %1279 = vmatprep.mubr.f32.mxu0 0.0
        %1280 = vmatmul.mubr.f32.gmra.mxu0 %v997
        %v1281 = vpop.f32.mrf.mxu0
        %v1282 = vadd.f32 %v1173, %v1281
        %v1283 = vpop.f32.mrf.mxu0
        %1284 = vmatprep.mubr.f32.mxu0 0.0
        %1285 = vmatmul.mubr.f32.gmra.mxu0 %v1000
        %v1286 = vpop.f32.mrf.mxu0
        %v1287 = vadd.f32 %v1173, %v1286
        %v1288 = vpop.f32.mrf.mxu0
        %1289 = vmatprep.mubr.f32.mxu0 0.0
        %1290 = vmatmul.mubr.f32.gmra.mxu0 %v1003
        %v1291 = vpop.f32.mrf.mxu0
        %v1292 = vadd.f32 %v1173, %v1291
        %v1293 = vpop.f32.mrf.mxu0
        %1294 = vmatprep.mubr.f32.mxu0 0.0
        %1295 = vmatmul.mubr.f32.gmra.mxu0 %v1006
        %v1296 = vpop.f32.mrf.mxu0
        %v1297 = vadd.f32 %v1173, %v1296
        %v1298 = vpop.f32.mrf.mxu0
        %1299 = vdwg.mxu0
        %v1312 = vcombine.high %v1242, %v1242
        %v1313 = vcombine.high %v1247, %v1247
        %v1314 = vcombine.high %v1252, %v1252
        %v1315 = vcombine.high %v1257, %v1257
        %v1316 = vcombine.high %v1262, %v1262
        %v1317 = vcombine.high %v1267, %v1267
        %v1318 = vcombine.high %v1272, %v1272
        %v1319 = vcombine.high %v1277, %v1277
        %v1320 = vcombine.high %v1282, %v1282
        %v1321 = vcombine.high %v1287, %v1287
        %v1322 = vcombine.high %v1292, %v1292
        %v1323 = vcombine.high %v1297, %v1297
        %v1337 = vlaneseq
        %v1338 = vshrl.u32 %v1337, 7
        %v1339 = vsub.s32 0, %v1338
        %v1340 = vrot.slane %v779, %v1339
        %1342 = vmatprep.subr.mxu0 0.0
        %1343 = vmatpush1.msra.mxu0 0.0
        %1344 = vmatprep.subr.mxu0 0.0
        %1345 = vmatpush1.msra.mxu0 0.0
        %1346 = vmatprep.subr.mxu0 0.0
        %1347 = vmatpush1.msra.mxu0 0.0
        %1348 = vmatprep.subr.mxu0 0.0
        %1349 = vmatpush1.msra.mxu0 0.0
        %1350 = vmatprep.subr.mxu0 0.0
        %1351 = vmatpush1.msra.mxu0 0.0
        %1352 = vmatprep.subr.mxu0 0.0
        %1353 = vmatpush1.msra.mxu0 0.0
        %1354 = vmatprep.subr.mxu0 0.0
        %1355 = vmatpush1.msra.mxu0 0.0
        %1356 = vmatprep.subr.mxu0 0.0
        %1357 = vmatpush1.msra.mxu0 0.0
        %1358 = vmatprep.subr.mxu0 0.0
        %1359 = vmatpush1.msra.mxu0 0.0
        %1360 = vmatprep.subr.mxu0 0.0
        %1361 = vmatpush1.msra.mxu0 0.0
        %1362 = vmatprep.subr.mxu0 0.0
        %1363 = vmatpush1.msra.mxu0 0.0
        %1364 = vmatprep.subr.mxu0 0.0
        %1365 = vmatpush1.msra.mxu0 0.0
        %1366 = vmatprep.subr.mxu0 0.0
        %1367 = vmatpush1.msra.mxu0 0.0
        %1368 = vmatprep.subr.mxu0 0.0
        %1369 = vmatpush1.msra.mxu0 0.0
        %1370 = vmatprep.subr.mxu0 0.0
        %1371 = vmatpush1.msra.mxu0 %v752
        %1372 = vmatprep.subr.mxu0 0.0
        %1373 = vmatpush1.msra.mxu0 %v751
        %1374 = vmatprep.subr.mxu0 0.0
        %1375 = vmatpush2.msra.mxu0 0.0
        %1376 = vmatprep.subr.mxu0 0.0
        %1377 = vmatpush2.msra.mxu0 0.0
        %1378 = vmatprep.subr.mxu0 0.0
        %1379 = vmatpush2.msra.mxu0 0.0
        %1380 = vmatprep.subr.mxu0 0.0
        %1381 = vmatpush2.msra.mxu0 0.0
        %1382 = vmatprep.subr.mxu0 0.0
        %1383 = vmatpush2.msra.mxu0 0.0
        %1384 = vmatprep.subr.mxu0 0.0
        %1385 = vmatpush2.msra.mxu0 0.0
        %1386 = vmatprep.subr.mxu0 0.0
        %1387 = vmatpush2.msra.mxu0 0.0
        %1388 = vmatprep.subr.mxu0 0.0
        %1389 = vmatpush2.msra.mxu0 0.0
        %1390 = vmatprep.subr.mxu0 0.0
        %1391 = vmatpush2.msra.mxu0 0.0
        %1392 = vmatprep.subr.mxu0 0.0
        %1393 = vmatpush2.msra.mxu0 0.0
        %1394 = vmatprep.subr.mxu0 0.0
        %1395 = vmatpush2.msra.mxu0 0.0
        %1396 = vmatprep.subr.mxu0 0.0
        %1397 = vmatpush2.msra.mxu0 0.0
        %1398 = vmatprep.subr.mxu0 0.0
        %1399 = vmatpush2.msra.mxu0 0.0
        %1400 = vmatprep.subr.mxu0 0.0
        %1401 = vmatpush2.msra.mxu0 0.0
        %1402 = vmatprep.subr.mxu0 0.0
        %1403 = vmatpush2.msra.mxu0 0.0
        %1404 = vmatprep.subr.mxu0 0.0
        %1405 = vmatpush2.msra.mxu0 0.0
        %1406 = vmatprep.mubr.f32.mxu0 0.0
        %1407 = vmatmul.mubr.f32.gmra.mxu0 %v973
        %v1408 = vpop.f32.mrf.mxu0
        %v1409 = vadd.f32 %v1340, %v1408
        %v1410 = vpop.f32.mrf.mxu0
        %1411 = vmatprep.mubr.f32.mxu0 0.0
        %1412 = vmatmul.mubr.f32.gmra.mxu0 %v976
        %v1413 = vpop.f32.mrf.mxu0
        %v1414 = vadd.f32 %v1340, %v1413
        %v1415 = vpop.f32.mrf.mxu0
        %1416 = vmatprep.mubr.f32.mxu0 0.0
        %1417 = vmatmul.mubr.f32.gmra.mxu0 %v979
        %v1418 = vpop.f32.mrf.mxu0
        %v1419 = vadd.f32 %v1340, %v1418
        %v1420 = vpop.f32.mrf.mxu0
        %1421 = vmatprep.mubr.f32.mxu0 0.0
        %1422 = vmatmul.mubr.f32.gmra.mxu0 %v982
        %v1423 = vpop.f32.mrf.mxu0
        %v1424 = vadd.f32 %v1340, %v1423
        %v1425 = vpop.f32.mrf.mxu0
        %1426 = vmatprep.mubr.f32.mxu0 0.0
        %1427 = vmatmul.mubr.f32.gmra.mxu0 %v985
        %v1428 = vpop.f32.mrf.mxu0
        %v1429 = vadd.f32 %v1340, %v1428
        %v1430 = vpop.f32.mrf.mxu0
        %1431 = vmatprep.mubr.f32.mxu0 0.0
        %1432 = vmatmul.mubr.f32.gmra.mxu0 %v988
        %v1433 = vpop.f32.mrf.mxu0
        %v1434 = vadd.f32 %v1340, %v1433
        %v1435 = vpop.f32.mrf.mxu0
        %1436 = vmatprep.mubr.f32.mxu0 0.0
        %1437 = vmatmul.mubr.f32.gmra.mxu0 %v991
        %v1438 = vpop.f32.mrf.mxu0
        %v1439 = vadd.f32 %v1340, %v1438
        %v1440 = vpop.f32.mrf.mxu0
        %1441 = vmatprep.mubr.f32.mxu0 0.0
        %1442 = vmatmul.mubr.f32.gmra.mxu0 %v994
        %v1443 = vpop.f32.mrf.mxu0
        %v1444 = vadd.f32 %v1340, %v1443
        %v1445 = vpop.f32.mrf.mxu0
        %1446 = vmatprep.mubr.f32.mxu0 0.0
        %1447 = vmatmul.mubr.f32.gmra.mxu0 %v997
        %v1448 = vpop.f32.mrf.mxu0
        %v1449 = vadd.f32 %v1340, %v1448
        %v1450 = vpop.f32.mrf.mxu0
        %1451 = vmatprep.mubr.f32.mxu0 0.0
        %1452 = vmatmul.mubr.f32.gmra.mxu0 %v1000
        %v1453 = vpop.f32.mrf.mxu0
        %v1454 = vadd.f32 %v1340, %v1453
        %v1455 = vpop.f32.mrf.mxu0
        %1456 = vmatprep.mubr.f32.mxu0 0.0
        %1457 = vmatmul.mubr.f32.gmra.mxu0 %v1003
        %v1458 = vpop.f32.mrf.mxu0
        %v1459 = vadd.f32 %v1340, %v1458
        %v1460 = vpop.f32.mrf.mxu0
        %1461 = vmatprep.mubr.f32.mxu0 0.0
        %1462 = vmatmul.mubr.f32.gmra.mxu0 %v1006
        %v1463 = vpop.f32.mrf.mxu0
        %v1464 = vadd.f32 %v1340, %v1463
        %v1465 = vpop.f32.mrf.mxu0
        %1466 = vdwg.mxu0
        %v1479 = vcombine.high %v1409, %v1409
        %v1480 = vcombine.high %v1414, %v1414
        %v1481 = vcombine.high %v1419, %v1419
        %v1482 = vcombine.high %v1424, %v1424
        %v1483 = vcombine.high %v1429, %v1429
        %v1484 = vcombine.high %v1434, %v1434
        %v1485 = vcombine.high %v1439, %v1439
        %v1486 = vcombine.high %v1444, %v1444
        %v1487 = vcombine.high %v1449, %v1449
        %v1488 = vcombine.high %v1454, %v1454
        %v1489 = vcombine.high %v1459, %v1459
        %v1490 = vcombine.high %v1464, %v1464
        %vm1503 = vcmask 523264
        %v1505 = vsel %vm1503, 0.0, 0
        %1507 = vmatprep.subr.mxu0 0.0
        %1508 = vmatpush1.msra.mxu0 0.0
        %1509 = vmatprep.subr.mxu0 0.0
        %1510 = vmatpush1.msra.mxu0 0.0
        %1511 = vmatprep.subr.mxu0 0.0
        %1512 = vmatpush1.msra.mxu0 0.0
        %1513 = vmatprep.subr.mxu0 0.0
        %1514 = vmatpush1.msra.mxu0 0.0
        %1515 = vmatprep.subr.mxu0 0.0
        %1516 = vmatpush1.msra.mxu0 0.0
        %1517 = vmatprep.subr.mxu0 0.0
        %1518 = vmatpush1.msra.mxu0 0.0
        %1519 = vmatprep.subr.mxu0 0.0
        %1520 = vmatpush1.msra.mxu0 0.0
        %1521 = vmatprep.subr.mxu0 0.0
        %1522 = vmatpush1.msra.mxu0 0.0
        %1523 = vmatprep.subr.mxu0 0.0
        %1524 = vmatpush1.msra.mxu0 %v760
        %1525 = vmatprep.subr.mxu0 0.0
        %1526 = vmatpush1.msra.mxu0 %v759
        %1527 = vmatprep.subr.mxu0 0.0
        %1528 = vmatpush1.msra.mxu0 %v758
        %1529 = vmatprep.subr.mxu0 0.0
        %1530 = vmatpush1.msra.mxu0 %v757
        %1531 = vmatprep.subr.mxu0 0.0
        %1532 = vmatpush1.msra.mxu0 %v756
        %1533 = vmatprep.subr.mxu0 0.0
        %1534 = vmatpush1.msra.mxu0 %v755
        %1535 = vmatprep.subr.mxu0 0.0
        %1536 = vmatpush1.msra.mxu0 %v754
        %1537 = vmatprep.subr.mxu0 0.0
        %1538 = vmatpush1.msra.mxu0 %v753
        %1539 = vmatprep.subr.mxu0 0.0
        %1540 = vmatpush2.msra.mxu0 0.0
        %1541 = vmatprep.subr.mxu0 0.0
        %1542 = vmatpush2.msra.mxu0 0.0
        %1543 = vmatprep.subr.mxu0 0.0
        %1544 = vmatpush2.msra.mxu0 0.0
        %1545 = vmatprep.subr.mxu0 0.0
        %1546 = vmatpush2.msra.mxu0 0.0
        %1547 = vmatprep.subr.mxu0 0.0
        %1548 = vmatpush2.msra.mxu0 0.0
        %1549 = vmatprep.subr.mxu0 0.0
        %1550 = vmatpush2.msra.mxu0 0.0
        %1551 = vmatprep.subr.mxu0 0.0
        %1552 = vmatpush2.msra.mxu0 0.0
        %1553 = vmatprep.subr.mxu0 0.0
        %1554 = vmatpush2.msra.mxu0 0.0
        %1555 = vmatprep.subr.mxu0 0.0
        %1556 = vmatpush2.msra.mxu0 0.0
        %1557 = vmatprep.subr.mxu0 0.0
        %1558 = vmatpush2.msra.mxu0 0.0
        %1559 = vmatprep.subr.mxu0 0.0
        %1560 = vmatpush2.msra.mxu0 0.0
        %1561 = vmatprep.subr.mxu0 0.0
        %1562 = vmatpush2.msra.mxu0 0.0
        %1563 = vmatprep.subr.mxu0 0.0
        %1564 = vmatpush2.msra.mxu0 0.0
        %1565 = vmatprep.subr.mxu0 0.0
        %1566 = vmatpush2.msra.mxu0 0.0
        %1567 = vmatprep.subr.mxu0 0.0
        %1568 = vmatpush2.msra.mxu0 0.0
        %1569 = vmatprep.subr.mxu0 0.0
        %1570 = vmatpush2.msra.mxu0 0.0
        %1571 = vmatprep.mubr.f32.mxu0 0.0
        %1572 = vmatmul.mubr.f32.gmra.mxu0 %v1505
        %v1573 = vpop.f32.mrf.mxu0
        %v1574 = vadd.f32 0.0, %v1573
        %v1575 = vpop.f32.mrf.mxu0
        %1576 = vdwg.mxu0
        %v1578 = vcombine.high %v1574, %v1574
        %v1579 = vrot.slane %v1574, 1
        %v1580 = vrot.slane %v1574, 2
        %v1581 = vrot.slane %v1574, 3
        %v1582 = vrot.slane %v1578, 1
        %v1583 = vrot.slane %v1578, 2
        %v1584 = vrot.slane %v1578, 3
        %v1593 = vadd.f32 %v1075, %v1574
        %v1594 = vadd.f32 %v1146, %v1579
        %v1595 = vadd.f32 %v1090, %v1580
        %v1596 = vadd.f32 %v1149, %v1581
        %v1597 = vadd.f32 %v1105, %v1578
        %v1598 = vadd.f32 %v1152, %v1582
        %v1599 = vadd.f32 %v1120, %v1583
        %v1600 = vadd.f32 %v1155, %v1584
        %v1601 = vxor.u32 %v1593, 2147483648
        %v1602 = vxor.u32 %v1594, 2147483648
        %v1603 = vxor.u32 %v1595, 2147483648
        %v1604 = vxor.u32 %v1596, 2147483648
        %v1605 = vxor.u32 %v1597, 2147483648
        %v1606 = vxor.u32 %v1598, 2147483648
        %v1607 = vxor.u32 %v1599, 2147483648
        %v1608 = vxor.u32 %v1600, 2147483648
        %v1609 = vmul.f32 %v1601, 1.442695
        %v1610 = vpow.pop %v1609
        %v1611 = vmul.f32 %v1602, 1.442695
        %v1612 = vpow.pop %v1611
        %v1613 = vmul.f32 %v1603, 1.442695
        %v1614 = vpow.pop %v1613
        %v1615 = vmul.f32 %v1604, 1.442695
        %v1616 = vpow.pop %v1615
        %v1617 = vmul.f32 %v1605, 1.442695
        %v1618 = vpow.pop %v1617
        %v1619 = vmul.f32 %v1606, 1.442695
        %v1620 = vpow.pop %v1619
        %v1621 = vmul.f32 %v1607, 1.442695
        %v1622 = vpow.pop %v1621
        %v1623 = vmul.f32 %v1608, 1.442695
        %v1624 = vpow.pop %v1623
        %v1625 = vadd.f32 %v1610, 1.0
        %v1626 = vadd.f32 %v1612, 1.0
        %v1627 = vadd.f32 %v1614, 1.0
        %v1628 = vadd.f32 %v1616, 1.0
        %v1629 = vadd.f32 %v1618, 1.0
        %v1630 = vadd.f32 %v1620, 1.0
        %v1631 = vadd.f32 %v1622, 1.0
        %v1632 = vadd.f32 %v1624, 1.0
        %v1633 = vrcp.pop %v1625
        %v1634 = vmul.f32 1.0, %v1633
        %v1635 = vrcp.pop %v1626
        %v1636 = vmul.f32 1.0, %v1635
        %v1637 = vrcp.pop %v1627
        %v1638 = vmul.f32 1.0, %v1637
        %v1639 = vrcp.pop %v1628
        %v1640 = vmul.f32 1.0, %v1639
        %v1641 = vrcp.pop %v1629
        %v1642 = vmul.f32 1.0, %v1641
        %v1643 = vrcp.pop %v1630
        %v1644 = vmul.f32 1.0, %v1643
        %v1645 = vrcp.pop %v1631
        %v1646 = vmul.f32 1.0, %v1645
        %v1647 = vrcp.pop %v1632
        %v1648 = vmul.f32 1.0, %v1647
        %1649 = vmatprep.subr.mxu0 0.0
        %1650 = vmatpush1.msra.mxu0 0.0
        %1651 = vmatprep.subr.mxu0 0.0
        %1652 = vmatpush1.msra.mxu0 0.0
        %1653 = vmatprep.subr.mxu0 0.0
        %1654 = vmatpush1.msra.mxu0 0.0
        %1655 = vmatprep.subr.mxu0 0.0
        %1656 = vmatpush1.msra.mxu0 0.0
        %1657 = vmatprep.subr.mxu0 0.0
        %1658 = vmatpush1.msra.mxu0 0.0
        %1659 = vmatprep.subr.mxu0 0.0
        %1660 = vmatpush1.msra.mxu0 0.0
        %1661 = vmatprep.subr.mxu0 0.0
        %1662 = vmatpush1.msra.mxu0 0.0
        %1663 = vmatprep.subr.mxu0 0.0
        %1664 = vmatpush1.msra.mxu0 0.0
        %1665 = vmatprep.subr.mxu0 0.0
        %1666 = vmatpush1.msra.mxu0 %v768
        %1667 = vmatprep.subr.mxu0 0.0
        %1668 = vmatpush1.msra.mxu0 %v767
        %1669 = vmatprep.subr.mxu0 0.0
        %1670 = vmatpush1.msra.mxu0 %v766
        %1671 = vmatprep.subr.mxu0 0.0
        %1672 = vmatpush1.msra.mxu0 %v765
        %1673 = vmatprep.subr.mxu0 0.0
        %1674 = vmatpush1.msra.mxu0 %v764
        %1675 = vmatprep.subr.mxu0 0.0
        %1676 = vmatpush1.msra.mxu0 %v763
        %1677 = vmatprep.subr.mxu0 0.0
        %1678 = vmatpush1.msra.mxu0 %v762
        %1679 = vmatprep.subr.mxu0 0.0
        %1680 = vmatpush1.msra.mxu0 %v761
        %1681 = vmatprep.subr.mxu0 0.0
        %1682 = vmatpush2.msra.mxu0 0.0
        %1683 = vmatprep.subr.mxu0 0.0
        %1684 = vmatpush2.msra.mxu0 0.0
        %1685 = vmatprep.subr.mxu0 0.0
        %1686 = vmatpush2.msra.mxu0 0.0
        %1687 = vmatprep.subr.mxu0 0.0
        %1688 = vmatpush2.msra.mxu0 0.0
        %1689 = vmatprep.subr.mxu0 0.0
        %1690 = vmatpush2.msra.mxu0 0.0
        %1691 = vmatprep.subr.mxu0 0.0
        %1692 = vmatpush2.msra.mxu0 0.0
        %1693 = vmatprep.subr.mxu0 0.0
        %1694 = vmatpush2.msra.mxu0 0.0
        %1695 = vmatprep.subr.mxu0 0.0
        %1696 = vmatpush2.msra.mxu0 0.0
        %1697 = vmatprep.subr.mxu0 0.0
        %1698 = vmatpush2.msra.mxu0 0.0
        %1699 = vmatprep.subr.mxu0 0.0
        %1700 = vmatpush2.msra.mxu0 0.0
        %1701 = vmatprep.subr.mxu0 0.0
        %1702 = vmatpush2.msra.mxu0 0.0
        %1703 = vmatprep.subr.mxu0 0.0
        %1704 = vmatpush2.msra.mxu0 0.0
        %1705 = vmatprep.subr.mxu0 0.0
        %1706 = vmatpush2.msra.mxu0 0.0
        %1707 = vmatprep.subr.mxu0 0.0
        %1708 = vmatpush2.msra.mxu0 0.0
        %1709 = vmatprep.subr.mxu0 0.0
        %1710 = vmatpush2.msra.mxu0 0.0
        %1711 = vmatprep.subr.mxu0 0.0
        %1712 = vmatpush2.msra.mxu0 0.0
        %1713 = vmatprep.mubr.f32.mxu0 0.0
        %1714 = vmatmul.mubr.f32.gmra.mxu0 %v1505
        %v1715 = vpop.f32.mrf.mxu0
        %v1716 = vadd.f32 0.0, %v1715
        %v1717 = vpop.f32.mrf.mxu0
        %1718 = vdwg.mxu0
        %v1720 = vcombine.high %v1716, %v1716
        %v1721 = vrot.slane %v1716, 1
        %v1722 = vrot.slane %v1716, 2
        %v1723 = vrot.slane %v1716, 3
        %v1724 = vrot.slane %v1720, 1
        %v1725 = vrot.slane %v1720, 2
        %v1726 = vrot.slane %v1720, 3
        %v1735 = vadd.f32 %v1242, %v1716
        %v1736 = vadd.f32 %v1313, %v1721
        %v1737 = vadd.f32 %v1257, %v1722
        %v1738 = vadd.f32 %v1316, %v1723
        %v1739 = vadd.f32 %v1272, %v1720
        %v1740 = vadd.f32 %v1319, %v1724
        %v1741 = vadd.f32 %v1287, %v1725
        %v1742 = vadd.f32 %v1322, %v1726
        %v1743 = vxor.u32 %v1735, 2147483648
        %v1744 = vxor.u32 %v1736, 2147483648
        %v1745 = vxor.u32 %v1737, 2147483648
        %v1746 = vxor.u32 %v1738, 2147483648
        %v1747 = vxor.u32 %v1739, 2147483648
        %v1748 = vxor.u32 %v1740, 2147483648
        %v1749 = vxor.u32 %v1741, 2147483648
        %v1750 = vxor.u32 %v1742, 2147483648
        %v1751 = vmul.f32 %v1743, 1.442695
        %v1752 = vpow.pop %v1751
        %v1753 = vmul.f32 %v1744, 1.442695
        %v1754 = vpow.pop %v1753
        %v1755 = vmul.f32 %v1745, 1.442695
        %v1756 = vpow.pop %v1755
        %v1757 = vmul.f32 %v1746, 1.442695
        %v1758 = vpow.pop %v1757
        %v1759 = vmul.f32 %v1747, 1.442695
        %v1760 = vpow.pop %v1759
        %v1761 = vmul.f32 %v1748, 1.442695
        %v1762 = vpow.pop %v1761
        %v1763 = vmul.f32 %v1749, 1.442695
        %v1764 = vpow.pop %v1763
        %v1765 = vmul.f32 %v1750, 1.442695
        %v1766 = vpow.pop %v1765
        %v1767 = vadd.f32 %v1752, 1.0
        %v1768 = vadd.f32 %v1754, 1.0
        %v1769 = vadd.f32 %v1756, 1.0
        %v1770 = vadd.f32 %v1758, 1.0
        %v1771 = vadd.f32 %v1760, 1.0
        %v1772 = vadd.f32 %v1762, 1.0
        %v1773 = vadd.f32 %v1764, 1.0
        %v1774 = vadd.f32 %v1766, 1.0
        %v1775 = vrcp.pop %v1767
        %v1776 = vmul.f32 1.0, %v1775
        %v1777 = vrcp.pop %v1768
        %v1778 = vmul.f32 1.0, %v1777
        %v1779 = vrcp.pop %v1769
        %v1780 = vmul.f32 1.0, %v1779
        %v1781 = vrcp.pop %v1770
        %v1782 = vmul.f32 1.0, %v1781
        %v1783 = vrcp.pop %v1771
        %v1784 = vmul.f32 1.0, %v1783
        %v1785 = vrcp.pop %v1772
        %v1786 = vmul.f32 1.0, %v1785
        %v1787 = vrcp.pop %v1773
        %v1788 = vmul.f32 1.0, %v1787
        %v1789 = vrcp.pop %v1774
        %v1790 = vmul.f32 1.0, %v1789
        %v1792 = vlaneseq
        %v1793 = vshrl.u32 %v1792, 7
        %v1794 = vsub.s32 0, %v1793
        %v1795 = vrot.slane %v780, %v1794
        %1797 = vmatprep.subr.mxu0 0.0
        %1798 = vmatpush1.msra.mxu0 0.0
        %1799 = vmatprep.subr.mxu0 0.0
        %1800 = vmatpush1.msra.mxu0 0.0
        %1801 = vmatprep.subr.mxu0 0.0
        %1802 = vmatpush1.msra.mxu0 0.0
        %1803 = vmatprep.subr.mxu0 0.0
        %1804 = vmatpush1.msra.mxu0 0.0
        %1805 = vmatprep.subr.mxu0 0.0
        %1806 = vmatpush1.msra.mxu0 0.0
        %1807 = vmatprep.subr.mxu0 0.0
        %1808 = vmatpush1.msra.mxu0 0.0
        %1809 = vmatprep.subr.mxu0 0.0
        %1810 = vmatpush1.msra.mxu0 0.0
        %1811 = vmatprep.subr.mxu0 0.0
        %1812 = vmatpush1.msra.mxu0 0.0
        %1813 = vmatprep.subr.mxu0 0.0
        %1814 = vmatpush1.msra.mxu0 %v776
        %1815 = vmatprep.subr.mxu0 0.0
        %1816 = vmatpush1.msra.mxu0 %v775
        %1817 = vmatprep.subr.mxu0 0.0
        %1818 = vmatpush1.msra.mxu0 %v774
        %1819 = vmatprep.subr.mxu0 0.0
        %1820 = vmatpush1.msra.mxu0 %v773
        %1821 = vmatprep.subr.mxu0 0.0
        %1822 = vmatpush1.msra.mxu0 %v772
        %1823 = vmatprep.subr.mxu0 0.0
        %1824 = vmatpush1.msra.mxu0 %v771
        %1825 = vmatprep.subr.mxu0 0.0
        %1826 = vmatpush1.msra.mxu0 %v770
        %1827 = vmatprep.subr.mxu0 0.0
        %1828 = vmatpush1.msra.mxu0 %v769
        %1829 = vmatprep.subr.mxu0 0.0
        %1830 = vmatpush2.msra.mxu0 0.0
        %1831 = vmatprep.subr.mxu0 0.0
        %1832 = vmatpush2.msra.mxu0 0.0
        %1833 = vmatprep.subr.mxu0 0.0
        %1834 = vmatpush2.msra.mxu0 0.0
        %1835 = vmatprep.subr.mxu0 0.0
        %1836 = vmatpush2.msra.mxu0 0.0
        %1837 = vmatprep.subr.mxu0 0.0
        %1838 = vmatpush2.msra.mxu0 0.0
        %1839 = vmatprep.subr.mxu0 0.0
        %1840 = vmatpush2.msra.mxu0 0.0
        %1841 = vmatprep.subr.mxu0 0.0
        %1842 = vmatpush2.msra.mxu0 0.0
        %1843 = vmatprep.subr.mxu0 0.0
        %1844 = vmatpush2.msra.mxu0 0.0
        %1845 = vmatprep.subr.mxu0 0.0
        %1846 = vmatpush2.msra.mxu0 0.0
        %1847 = vmatprep.subr.mxu0 0.0
        %1848 = vmatpush2.msra.mxu0 0.0
        %1849 = vmatprep.subr.mxu0 0.0
        %1850 = vmatpush2.msra.mxu0 0.0
        %1851 = vmatprep.subr.mxu0 0.0
        %1852 = vmatpush2.msra.mxu0 0.0
        %1853 = vmatprep.subr.mxu0 0.0
        %1854 = vmatpush2.msra.mxu0 0.0
        %1855 = vmatprep.subr.mxu0 0.0
        %1856 = vmatpush2.msra.mxu0 0.0
        %1857 = vmatprep.subr.mxu0 0.0
        %1858 = vmatpush2.msra.mxu0 0.0
        %1859 = vmatprep.subr.mxu0 0.0
        %1860 = vmatpush2.msra.mxu0 0.0
        %1861 = vmatprep.mubr.f32.mxu0 0.0
        %1862 = vmatmul.mubr.f32.gmra.mxu0 %v1505
        %v1863 = vpop.f32.mrf.mxu0
        %v1864 = vadd.f32 %v1795, %v1863
        %v1865 = vpop.f32.mrf.mxu0
        %1866 = vdwg.mxu0
        %v1868 = vcombine.high %v1864, %v1864
        %v1869 = vrot.slane %v1864, 1
        %v1870 = vrot.slane %v1864, 2
        %v1871 = vrot.slane %v1864, 3
        %v1872 = vrot.slane %v1868, 1
        %v1873 = vrot.slane %v1868, 2
        %v1874 = vrot.slane %v1868, 3
        %v1883 = vmul.f32 %v1634, %v1864
        %v1884 = vmul.f32 %v1636, %v1869
        %v1885 = vmul.f32 %v1638, %v1870
        %v1886 = vmul.f32 %v1640, %v1871
        %v1887 = vmul.f32 %v1642, %v1868
        %v1888 = vmul.f32 %v1644, %v1872
        %v1889 = vmul.f32 %v1646, %v1873
        %v1890 = vmul.f32 %v1648, %v1874
        %v1891 = vadd.f32 %v1409, %v1883
        %v1892 = vadd.f32 %v1480, %v1884
        %v1893 = vadd.f32 %v1424, %v1885
        %v1894 = vadd.f32 %v1483, %v1886
        %v1895 = vadd.f32 %v1439, %v1887
        %v1896 = vadd.f32 %v1486, %v1888
        %v1897 = vadd.f32 %v1454, %v1889
        %v1898 = vadd.f32 %v1489, %v1890
        %v1899 = vtanh.pop %v1891
        %v1900 = vtanh.pop %v1892
        %v1901 = vtanh.pop %v1893
        %v1902 = vtanh.pop %v1894
        %v1903 = vtanh.pop %v1895
        %v1904 = vtanh.pop %v1896
        %v1905 = vtanh.pop %v1897
        %v1906 = vtanh.pop %v1898
        %v1907 = vsub.f32 1.0, %v1776
        %v1908 = vsub.f32 1.0, %v1778
        %v1909 = vsub.f32 1.0, %v1780
        %v1910 = vsub.f32 1.0, %v1782
        %v1911 = vsub.f32 1.0, %v1784
        %v1912 = vsub.f32 1.0, %v1786
        %v1913 = vsub.f32 1.0, %v1788
        %v1914 = vsub.f32 1.0, %v1790
        %v1915 = vmul.f32 %v1907, %v1899
        %v1916 = vmul.f32 %v1908, %v1900
        %v1917 = vmul.f32 %v1909, %v1901
        %v1918 = vmul.f32 %v1910, %v1902
        %v1919 = vmul.f32 %v1911, %v1903
        %v1920 = vmul.f32 %v1912, %v1904
        %v1921 = vmul.f32 %v1913, %v1905
        %v1922 = vmul.f32 %v1914, %v1906
        %v1923 = vmul.f32 %v1776, 0.0
        %v1924 = vmul.f32 %v1778, 0.0
        %v1925 = vmul.f32 %v1780, 0.0
        %v1926 = vmul.f32 %v1782, 0.0
        %v1927 = vmul.f32 %v1784, 0.0
        %v1928 = vmul.f32 %v1786, 0.0
        %v1929 = vmul.f32 %v1788, 0.0
        %v1930 = vmul.f32 %v1790, 0.0
        %v1931 = vadd.f32 %v1915, %v1923
        %v1932 = vadd.f32 %v1916, %v1924
        %v1933 = vadd.f32 %v1917, %v1925
        %v1934 = vadd.f32 %v1918, %v1926
        %v1935 = vadd.f32 %v1919, %v1927
        %v1936 = vadd.f32 %v1920, %v1928
        %v1937 = vadd.f32 %v1921, %v1929
        %v1938 = vadd.f32 %v1922, %v1930
        %p1939 = scmp.gt.s32.totalorder %s704, 0
        %s1940 = scalar_select %p1939, 1, 0
        %s1941 = scvt.s32.f32 %s1940
        %v1942 = vstv %s1941
        %v1943 = vmul.f32 %v1942, %v1931
        %v1944 = vmul.f32 %v1942, %v1932
        %v1945 = vmul.f32 %v1942, %v1933
        %v1946 = vmul.f32 %v1942, %v1934
        %v1947 = vmul.f32 %v1942, %v1935
        %v1948 = vmul.f32 %v1942, %v1936
        %v1949 = vmul.f32 %v1942, %v1937
        %v1950 = vmul.f32 %v1942, %v1938
        %s1951 = ssub.f32 1.0, %s1941
        %v1952 = vstv %s1951
        %v1953 = vmul.f32 %v1952, 0.0
        %v1954 = vadd.f32 %v1943, %v1953
        %v1955 = vadd.f32 %v1944, %v1953
        %v1956 = vadd.f32 %v1945, %v1953
        %v1957 = vadd.f32 %v1946, %v1953
        %v1958 = vadd.f32 %v1947, %v1953
        %v1959 = vadd.f32 %v1948, %v1953
        %v1960 = vadd.f32 %v1949, %v1953
        %v1961 = vadd.f32 %v1950, %v1953
        %v1970 = vlaneseq
        %v1971 = vshrl.u32 %v1970, 7
        %v1972 = vsub.s32 0, %v1971
        %v1973 = vrot.slane %v1954, %v1972
        %v1974 = vlaneseq
        %v1975 = vshrl.u32 %v1974, 7
        %v1976 = vsub.s32 0, %v1975
        %v1977 = vrot.slane %v1955, %v1976
        %v1978 = vlaneseq
        %v1979 = vshrl.u32 %v1978, 7
        %v1980 = vsub.s32 0, %v1979
        %v1981 = vrot.slane %v1956, %v1980
        %v1982 = vlaneseq
        %v1983 = vshrl.u32 %v1982, 7
        %v1984 = vsub.s32 0, %v1983
        %v1985 = vrot.slane %v1957, %v1984
        %v1986 = vlaneseq
        %v1987 = vshrl.u32 %v1986, 7
        %v1988 = vsub.s32 0, %v1987
        %v1989 = vrot.slane %v1958, %v1988
        %v1990 = vlaneseq
        %v1991 = vshrl.u32 %v1990, 7
        %v1992 = vsub.s32 0, %v1991
        %v1993 = vrot.slane %v1959, %v1992
        %v1994 = vlaneseq
        %v1995 = vshrl.u32 %v1994, 7
        %v1996 = vsub.s32 0, %v1995
        %v1997 = vrot.slane %v1960, %v1996
        %v1998 = vlaneseq
        %v1999 = vshrl.u32 %v1998, 7
        %v2000 = vsub.s32 0, %v1999
        %v2001 = vrot.slane %v1961, %v2000
        %vm2002 = vcmask 1041409
        %v2003 = vsel %vm2002, %v1977, %v1973
        %vm2004 = vcmask 1042434
        %v2005 = vsel %vm2004, %v1981, %v2003
        %vm2006 = vcmask 1043459
        %v2007 = vsel %vm2006, %v1985, %v2005
        %vm2008 = vcmask 1044484
        %v2009 = vsel %vm2008, %v1989, %v2007
        %vm2010 = vcmask 1045509
        %v2011 = vsel %vm2010, %v1993, %v2009
        %vm2012 = vcmask 1046534
        %v2013 = vsel %vm2012, %v1997, %v2011
        %vm2014 = vcmask 1047559
        %v2015 = vsel %vm2014, %v2001, %v2013
        %v2016 = vsel %vm1503, %v2015, 0
        %2018 = vmatprep.subr.mxu0 0.0
        %2019 = vmatpush1.msra.mxu0 0.0
        %2020 = vmatprep.subr.mxu0 0.0
        %2021 = vmatpush1.msra.mxu0 0.0
        %2022 = vmatprep.subr.mxu0 0.0
        %2023 = vmatpush1.msra.mxu0 0.0
        %2024 = vmatprep.subr.mxu0 0.0
        %2025 = vmatpush1.msra.mxu0 0.0
        %2026 = vmatprep.subr.mxu0 0.0
        %2027 = vmatpush1.msra.mxu0 0.0
        %2028 = vmatprep.subr.mxu0 0.0
        %2029 = vmatpush1.msra.mxu0 0.0
        %2030 = vmatprep.subr.mxu0 0.0
        %2031 = vmatpush1.msra.mxu0 0.0
        %2032 = vmatprep.subr.mxu0 0.0
        %2033 = vmatpush1.msra.mxu0 0.0
        %2034 = vmatprep.subr.mxu0 0.0
        %2035 = vmatpush1.msra.mxu0 %v760
        %2036 = vmatprep.subr.mxu0 0.0
        %2037 = vmatpush1.msra.mxu0 %v759
        %2038 = vmatprep.subr.mxu0 0.0
        %2039 = vmatpush1.msra.mxu0 %v758
        %2040 = vmatprep.subr.mxu0 0.0
        %2041 = vmatpush1.msra.mxu0 %v757
        %2042 = vmatprep.subr.mxu0 0.0
        %2043 = vmatpush1.msra.mxu0 %v756
        %2044 = vmatprep.subr.mxu0 0.0
        %2045 = vmatpush1.msra.mxu0 %v755
        %2046 = vmatprep.subr.mxu0 0.0
        %2047 = vmatpush1.msra.mxu0 %v754
        %2048 = vmatprep.subr.mxu0 0.0
        %2049 = vmatpush1.msra.mxu0 %v753
        %2050 = vmatprep.subr.mxu0 0.0
        %2051 = vmatpush2.msra.mxu0 0.0
        %2052 = vmatprep.subr.mxu0 0.0
        %2053 = vmatpush2.msra.mxu0 0.0
        %2054 = vmatprep.subr.mxu0 0.0
        %2055 = vmatpush2.msra.mxu0 0.0
        %2056 = vmatprep.subr.mxu0 0.0
        %2057 = vmatpush2.msra.mxu0 0.0
        %2058 = vmatprep.subr.mxu0 0.0
        %2059 = vmatpush2.msra.mxu0 0.0
        %2060 = vmatprep.subr.mxu0 0.0
        %2061 = vmatpush2.msra.mxu0 0.0
        %2062 = vmatprep.subr.mxu0 0.0
        %2063 = vmatpush2.msra.mxu0 0.0
        %2064 = vmatprep.subr.mxu0 0.0
        %2065 = vmatpush2.msra.mxu0 0.0
        %2066 = vmatprep.subr.mxu0 0.0
        %2067 = vmatpush2.msra.mxu0 0.0
        %2068 = vmatprep.subr.mxu0 0.0
        %2069 = vmatpush2.msra.mxu0 0.0
        %2070 = vmatprep.subr.mxu0 0.0
        %2071 = vmatpush2.msra.mxu0 0.0
        %2072 = vmatprep.subr.mxu0 0.0
        %2073 = vmatpush2.msra.mxu0 0.0
        %2074 = vmatprep.subr.mxu0 0.0
        %2075 = vmatpush2.msra.mxu0 0.0
        %2076 = vmatprep.subr.mxu0 0.0
        %2077 = vmatpush2.msra.mxu0 0.0
        %2078 = vmatprep.subr.mxu0 0.0
        %2079 = vmatpush2.msra.mxu0 0.0
        %2080 = vmatprep.subr.mxu0 0.0
        %2081 = vmatpush2.msra.mxu0 0.0
        %2082 = vmatprep.mubr.f32.mxu0 0.0
        %2083 = vmatmul.mubr.f32.gmra.mxu0 %v2016
        %v2084 = vpop.f32.mrf.mxu0
        %v2085 = vadd.f32 0.0, %v2084
        %v2086 = vpop.f32.mrf.mxu0
        %2087 = vdwg.mxu0
        %v2089 = vcombine.high %v2085, %v2085
        %v2090 = vrot.slane %v2085, 7
        %v2091 = vrot.slane %v2085, 1
        %v2092 = vrot.slane %v2085, 2
        %v2093 = vrot.slane %v2089, 7
        %v2094 = vrot.slane %v2089, 1
        %v2095 = vrot.slane %v2089, 2
        %v2104 = vadd.f32 %v1075, %v2090
        %v2105 = vadd.f32 %v1146, %v2085
        %v2106 = vadd.f32 %v1090, %v2091
        %v2107 = vadd.f32 %v1149, %v2092
        %v2108 = vadd.f32 %v1105, %v2093
        %v2109 = vadd.f32 %v1152, %v2089
        %v2110 = vadd.f32 %v1120, %v2094
        %v2111 = vadd.f32 %v1155, %v2095
        %v2112 = vxor.u32 %v2104, 2147483648
        %v2113 = vxor.u32 %v2105, 2147483648
        %v2114 = vxor.u32 %v2106, 2147483648
        %v2115 = vxor.u32 %v2107, 2147483648
        %v2116 = vxor.u32 %v2108, 2147483648
        %v2117 = vxor.u32 %v2109, 2147483648
        %v2118 = vxor.u32 %v2110, 2147483648
        %v2119 = vxor.u32 %v2111, 2147483648
        %v2120 = vmul.f32 %v2112, 1.442695
        %v2121 = vpow.pop %v2120
        %v2122 = vmul.f32 %v2113, 1.442695
        %v2123 = vpow.pop %v2122
        %v2124 = vmul.f32 %v2114, 1.442695
        %v2125 = vpow.pop %v2124
        %v2126 = vmul.f32 %v2115, 1.442695
        %v2127 = vpow.pop %v2126
        %v2128 = vmul.f32 %v2116, 1.442695
        %v2129 = vpow.pop %v2128
        %v2130 = vmul.f32 %v2117, 1.442695
        %v2131 = vpow.pop %v2130
        %v2132 = vmul.f32 %v2118, 1.442695
        %v2133 = vpow.pop %v2132
        %v2134 = vmul.f32 %v2119, 1.442695
        %v2135 = vpow.pop %v2134
        %v2136 = vadd.f32 %v2121, 1.0
        %v2137 = vadd.f32 %v2123, 1.0
        %v2138 = vadd.f32 %v2125, 1.0
        %v2139 = vadd.f32 %v2127, 1.0
        %v2140 = vadd.f32 %v2129, 1.0
        %v2141 = vadd.f32 %v2131, 1.0
        %v2142 = vadd.f32 %v2133, 1.0
        %v2143 = vadd.f32 %v2135, 1.0
        %v2144 = vrcp.pop %v2136
        %v2145 = vmul.f32 1.0, %v2144
        %v2146 = vrcp.pop %v2137
        %v2147 = vmul.f32 1.0, %v2146
        %v2148 = vrcp.pop %v2138
        %v2149 = vmul.f32 1.0, %v2148
        %v2150 = vrcp.pop %v2139
        %v2151 = vmul.f32 1.0, %v2150
        %v2152 = vrcp.pop %v2140
        %v2153 = vmul.f32 1.0, %v2152
        %v2154 = vrcp.pop %v2141
        %v2155 = vmul.f32 1.0, %v2154
        %v2156 = vrcp.pop %v2142
        %v2157 = vmul.f32 1.0, %v2156
        %v2158 = vrcp.pop %v2143
        %v2159 = vmul.f32 1.0, %v2158
        %2160 = vmatprep.subr.mxu0 0.0
        %2161 = vmatpush1.msra.mxu0 0.0
        %2162 = vmatprep.subr.mxu0 0.0
        %2163 = vmatpush1.msra.mxu0 0.0
        %2164 = vmatprep.subr.mxu0 0.0
        %2165 = vmatpush1.msra.mxu0 0.0
        %2166 = vmatprep.subr.mxu0 0.0
        %2167 = vmatpush1.msra.mxu0 0.0
        %2168 = vmatprep.subr.mxu0 0.0
        %2169 = vmatpush1.msra.mxu0 0.0
        %2170 = vmatprep.subr.mxu0 0.0
        %2171 = vmatpush1.msra.mxu0 0.0
        %2172 = vmatprep.subr.mxu0 0.0
        %2173 = vmatpush1.msra.mxu0 0.0
        %2174 = vmatprep.subr.mxu0 0.0
        %2175 = vmatpush1.msra.mxu0 0.0
        %2176 = vmatprep.subr.mxu0 0.0
        %2177 = vmatpush1.msra.mxu0 %v768
        %2178 = vmatprep.subr.mxu0 0.0
        %2179 = vmatpush1.msra.mxu0 %v767
        %2180 = vmatprep.subr.mxu0 0.0
        %2181 = vmatpush1.msra.mxu0 %v766
        %2182 = vmatprep.subr.mxu0 0.0
        %2183 = vmatpush1.msra.mxu0 %v765
        %2184 = vmatprep.subr.mxu0 0.0
        %2185 = vmatpush1.msra.mxu0 %v764
        %2186 = vmatprep.subr.mxu0 0.0
        %2187 = vmatpush1.msra.mxu0 %v763
        %2188 = vmatprep.subr.mxu0 0.0
        %2189 = vmatpush1.msra.mxu0 %v762
        %2190 = vmatprep.subr.mxu0 0.0
        %2191 = vmatpush1.msra.mxu0 %v761
        %2192 = vmatprep.subr.mxu0 0.0
        %2193 = vmatpush2.msra.mxu0 0.0
        %2194 = vmatprep.subr.mxu0 0.0
        %2195 = vmatpush2.msra.mxu0 0.0
        %2196 = vmatprep.subr.mxu0 0.0
        %2197 = vmatpush2.msra.mxu0 0.0
        %2198 = vmatprep.subr.mxu0 0.0
        %2199 = vmatpush2.msra.mxu0 0.0
        %2200 = vmatprep.subr.mxu0 0.0
        %2201 = vmatpush2.msra.mxu0 0.0
        %2202 = vmatprep.subr.mxu0 0.0
        %2203 = vmatpush2.msra.mxu0 0.0
        %2204 = vmatprep.subr.mxu0 0.0
        %2205 = vmatpush2.msra.mxu0 0.0
        %2206 = vmatprep.subr.mxu0 0.0
        %2207 = vmatpush2.msra.mxu0 0.0
        %2208 = vmatprep.subr.mxu0 0.0
        %2209 = vmatpush2.msra.mxu0 0.0
        %2210 = vmatprep.subr.mxu0 0.0
        %2211 = vmatpush2.msra.mxu0 0.0
        %2212 = vmatprep.subr.mxu0 0.0
        %2213 = vmatpush2.msra.mxu0 0.0
        %2214 = vmatprep.subr.mxu0 0.0
        %2215 = vmatpush2.msra.mxu0 0.0
        %2216 = vmatprep.subr.mxu0 0.0
        %2217 = vmatpush2.msra.mxu0 0.0
        %2218 = vmatprep.subr.mxu0 0.0
        %2219 = vmatpush2.msra.mxu0 0.0
        %2220 = vmatprep.subr.mxu0 0.0
        %2221 = vmatpush2.msra.mxu0 0.0
        %2222 = vmatprep.subr.mxu0 0.0
        %2223 = vmatpush2.msra.mxu0 0.0
        %2224 = vmatprep.mubr.f32.mxu0 0.0
        %2225 = vmatmul.mubr.f32.gmra.mxu0 %v2016
        %v2226 = vpop.f32.mrf.mxu0
        %v2227 = vadd.f32 0.0, %v2226
        %v2228 = vpop.f32.mrf.mxu0
        %2229 = vdwg.mxu0
        %v2231 = vcombine.high %v2227, %v2227
        %v2232 = vrot.slane %v2227, 7
        %v2233 = vrot.slane %v2227, 1
        %v2234 = vrot.slane %v2227, 2
        %v2235 = vrot.slane %v2231, 7
        %v2236 = vrot.slane %v2231, 1
        %v2237 = vrot.slane %v2231, 2
        %v2246 = vadd.f32 %v1242, %v2232
        %v2247 = vadd.f32 %v1313, %v2227
        %v2248 = vadd.f32 %v1257, %v2233
        %v2249 = vadd.f32 %v1316, %v2234
        %v2250 = vadd.f32 %v1272, %v2235
        %v2251 = vadd.f32 %v1319, %v2231
        %v2252 = vadd.f32 %v1287, %v2236
        %v2253 = vadd.f32 %v1322, %v2237
        %v2254 = vxor.u32 %v2246, 2147483648
        %v2255 = vxor.u32 %v2247, 2147483648
        %v2256 = vxor.u32 %v2248, 2147483648
        %v2257 = vxor.u32 %v2249, 2147483648
        %v2258 = vxor.u32 %v2250, 2147483648
        %v2259 = vxor.u32 %v2251, 2147483648
        %v2260 = vxor.u32 %v2252, 2147483648
        %v2261 = vxor.u32 %v2253, 2147483648
        %v2262 = vmul.f32 %v2254, 1.442695
        %v2263 = vpow.pop %v2262
        %v2264 = vmul.f32 %v2255, 1.442695
        %v2265 = vpow.pop %v2264
        %v2266 = vmul.f32 %v2256, 1.442695
        %v2267 = vpow.pop %v2266
        %v2268 = vmul.f32 %v2257, 1.442695
        %v2269 = vpow.pop %v2268
        %v2270 = vmul.f32 %v2258, 1.442695
        %v2271 = vpow.pop %v2270
        %v2272 = vmul.f32 %v2259, 1.442695
        %v2273 = vpow.pop %v2272
        %v2274 = vmul.f32 %v2260, 1.442695
        %v2275 = vpow.pop %v2274
        %v2276 = vmul.f32 %v2261, 1.442695
        %v2277 = vpow.pop %v2276
        %v2278 = vadd.f32 %v2263, 1.0
        %v2279 = vadd.f32 %v2265, 1.0
        %v2280 = vadd.f32 %v2267, 1.0
        %v2281 = vadd.f32 %v2269, 1.0
        %v2282 = vadd.f32 %v2271, 1.0
        %v2283 = vadd.f32 %v2273, 1.0
        %v2284 = vadd.f32 %v2275, 1.0
        %v2285 = vadd.f32 %v2277, 1.0
        %v2286 = vrcp.pop %v2278
        %v2287 = vmul.f32 1.0, %v2286
        %v2288 = vrcp.pop %v2279
        %v2289 = vmul.f32 1.0, %v2288
        %v2290 = vrcp.pop %v2280
        %v2291 = vmul.f32 1.0, %v2290
        %v2292 = vrcp.pop %v2281
        %v2293 = vmul.f32 1.0, %v2292
        %v2294 = vrcp.pop %v2282
        %v2295 = vmul.f32 1.0, %v2294
        %v2296 = vrcp.pop %v2283
        %v2297 = vmul.f32 1.0, %v2296
        %v2298 = vrcp.pop %v2284
        %v2299 = vmul.f32 1.0, %v2298
        %v2300 = vrcp.pop %v2285
        %v2301 = vmul.f32 1.0, %v2300
        %2302 = vmatprep.subr.mxu0 0.0
        %2303 = vmatpush1.msra.mxu0 0.0
        %2304 = vmatprep.subr.mxu0 0.0
        %2305 = vmatpush1.msra.mxu0 0.0
        %2306 = vmatprep.subr.mxu0 0.0
        %2307 = vmatpush1.msra.mxu0 0.0
        %2308 = vmatprep.subr.mxu0 0.0
        %2309 = vmatpush1.msra.mxu0 0.0
        %2310 = vmatprep.subr.mxu0 0.0
        %2311 = vmatpush1.msra.mxu0 0.0
        %2312 = vmatprep.subr.mxu0 0.0
        %2313 = vmatpush1.msra.mxu0 0.0
        %2314 = vmatprep.subr.mxu0 0.0
        %2315 = vmatpush1.msra.mxu0 0.0
        %2316 = vmatprep.subr.mxu0 0.0
        %2317 = vmatpush1.msra.mxu0 0.0
        %2318 = vmatprep.subr.mxu0 0.0
        %2319 = vmatpush1.msra.mxu0 %v776
        %2320 = vmatprep.subr.mxu0 0.0
        %2321 = vmatpush1.msra.mxu0 %v775
        %2322 = vmatprep.subr.mxu0 0.0
        %2323 = vmatpush1.msra.mxu0 %v774
        %2324 = vmatprep.subr.mxu0 0.0
        %2325 = vmatpush1.msra.mxu0 %v773
        %2326 = vmatprep.subr.mxu0 0.0
        %2327 = vmatpush1.msra.mxu0 %v772
        %2328 = vmatprep.subr.mxu0 0.0
        %2329 = vmatpush1.msra.mxu0 %v771
        %2330 = vmatprep.subr.mxu0 0.0
        %2331 = vmatpush1.msra.mxu0 %v770
        %2332 = vmatprep.subr.mxu0 0.0
        %2333 = vmatpush1.msra.mxu0 %v769
        %2334 = vmatprep.subr.mxu0 0.0
        %2335 = vmatpush2.msra.mxu0 0.0
        %2336 = vmatprep.subr.mxu0 0.0
        %2337 = vmatpush2.msra.mxu0 0.0
        %2338 = vmatprep.subr.mxu0 0.0
        %2339 = vmatpush2.msra.mxu0 0.0
        %2340 = vmatprep.subr.mxu0 0.0
        %2341 = vmatpush2.msra.mxu0 0.0
        %2342 = vmatprep.subr.mxu0 0.0
        %2343 = vmatpush2.msra.mxu0 0.0
        %2344 = vmatprep.subr.mxu0 0.0
        %2345 = vmatpush2.msra.mxu0 0.0
        %2346 = vmatprep.subr.mxu0 0.0
        %2347 = vmatpush2.msra.mxu0 0.0
        %2348 = vmatprep.subr.mxu0 0.0
        %2349 = vmatpush2.msra.mxu0 0.0
        %2350 = vmatprep.subr.mxu0 0.0
        %2351 = vmatpush2.msra.mxu0 0.0
        %2352 = vmatprep.subr.mxu0 0.0
        %2353 = vmatpush2.msra.mxu0 0.0
        %2354 = vmatprep.subr.mxu0 0.0
        %2355 = vmatpush2.msra.mxu0 0.0
        %2356 = vmatprep.subr.mxu0 0.0
        %2357 = vmatpush2.msra.mxu0 0.0
        %2358 = vmatprep.subr.mxu0 0.0
        %2359 = vmatpush2.msra.mxu0 0.0
        %2360 = vmatprep.subr.mxu0 0.0
        %2361 = vmatpush2.msra.mxu0 0.0
        %2362 = vmatprep.subr.mxu0 0.0
        %2363 = vmatpush2.msra.mxu0 0.0
        %2364 = vmatprep.subr.mxu0 0.0
        %2365 = vmatpush2.msra.mxu0 0.0
        %2366 = vmatprep.mubr.f32.mxu0 0.0
        %2367 = vmatmul.mubr.f32.gmra.mxu0 %v2016
        %v2368 = vpop.f32.mrf.mxu0
        %v2369 = vadd.f32 %v1795, %v2368
        %v2370 = vpop.f32.mrf.mxu0
        %2371 = vdwg.mxu0
        %v2373 = vcombine.high %v2369, %v2369
        %v2374 = vrot.slane %v2369, 7
        %v2375 = vrot.slane %v2369, 1
        %v2376 = vrot.slane %v2369, 2
        %v2377 = vrot.slane %v2373, 7
        %v2378 = vrot.slane %v2373, 1
        %v2379 = vrot.slane %v2373, 2
        %v2388 = vmul.f32 %v2145, %v2374
        %v2389 = vmul.f32 %v2147, %v2369
        %v2390 = vmul.f32 %v2149, %v2375
        %v2391 = vmul.f32 %v2151, %v2376
        %v2392 = vmul.f32 %v2153, %v2377
        %v2393 = vmul.f32 %v2155, %v2373
        %v2394 = vmul.f32 %v2157, %v2378
        %v2395 = vmul.f32 %v2159, %v2379
        %v2396 = vadd.f32 %v1409, %v2388
        %v2397 = vadd.f32 %v1480, %v2389
        %v2398 = vadd.f32 %v1424, %v2390
        %v2399 = vadd.f32 %v1483, %v2391
        %v2400 = vadd.f32 %v1439, %v2392
        %v2401 = vadd.f32 %v1486, %v2393
        %v2402 = vadd.f32 %v1454, %v2394
        %v2403 = vadd.f32 %v1489, %v2395
        %v2404 = vtanh.pop %v2396
        %v2405 = vtanh.pop %v2397
        %v2406 = vtanh.pop %v2398
        %v2407 = vtanh.pop %v2399
        %v2408 = vtanh.pop %v2400
        %v2409 = vtanh.pop %v2401
        %v2410 = vtanh.pop %v2402
        %v2411 = vtanh.pop %v2403
        %v2412 = vsub.f32 1.0, %v2287
        %v2413 = vsub.f32 1.0, %v2289
        %v2414 = vsub.f32 1.0, %v2291
        %v2415 = vsub.f32 1.0, %v2293
        %v2416 = vsub.f32 1.0, %v2295
        %v2417 = vsub.f32 1.0, %v2297
        %v2418 = vsub.f32 1.0, %v2299
        %v2419 = vsub.f32 1.0, %v2301
        %v2420 = vmul.f32 %v2412, %v2404
        %v2421 = vmul.f32 %v2413, %v2405
        %v2422 = vmul.f32 %v2414, %v2406
        %v2423 = vmul.f32 %v2415, %v2407
        %v2424 = vmul.f32 %v2416, %v2408
        %v2425 = vmul.f32 %v2417, %v2409
        %v2426 = vmul.f32 %v2418, %v2410
        %v2427 = vmul.f32 %v2419, %v2411
        %v2428 = vrot.slane %v1954, 7
        %v2429 = vrot.slane %v1955, 7
        %v2430 = vrot.slane %v1956, 7
        %v2431 = vrot.slane %v1957, 7
        %v2432 = vrot.slane %v1958, 7
        %v2433 = vrot.slane %v1959, 7
        %v2434 = vrot.slane %v1960, 7
        %v2435 = vrot.slane %v1961, 7
        %v2444 = vmul.f32 %v2287, %v2428
        %v2445 = vmul.f32 %v2289, %v2429
        %v2446 = vmul.f32 %v2291, %v2430
        %v2447 = vmul.f32 %v2293, %v2431
        %v2448 = vmul.f32 %v2295, %v2432
        %v2449 = vmul.f32 %v2297, %v2433
        %v2450 = vmul.f32 %v2299, %v2434
        %v2451 = vmul.f32 %v2301, %v2435
        %v2452 = vadd.f32 %v2420, %v2444
        %v2453 = vadd.f32 %v2421, %v2445
        %v2454 = vadd.f32 %v2422, %v2446
        %v2455 = vadd.f32 %v2423, %v2447
        %v2456 = vadd.f32 %v2424, %v2448
        %v2457 = vadd.f32 %v2425, %v2449
        %v2458 = vadd.f32 %v2426, %v2450
        %v2459 = vadd.f32 %v2427, %v2451
        %p2460 = scmp.gt.s32.totalorder %s704, 1
        %s2461 = scalar_select %p2460, 1, 0
        %s2462 = scvt.s32.f32 %s2461
        %v2463 = vstv %s2462
        %v2464 = vmul.f32 %v2463, %v2452
        %v2465 = vmul.f32 %v2463, %v2453
        %v2466 = vmul.f32 %v2463, %v2454
        %v2467 = vmul.f32 %v2463, %v2455
        %v2468 = vmul.f32 %v2463, %v2456
        %v2469 = vmul.f32 %v2463, %v2457
        %v2470 = vmul.f32 %v2463, %v2458
        %v2471 = vmul.f32 %v2463, %v2459
        %s2472 = ssub.f32 1.0, %s2462
        %v2473 = vstv %s2472
        %v2474 = vmul.f32 %v2473, %v1954
        %v2475 = vmul.f32 %v2473, %v1955
        %v2476 = vmul.f32 %v2473, %v1956
        %v2477 = vmul.f32 %v2473, %v1957
        %v2478 = vmul.f32 %v2473, %v1958
        %v2479 = vmul.f32 %v2473, %v1959
        %v2480 = vmul.f32 %v2473, %v1960
        %v2481 = vmul.f32 %v2473, %v1961
        %v2490 = vrot.slane %v2474, 7
        %v2491 = vrot.slane %v2475, 7
        %v2492 = vrot.slane %v2476, 7
        %v2493 = vrot.slane %v2477, 7
        %v2494 = vrot.slane %v2478, 7
        %v2495 = vrot.slane %v2479, 7
        %v2496 = vrot.slane %v2480, 7
        %v2497 = vrot.slane %v2481, 7
        %v2506 = vadd.f32 %v2464, %v2490
        %v2507 = vadd.f32 %v2465, %v2491
        %v2508 = vadd.f32 %v2466, %v2492
        %v2509 = vadd.f32 %v2467, %v2493
        %v2510 = vadd.f32 %v2468, %v2494
        %v2511 = vadd.f32 %v2469, %v2495
        %v2512 = vadd.f32 %v2470, %v2496
        %v2513 = vadd.f32 %v2471, %v2497
        %v2522 = vlaneseq
        %v2523 = vshrl.u32 %v2522, 7
        %v2524 = vsub.s32 1, %v2523
        %v2525 = vrot.slane %v2506, %v2524
        %v2526 = vlaneseq
        %v2527 = vshrl.u32 %v2526, 7
        %v2528 = vsub.s32 1, %v2527
        %v2529 = vrot.slane %v2507, %v2528
        %v2530 = vlaneseq
        %v2531 = vshrl.u32 %v2530, 7
        %v2532 = vsub.s32 1, %v2531
        %v2533 = vrot.slane %v2508, %v2532
        %v2534 = vlaneseq
        %v2535 = vshrl.u32 %v2534, 7
        %v2536 = vsub.s32 1, %v2535
        %v2537 = vrot.slane %v2509, %v2536
        %v2538 = vlaneseq
        %v2539 = vshrl.u32 %v2538, 7
        %v2540 = vsub.s32 1, %v2539
        %v2541 = vrot.slane %v2510, %v2540
        %v2542 = vlaneseq
        %v2543 = vshrl.u32 %v2542, 7
        %v2544 = vsub.s32 1, %v2543
        %v2545 = vrot.slane %v2511, %v2544
        %v2546 = vlaneseq
        %v2547 = vshrl.u32 %v2546, 7
        %v2548 = vsub.s32 1, %v2547
        %v2549 = vrot.slane %v2512, %v2548
        %v2550 = vlaneseq
        %v2551 = vshrl.u32 %v2550, 7
        %v2552 = vsub.s32 1, %v2551
        %v2553 = vrot.slane %v2513, %v2552
        %v2554 = vsel %vm2002, %v2529, %v2525
        %v2555 = vsel %vm2004, %v2533, %v2554
        %v2556 = vsel %vm2006, %v2537, %v2555
        %v2557 = vsel %vm2008, %v2541, %v2556
        %v2558 = vsel %vm2010, %v2545, %v2557
        %v2559 = vsel %vm2012, %v2549, %v2558
        %v2560 = vsel %vm2014, %v2553, %v2559
        %v2561 = vsel %vm1503, %v2560, 0
        %2563 = vmatprep.subr.mxu0 0.0
        %2564 = vmatpush1.msra.mxu0 0.0
        %2565 = vmatprep.subr.mxu0 0.0
        %2566 = vmatpush1.msra.mxu0 0.0
        %2567 = vmatprep.subr.mxu0 0.0
        %2568 = vmatpush1.msra.mxu0 0.0
        %2569 = vmatprep.subr.mxu0 0.0
        %2570 = vmatpush1.msra.mxu0 0.0
        %2571 = vmatprep.subr.mxu0 0.0
        %2572 = vmatpush1.msra.mxu0 0.0
        %2573 = vmatprep.subr.mxu0 0.0
        %2574 = vmatpush1.msra.mxu0 0.0
        %2575 = vmatprep.subr.mxu0 0.0
        %2576 = vmatpush1.msra.mxu0 0.0
        %2577 = vmatprep.subr.mxu0 0.0
        %2578 = vmatpush1.msra.mxu0 0.0
        %2579 = vmatprep.subr.mxu0 0.0
        %2580 = vmatpush1.msra.mxu0 %v760
        %2581 = vmatprep.subr.mxu0 0.0
        %2582 = vmatpush1.msra.mxu0 %v759
        %2583 = vmatprep.subr.mxu0 0.0
        %2584 = vmatpush1.msra.mxu0 %v758
        %2585 = vmatprep.subr.mxu0 0.0
        %2586 = vmatpush1.msra.mxu0 %v757
        %2587 = vmatprep.subr.mxu0 0.0
        %2588 = vmatpush1.msra.mxu0 %v756
        %2589 = vmatprep.subr.mxu0 0.0
        %2590 = vmatpush1.msra.mxu0 %v755
        %2591 = vmatprep.subr.mxu0 0.0
        %2592 = vmatpush1.msra.mxu0 %v754
        %2593 = vmatprep.subr.mxu0 0.0
        %2594 = vmatpush1.msra.mxu0 %v753
        %2595 = vmatprep.subr.mxu0 0.0
        %2596 = vmatpush2.msra.mxu0 0.0
        %2597 = vmatprep.subr.mxu0 0.0
        %2598 = vmatpush2.msra.mxu0 0.0
        %2599 = vmatprep.subr.mxu0 0.0
        %2600 = vmatpush2.msra.mxu0 0.0
        %2601 = vmatprep.subr.mxu0 0.0
        %2602 = vmatpush2.msra.mxu0 0.0
        %2603 = vmatprep.subr.mxu0 0.0
        %2604 = vmatpush2.msra.mxu0 0.0
        %2605 = vmatprep.subr.mxu0 0.0
        %2606 = vmatpush2.msra.mxu0 0.0
        %2607 = vmatprep.subr.mxu0 0.0
        %2608 = vmatpush2.msra.mxu0 0.0
        %2609 = vmatprep.subr.mxu0 0.0
        %2610 = vmatpush2.msra.mxu0 0.0
        %2611 = vmatprep.subr.mxu0 0.0
        %2612 = vmatpush2.msra.mxu0 0.0
        %2613 = vmatprep.subr.mxu0 0.0
        %2614 = vmatpush2.msra.mxu0 0.0
        %2615 = vmatprep.subr.mxu0 0.0
        %2616 = vmatpush2.msra.mxu0 0.0
        %2617 = vmatprep.subr.mxu0 0.0
        %2618 = vmatpush2.msra.mxu0 0.0
        %2619 = vmatprep.subr.mxu0 0.0
        %2620 = vmatpush2.msra.mxu0 0.0
        %2621 = vmatprep.subr.mxu0 0.0
        %2622 = vmatpush2.msra.mxu0 0.0
        %2623 = vmatprep.subr.mxu0 0.0
        %2624 = vmatpush2.msra.mxu0 0.0
        %2625 = vmatprep.subr.mxu0 0.0
        %2626 = vmatpush2.msra.mxu0 0.0
        %2627 = vmatprep.mubr.f32.mxu0 0.0
        %2628 = vmatmul.mubr.f32.gmra.mxu0 %v2561
        %v2629 = vpop.f32.mrf.mxu0
        %v2630 = vadd.f32 0.0, %v2629
        %v2631 = vpop.f32.mrf.mxu0
        %2632 = vdwg.mxu0
        %v2634 = vcombine.high %v2630, %v2630
        %v2635 = vrot.slane %v2630, 6
        %v2636 = vrot.slane %v2630, 7
        %v2637 = vrot.slane %v2630, 1
        %v2638 = vrot.slane %v2634, 6
        %v2639 = vrot.slane %v2634, 7
        %v2640 = vrot.slane %v2634, 1
        %v2649 = vadd.f32 %v1075, %v2635
        %v2650 = vadd.f32 %v1146, %v2636
        %v2651 = vadd.f32 %v1090, %v2630
        %v2652 = vadd.f32 %v1149, %v2637
        %v2653 = vadd.f32 %v1105, %v2638
        %v2654 = vadd.f32 %v1152, %v2639
        %v2655 = vadd.f32 %v1120, %v2634
        %v2656 = vadd.f32 %v1155, %v2640
        %v2657 = vxor.u32 %v2649, 2147483648
        %v2658 = vxor.u32 %v2650, 2147483648
        %v2659 = vxor.u32 %v2651, 2147483648
        %v2660 = vxor.u32 %v2652, 2147483648
        %v2661 = vxor.u32 %v2653, 2147483648
        %v2662 = vxor.u32 %v2654, 2147483648
        %v2663 = vxor.u32 %v2655, 2147483648
        %v2664 = vxor.u32 %v2656, 2147483648
        %v2665 = vmul.f32 %v2657, 1.442695
        %v2666 = vpow.pop %v2665
        %v2667 = vmul.f32 %v2658, 1.442695
        %v2668 = vpow.pop %v2667
        %v2669 = vmul.f32 %v2659, 1.442695
        %v2670 = vpow.pop %v2669
        %v2671 = vmul.f32 %v2660, 1.442695
        %v2672 = vpow.pop %v2671
        %v2673 = vmul.f32 %v2661, 1.442695
        %v2674 = vpow.pop %v2673
        %v2675 = vmul.f32 %v2662, 1.442695
        %v2676 = vpow.pop %v2675
        %v2677 = vmul.f32 %v2663, 1.442695
        %v2678 = vpow.pop %v2677
        %v2679 = vmul.f32 %v2664, 1.442695
        %v2680 = vpow.pop %v2679
        %v2681 = vadd.f32 %v2666, 1.0
        %v2682 = vadd.f32 %v2668, 1.0
        %v2683 = vadd.f32 %v2670, 1.0
        %v2684 = vadd.f32 %v2672, 1.0
        %v2685 = vadd.f32 %v2674, 1.0
        %v2686 = vadd.f32 %v2676, 1.0
        %v2687 = vadd.f32 %v2678, 1.0
        %v2688 = vadd.f32 %v2680, 1.0
        %v2689 = vrcp.pop %v2681
        %v2690 = vmul.f32 1.0, %v2689
        %v2691 = vrcp.pop %v2682
        %v2692 = vmul.f32 1.0, %v2691
        %v2693 = vrcp.pop %v2683
        %v2694 = vmul.f32 1.0, %v2693
        %v2695 = vrcp.pop %v2684
        %v2696 = vmul.f32 1.0, %v2695
        %v2697 = vrcp.pop %v2685
        %v2698 = vmul.f32 1.0, %v2697
        %v2699 = vrcp.pop %v2686
        %v2700 = vmul.f32 1.0, %v2699
        %v2701 = vrcp.pop %v2687
        %v2702 = vmul.f32 1.0, %v2701
        %v2703 = vrcp.pop %v2688
        %v2704 = vmul.f32 1.0, %v2703
        %2705 = vmatprep.subr.mxu0 0.0
        %2706 = vmatpush1.msra.mxu0 0.0
        %2707 = vmatprep.subr.mxu0 0.0
        %2708 = vmatpush1.msra.mxu0 0.0
        %2709 = vmatprep.subr.mxu0 0.0
        %2710 = vmatpush1.msra.mxu0 0.0
        %2711 = vmatprep.subr.mxu0 0.0
        %2712 = vmatpush1.msra.mxu0 0.0
        %2713 = vmatprep.subr.mxu0 0.0
        %2714 = vmatpush1.msra.mxu0 0.0
        %2715 = vmatprep.subr.mxu0 0.0
        %2716 = vmatpush1.msra.mxu0 0.0
        %2717 = vmatprep.subr.mxu0 0.0
        %2718 = vmatpush1.msra.mxu0 0.0
        %2719 = vmatprep.subr.mxu0 0.0
        %2720 = vmatpush1.msra.mxu0 0.0
        %2721 = vmatprep.subr.mxu0 0.0
        %2722 = vmatpush1.msra.mxu0 %v768
        %2723 = vmatprep.subr.mxu0 0.0
        %2724 = vmatpush1.msra.mxu0 %v767
        %2725 = vmatprep.subr.mxu0 0.0
        %2726 = vmatpush1.msra.mxu0 %v766
        %2727 = vmatprep.subr.mxu0 0.0
        %2728 = vmatpush1.msra.mxu0 %v765
        %2729 = vmatprep.subr.mxu0 0.0
        %2730 = vmatpush1.msra.mxu0 %v764
        %2731 = vmatprep.subr.mxu0 0.0
        %2732 = vmatpush1.msra.mxu0 %v763
        %2733 = vmatprep.subr.mxu0 0.0
        %2734 = vmatpush1.msra.mxu0 %v762
        %2735 = vmatprep.subr.mxu0 0.0
        %2736 = vmatpush1.msra.mxu0 %v761
        %2737 = vmatprep.subr.mxu0 0.0
        %2738 = vmatpush2.msra.mxu0 0.0
        %2739 = vmatprep.subr.mxu0 0.0
        %2740 = vmatpush2.msra.mxu0 0.0
        %2741 = vmatprep.subr.mxu0 0.0
        %2742 = vmatpush2.msra.mxu0 0.0
        %2743 = vmatprep.subr.mxu0 0.0
        %2744 = vmatpush2.msra.mxu0 0.0
        %2745 = vmatprep.subr.mxu0 0.0
        %2746 = vmatpush2.msra.mxu0 0.0
        %2747 = vmatprep.subr.mxu0 0.0
        %2748 = vmatpush2.msra.mxu0 0.0
        %2749 = vmatprep.subr.mxu0 0.0
        %2750 = vmatpush2.msra.mxu0 0.0
        %2751 = vmatprep.subr.mxu0 0.0
        %2752 = vmatpush2.msra.mxu0 0.0
        %2753 = vmatprep.subr.mxu0 0.0
        %2754 = vmatpush2.msra.mxu0 0.0
        %2755 = vmatprep.subr.mxu0 0.0
        %2756 = vmatpush2.msra.mxu0 0.0
        %2757 = vmatprep.subr.mxu0 0.0
        %2758 = vmatpush2.msra.mxu0 0.0
        %2759 = vmatprep.subr.mxu0 0.0
        %2760 = vmatpush2.msra.mxu0 0.0
        %2761 = vmatprep.subr.mxu0 0.0
        %2762 = vmatpush2.msra.mxu0 0.0
        %2763 = vmatprep.subr.mxu0 0.0
        %2764 = vmatpush2.msra.mxu0 0.0
        %2765 = vmatprep.subr.mxu0 0.0
        %2766 = vmatpush2.msra.mxu0 0.0
        %2767 = vmatprep.subr.mxu0 0.0
        %2768 = vmatpush2.msra.mxu0 0.0
        %2769 = vmatprep.mubr.f32.mxu0 0.0
        %2770 = vmatmul.mubr.f32.gmra.mxu0 %v2561
        %v2771 = vpop.f32.mrf.mxu0
        %v2772 = vadd.f32 0.0, %v2771
        %v2773 = vpop.f32.mrf.mxu0
        %2774 = vdwg.mxu0
        %v2776 = vcombine.high %v2772, %v2772
        %v2777 = vrot.slane %v2772, 6
        %v2778 = vrot.slane %v2772, 7
        %v2779 = vrot.slane %v2772, 1
        %v2780 = vrot.slane %v2776, 6
        %v2781 = vrot.slane %v2776, 7
        %v2782 = vrot.slane %v2776, 1
        %v2791 = vadd.f32 %v1242, %v2777
        %v2792 = vadd.f32 %v1313, %v2778
        %v2793 = vadd.f32 %v1257, %v2772
        %v2794 = vadd.f32 %v1316, %v2779
        %v2795 = vadd.f32 %v1272, %v2780
        %v2796 = vadd.f32 %v1319, %v2781
        %v2797 = vadd.f32 %v1287, %v2776
        %v2798 = vadd.f32 %v1322, %v2782
        %v2799 = vxor.u32 %v2791, 2147483648
        %v2800 = vxor.u32 %v2792, 2147483648
        %v2801 = vxor.u32 %v2793, 2147483648
        %v2802 = vxor.u32 %v2794, 2147483648
        %v2803 = vxor.u32 %v2795, 2147483648
        %v2804 = vxor.u32 %v2796, 2147483648
        %v2805 = vxor.u32 %v2797, 2147483648
        %v2806 = vxor.u32 %v2798, 2147483648
        %v2807 = vmul.f32 %v2799, 1.442695
        %v2808 = vpow.pop %v2807
        %v2809 = vmul.f32 %v2800, 1.442695
        %v2810 = vpow.pop %v2809
        %v2811 = vmul.f32 %v2801, 1.442695
        %v2812 = vpow.pop %v2811
        %v2813 = vmul.f32 %v2802, 1.442695
        %v2814 = vpow.pop %v2813
        %v2815 = vmul.f32 %v2803, 1.442695
        %v2816 = vpow.pop %v2815
        %v2817 = vmul.f32 %v2804, 1.442695
        %v2818 = vpow.pop %v2817
        %v2819 = vmul.f32 %v2805, 1.442695
        %v2820 = vpow.pop %v2819
        %v2821 = vmul.f32 %v2806, 1.442695
        %v2822 = vpow.pop %v2821
        %v2823 = vadd.f32 %v2808, 1.0
        %v2824 = vadd.f32 %v2810, 1.0
        %v2825 = vadd.f32 %v2812, 1.0
        %v2826 = vadd.f32 %v2814, 1.0
        %v2827 = vadd.f32 %v2816, 1.0
        %v2828 = vadd.f32 %v2818, 1.0
        %v2829 = vadd.f32 %v2820, 1.0
        %v2830 = vadd.f32 %v2822, 1.0
        %v2831 = vrcp.pop %v2823
        %v2832 = vmul.f32 1.0, %v2831
        %v2833 = vrcp.pop %v2824
        %v2834 = vmul.f32 1.0, %v2833
        %v2835 = vrcp.pop %v2825
        %v2836 = vmul.f32 1.0, %v2835
        %v2837 = vrcp.pop %v2826
        %v2838 = vmul.f32 1.0, %v2837
        %v2839 = vrcp.pop %v2827
        %v2840 = vmul.f32 1.0, %v2839
        %v2841 = vrcp.pop %v2828
        %v2842 = vmul.f32 1.0, %v2841
        %v2843 = vrcp.pop %v2829
        %v2844 = vmul.f32 1.0, %v2843
        %v2845 = vrcp.pop %v2830
        %v2846 = vmul.f32 1.0, %v2845
        %2847 = vmatprep.subr.mxu0 0.0
        %2848 = vmatpush1.msra.mxu0 0.0
        %2849 = vmatprep.subr.mxu0 0.0
        %2850 = vmatpush1.msra.mxu0 0.0
        %2851 = vmatprep.subr.mxu0 0.0
        %2852 = vmatpush1.msra.mxu0 0.0
        %2853 = vmatprep.subr.mxu0 0.0
        %2854 = vmatpush1.msra.mxu0 0.0
        %2855 = vmatprep.subr.mxu0 0.0
        %2856 = vmatpush1.msra.mxu0 0.0
        %2857 = vmatprep.subr.mxu0 0.0
        %2858 = vmatpush1.msra.mxu0 0.0
        %2859 = vmatprep.subr.mxu0 0.0
        %2860 = vmatpush1.msra.mxu0 0.0
        %2861 = vmatprep.subr.mxu0 0.0
        %2862 = vmatpush1.msra.mxu0 0.0
        %2863 = vmatprep.subr.mxu0 0.0
        %2864 = vmatpush1.msra.mxu0 %v776
        %2865 = vmatprep.subr.mxu0 0.0
        %2866 = vmatpush1.msra.mxu0 %v775
        %2867 = vmatprep.subr.mxu0 0.0
        %2868 = vmatpush1.msra.mxu0 %v774
        %2869 = vmatprep.subr.mxu0 0.0
        %2870 = vmatpush1.msra.mxu0 %v773
        %2871 = vmatprep.subr.mxu0 0.0
        %2872 = vmatpush1.msra.mxu0 %v772
        %2873 = vmatprep.subr.mxu0 0.0
        %2874 = vmatpush1.msra.mxu0 %v771
        %2875 = vmatprep.subr.mxu0 0.0
        %2876 = vmatpush1.msra.mxu0 %v770
        %2877 = vmatprep.subr.mxu0 0.0
        %2878 = vmatpush1.msra.mxu0 %v769
        %2879 = vmatprep.subr.mxu0 0.0
        %2880 = vmatpush2.msra.mxu0 0.0
        %2881 = vmatprep.subr.mxu0 0.0
        %2882 = vmatpush2.msra.mxu0 0.0
        %2883 = vmatprep.subr.mxu0 0.0
        %2884 = vmatpush2.msra.mxu0 0.0
        %2885 = vmatprep.subr.mxu0 0.0
        %2886 = vmatpush2.msra.mxu0 0.0
        %2887 = vmatprep.subr.mxu0 0.0
        %2888 = vmatpush2.msra.mxu0 0.0
        %2889 = vmatprep.subr.mxu0 0.0
        %2890 = vmatpush2.msra.mxu0 0.0
        %2891 = vmatprep.subr.mxu0 0.0
        %2892 = vmatpush2.msra.mxu0 0.0
        %2893 = vmatprep.subr.mxu0 0.0
        %2894 = vmatpush2.msra.mxu0 0.0
        %2895 = vmatprep.subr.mxu0 0.0
        %2896 = vmatpush2.msra.mxu0 0.0
        %2897 = vmatprep.subr.mxu0 0.0
        %2898 = vmatpush2.msra.mxu0 0.0
        %2899 = vmatprep.subr.mxu0 0.0
        %2900 = vmatpush2.msra.mxu0 0.0
        %2901 = vmatprep.subr.mxu0 0.0
        %2902 = vmatpush2.msra.mxu0 0.0
        %2903 = vmatprep.subr.mxu0 0.0
        %2904 = vmatpush2.msra.mxu0 0.0
        %2905 = vmatprep.subr.mxu0 0.0
        %2906 = vmatpush2.msra.mxu0 0.0
        %2907 = vmatprep.subr.mxu0 0.0
        %2908 = vmatpush2.msra.mxu0 0.0
        %2909 = vmatprep.subr.mxu0 0.0
        %2910 = vmatpush2.msra.mxu0 0.0
        %2911 = vmatprep.mubr.f32.mxu0 0.0
        %2912 = vmatmul.mubr.f32.gmra.mxu0 %v2561
        %v2913 = vpop.f32.mrf.mxu0
        %v2914 = vadd.f32 %v1795, %v2913
        %v2915 = vpop.f32.mrf.mxu0
        %2916 = vdwg.mxu0
        %v2918 = vcombine.high %v2914, %v2914
        %v2919 = vrot.slane %v2914, 6
        %v2920 = vrot.slane %v2914, 7
        %v2921 = vrot.slane %v2914, 1
        %v2922 = vrot.slane %v2918, 6
        %v2923 = vrot.slane %v2918, 7
        %v2924 = vrot.slane %v2918, 1
        %v2933 = vmul.f32 %v2690, %v2919
        %v2934 = vmul.f32 %v2692, %v2920
        %v2935 = vmul.f32 %v2694, %v2914
        %v2936 = vmul.f32 %v2696, %v2921
        %v2937 = vmul.f32 %v2698, %v2922
        %v2938 = vmul.f32 %v2700, %v2923
        %v2939 = vmul.f32 %v2702, %v2918
        %v2940 = vmul.f32 %v2704, %v2924
        %v2941 = vadd.f32 %v1409, %v2933
        %v2942 = vadd.f32 %v1480, %v2934
        %v2943 = vadd.f32 %v1424, %v2935
        %v2944 = vadd.f32 %v1483, %v2936
        %v2945 = vadd.f32 %v1439, %v2937
        %v2946 = vadd.f32 %v1486, %v2938
        %v2947 = vadd.f32 %v1454, %v2939
        %v2948 = vadd.f32 %v1489, %v2940
        %v2949 = vtanh.pop %v2941
        %v2950 = vtanh.pop %v2942
        %v2951 = vtanh.pop %v2943
        %v2952 = vtanh.pop %v2944
        %v2953 = vtanh.pop %v2945
        %v2954 = vtanh.pop %v2946
        %v2955 = vtanh.pop %v2947
        %v2956 = vtanh.pop %v2948
        %v2957 = vsub.f32 1.0, %v2832
        %v2958 = vsub.f32 1.0, %v2834
        %v2959 = vsub.f32 1.0, %v2836
        %v2960 = vsub.f32 1.0, %v2838
        %v2961 = vsub.f32 1.0, %v2840
        %v2962 = vsub.f32 1.0, %v2842
        %v2963 = vsub.f32 1.0, %v2844
        %v2964 = vsub.f32 1.0, %v2846
        %v2965 = vmul.f32 %v2957, %v2949
        %v2966 = vmul.f32 %v2958, %v2950
        %v2967 = vmul.f32 %v2959, %v2951
        %v2968 = vmul.f32 %v2960, %v2952
        %v2969 = vmul.f32 %v2961, %v2953
        %v2970 = vmul.f32 %v2962, %v2954
        %v2971 = vmul.f32 %v2963, %v2955
        %v2972 = vmul.f32 %v2964, %v2956
        %v2973 = vrot.slane %v2506, 7
        %v2974 = vrot.slane %v2507, 7
        %v2975 = vrot.slane %v2508, 7
        %v2976 = vrot.slane %v2509, 7
        %v2977 = vrot.slane %v2510, 7
        %v2978 = vrot.slane %v2511, 7
        %v2979 = vrot.slane %v2512, 7
        %v2980 = vrot.slane %v2513, 7
        %v2989 = vmul.f32 %v2832, %v2973
        %v2990 = vmul.f32 %v2834, %v2974
        %v2991 = vmul.f32 %v2836, %v2975
        %v2992 = vmul.f32 %v2838, %v2976
        %v2993 = vmul.f32 %v2840, %v2977
        %v2994 = vmul.f32 %v2842, %v2978
        %v2995 = vmul.f32 %v2844, %v2979
        %v2996 = vmul.f32 %v2846, %v2980
        %v2997 = vadd.f32 %v2965, %v2989
        %v2998 = vadd.f32 %v2966, %v2990
        %v2999 = vadd.f32 %v2967, %v2991
        %v3000 = vadd.f32 %v2968, %v2992
        %v3001 = vadd.f32 %v2969, %v2993
        %v3002 = vadd.f32 %v2970, %v2994
        %v3003 = vadd.f32 %v2971, %v2995
        %v3004 = vadd.f32 %v2972, %v2996
        %p3005 = scmp.gt.s32.totalorder %s704, 2
        %s3006 = scalar_select %p3005, 1, 0
        %s3007 = scvt.s32.f32 %s3006
        %v3008 = vstv %s3007
        %v3009 = vmul.f32 %v3008, %v2997
        %v3010 = vmul.f32 %v3008, %v2998
        %v3011 = vmul.f32 %v3008, %v2999
        %v3012 = vmul.f32 %v3008, %v3000
        %v3013 = vmul.f32 %v3008, %v3001
        %v3014 = vmul.f32 %v3008, %v3002
        %v3015 = vmul.f32 %v3008, %v3003
        %v3016 = vmul.f32 %v3008, %v3004
        %s3017 = ssub.f32 1.0, %s3007
        %v3018 = vstv %s3017
        %v3019 = vmul.f32 %v3018, %v2506
        %v3020 = vmul.f32 %v3018, %v2507
        %v3021 = vmul.f32 %v3018, %v2508
        %v3022 = vmul.f32 %v3018, %v2509
        %v3023 = vmul.f32 %v3018, %v2510
        %v3024 = vmul.f32 %v3018, %v2511
        %v3025 = vmul.f32 %v3018, %v2512
        %v3026 = vmul.f32 %v3018, %v2513
        %v3035 = vrot.slane %v3019, 7
        %v3036 = vrot.slane %v3020, 7
        %v3037 = vrot.slane %v3021, 7
        %v3038 = vrot.slane %v3022, 7
        %v3039 = vrot.slane %v3023, 7
        %v3040 = vrot.slane %v3024, 7
        %v3041 = vrot.slane %v3025, 7
        %v3042 = vrot.slane %v3026, 7
        %v3051 = vadd.f32 %v3009, %v3035
        %v3052 = vadd.f32 %v3010, %v3036
        %v3053 = vadd.f32 %v3011, %v3037
        %v3054 = vadd.f32 %v3012, %v3038
        %v3055 = vadd.f32 %v3013, %v3039
        %v3056 = vadd.f32 %v3014, %v3040
        %v3057 = vadd.f32 %v3015, %v3041
        %v3058 = vadd.f32 %v3016, %v3042
        %v3067 = vlaneseq
        %v3068 = vshrl.u32 %v3067, 7
        %v3069 = vsub.s32 2, %v3068
        %v3070 = vrot.slane %v3051, %v3069
        %v3071 = vlaneseq
        %v3072 = vshrl.u32 %v3071, 7
        %v3073 = vsub.s32 2, %v3072
        %v3074 = vrot.slane %v3052, %v3073
        %v3075 = vlaneseq
        %v3076 = vshrl.u32 %v3075, 7
        %v3077 = vsub.s32 2, %v3076
        %v3078 = vrot.slane %v3053, %v3077
        %v3079 = vlaneseq
        %v3080 = vshrl.u32 %v3079, 7
        %v3081 = vsub.s32 2, %v3080
        %v3082 = vrot.slane %v3054, %v3081
        %v3083 = vlaneseq
        %v3084 = vshrl.u32 %v3083, 7
        %v3085 = vsub.s32 2, %v3084
        %v3086 = vrot.slane %v3055, %v3085
        %v3087 = vlaneseq
        %v3088 = vshrl.u32 %v3087, 7
        %v3089 = vsub.s32 2, %v3088
        %v3090 = vrot.slane %v3056, %v3089
        %v3091 = vlaneseq
        %v3092 = vshrl.u32 %v3091, 7
        %v3093 = vsub.s32 2, %v3092
        %v3094 = vrot.slane %v3057, %v3093
        %v3095 = vlaneseq
        %v3096 = vshrl.u32 %v3095, 7
        %v3097 = vsub.s32 2, %v3096
        %v3098 = vrot.slane %v3058, %v3097
        %v3099 = vsel %vm2002, %v3074, %v3070
        %v3100 = vsel %vm2004, %v3078, %v3099
        %v3101 = vsel %vm2006, %v3082, %v3100
        %v3102 = vsel %vm2008, %v3086, %v3101
        %v3103 = vsel %vm2010, %v3090, %v3102
        %v3104 = vsel %vm2012, %v3094, %v3103
        %v3105 = vsel %vm2014, %v3098, %v3104
        %v3106 = vsel %vm1503, %v3105, 0
        %3108 = vmatprep.subr.mxu0 0.0
        %3109 = vmatpush1.msra.mxu0 0.0
        %3110 = vmatprep.subr.mxu0 0.0
        %3111 = vmatpush1.msra.mxu0 0.0
        %3112 = vmatprep.subr.mxu0 0.0
        %3113 = vmatpush1.msra.mxu0 0.0
        %3114 = vmatprep.subr.mxu0 0.0
        %3115 = vmatpush1.msra.mxu0 0.0
        %3116 = vmatprep.subr.mxu0 0.0
        %3117 = vmatpush1.msra.mxu0 0.0
        %3118 = vmatprep.subr.mxu0 0.0
        %3119 = vmatpush1.msra.mxu0 0.0
        %3120 = vmatprep.subr.mxu0 0.0
        %3121 = vmatpush1.msra.mxu0 0.0
        %3122 = vmatprep.subr.mxu0 0.0
        %3123 = vmatpush1.msra.mxu0 0.0
        %3124 = vmatprep.subr.mxu0 0.0
        %3125 = vmatpush1.msra.mxu0 %v760
        %3126 = vmatprep.subr.mxu0 0.0
        %3127 = vmatpush1.msra.mxu0 %v759
        %3128 = vmatprep.subr.mxu0 0.0
        %3129 = vmatpush1.msra.mxu0 %v758
        %3130 = vmatprep.subr.mxu0 0.0
        %3131 = vmatpush1.msra.mxu0 %v757
        %3132 = vmatprep.subr.mxu0 0.0
        %3133 = vmatpush1.msra.mxu0 %v756
        %3134 = vmatprep.subr.mxu0 0.0
        %3135 = vmatpush1.msra.mxu0 %v755
        %3136 = vmatprep.subr.mxu0 0.0
        %3137 = vmatpush1.msra.mxu0 %v754
        %3138 = vmatprep.subr.mxu0 0.0
        %3139 = vmatpush1.msra.mxu0 %v753
        %3140 = vmatprep.subr.mxu0 0.0
        %3141 = vmatpush2.msra.mxu0 0.0
        %3142 = vmatprep.subr.mxu0 0.0
        %3143 = vmatpush2.msra.mxu0 0.0
        %3144 = vmatprep.subr.mxu0 0.0
        %3145 = vmatpush2.msra.mxu0 0.0
        %3146 = vmatprep.subr.mxu0 0.0
        %3147 = vmatpush2.msra.mxu0 0.0
        %3148 = vmatprep.subr.mxu0 0.0
        %3149 = vmatpush2.msra.mxu0 0.0
        %3150 = vmatprep.subr.mxu0 0.0
        %3151 = vmatpush2.msra.mxu0 0.0
        %3152 = vmatprep.subr.mxu0 0.0
        %3153 = vmatpush2.msra.mxu0 0.0
        %3154 = vmatprep.subr.mxu0 0.0
        %3155 = vmatpush2.msra.mxu0 0.0
        %3156 = vmatprep.subr.mxu0 0.0
        %3157 = vmatpush2.msra.mxu0 0.0
        %3158 = vmatprep.subr.mxu0 0.0
        %3159 = vmatpush2.msra.mxu0 0.0
        %3160 = vmatprep.subr.mxu0 0.0
        %3161 = vmatpush2.msra.mxu0 0.0
        %3162 = vmatprep.subr.mxu0 0.0
        %3163 = vmatpush2.msra.mxu0 0.0
        %3164 = vmatprep.subr.mxu0 0.0
        %3165 = vmatpush2.msra.mxu0 0.0
        %3166 = vmatprep.subr.mxu0 0.0
        %3167 = vmatpush2.msra.mxu0 0.0
        %3168 = vmatprep.subr.mxu0 0.0
        %3169 = vmatpush2.msra.mxu0 0.0
        %3170 = vmatprep.subr.mxu0 0.0
        %3171 = vmatpush2.msra.mxu0 0.0
        %3172 = vmatprep.mubr.f32.mxu0 0.0
        %3173 = vmatmul.mubr.f32.gmra.mxu0 %v3106
        %v3174 = vpop.f32.mrf.mxu0
        %v3175 = vadd.f32 0.0, %v3174
        %v3176 = vpop.f32.mrf.mxu0
        %3177 = vdwg.mxu0
        %v3179 = vcombine.high %v3175, %v3175
        %v3180 = vrot.slane %v3175, 5
        %v3181 = vrot.slane %v3175, 6
        %v3182 = vrot.slane %v3175, 7
        %v3183 = vrot.slane %v3179, 5
        %v3184 = vrot.slane %v3179, 6
        %v3185 = vrot.slane %v3179, 7
        %v3194 = vadd.f32 %v1075, %v3180
        %v3195 = vadd.f32 %v1146, %v3181
        %v3196 = vadd.f32 %v1090, %v3182
        %v3197 = vadd.f32 %v1149, %v3175
        %v3198 = vadd.f32 %v1105, %v3183
        %v3199 = vadd.f32 %v1152, %v3184
        %v3200 = vadd.f32 %v1120, %v3185
        %v3201 = vadd.f32 %v1155, %v3179
        %v3202 = vxor.u32 %v3194, 2147483648
        %v3203 = vxor.u32 %v3195, 2147483648
        %v3204 = vxor.u32 %v3196, 2147483648
        %v3205 = vxor.u32 %v3197, 2147483648
        %v3206 = vxor.u32 %v3198, 2147483648
        %v3207 = vxor.u32 %v3199, 2147483648
        %v3208 = vxor.u32 %v3200, 2147483648
        %v3209 = vxor.u32 %v3201, 2147483648
        %v3210 = vmul.f32 %v3202, 1.442695
        %v3211 = vpow.pop %v3210
        %v3212 = vmul.f32 %v3203, 1.442695
        %v3213 = vpow.pop %v3212
        %v3214 = vmul.f32 %v3204, 1.442695
        %v3215 = vpow.pop %v3214
        %v3216 = vmul.f32 %v3205, 1.442695
        %v3217 = vpow.pop %v3216
        %v3218 = vmul.f32 %v3206, 1.442695
        %v3219 = vpow.pop %v3218
        %v3220 = vmul.f32 %v3207, 1.442695
        %v3221 = vpow.pop %v3220
        %v3222 = vmul.f32 %v3208, 1.442695
        %v3223 = vpow.pop %v3222
        %v3224 = vmul.f32 %v3209, 1.442695
        %v3225 = vpow.pop %v3224
        %v3226 = vadd.f32 %v3211, 1.0
        %v3227 = vadd.f32 %v3213, 1.0
        %v3228 = vadd.f32 %v3215, 1.0
        %v3229 = vadd.f32 %v3217, 1.0
        %v3230 = vadd.f32 %v3219, 1.0
        %v3231 = vadd.f32 %v3221, 1.0
        %v3232 = vadd.f32 %v3223, 1.0
        %v3233 = vadd.f32 %v3225, 1.0
        %v3234 = vrcp.pop %v3226
        %v3235 = vmul.f32 1.0, %v3234
        %v3236 = vrcp.pop %v3227
        %v3237 = vmul.f32 1.0, %v3236
        %v3238 = vrcp.pop %v3228
        %v3239 = vmul.f32 1.0, %v3238
        %v3240 = vrcp.pop %v3229
        %v3241 = vmul.f32 1.0, %v3240
        %v3242 = vrcp.pop %v3230
        %v3243 = vmul.f32 1.0, %v3242
        %v3244 = vrcp.pop %v3231
        %v3245 = vmul.f32 1.0, %v3244
        %v3246 = vrcp.pop %v3232
        %v3247 = vmul.f32 1.0, %v3246
        %v3248 = vrcp.pop %v3233
        %v3249 = vmul.f32 1.0, %v3248
        %3250 = vmatprep.subr.mxu0 0.0
        %3251 = vmatpush1.msra.mxu0 0.0
        %3252 = vmatprep.subr.mxu0 0.0
        %3253 = vmatpush1.msra.mxu0 0.0
        %3254 = vmatprep.subr.mxu0 0.0
        %3255 = vmatpush1.msra.mxu0 0.0
        %3256 = vmatprep.subr.mxu0 0.0
        %3257 = vmatpush1.msra.mxu0 0.0
        %3258 = vmatprep.subr.mxu0 0.0
        %3259 = vmatpush1.msra.mxu0 0.0
        %3260 = vmatprep.subr.mxu0 0.0
        %3261 = vmatpush1.msra.mxu0 0.0
        %3262 = vmatprep.subr.mxu0 0.0
        %3263 = vmatpush1.msra.mxu0 0.0
        %3264 = vmatprep.subr.mxu0 0.0
        %3265 = vmatpush1.msra.mxu0 0.0
        %3266 = vmatprep.subr.mxu0 0.0
        %3267 = vmatpush1.msra.mxu0 %v768
        %3268 = vmatprep.subr.mxu0 0.0
        %3269 = vmatpush1.msra.mxu0 %v767
        %3270 = vmatprep.subr.mxu0 0.0
        %3271 = vmatpush1.msra.mxu0 %v766
        %3272 = vmatprep.subr.mxu0 0.0
        %3273 = vmatpush1.msra.mxu0 %v765
        %3274 = vmatprep.subr.mxu0 0.0
        %3275 = vmatpush1.msra.mxu0 %v764
        %3276 = vmatprep.subr.mxu0 0.0
        %3277 = vmatpush1.msra.mxu0 %v763
        %3278 = vmatprep.subr.mxu0 0.0
        %3279 = vmatpush1.msra.mxu0 %v762
        %3280 = vmatprep.subr.mxu0 0.0
        %3281 = vmatpush1.msra.mxu0 %v761
        %3282 = vmatprep.subr.mxu0 0.0
        %3283 = vmatpush2.msra.mxu0 0.0
        %3284 = vmatprep.subr.mxu0 0.0
        %3285 = vmatpush2.msra.mxu0 0.0
        %3286 = vmatprep.subr.mxu0 0.0
        %3287 = vmatpush2.msra.mxu0 0.0
        %3288 = vmatprep.subr.mxu0 0.0
        %3289 = vmatpush2.msra.mxu0 0.0
        %3290 = vmatprep.subr.mxu0 0.0
        %3291 = vmatpush2.msra.mxu0 0.0
        %3292 = vmatprep.subr.mxu0 0.0
        %3293 = vmatpush2.msra.mxu0 0.0
        %3294 = vmatprep.subr.mxu0 0.0
        %3295 = vmatpush2.msra.mxu0 0.0
        %3296 = vmatprep.subr.mxu0 0.0
        %3297 = vmatpush2.msra.mxu0 0.0
        %3298 = vmatprep.subr.mxu0 0.0
        %3299 = vmatpush2.msra.mxu0 0.0
        %3300 = vmatprep.subr.mxu0 0.0
        %3301 = vmatpush2.msra.mxu0 0.0
        %3302 = vmatprep.subr.mxu0 0.0
        %3303 = vmatpush2.msra.mxu0 0.0
        %3304 = vmatprep.subr.mxu0 0.0
        %3305 = vmatpush2.msra.mxu0 0.0
        %3306 = vmatprep.subr.mxu0 0.0
        %3307 = vmatpush2.msra.mxu0 0.0
        %3308 = vmatprep.subr.mxu0 0.0
        %3309 = vmatpush2.msra.mxu0 0.0
        %3310 = vmatprep.subr.mxu0 0.0
        %3311 = vmatpush2.msra.mxu0 0.0
        %3312 = vmatprep.subr.mxu0 0.0
        %3313 = vmatpush2.msra.mxu0 0.0
        %3314 = vmatprep.mubr.f32.mxu0 0.0
        %3315 = vmatmul.mubr.f32.gmra.mxu0 %v3106
        %v3316 = vpop.f32.mrf.mxu0
        %v3317 = vadd.f32 0.0, %v3316
        %v3318 = vpop.f32.mrf.mxu0
        %3319 = vdwg.mxu0
        %v3321 = vcombine.high %v3317, %v3317
        %v3322 = vrot.slane %v3317, 5
        %v3323 = vrot.slane %v3317, 6
        %v3324 = vrot.slane %v3317, 7
        %v3325 = vrot.slane %v3321, 5
        %v3326 = vrot.slane %v3321, 6
        %v3327 = vrot.slane %v3321, 7
        %v3336 = vadd.f32 %v1242, %v3322
        %v3337 = vadd.f32 %v1313, %v3323
        %v3338 = vadd.f32 %v1257, %v3324
        %v3339 = vadd.f32 %v1316, %v3317
        %v3340 = vadd.f32 %v1272, %v3325
        %v3341 = vadd.f32 %v1319, %v3326
        %v3342 = vadd.f32 %v1287, %v3327
        %v3343 = vadd.f32 %v1322, %v3321
        %v3344 = vxor.u32 %v3336, 2147483648
        %v3345 = vxor.u32 %v3337, 2147483648
        %v3346 = vxor.u32 %v3338, 2147483648
        %v3347 = vxor.u32 %v3339, 2147483648
        %v3348 = vxor.u32 %v3340, 2147483648
        %v3349 = vxor.u32 %v3341, 2147483648
        %v3350 = vxor.u32 %v3342, 2147483648
        %v3351 = vxor.u32 %v3343, 2147483648
        %v3352 = vmul.f32 %v3344, 1.442695
        %v3353 = vpow.pop %v3352
        %v3354 = vmul.f32 %v3345, 1.442695
        %v3355 = vpow.pop %v3354
        %v3356 = vmul.f32 %v3346, 1.442695
        %v3357 = vpow.pop %v3356
        %v3358 = vmul.f32 %v3347, 1.442695
        %v3359 = vpow.pop %v3358
        %v3360 = vmul.f32 %v3348, 1.442695
        %v3361 = vpow.pop %v3360
        %v3362 = vmul.f32 %v3349, 1.442695
        %v3363 = vpow.pop %v3362
        %v3364 = vmul.f32 %v3350, 1.442695
        %v3365 = vpow.pop %v3364
        %v3366 = vmul.f32 %v3351, 1.442695
        %v3367 = vpow.pop %v3366
        %v3368 = vadd.f32 %v3353, 1.0
        %v3369 = vadd.f32 %v3355, 1.0
        %v3370 = vadd.f32 %v3357, 1.0
        %v3371 = vadd.f32 %v3359, 1.0
        %v3372 = vadd.f32 %v3361, 1.0
        %v3373 = vadd.f32 %v3363, 1.0
        %v3374 = vadd.f32 %v3365, 1.0
        %v3375 = vadd.f32 %v3367, 1.0
        %v3376 = vrcp.pop %v3368
        %v3377 = vmul.f32 1.0, %v3376
        %v3378 = vrcp.pop %v3369
        %v3379 = vmul.f32 1.0, %v3378
        %v3380 = vrcp.pop %v3370
        %v3381 = vmul.f32 1.0, %v3380
        %v3382 = vrcp.pop %v3371
        %v3383 = vmul.f32 1.0, %v3382
        %v3384 = vrcp.pop %v3372
        %v3385 = vmul.f32 1.0, %v3384
        %v3386 = vrcp.pop %v3373
        %v3387 = vmul.f32 1.0, %v3386
        %v3388 = vrcp.pop %v3374
        %v3389 = vmul.f32 1.0, %v3388
        %v3390 = vrcp.pop %v3375
        %v3391 = vmul.f32 1.0, %v3390
        %3392 = vmatprep.subr.mxu0 0.0
        %3393 = vmatpush1.msra.mxu0 0.0
        %3394 = vmatprep.subr.mxu0 0.0
        %3395 = vmatpush1.msra.mxu0 0.0
        %3396 = vmatprep.subr.mxu0 0.0
        %3397 = vmatpush1.msra.mxu0 0.0
        %3398 = vmatprep.subr.mxu0 0.0
        %3399 = vmatpush1.msra.mxu0 0.0
        %3400 = vmatprep.subr.mxu0 0.0
        %3401 = vmatpush1.msra.mxu0 0.0
        %3402 = vmatprep.subr.mxu0 0.0
        %3403 = vmatpush1.msra.mxu0 0.0
        %3404 = vmatprep.subr.mxu0 0.0
        %3405 = vmatpush1.msra.mxu0 0.0
        %3406 = vmatprep.subr.mxu0 0.0
        %3407 = vmatpush1.msra.mxu0 0.0
        %3408 = vmatprep.subr.mxu0 0.0
        %3409 = vmatpush1.msra.mxu0 %v776
        %3410 = vmatprep.subr.mxu0 0.0
        %3411 = vmatpush1.msra.mxu0 %v775
        %3412 = vmatprep.subr.mxu0 0.0
        %3413 = vmatpush1.msra.mxu0 %v774
        %3414 = vmatprep.subr.mxu0 0.0
        %3415 = vmatpush1.msra.mxu0 %v773
        %3416 = vmatprep.subr.mxu0 0.0
        %3417 = vmatpush1.msra.mxu0 %v772
        %3418 = vmatprep.subr.mxu0 0.0
        %3419 = vmatpush1.msra.mxu0 %v771
        %3420 = vmatprep.subr.mxu0 0.0
        %3421 = vmatpush1.msra.mxu0 %v770
        %3422 = vmatprep.subr.mxu0 0.0
        %3423 = vmatpush1.msra.mxu0 %v769
        %3424 = vmatprep.subr.mxu0 0.0
        %3425 = vmatpush2.msra.mxu0 0.0
        %3426 = vmatprep.subr.mxu0 0.0
        %3427 = vmatpush2.msra.mxu0 0.0
        %3428 = vmatprep.subr.mxu0 0.0
        %3429 = vmatpush2.msra.mxu0 0.0
        %3430 = vmatprep.subr.mxu0 0.0
        %3431 = vmatpush2.msra.mxu0 0.0
        %3432 = vmatprep.subr.mxu0 0.0
        %3433 = vmatpush2.msra.mxu0 0.0
        %3434 = vmatprep.subr.mxu0 0.0
        %3435 = vmatpush2.msra.mxu0 0.0
        %3436 = vmatprep.subr.mxu0 0.0
        %3437 = vmatpush2.msra.mxu0 0.0
        %3438 = vmatprep.subr.mxu0 0.0
        %3439 = vmatpush2.msra.mxu0 0.0
        %3440 = vmatprep.subr.mxu0 0.0
        %3441 = vmatpush2.msra.mxu0 0.0
        %3442 = vmatprep.subr.mxu0 0.0
        %3443 = vmatpush2.msra.mxu0 0.0
        %3444 = vmatprep.subr.mxu0 0.0
        %3445 = vmatpush2.msra.mxu0 0.0
        %3446 = vmatprep.subr.mxu0 0.0
        %3447 = vmatpush2.msra.mxu0 0.0
        %3448 = vmatprep.subr.mxu0 0.0
        %3449 = vmatpush2.msra.mxu0 0.0
        %3450 = vmatprep.subr.mxu0 0.0
        %3451 = vmatpush2.msra.mxu0 0.0
        %3452 = vmatprep.subr.mxu0 0.0
        %3453 = vmatpush2.msra.mxu0 0.0
        %3454 = vmatprep.subr.mxu0 0.0
        %3455 = vmatpush2.msra.mxu0 0.0
        %3456 = vmatprep.mubr.f32.mxu0 0.0
        %3457 = vmatmul.mubr.f32.gmra.mxu0 %v3106
        %v3458 = vpop.f32.mrf.mxu0
        %v3459 = vadd.f32 %v1795, %v3458
        %v3460 = vpop.f32.mrf.mxu0
        %3461 = vdwg.mxu0
        %v3463 = vcombine.high %v3459, %v3459
        %v3464 = vrot.slane %v3459, 5
        %v3465 = vrot.slane %v3459, 6
        %v3466 = vrot.slane %v3459, 7
        %v3467 = vrot.slane %v3463, 5
        %v3468 = vrot.slane %v3463, 6
        %v3469 = vrot.slane %v3463, 7
        %v3478 = vmul.f32 %v3235, %v3464
        %v3479 = vmul.f32 %v3237, %v3465
        %v3480 = vmul.f32 %v3239, %v3466
        %v3481 = vmul.f32 %v3241, %v3459
        %v3482 = vmul.f32 %v3243, %v3467
        %v3483 = vmul.f32 %v3245, %v3468
        %v3484 = vmul.f32 %v3247, %v3469
        %v3485 = vmul.f32 %v3249, %v3463
        %v3486 = vadd.f32 %v1409, %v3478
        %v3487 = vadd.f32 %v1480, %v3479
        %v3488 = vadd.f32 %v1424, %v3480
        %v3489 = vadd.f32 %v1483, %v3481
        %v3490 = vadd.f32 %v1439, %v3482
        %v3491 = vadd.f32 %v1486, %v3483
        %v3492 = vadd.f32 %v1454, %v3484
        %v3493 = vadd.f32 %v1489, %v3485
        %v3494 = vtanh.pop %v3486
        %v3495 = vtanh.pop %v3487
        %v3496 = vtanh.pop %v3488
        %v3497 = vtanh.pop %v3489
        %v3498 = vtanh.pop %v3490
        %v3499 = vtanh.pop %v3491
        %v3500 = vtanh.pop %v3492
        %v3501 = vtanh.pop %v3493
        %v3502 = vsub.f32 1.0, %v3377
        %v3503 = vsub.f32 1.0, %v3379
        %v3504 = vsub.f32 1.0, %v3381
        %v3505 = vsub.f32 1.0, %v3383
        %v3506 = vsub.f32 1.0, %v3385
        %v3507 = vsub.f32 1.0, %v3387
        %v3508 = vsub.f32 1.0, %v3389
        %v3509 = vsub.f32 1.0, %v3391
        %v3510 = vmul.f32 %v3502, %v3494
        %v3511 = vmul.f32 %v3503, %v3495
        %v3512 = vmul.f32 %v3504, %v3496
        %v3513 = vmul.f32 %v3505, %v3497
        %v3514 = vmul.f32 %v3506, %v3498
        %v3515 = vmul.f32 %v3507, %v3499
        %v3516 = vmul.f32 %v3508, %v3500
        %v3517 = vmul.f32 %v3509, %v3501
        %v3518 = vrot.slane %v3051, 7
        %v3519 = vrot.slane %v3052, 7
        %v3520 = vrot.slane %v3053, 7
        %v3521 = vrot.slane %v3054, 7
        %v3522 = vrot.slane %v3055, 7
        %v3523 = vrot.slane %v3056, 7
        %v3524 = vrot.slane %v3057, 7
        %v3525 = vrot.slane %v3058, 7
        %v3534 = vmul.f32 %v3377, %v3518
        %v3535 = vmul.f32 %v3379, %v3519
        %v3536 = vmul.f32 %v3381, %v3520
        %v3537 = vmul.f32 %v3383, %v3521
        %v3538 = vmul.f32 %v3385, %v3522
        %v3539 = vmul.f32 %v3387, %v3523
        %v3540 = vmul.f32 %v3389, %v3524
        %v3541 = vmul.f32 %v3391, %v3525
        %v3542 = vadd.f32 %v3510, %v3534
        %v3543 = vadd.f32 %v3511, %v3535
        %v3544 = vadd.f32 %v3512, %v3536
        %v3545 = vadd.f32 %v3513, %v3537
        %v3546 = vadd.f32 %v3514, %v3538
        %v3547 = vadd.f32 %v3515, %v3539
        %v3548 = vadd.f32 %v3516, %v3540
        %v3549 = vadd.f32 %v3517, %v3541
        %p3550 = scmp.gt.s32.totalorder %s704, 3
        %s3551 = scalar_select %p3550, 1, 0
        %s3552 = scvt.s32.f32 %s3551
        %v3553 = vstv %s3552
        %v3554 = vmul.f32 %v3553, %v3542
        %v3555 = vmul.f32 %v3553, %v3543
        %v3556 = vmul.f32 %v3553, %v3544
        %v3557 = vmul.f32 %v3553, %v3545
        %v3558 = vmul.f32 %v3553, %v3546
        %v3559 = vmul.f32 %v3553, %v3547
        %v3560 = vmul.f32 %v3553, %v3548
        %v3561 = vmul.f32 %v3553, %v3549
        %s3562 = ssub.f32 1.0, %s3552
        %v3563 = vstv %s3562
        %v3564 = vmul.f32 %v3563, %v3051
        %v3565 = vmul.f32 %v3563, %v3052
        %v3566 = vmul.f32 %v3563, %v3053
        %v3567 = vmul.f32 %v3563, %v3054
        %v3568 = vmul.f32 %v3563, %v3055
        %v3569 = vmul.f32 %v3563, %v3056
        %v3570 = vmul.f32 %v3563, %v3057
        %v3571 = vmul.f32 %v3563, %v3058
        %v3580 = vrot.slane %v3564, 7
        %v3581 = vrot.slane %v3565, 7
        %v3582 = vrot.slane %v3566, 7
        %v3583 = vrot.slane %v3567, 7
        %v3584 = vrot.slane %v3568, 7
        %v3585 = vrot.slane %v3569, 7
        %v3586 = vrot.slane %v3570, 7
        %v3587 = vrot.slane %v3571, 7
        %v3596 = vadd.f32 %v3554, %v3580
        %v3597 = vadd.f32 %v3555, %v3581
        %v3598 = vadd.f32 %v3556, %v3582
        %v3599 = vadd.f32 %v3557, %v3583
        %v3600 = vadd.f32 %v3558, %v3584
        %v3601 = vadd.f32 %v3559, %v3585
        %v3602 = vadd.f32 %v3560, %v3586
        %v3603 = vadd.f32 %v3561, %v3587
        %v3612 = vlaneseq
        %v3613 = vshrl.u32 %v3612, 7
        %v3614 = vsub.s32 3, %v3613
        %v3615 = vrot.slane %v3596, %v3614
        %v3616 = vlaneseq
        %v3617 = vshrl.u32 %v3616, 7
        %v3618 = vsub.s32 3, %v3617
        %v3619 = vrot.slane %v3597, %v3618
        %v3620 = vlaneseq
        %v3621 = vshrl.u32 %v3620, 7
        %v3622 = vsub.s32 3, %v3621
        %v3623 = vrot.slane %v3598, %v3622
        %v3624 = vlaneseq
        %v3625 = vshrl.u32 %v3624, 7
        %v3626 = vsub.s32 3, %v3625
        %v3627 = vrot.slane %v3599, %v3626
        %v3628 = vlaneseq
        %v3629 = vshrl.u32 %v3628, 7
        %v3630 = vsub.s32 3, %v3629
        %v3631 = vrot.slane %v3600, %v3630
        %v3632 = vlaneseq
        %v3633 = vshrl.u32 %v3632, 7
        %v3634 = vsub.s32 3, %v3633
        %v3635 = vrot.slane %v3601, %v3634
        %v3636 = vlaneseq
        %v3637 = vshrl.u32 %v3636, 7
        %v3638 = vsub.s32 3, %v3637
        %v3639 = vrot.slane %v3602, %v3638
        %v3640 = vlaneseq
        %v3641 = vshrl.u32 %v3640, 7
        %v3642 = vsub.s32 3, %v3641
        %v3643 = vrot.slane %v3603, %v3642
        %v3644 = vsel %vm2002, %v3619, %v3615
        %v3645 = vsel %vm2004, %v3623, %v3644
        %v3646 = vsel %vm2006, %v3627, %v3645
        %v3647 = vsel %vm2008, %v3631, %v3646
        %v3648 = vsel %vm2010, %v3635, %v3647
        %v3649 = vsel %vm2012, %v3639, %v3648
        %v3650 = vsel %vm2014, %v3643, %v3649
        %v3651 = vsel %vm1503, %v3650, 0
        %3653 = vmatprep.subr.mxu0 0.0
        %3654 = vmatpush1.msra.mxu0 0.0
        %3655 = vmatprep.subr.mxu0 0.0
        %3656 = vmatpush1.msra.mxu0 0.0
        %3657 = vmatprep.subr.mxu0 0.0
        %3658 = vmatpush1.msra.mxu0 0.0
        %3659 = vmatprep.subr.mxu0 0.0
        %3660 = vmatpush1.msra.mxu0 0.0
        %3661 = vmatprep.subr.mxu0 0.0
        %3662 = vmatpush1.msra.mxu0 0.0
        %3663 = vmatprep.subr.mxu0 0.0
        %3664 = vmatpush1.msra.mxu0 0.0
        %3665 = vmatprep.subr.mxu0 0.0
        %3666 = vmatpush1.msra.mxu0 0.0
        %3667 = vmatprep.subr.mxu0 0.0
        %3668 = vmatpush1.msra.mxu0 0.0
        %3669 = vmatprep.subr.mxu0 0.0
        %3670 = vmatpush1.msra.mxu0 %v760
        %3671 = vmatprep.subr.mxu0 0.0
        %3672 = vmatpush1.msra.mxu0 %v759
        %3673 = vmatprep.subr.mxu0 0.0
        %3674 = vmatpush1.msra.mxu0 %v758
        %3675 = vmatprep.subr.mxu0 0.0
        %3676 = vmatpush1.msra.mxu0 %v757
        %3677 = vmatprep.subr.mxu0 0.0
        %3678 = vmatpush1.msra.mxu0 %v756
        %3679 = vmatprep.subr.mxu0 0.0
        %3680 = vmatpush1.msra.mxu0 %v755
        %3681 = vmatprep.subr.mxu0 0.0
        %3682 = vmatpush1.msra.mxu0 %v754
        %3683 = vmatprep.subr.mxu0 0.0
        %3684 = vmatpush1.msra.mxu0 %v753
        %3685 = vmatprep.subr.mxu0 0.0
        %3686 = vmatpush2.msra.mxu0 0.0
        %3687 = vmatprep.subr.mxu0 0.0
        %3688 = vmatpush2.msra.mxu0 0.0
        %3689 = vmatprep.subr.mxu0 0.0
        %3690 = vmatpush2.msra.mxu0 0.0
        %3691 = vmatprep.subr.mxu0 0.0
        %3692 = vmatpush2.msra.mxu0 0.0
        %3693 = vmatprep.subr.mxu0 0.0
        %3694 = vmatpush2.msra.mxu0 0.0
        %3695 = vmatprep.subr.mxu0 0.0
        %3696 = vmatpush2.msra.mxu0 0.0
        %3697 = vmatprep.subr.mxu0 0.0
        %3698 = vmatpush2.msra.mxu0 0.0
        %3699 = vmatprep.subr.mxu0 0.0
        %3700 = vmatpush2.msra.mxu0 0.0
        %3701 = vmatprep.subr.mxu0 0.0
        %3702 = vmatpush2.msra.mxu0 0.0
        %3703 = vmatprep.subr.mxu0 0.0
        %3704 = vmatpush2.msra.mxu0 0.0
        %3705 = vmatprep.subr.mxu0 0.0
        %3706 = vmatpush2.msra.mxu0 0.0
        %3707 = vmatprep.subr.mxu0 0.0
        %3708 = vmatpush2.msra.mxu0 0.0
        %3709 = vmatprep.subr.mxu0 0.0
        %3710 = vmatpush2.msra.mxu0 0.0
        %3711 = vmatprep.subr.mxu0 0.0
        %3712 = vmatpush2.msra.mxu0 0.0
        %3713 = vmatprep.subr.mxu0 0.0
        %3714 = vmatpush2.msra.mxu0 0.0
        %3715 = vmatprep.subr.mxu0 0.0
        %3716 = vmatpush2.msra.mxu0 0.0
        %3717 = vmatprep.mubr.f32.mxu0 0.0
        %3718 = vmatmul.mubr.f32.gmra.mxu0 %v3651
        %v3719 = vpop.f32.mrf.mxu0
        %v3720 = vadd.f32 0.0, %v3719
        %v3721 = vpop.f32.mrf.mxu0
        %3722 = vdwg.mxu0
        %v3724 = vcombine.high %v3720, %v3720
        %v3725 = vrot.slane %v3720, 1
        %v3726 = vrot.slane %v3720, 2
        %v3727 = vrot.slane %v3720, 3
        %v3728 = vrot.slane %v3724, 1
        %v3729 = vrot.slane %v3724, 2
        %v3730 = vrot.slane %v3724, 3
        %v3739 = vadd.f32 %v1145, %v3720
        %v3740 = vadd.f32 %v1085, %v3725
        %v3741 = vadd.f32 %v1148, %v3726
        %v3742 = vadd.f32 %v1100, %v3727
        %v3743 = vadd.f32 %v1151, %v3724
        %v3744 = vadd.f32 %v1115, %v3728
        %v3745 = vadd.f32 %v1154, %v3729
        %v3746 = vadd.f32 %v1130, %v3730
        %v3747 = vxor.u32 %v3739, 2147483648
        %v3748 = vxor.u32 %v3740, 2147483648
        %v3749 = vxor.u32 %v3741, 2147483648
        %v3750 = vxor.u32 %v3742, 2147483648
        %v3751 = vxor.u32 %v3743, 2147483648
        %v3752 = vxor.u32 %v3744, 2147483648
        %v3753 = vxor.u32 %v3745, 2147483648
        %v3754 = vxor.u32 %v3746, 2147483648
        %v3755 = vmul.f32 %v3747, 1.442695
        %v3756 = vpow.pop %v3755
        %v3757 = vmul.f32 %v3748, 1.442695
        %v3758 = vpow.pop %v3757
        %v3759 = vmul.f32 %v3749, 1.442695
        %v3760 = vpow.pop %v3759
        %v3761 = vmul.f32 %v3750, 1.442695
        %v3762 = vpow.pop %v3761
        %v3763 = vmul.f32 %v3751, 1.442695
        %v3764 = vpow.pop %v3763
        %v3765 = vmul.f32 %v3752, 1.442695
        %v3766 = vpow.pop %v3765
        %v3767 = vmul.f32 %v3753, 1.442695
        %v3768 = vpow.pop %v3767
        %v3769 = vmul.f32 %v3754, 1.442695
        %v3770 = vpow.pop %v3769
        %v3771 = vadd.f32 %v3756, 1.0
        %v3772 = vadd.f32 %v3758, 1.0
        %v3773 = vadd.f32 %v3760, 1.0
        %v3774 = vadd.f32 %v3762, 1.0
        %v3775 = vadd.f32 %v3764, 1.0
        %v3776 = vadd.f32 %v3766, 1.0
        %v3777 = vadd.f32 %v3768, 1.0
        %v3778 = vadd.f32 %v3770, 1.0
        %v3779 = vrcp.pop %v3771
        %v3780 = vmul.f32 1.0, %v3779
        %v3781 = vrcp.pop %v3772
        %v3782 = vmul.f32 1.0, %v3781
        %v3783 = vrcp.pop %v3773
        %v3784 = vmul.f32 1.0, %v3783
        %v3785 = vrcp.pop %v3774
        %v3786 = vmul.f32 1.0, %v3785
        %v3787 = vrcp.pop %v3775
        %v3788 = vmul.f32 1.0, %v3787
        %v3789 = vrcp.pop %v3776
        %v3790 = vmul.f32 1.0, %v3789
        %v3791 = vrcp.pop %v3777
        %v3792 = vmul.f32 1.0, %v3791
        %v3793 = vrcp.pop %v3778
        %v3794 = vmul.f32 1.0, %v3793
        %3795 = vmatprep.subr.mxu0 0.0
        %3796 = vmatpush1.msra.mxu0 0.0
        %3797 = vmatprep.subr.mxu0 0.0
        %3798 = vmatpush1.msra.mxu0 0.0
        %3799 = vmatprep.subr.mxu0 0.0
        %3800 = vmatpush1.msra.mxu0 0.0
        %3801 = vmatprep.subr.mxu0 0.0
        %3802 = vmatpush1.msra.mxu0 0.0
        %3803 = vmatprep.subr.mxu0 0.0
        %3804 = vmatpush1.msra.mxu0 0.0
        %3805 = vmatprep.subr.mxu0 0.0
        %3806 = vmatpush1.msra.mxu0 0.0
        %3807 = vmatprep.subr.mxu0 0.0
        %3808 = vmatpush1.msra.mxu0 0.0
        %3809 = vmatprep.subr.mxu0 0.0
        %3810 = vmatpush1.msra.mxu0 0.0
        %3811 = vmatprep.subr.mxu0 0.0
        %3812 = vmatpush1.msra.mxu0 %v768
        %3813 = vmatprep.subr.mxu0 0.0
        %3814 = vmatpush1.msra.mxu0 %v767
        %3815 = vmatprep.subr.mxu0 0.0
        %3816 = vmatpush1.msra.mxu0 %v766
        %3817 = vmatprep.subr.mxu0 0.0
        %3818 = vmatpush1.msra.mxu0 %v765
        %3819 = vmatprep.subr.mxu0 0.0
        %3820 = vmatpush1.msra.mxu0 %v764
        %3821 = vmatprep.subr.mxu0 0.0
        %3822 = vmatpush1.msra.mxu0 %v763
        %3823 = vmatprep.subr.mxu0 0.0
        %3824 = vmatpush1.msra.mxu0 %v762
        %3825 = vmatprep.subr.mxu0 0.0
        %3826 = vmatpush1.msra.mxu0 %v761
        %3827 = vmatprep.subr.mxu0 0.0
        %3828 = vmatpush2.msra.mxu0 0.0
        %3829 = vmatprep.subr.mxu0 0.0
        %3830 = vmatpush2.msra.mxu0 0.0
        %3831 = vmatprep.subr.mxu0 0.0
        %3832 = vmatpush2.msra.mxu0 0.0
        %3833 = vmatprep.subr.mxu0 0.0
        %3834 = vmatpush2.msra.mxu0 0.0
        %3835 = vmatprep.subr.mxu0 0.0
        %3836 = vmatpush2.msra.mxu0 0.0
        %3837 = vmatprep.subr.mxu0 0.0
        %3838 = vmatpush2.msra.mxu0 0.0
        %3839 = vmatprep.subr.mxu0 0.0
        %3840 = vmatpush2.msra.mxu0 0.0
        %3841 = vmatprep.subr.mxu0 0.0
        %3842 = vmatpush2.msra.mxu0 0.0
        %3843 = vmatprep.subr.mxu0 0.0
        %3844 = vmatpush2.msra.mxu0 0.0
        %3845 = vmatprep.subr.mxu0 0.0
        %3846 = vmatpush2.msra.mxu0 0.0
        %3847 = vmatprep.subr.mxu0 0.0
        %3848 = vmatpush2.msra.mxu0 0.0
        %3849 = vmatprep.subr.mxu0 0.0
        %3850 = vmatpush2.msra.mxu0 0.0
        %3851 = vmatprep.subr.mxu0 0.0
        %3852 = vmatpush2.msra.mxu0 0.0
        %3853 = vmatprep.subr.mxu0 0.0
        %3854 = vmatpush2.msra.mxu0 0.0
        %3855 = vmatprep.subr.mxu0 0.0
        %3856 = vmatpush2.msra.mxu0 0.0
        %3857 = vmatprep.subr.mxu0 0.0
        %3858 = vmatpush2.msra.mxu0 0.0
        %3859 = vmatprep.mubr.f32.mxu0 0.0
        %3860 = vmatmul.mubr.f32.gmra.mxu0 %v3651
        %v3861 = vpop.f32.mrf.mxu0
        %v3862 = vadd.f32 0.0, %v3861
        %v3863 = vpop.f32.mrf.mxu0
        %3864 = vdwg.mxu0
        %v3866 = vcombine.high %v3862, %v3862
        %v3867 = vrot.slane %v3862, 1
        %v3868 = vrot.slane %v3862, 2
        %v3869 = vrot.slane %v3862, 3
        %v3870 = vrot.slane %v3866, 1
        %v3871 = vrot.slane %v3866, 2
        %v3872 = vrot.slane %v3866, 3
        %v3881 = vadd.f32 %v1312, %v3862
        %v3882 = vadd.f32 %v1252, %v3867
        %v3883 = vadd.f32 %v1315, %v3868
        %v3884 = vadd.f32 %v1267, %v3869
        %v3885 = vadd.f32 %v1318, %v3866
        %v3886 = vadd.f32 %v1282, %v3870
        %v3887 = vadd.f32 %v1321, %v3871
        %v3888 = vadd.f32 %v1297, %v3872
        %v3889 = vxor.u32 %v3881, 2147483648
        %v3890 = vxor.u32 %v3882, 2147483648
        %v3891 = vxor.u32 %v3883, 2147483648
        %v3892 = vxor.u32 %v3884, 2147483648
        %v3893 = vxor.u32 %v3885, 2147483648
        %v3894 = vxor.u32 %v3886, 2147483648
        %v3895 = vxor.u32 %v3887, 2147483648
        %v3896 = vxor.u32 %v3888, 2147483648
        %v3897 = vmul.f32 %v3889, 1.442695
        %v3898 = vpow.pop %v3897
        %v3899 = vmul.f32 %v3890, 1.442695
        %v3900 = vpow.pop %v3899
        %v3901 = vmul.f32 %v3891, 1.442695
        %v3902 = vpow.pop %v3901
        %v3903 = vmul.f32 %v3892, 1.442695
        %v3904 = vpow.pop %v3903
        %v3905 = vmul.f32 %v3893, 1.442695
        %v3906 = vpow.pop %v3905
        %v3907 = vmul.f32 %v3894, 1.442695
        %v3908 = vpow.pop %v3907
        %v3909 = vmul.f32 %v3895, 1.442695
        %v3910 = vpow.pop %v3909
        %v3911 = vmul.f32 %v3896, 1.442695
        %v3912 = vpow.pop %v3911
        %v3913 = vadd.f32 %v3898, 1.0
        %v3914 = vadd.f32 %v3900, 1.0
        %v3915 = vadd.f32 %v3902, 1.0
        %v3916 = vadd.f32 %v3904, 1.0
        %v3917 = vadd.f32 %v3906, 1.0
        %v3918 = vadd.f32 %v3908, 1.0
        %v3919 = vadd.f32 %v3910, 1.0
        %v3920 = vadd.f32 %v3912, 1.0
        %v3921 = vrcp.pop %v3913
        %v3922 = vmul.f32 1.0, %v3921
        %v3923 = vrcp.pop %v3914
        %v3924 = vmul.f32 1.0, %v3923
        %v3925 = vrcp.pop %v3915
        %v3926 = vmul.f32 1.0, %v3925
        %v3927 = vrcp.pop %v3916
        %v3928 = vmul.f32 1.0, %v3927
        %v3929 = vrcp.pop %v3917
        %v3930 = vmul.f32 1.0, %v3929
        %v3931 = vrcp.pop %v3918
        %v3932 = vmul.f32 1.0, %v3931
        %v3933 = vrcp.pop %v3919
        %v3934 = vmul.f32 1.0, %v3933
        %v3935 = vrcp.pop %v3920
        %v3936 = vmul.f32 1.0, %v3935
        %3937 = vmatprep.subr.mxu0 0.0
        %3938 = vmatpush1.msra.mxu0 0.0
        %3939 = vmatprep.subr.mxu0 0.0
        %3940 = vmatpush1.msra.mxu0 0.0
        %3941 = vmatprep.subr.mxu0 0.0
        %3942 = vmatpush1.msra.mxu0 0.0
        %3943 = vmatprep.subr.mxu0 0.0
        %3944 = vmatpush1.msra.mxu0 0.0
        %3945 = vmatprep.subr.mxu0 0.0
        %3946 = vmatpush1.msra.mxu0 0.0
        %3947 = vmatprep.subr.mxu0 0.0
        %3948 = vmatpush1.msra.mxu0 0.0
        %3949 = vmatprep.subr.mxu0 0.0
        %3950 = vmatpush1.msra.mxu0 0.0
        %3951 = vmatprep.subr.mxu0 0.0
        %3952 = vmatpush1.msra.mxu0 0.0
        %3953 = vmatprep.subr.mxu0 0.0
        %3954 = vmatpush1.msra.mxu0 %v776
        %3955 = vmatprep.subr.mxu0 0.0
        %3956 = vmatpush1.msra.mxu0 %v775
        %3957 = vmatprep.subr.mxu0 0.0
        %3958 = vmatpush1.msra.mxu0 %v774
        %3959 = vmatprep.subr.mxu0 0.0
        %3960 = vmatpush1.msra.mxu0 %v773
        %3961 = vmatprep.subr.mxu0 0.0
        %3962 = vmatpush1.msra.mxu0 %v772
        %3963 = vmatprep.subr.mxu0 0.0
        %3964 = vmatpush1.msra.mxu0 %v771
        %3965 = vmatprep.subr.mxu0 0.0
        %3966 = vmatpush1.msra.mxu0 %v770
        %3967 = vmatprep.subr.mxu0 0.0
        %3968 = vmatpush1.msra.mxu0 %v769
        %3969 = vmatprep.subr.mxu0 0.0
        %3970 = vmatpush2.msra.mxu0 0.0
        %3971 = vmatprep.subr.mxu0 0.0
        %3972 = vmatpush2.msra.mxu0 0.0
        %3973 = vmatprep.subr.mxu0 0.0
        %3974 = vmatpush2.msra.mxu0 0.0
        %3975 = vmatprep.subr.mxu0 0.0
        %3976 = vmatpush2.msra.mxu0 0.0
        %3977 = vmatprep.subr.mxu0 0.0
        %3978 = vmatpush2.msra.mxu0 0.0
        %3979 = vmatprep.subr.mxu0 0.0
        %3980 = vmatpush2.msra.mxu0 0.0
        %3981 = vmatprep.subr.mxu0 0.0
        %3982 = vmatpush2.msra.mxu0 0.0
        %3983 = vmatprep.subr.mxu0 0.0
        %3984 = vmatpush2.msra.mxu0 0.0
        %3985 = vmatprep.subr.mxu0 0.0
        %3986 = vmatpush2.msra.mxu0 0.0
        %3987 = vmatprep.subr.mxu0 0.0
        %3988 = vmatpush2.msra.mxu0 0.0
        %3989 = vmatprep.subr.mxu0 0.0
        %3990 = vmatpush2.msra.mxu0 0.0
        %3991 = vmatprep.subr.mxu0 0.0
        %3992 = vmatpush2.msra.mxu0 0.0
        %3993 = vmatprep.subr.mxu0 0.0
        %3994 = vmatpush2.msra.mxu0 0.0
        %3995 = vmatprep.subr.mxu0 0.0
        %3996 = vmatpush2.msra.mxu0 0.0
        %3997 = vmatprep.subr.mxu0 0.0
        %3998 = vmatpush2.msra.mxu0 0.0
        %3999 = vmatprep.subr.mxu0 0.0
        %4000 = vmatpush2.msra.mxu0 0.0
        %4001 = vmatprep.mubr.f32.mxu0 0.0
        %4002 = vmatmul.mubr.f32.gmra.mxu0 %v3651
        %v4003 = vpop.f32.mrf.mxu0
        %v4004 = vadd.f32 %v1795, %v4003
        %v4005 = vpop.f32.mrf.mxu0
        %4006 = vdwg.mxu0
        %v4008 = vcombine.high %v4004, %v4004
        %v4009 = vrot.slane %v4004, 1
        %v4010 = vrot.slane %v4004, 2
        %v4011 = vrot.slane %v4004, 3
        %v4012 = vrot.slane %v4008, 1
        %v4013 = vrot.slane %v4008, 2
        %v4014 = vrot.slane %v4008, 3
        %v4023 = vmul.f32 %v3780, %v4004
        %v4024 = vmul.f32 %v3782, %v4009
        %v4025 = vmul.f32 %v3784, %v4010
        %v4026 = vmul.f32 %v3786, %v4011
        %v4027 = vmul.f32 %v3788, %v4008
        %v4028 = vmul.f32 %v3790, %v4012
        %v4029 = vmul.f32 %v3792, %v4013
        %v4030 = vmul.f32 %v3794, %v4014
        %v4031 = vadd.f32 %v1479, %v4023
        %v4032 = vadd.f32 %v1419, %v4024
        %v4033 = vadd.f32 %v1482, %v4025
        %v4034 = vadd.f32 %v1434, %v4026
        %v4035 = vadd.f32 %v1485, %v4027
        %v4036 = vadd.f32 %v1449, %v4028
        %v4037 = vadd.f32 %v1488, %v4029
        %v4038 = vadd.f32 %v1464, %v4030
        %v4039 = vtanh.pop %v4031
        %v4040 = vtanh.pop %v4032
        %v4041 = vtanh.pop %v4033
        %v4042 = vtanh.pop %v4034
        %v4043 = vtanh.pop %v4035
        %v4044 = vtanh.pop %v4036
        %v4045 = vtanh.pop %v4037
        %v4046 = vtanh.pop %v4038
        %v4047 = vsub.f32 1.0, %v3922
        %v4048 = vsub.f32 1.0, %v3924
        %v4049 = vsub.f32 1.0, %v3926
        %v4050 = vsub.f32 1.0, %v3928
        %v4051 = vsub.f32 1.0, %v3930
        %v4052 = vsub.f32 1.0, %v3932
        %v4053 = vsub.f32 1.0, %v3934
        %v4054 = vsub.f32 1.0, %v3936
        %v4055 = vmul.f32 %v4047, %v4039
        %v4056 = vmul.f32 %v4048, %v4040
        %v4057 = vmul.f32 %v4049, %v4041
        %v4058 = vmul.f32 %v4050, %v4042
        %v4059 = vmul.f32 %v4051, %v4043
        %v4060 = vmul.f32 %v4052, %v4044
        %v4061 = vmul.f32 %v4053, %v4045
        %v4062 = vmul.f32 %v4054, %v4046
        %v4063 = vrot.slane %v3596, 7
        %v4064 = vrot.slane %v4063, 4
        %v4065 = vrot.slane %v3597, 7
        %v4066 = vrot.slane %v4065, 4
        %v4067 = vrot.slane %v3598, 7
        %v4068 = vrot.slane %v4067, 4
        %v4069 = vrot.slane %v3599, 7
        %v4070 = vrot.slane %v4069, 4
        %v4071 = vrot.slane %v3600, 7
        %v4072 = vrot.slane %v4071, 4
        %v4073 = vrot.slane %v3601, 7
        %v4074 = vrot.slane %v4073, 4
        %v4075 = vrot.slane %v3602, 7
        %v4076 = vrot.slane %v4075, 4
        %v4077 = vrot.slane %v3603, 7
        %v4078 = vrot.slane %v4077, 4
        %v4087 = vmul.f32 %v3922, %v4064
        %v4088 = vmul.f32 %v3924, %v4066
        %v4089 = vmul.f32 %v3926, %v4068
        %v4090 = vmul.f32 %v3928, %v4070
        %v4091 = vmul.f32 %v3930, %v4072
        %v4092 = vmul.f32 %v3932, %v4074
        %v4093 = vmul.f32 %v3934, %v4076
        %v4094 = vmul.f32 %v3936, %v4078
        %v4095 = vadd.f32 %v4055, %v4087
        %v4096 = vadd.f32 %v4056, %v4088
        %v4097 = vadd.f32 %v4057, %v4089
        %v4098 = vadd.f32 %v4058, %v4090
        %v4099 = vadd.f32 %v4059, %v4091
        %v4100 = vadd.f32 %v4060, %v4092
        %v4101 = vadd.f32 %v4061, %v4093
        %v4102 = vadd.f32 %v4062, %v4094
        %p4103 = scmp.gt.s32.totalorder %s704, 4
        %s4104 = scalar_select %p4103, 1, 0
        %s4105 = scvt.s32.f32 %s4104
        %v4106 = vstv %s4105
        %v4107 = vmul.f32 %v4106, %v4095
        %v4108 = vmul.f32 %v4106, %v4096
        %v4109 = vmul.f32 %v4106, %v4097
        %v4110 = vmul.f32 %v4106, %v4098
        %v4111 = vmul.f32 %v4106, %v4099
        %v4112 = vmul.f32 %v4106, %v4100
        %v4113 = vmul.f32 %v4106, %v4101
        %v4114 = vmul.f32 %v4106, %v4102
        %s4115 = ssub.f32 1.0, %s4105
        %v4116 = vstv %s4115
        %v4117 = vmul.f32 %v4116, %v3596
        %v4118 = vmul.f32 %v4116, %v3597
        %v4119 = vmul.f32 %v4116, %v3598
        %v4120 = vmul.f32 %v4116, %v3599
        %v4121 = vmul.f32 %v4116, %v3600
        %v4122 = vmul.f32 %v4116, %v3601
        %v4123 = vmul.f32 %v4116, %v3602
        %v4124 = vmul.f32 %v4116, %v3603
        %v4133 = vrot.slane %v4117, 7
        %v4134 = vrot.slane %v4133, 4
        %v4135 = vrot.slane %v4118, 7
        %v4136 = vrot.slane %v4135, 4
        %v4137 = vrot.slane %v4119, 7
        %v4138 = vrot.slane %v4137, 4
        %v4139 = vrot.slane %v4120, 7
        %v4140 = vrot.slane %v4139, 4
        %v4141 = vrot.slane %v4121, 7
        %v4142 = vrot.slane %v4141, 4
        %v4143 = vrot.slane %v4122, 7
        %v4144 = vrot.slane %v4143, 4
        %v4145 = vrot.slane %v4123, 7
        %v4146 = vrot.slane %v4145, 4
        %v4147 = vrot.slane %v4124, 7
        %v4148 = vrot.slane %v4147, 4
        %v4157 = vadd.f32 %v4107, %v4134
        %v4158 = vadd.f32 %v4108, %v4136
        %v4159 = vadd.f32 %v4109, %v4138
        %v4160 = vadd.f32 %v4110, %v4140
        %v4161 = vadd.f32 %v4111, %v4142
        %v4162 = vadd.f32 %v4112, %v4144
        %v4163 = vadd.f32 %v4113, %v4146
        %v4164 = vadd.f32 %v4114, %v4148
        %v4173 = vlaneseq
        %v4174 = vshrl.u32 %v4173, 7
        %v4175 = vsub.s32 0, %v4174
        %v4176 = vrot.slane %v4157, %v4175
        %v4177 = vlaneseq
        %v4178 = vshrl.u32 %v4177, 7
        %v4179 = vsub.s32 0, %v4178
        %v4180 = vrot.slane %v4158, %v4179
        %v4181 = vlaneseq
        %v4182 = vshrl.u32 %v4181, 7
        %v4183 = vsub.s32 0, %v4182
        %v4184 = vrot.slane %v4159, %v4183
        %v4185 = vlaneseq
        %v4186 = vshrl.u32 %v4185, 7
        %v4187 = vsub.s32 0, %v4186
        %v4188 = vrot.slane %v4160, %v4187
        %v4189 = vlaneseq
        %v4190 = vshrl.u32 %v4189, 7
        %v4191 = vsub.s32 0, %v4190
        %v4192 = vrot.slane %v4161, %v4191
        %v4193 = vlaneseq
        %v4194 = vshrl.u32 %v4193, 7
        %v4195 = vsub.s32 0, %v4194
        %v4196 = vrot.slane %v4162, %v4195
        %v4197 = vlaneseq
        %v4198 = vshrl.u32 %v4197, 7
        %v4199 = vsub.s32 0, %v4198
        %v4200 = vrot.slane %v4163, %v4199
        %v4201 = vlaneseq
        %v4202 = vshrl.u32 %v4201, 7
        %v4203 = vsub.s32 0, %v4202
        %v4204 = vrot.slane %v4164, %v4203
        %v4205 = vsel %vm2002, %v4180, %v4176
        %v4206 = vsel %vm2004, %v4184, %v4205
        %v4207 = vsel %vm2006, %v4188, %v4206
        %v4208 = vsel %vm2008, %v4192, %v4207
        %v4209 = vsel %vm2010, %v4196, %v4208
        %v4210 = vsel %vm2012, %v4200, %v4209
        %v4211 = vsel %vm2014, %v4204, %v4210
        %v4212 = vsel %vm1503, %v4211, 0
        %4214 = vmatprep.subr.mxu0 0.0
        %4215 = vmatpush1.msra.mxu0 0.0
        %4216 = vmatprep.subr.mxu0 0.0
        %4217 = vmatpush1.msra.mxu0 0.0
        %4218 = vmatprep.subr.mxu0 0.0
        %4219 = vmatpush1.msra.mxu0 0.0
        %4220 = vmatprep.subr.mxu0 0.0
        %4221 = vmatpush1.msra.mxu0 0.0
        %4222 = vmatprep.subr.mxu0 0.0
        %4223 = vmatpush1.msra.mxu0 0.0
        %4224 = vmatprep.subr.mxu0 0.0
        %4225 = vmatpush1.msra.mxu0 0.0
        %4226 = vmatprep.subr.mxu0 0.0
        %4227 = vmatpush1.msra.mxu0 0.0
        %4228 = vmatprep.subr.mxu0 0.0
        %4229 = vmatpush1.msra.mxu0 0.0
        %4230 = vmatprep.subr.mxu0 0.0
        %4231 = vmatpush1.msra.mxu0 %v760
        %4232 = vmatprep.subr.mxu0 0.0
        %4233 = vmatpush1.msra.mxu0 %v759
        %4234 = vmatprep.subr.mxu0 0.0
        %4235 = vmatpush1.msra.mxu0 %v758
        %4236 = vmatprep.subr.mxu0 0.0
        %4237 = vmatpush1.msra.mxu0 %v757
        %4238 = vmatprep.subr.mxu0 0.0
        %4239 = vmatpush1.msra.mxu0 %v756
        %4240 = vmatprep.subr.mxu0 0.0
        %4241 = vmatpush1.msra.mxu0 %v755
        %4242 = vmatprep.subr.mxu0 0.0
        %4243 = vmatpush1.msra.mxu0 %v754
        %4244 = vmatprep.subr.mxu0 0.0
        %4245 = vmatpush1.msra.mxu0 %v753
        %4246 = vmatprep.subr.mxu0 0.0
        %4247 = vmatpush2.msra.mxu0 0.0
        %4248 = vmatprep.subr.mxu0 0.0
        %4249 = vmatpush2.msra.mxu0 0.0
        %4250 = vmatprep.subr.mxu0 0.0
        %4251 = vmatpush2.msra.mxu0 0.0
        %4252 = vmatprep.subr.mxu0 0.0
        %4253 = vmatpush2.msra.mxu0 0.0
        %4254 = vmatprep.subr.mxu0 0.0
        %4255 = vmatpush2.msra.mxu0 0.0
        %4256 = vmatprep.subr.mxu0 0.0
        %4257 = vmatpush2.msra.mxu0 0.0
        %4258 = vmatprep.subr.mxu0 0.0
        %4259 = vmatpush2.msra.mxu0 0.0
        %4260 = vmatprep.subr.mxu0 0.0
        %4261 = vmatpush2.msra.mxu0 0.0
        %4262 = vmatprep.subr.mxu0 0.0
        %4263 = vmatpush2.msra.mxu0 0.0
        %4264 = vmatprep.subr.mxu0 0.0
        %4265 = vmatpush2.msra.mxu0 0.0
        %4266 = vmatprep.subr.mxu0 0.0
        %4267 = vmatpush2.msra.mxu0 0.0
        %4268 = vmatprep.subr.mxu0 0.0
        %4269 = vmatpush2.msra.mxu0 0.0
        %4270 = vmatprep.subr.mxu0 0.0
        %4271 = vmatpush2.msra.mxu0 0.0
        %4272 = vmatprep.subr.mxu0 0.0
        %4273 = vmatpush2.msra.mxu0 0.0
        %4274 = vmatprep.subr.mxu0 0.0
        %4275 = vmatpush2.msra.mxu0 0.0
        %4276 = vmatprep.subr.mxu0 0.0
        %4277 = vmatpush2.msra.mxu0 0.0
        %4278 = vmatprep.mubr.f32.mxu0 0.0
        %4279 = vmatmul.mubr.f32.gmra.mxu0 %v4212
        %v4280 = vpop.f32.mrf.mxu0
        %v4281 = vadd.f32 0.0, %v4280
        %v4282 = vpop.f32.mrf.mxu0
        %4283 = vdwg.mxu0
        %v4285 = vcombine.high %v4281, %v4281
        %v4286 = vrot.slane %v4281, 7
        %v4287 = vrot.slane %v4281, 1
        %v4288 = vrot.slane %v4281, 2
        %v4289 = vrot.slane %v4285, 7
        %v4290 = vrot.slane %v4285, 1
        %v4291 = vrot.slane %v4285, 2
        %v4300 = vadd.f32 %v1145, %v4286
        %v4301 = vadd.f32 %v1085, %v4281
        %v4302 = vadd.f32 %v1148, %v4287
        %v4303 = vadd.f32 %v1100, %v4288
        %v4304 = vadd.f32 %v1151, %v4289
        %v4305 = vadd.f32 %v1115, %v4285
        %v4306 = vadd.f32 %v1154, %v4290
        %v4307 = vadd.f32 %v1130, %v4291
        %v4308 = vxor.u32 %v4300, 2147483648
        %v4309 = vxor.u32 %v4301, 2147483648
        %v4310 = vxor.u32 %v4302, 2147483648
        %v4311 = vxor.u32 %v4303, 2147483648
        %v4312 = vxor.u32 %v4304, 2147483648
        %v4313 = vxor.u32 %v4305, 2147483648
        %v4314 = vxor.u32 %v4306, 2147483648
        %v4315 = vxor.u32 %v4307, 2147483648
        %v4316 = vmul.f32 %v4308, 1.442695
        %v4317 = vpow.pop %v4316
        %v4318 = vmul.f32 %v4309, 1.442695
        %v4319 = vpow.pop %v4318
        %v4320 = vmul.f32 %v4310, 1.442695
        %v4321 = vpow.pop %v4320
        %v4322 = vmul.f32 %v4311, 1.442695
        %v4323 = vpow.pop %v4322
        %v4324 = vmul.f32 %v4312, 1.442695
        %v4325 = vpow.pop %v4324
        %v4326 = vmul.f32 %v4313, 1.442695
        %v4327 = vpow.pop %v4326
        %v4328 = vmul.f32 %v4314, 1.442695
        %v4329 = vpow.pop %v4328
        %v4330 = vmul.f32 %v4315, 1.442695
        %v4331 = vpow.pop %v4330
        %v4332 = vadd.f32 %v4317, 1.0
        %v4333 = vadd.f32 %v4319, 1.0
        %v4334 = vadd.f32 %v4321, 1.0
        %v4335 = vadd.f32 %v4323, 1.0
        %v4336 = vadd.f32 %v4325, 1.0
        %v4337 = vadd.f32 %v4327, 1.0
        %v4338 = vadd.f32 %v4329, 1.0
        %v4339 = vadd.f32 %v4331, 1.0
        %v4340 = vrcp.pop %v4332
        %v4341 = vmul.f32 1.0, %v4340
        %v4342 = vrcp.pop %v4333
        %v4343 = vmul.f32 1.0, %v4342
        %v4344 = vrcp.pop %v4334
        %v4345 = vmul.f32 1.0, %v4344
        %v4346 = vrcp.pop %v4335
        %v4347 = vmul.f32 1.0, %v4346
        %v4348 = vrcp.pop %v4336
        %v4349 = vmul.f32 1.0, %v4348
        %v4350 = vrcp.pop %v4337
        %v4351 = vmul.f32 1.0, %v4350
        %v4352 = vrcp.pop %v4338
        %v4353 = vmul.f32 1.0, %v4352
        %v4354 = vrcp.pop %v4339
        %v4355 = vmul.f32 1.0, %v4354
        %4356 = vmatprep.subr.mxu0 0.0
        %4357 = vmatpush1.msra.mxu0 0.0
        %4358 = vmatprep.subr.mxu0 0.0
        %4359 = vmatpush1.msra.mxu0 0.0
        %4360 = vmatprep.subr.mxu0 0.0
        %4361 = vmatpush1.msra.mxu0 0.0
        %4362 = vmatprep.subr.mxu0 0.0
        %4363 = vmatpush1.msra.mxu0 0.0
        %4364 = vmatprep.subr.mxu0 0.0
        %4365 = vmatpush1.msra.mxu0 0.0
        %4366 = vmatprep.subr.mxu0 0.0
        %4367 = vmatpush1.msra.mxu0 0.0
        %4368 = vmatprep.subr.mxu0 0.0
        %4369 = vmatpush1.msra.mxu0 0.0
        %4370 = vmatprep.subr.mxu0 0.0
        %4371 = vmatpush1.msra.mxu0 0.0
        %4372 = vmatprep.subr.mxu0 0.0
        %4373 = vmatpush1.msra.mxu0 %v768
        %4374 = vmatprep.subr.mxu0 0.0
        %4375 = vmatpush1.msra.mxu0 %v767
        %4376 = vmatprep.subr.mxu0 0.0
        %4377 = vmatpush1.msra.mxu0 %v766
        %4378 = vmatprep.subr.mxu0 0.0
        %4379 = vmatpush1.msra.mxu0 %v765
        %4380 = vmatprep.subr.mxu0 0.0
        %4381 = vmatpush1.msra.mxu0 %v764
        %4382 = vmatprep.subr.mxu0 0.0
        %4383 = vmatpush1.msra.mxu0 %v763
        %4384 = vmatprep.subr.mxu0 0.0
        %4385 = vmatpush1.msra.mxu0 %v762
        %4386 = vmatprep.subr.mxu0 0.0
        %4387 = vmatpush1.msra.mxu0 %v761
        %4388 = vmatprep.subr.mxu0 0.0
        %4389 = vmatpush2.msra.mxu0 0.0
        %4390 = vmatprep.subr.mxu0 0.0
        %4391 = vmatpush2.msra.mxu0 0.0
        %4392 = vmatprep.subr.mxu0 0.0
        %4393 = vmatpush2.msra.mxu0 0.0
        %4394 = vmatprep.subr.mxu0 0.0
        %4395 = vmatpush2.msra.mxu0 0.0
        %4396 = vmatprep.subr.mxu0 0.0
        %4397 = vmatpush2.msra.mxu0 0.0
        %4398 = vmatprep.subr.mxu0 0.0
        %4399 = vmatpush2.msra.mxu0 0.0
        %4400 = vmatprep.subr.mxu0 0.0
        %4401 = vmatpush2.msra.mxu0 0.0
        %4402 = vmatprep.subr.mxu0 0.0
        %4403 = vmatpush2.msra.mxu0 0.0
        %4404 = vmatprep.subr.mxu0 0.0
        %4405 = vmatpush2.msra.mxu0 0.0
        %4406 = vmatprep.subr.mxu0 0.0
        %4407 = vmatpush2.msra.mxu0 0.0
        %4408 = vmatprep.subr.mxu0 0.0
        %4409 = vmatpush2.msra.mxu0 0.0
        %4410 = vmatprep.subr.mxu0 0.0
        %4411 = vmatpush2.msra.mxu0 0.0
        %4412 = vmatprep.subr.mxu0 0.0
        %4413 = vmatpush2.msra.mxu0 0.0
        %4414 = vmatprep.subr.mxu0 0.0
        %4415 = vmatpush2.msra.mxu0 0.0
        %4416 = vmatprep.subr.mxu0 0.0
        %4417 = vmatpush2.msra.mxu0 0.0
        %4418 = vmatprep.subr.mxu0 0.0
        %4419 = vmatpush2.msra.mxu0 0.0
        %4420 = vmatprep.mubr.f32.mxu0 0.0
        %4421 = vmatmul.mubr.f32.gmra.mxu0 %v4212
        %v4422 = vpop.f32.mrf.mxu0
        %v4423 = vadd.f32 0.0, %v4422
        %v4424 = vpop.f32.mrf.mxu0
        %4425 = vdwg.mxu0
        %v4427 = vcombine.high %v4423, %v4423
        %v4428 = vrot.slane %v4423, 7
        %v4429 = vrot.slane %v4423, 1
        %v4430 = vrot.slane %v4423, 2
        %v4431 = vrot.slane %v4427, 7
        %v4432 = vrot.slane %v4427, 1
        %v4433 = vrot.slane %v4427, 2
        %v4442 = vadd.f32 %v1312, %v4428
        %v4443 = vadd.f32 %v1252, %v4423
        %v4444 = vadd.f32 %v1315, %v4429
        %v4445 = vadd.f32 %v1267, %v4430
        %v4446 = vadd.f32 %v1318, %v4431
        %v4447 = vadd.f32 %v1282, %v4427
        %v4448 = vadd.f32 %v1321, %v4432
        %v4449 = vadd.f32 %v1297, %v4433
        %v4450 = vxor.u32 %v4442, 2147483648
        %v4451 = vxor.u32 %v4443, 2147483648
        %v4452 = vxor.u32 %v4444, 2147483648
        %v4453 = vxor.u32 %v4445, 2147483648
        %v4454 = vxor.u32 %v4446, 2147483648
        %v4455 = vxor.u32 %v4447, 2147483648
        %v4456 = vxor.u32 %v4448, 2147483648
        %v4457 = vxor.u32 %v4449, 2147483648
        %v4458 = vmul.f32 %v4450, 1.442695
        %v4459 = vpow.pop %v4458
        %v4460 = vmul.f32 %v4451, 1.442695
        %v4461 = vpow.pop %v4460
        %v4462 = vmul.f32 %v4452, 1.442695
        %v4463 = vpow.pop %v4462
        %v4464 = vmul.f32 %v4453, 1.442695
        %v4465 = vpow.pop %v4464
        %v4466 = vmul.f32 %v4454, 1.442695
        %v4467 = vpow.pop %v4466
        %v4468 = vmul.f32 %v4455, 1.442695
        %v4469 = vpow.pop %v4468
        %v4470 = vmul.f32 %v4456, 1.442695
        %v4471 = vpow.pop %v4470
        %v4472 = vmul.f32 %v4457, 1.442695
        %v4473 = vpow.pop %v4472
        %v4474 = vadd.f32 %v4459, 1.0
        %v4475 = vadd.f32 %v4461, 1.0
        %v4476 = vadd.f32 %v4463, 1.0
        %v4477 = vadd.f32 %v4465, 1.0
        %v4478 = vadd.f32 %v4467, 1.0
        %v4479 = vadd.f32 %v4469, 1.0
        %v4480 = vadd.f32 %v4471, 1.0
        %v4481 = vadd.f32 %v4473, 1.0
        %v4482 = vrcp.pop %v4474
        %v4483 = vmul.f32 1.0, %v4482
        %v4484 = vrcp.pop %v4475
        %v4485 = vmul.f32 1.0, %v4484
        %v4486 = vrcp.pop %v4476
        %v4487 = vmul.f32 1.0, %v4486
        %v4488 = vrcp.pop %v4477
        %v4489 = vmul.f32 1.0, %v4488
        %v4490 = vrcp.pop %v4478
        %v4491 = vmul.f32 1.0, %v4490
        %v4492 = vrcp.pop %v4479
        %v4493 = vmul.f32 1.0, %v4492
        %v4494 = vrcp.pop %v4480
        %v4495 = vmul.f32 1.0, %v4494
        %v4496 = vrcp.pop %v4481
        %v4497 = vmul.f32 1.0, %v4496
        %4498 = vmatprep.subr.mxu0 0.0
        %4499 = vmatpush1.msra.mxu0 0.0
        %4500 = vmatprep.subr.mxu0 0.0
        %4501 = vmatpush1.msra.mxu0 0.0
        %4502 = vmatprep.subr.mxu0 0.0
        %4503 = vmatpush1.msra.mxu0 0.0
        %4504 = vmatprep.subr.mxu0 0.0
        %4505 = vmatpush1.msra.mxu0 0.0
        %4506 = vmatprep.subr.mxu0 0.0
        %4507 = vmatpush1.msra.mxu0 0.0
        %4508 = vmatprep.subr.mxu0 0.0
        %4509 = vmatpush1.msra.mxu0 0.0
        %4510 = vmatprep.subr.mxu0 0.0
        %4511 = vmatpush1.msra.mxu0 0.0
        %4512 = vmatprep.subr.mxu0 0.0
        %4513 = vmatpush1.msra.mxu0 0.0
        %4514 = vmatprep.subr.mxu0 0.0
        %4515 = vmatpush1.msra.mxu0 %v776
        %4516 = vmatprep.subr.mxu0 0.0
        %4517 = vmatpush1.msra.mxu0 %v775
        %4518 = vmatprep.subr.mxu0 0.0
        %4519 = vmatpush1.msra.mxu0 %v774
        %4520 = vmatprep.subr.mxu0 0.0
        %4521 = vmatpush1.msra.mxu0 %v773
        %4522 = vmatprep.subr.mxu0 0.0
        %4523 = vmatpush1.msra.mxu0 %v772
        %4524 = vmatprep.subr.mxu0 0.0
        %4525 = vmatpush1.msra.mxu0 %v771
        %4526 = vmatprep.subr.mxu0 0.0
        %4527 = vmatpush1.msra.mxu0 %v770
        %4528 = vmatprep.subr.mxu0 0.0
        %4529 = vmatpush1.msra.mxu0 %v769
        %4530 = vmatprep.subr.mxu0 0.0
        %4531 = vmatpush2.msra.mxu0 0.0
        %4532 = vmatprep.subr.mxu0 0.0
        %4533 = vmatpush2.msra.mxu0 0.0
        %4534 = vmatprep.subr.mxu0 0.0
        %4535 = vmatpush2.msra.mxu0 0.0
        %4536 = vmatprep.subr.mxu0 0.0
        %4537 = vmatpush2.msra.mxu0 0.0
        %4538 = vmatprep.subr.mxu0 0.0
        %4539 = vmatpush2.msra.mxu0 0.0
        %4540 = vmatprep.subr.mxu0 0.0
        %4541 = vmatpush2.msra.mxu0 0.0
        %4542 = vmatprep.subr.mxu0 0.0
        %4543 = vmatpush2.msra.mxu0 0.0
        %4544 = vmatprep.subr.mxu0 0.0
        %4545 = vmatpush2.msra.mxu0 0.0
        %4546 = vmatprep.subr.mxu0 0.0
        %4547 = vmatpush2.msra.mxu0 0.0
        %4548 = vmatprep.subr.mxu0 0.0
        %4549 = vmatpush2.msra.mxu0 0.0
        %4550 = vmatprep.subr.mxu0 0.0
        %4551 = vmatpush2.msra.mxu0 0.0
        %4552 = vmatprep.subr.mxu0 0.0
        %4553 = vmatpush2.msra.mxu0 0.0
        %4554 = vmatprep.subr.mxu0 0.0
        %4555 = vmatpush2.msra.mxu0 0.0
        %4556 = vmatprep.subr.mxu0 0.0
        %4557 = vmatpush2.msra.mxu0 0.0
        %4558 = vmatprep.subr.mxu0 0.0
        %4559 = vmatpush2.msra.mxu0 0.0
        %4560 = vmatprep.subr.mxu0 0.0
        %4561 = vmatpush2.msra.mxu0 0.0
        %4562 = vmatprep.mubr.f32.mxu0 0.0
        %4563 = vmatmul.mubr.f32.gmra.mxu0 %v4212
        %v4564 = vpop.f32.mrf.mxu0
        %v4565 = vadd.f32 %v1795, %v4564
        %v4566 = vpop.f32.mrf.mxu0
        %4567 = vdwg.mxu0
        %v4569 = vcombine.high %v4565, %v4565
        %v4570 = vrot.slane %v4565, 7
        %v4571 = vrot.slane %v4565, 1
        %v4572 = vrot.slane %v4565, 2
        %v4573 = vrot.slane %v4569, 7
        %v4574 = vrot.slane %v4569, 1
        %v4575 = vrot.slane %v4569, 2
        %v4584 = vmul.f32 %v4341, %v4570
        %v4585 = vmul.f32 %v4343, %v4565
        %v4586 = vmul.f32 %v4345, %v4571
        %v4587 = vmul.f32 %v4347, %v4572
        %v4588 = vmul.f32 %v4349, %v4573
        %v4589 = vmul.f32 %v4351, %v4569
        %v4590 = vmul.f32 %v4353, %v4574
        %v4591 = vmul.f32 %v4355, %v4575
        %v4592 = vadd.f32 %v1479, %v4584
        %v4593 = vadd.f32 %v1419, %v4585
        %v4594 = vadd.f32 %v1482, %v4586
        %v4595 = vadd.f32 %v1434, %v4587
        %v4596 = vadd.f32 %v1485, %v4588
        %v4597 = vadd.f32 %v1449, %v4589
        %v4598 = vadd.f32 %v1488, %v4590
        %v4599 = vadd.f32 %v1464, %v4591
        %v4600 = vtanh.pop %v4592
        %v4601 = vtanh.pop %v4593
        %v4602 = vtanh.pop %v4594
        %v4603 = vtanh.pop %v4595
        %v4604 = vtanh.pop %v4596
        %v4605 = vtanh.pop %v4597
        %v4606 = vtanh.pop %v4598
        %v4607 = vtanh.pop %v4599
        %v4608 = vsub.f32 1.0, %v4483
        %v4609 = vsub.f32 1.0, %v4485
        %v4610 = vsub.f32 1.0, %v4487
        %v4611 = vsub.f32 1.0, %v4489
        %v4612 = vsub.f32 1.0, %v4491
        %v4613 = vsub.f32 1.0, %v4493
        %v4614 = vsub.f32 1.0, %v4495
        %v4615 = vsub.f32 1.0, %v4497
        %v4616 = vmul.f32 %v4608, %v4600
        %v4617 = vmul.f32 %v4609, %v4601
        %v4618 = vmul.f32 %v4610, %v4602
        %v4619 = vmul.f32 %v4611, %v4603
        %v4620 = vmul.f32 %v4612, %v4604
        %v4621 = vmul.f32 %v4613, %v4605
        %v4622 = vmul.f32 %v4614, %v4606
        %v4623 = vmul.f32 %v4615, %v4607
        %v4624 = vrot.slane %v4157, 7
        %v4625 = vrot.slane %v4158, 7
        %v4626 = vrot.slane %v4159, 7
        %v4627 = vrot.slane %v4160, 7
        %v4628 = vrot.slane %v4161, 7
        %v4629 = vrot.slane %v4162, 7
        %v4630 = vrot.slane %v4163, 7
        %v4631 = vrot.slane %v4164, 7
        %v4640 = vmul.f32 %v4483, %v4624
        %v4641 = vmul.f32 %v4485, %v4625
        %v4642 = vmul.f32 %v4487, %v4626
        %v4643 = vmul.f32 %v4489, %v4627
        %v4644 = vmul.f32 %v4491, %v4628
        %v4645 = vmul.f32 %v4493, %v4629
        %v4646 = vmul.f32 %v4495, %v4630
        %v4647 = vmul.f32 %v4497, %v4631
        %v4648 = vadd.f32 %v4616, %v4640
        %v4649 = vadd.f32 %v4617, %v4641
        %v4650 = vadd.f32 %v4618, %v4642
        %v4651 = vadd.f32 %v4619, %v4643
        %v4652 = vadd.f32 %v4620, %v4644
        %v4653 = vadd.f32 %v4621, %v4645
        %v4654 = vadd.f32 %v4622, %v4646
        %v4655 = vadd.f32 %v4623, %v4647
        %p4656 = scmp.gt.s32.totalorder %s704, 5
        %s4657 = scalar_select %p4656, 1, 0
        %s4658 = scvt.s32.f32 %s4657
        %v4659 = vstv %s4658
        %v4660 = vmul.f32 %v4659, %v4648
        %v4661 = vmul.f32 %v4659, %v4649
        %v4662 = vmul.f32 %v4659, %v4650
        %v4663 = vmul.f32 %v4659, %v4651
        %v4664 = vmul.f32 %v4659, %v4652
        %v4665 = vmul.f32 %v4659, %v4653
        %v4666 = vmul.f32 %v4659, %v4654
        %v4667 = vmul.f32 %v4659, %v4655
        %s4668 = ssub.f32 1.0, %s4658
        %v4669 = vstv %s4668
        %v4670 = vmul.f32 %v4669, %v4157
        %v4671 = vmul.f32 %v4669, %v4158
        %v4672 = vmul.f32 %v4669, %v4159
        %v4673 = vmul.f32 %v4669, %v4160
        %v4674 = vmul.f32 %v4669, %v4161
        %v4675 = vmul.f32 %v4669, %v4162
        %v4676 = vmul.f32 %v4669, %v4163
        %v4677 = vmul.f32 %v4669, %v4164
        %v4686 = vrot.slane %v4670, 7
        %v4687 = vrot.slane %v4671, 7
        %v4688 = vrot.slane %v4672, 7
        %v4689 = vrot.slane %v4673, 7
        %v4690 = vrot.slane %v4674, 7
        %v4691 = vrot.slane %v4675, 7
        %v4692 = vrot.slane %v4676, 7
        %v4693 = vrot.slane %v4677, 7
        %v4702 = vadd.f32 %v4660, %v4686
        %v4703 = vadd.f32 %v4661, %v4687
        %v4704 = vadd.f32 %v4662, %v4688
        %v4705 = vadd.f32 %v4663, %v4689
        %v4706 = vadd.f32 %v4664, %v4690
        %v4707 = vadd.f32 %v4665, %v4691
        %v4708 = vadd.f32 %v4666, %v4692
        %v4709 = vadd.f32 %v4667, %v4693
        %v4718 = vlaneseq
        %v4719 = vshrl.u32 %v4718, 7
        %v4720 = vsub.s32 1, %v4719
        %v4721 = vrot.slane %v4702, %v4720
        %v4722 = vlaneseq
        %v4723 = vshrl.u32 %v4722, 7
        %v4724 = vsub.s32 1, %v4723
        %v4725 = vrot.slane %v4703, %v4724
        %v4726 = vlaneseq
        %v4727 = vshrl.u32 %v4726, 7
        %v4728 = vsub.s32 1, %v4727
        %v4729 = vrot.slane %v4704, %v4728
        %v4730 = vlaneseq
        %v4731 = vshrl.u32 %v4730, 7
        %v4732 = vsub.s32 1, %v4731
        %v4733 = vrot.slane %v4705, %v4732
        %v4734 = vlaneseq
        %v4735 = vshrl.u32 %v4734, 7
        %v4736 = vsub.s32 1, %v4735
        %v4737 = vrot.slane %v4706, %v4736
        %v4738 = vlaneseq
        %v4739 = vshrl.u32 %v4738, 7
        %v4740 = vsub.s32 1, %v4739
        %v4741 = vrot.slane %v4707, %v4740
        %v4742 = vlaneseq
        %v4743 = vshrl.u32 %v4742, 7
        %v4744 = vsub.s32 1, %v4743
        %v4745 = vrot.slane %v4708, %v4744
        %v4746 = vlaneseq
        %v4747 = vshrl.u32 %v4746, 7
        %v4748 = vsub.s32 1, %v4747
        %v4749 = vrot.slane %v4709, %v4748
        %v4750 = vsel %vm2002, %v4725, %v4721
        %v4751 = vsel %vm2004, %v4729, %v4750
        %v4752 = vsel %vm2006, %v4733, %v4751
        %v4753 = vsel %vm2008, %v4737, %v4752
        %v4754 = vsel %vm2010, %v4741, %v4753
        %v4755 = vsel %vm2012, %v4745, %v4754
        %v4756 = vsel %vm2014, %v4749, %v4755
        %v4757 = vsel %vm1503, %v4756, 0
        %4759 = vmatprep.subr.mxu0 0.0
        %4760 = vmatpush1.msra.mxu0 0.0
        %4761 = vmatprep.subr.mxu0 0.0
        %4762 = vmatpush1.msra.mxu0 0.0
        %4763 = vmatprep.subr.mxu0 0.0
        %4764 = vmatpush1.msra.mxu0 0.0
        %4765 = vmatprep.subr.mxu0 0.0
        %4766 = vmatpush1.msra.mxu0 0.0
        %4767 = vmatprep.subr.mxu0 0.0
        %4768 = vmatpush1.msra.mxu0 0.0
        %4769 = vmatprep.subr.mxu0 0.0
        %4770 = vmatpush1.msra.mxu0 0.0
        %4771 = vmatprep.subr.mxu0 0.0
        %4772 = vmatpush1.msra.mxu0 0.0
        %4773 = vmatprep.subr.mxu0 0.0
        %4774 = vmatpush1.msra.mxu0 0.0
        %4775 = vmatprep.subr.mxu0 0.0
        %4776 = vmatpush1.msra.mxu0 %v760
        %4777 = vmatprep.subr.mxu0 0.0
        %4778 = vmatpush1.msra.mxu0 %v759
        %4779 = vmatprep.subr.mxu0 0.0
        %4780 = vmatpush1.msra.mxu0 %v758
        %4781 = vmatprep.subr.mxu0 0.0
        %4782 = vmatpush1.msra.mxu0 %v757
        %4783 = vmatprep.subr.mxu0 0.0
        %4784 = vmatpush1.msra.mxu0 %v756
        %4785 = vmatprep.subr.mxu0 0.0
        %4786 = vmatpush1.msra.mxu0 %v755
        %4787 = vmatprep.subr.mxu0 0.0
        %4788 = vmatpush1.msra.mxu0 %v754
        %4789 = vmatprep.subr.mxu0 0.0
        %4790 = vmatpush1.msra.mxu0 %v753
        %4791 = vmatprep.subr.mxu0 0.0
        %4792 = vmatpush2.msra.mxu0 0.0
        %4793 = vmatprep.subr.mxu0 0.0
        %4794 = vmatpush2.msra.mxu0 0.0
        %4795 = vmatprep.subr.mxu0 0.0
        %4796 = vmatpush2.msra.mxu0 0.0
        %4797 = vmatprep.subr.mxu0 0.0
        %4798 = vmatpush2.msra.mxu0 0.0
        %4799 = vmatprep.subr.mxu0 0.0
        %4800 = vmatpush2.msra.mxu0 0.0
        %4801 = vmatprep.subr.mxu0 0.0
        %4802 = vmatpush2.msra.mxu0 0.0
        %4803 = vmatprep.subr.mxu0 0.0
        %4804 = vmatpush2.msra.mxu0 0.0
        %4805 = vmatprep.subr.mxu0 0.0
        %4806 = vmatpush2.msra.mxu0 0.0
        %4807 = vmatprep.subr.mxu0 0.0
        %4808 = vmatpush2.msra.mxu0 0.0
        %4809 = vmatprep.subr.mxu0 0.0
        %4810 = vmatpush2.msra.mxu0 0.0
        %4811 = vmatprep.subr.mxu0 0.0
        %4812 = vmatpush2.msra.mxu0 0.0
        %4813 = vmatprep.subr.mxu0 0.0
        %4814 = vmatpush2.msra.mxu0 0.0
        %4815 = vmatprep.subr.mxu0 0.0
        %4816 = vmatpush2.msra.mxu0 0.0
        %4817 = vmatprep.subr.mxu0 0.0
        %4818 = vmatpush2.msra.mxu0 0.0
        %4819 = vmatprep.subr.mxu0 0.0
        %4820 = vmatpush2.msra.mxu0 0.0
        %4821 = vmatprep.subr.mxu0 0.0
        %4822 = vmatpush2.msra.mxu0 0.0
        %4823 = vmatprep.mubr.f32.mxu0 0.0
        %4824 = vmatmul.mubr.f32.gmra.mxu0 %v4757
        %v4825 = vpop.f32.mrf.mxu0
        %v4826 = vadd.f32 0.0, %v4825
        %v4827 = vpop.f32.mrf.mxu0
        %4828 = vdwg.mxu0
        %v4830 = vcombine.high %v4826, %v4826
        %v4831 = vrot.slane %v4826, 6
        %v4832 = vrot.slane %v4826, 7
        %v4833 = vrot.slane %v4826, 1
        %v4834 = vrot.slane %v4830, 6
        %v4835 = vrot.slane %v4830, 7
        %v4836 = vrot.slane %v4830, 1
        %v4845 = vadd.f32 %v1145, %v4831
        %v4846 = vadd.f32 %v1085, %v4832
        %v4847 = vadd.f32 %v1148, %v4826
        %v4848 = vadd.f32 %v1100, %v4833
        %v4849 = vadd.f32 %v1151, %v4834
        %v4850 = vadd.f32 %v1115, %v4835
        %v4851 = vadd.f32 %v1154, %v4830
        %v4852 = vadd.f32 %v1130, %v4836
        %v4853 = vxor.u32 %v4845, 2147483648
        %v4854 = vxor.u32 %v4846, 2147483648
        %v4855 = vxor.u32 %v4847, 2147483648
        %v4856 = vxor.u32 %v4848, 2147483648
        %v4857 = vxor.u32 %v4849, 2147483648
        %v4858 = vxor.u32 %v4850, 2147483648
        %v4859 = vxor.u32 %v4851, 2147483648
        %v4860 = vxor.u32 %v4852, 2147483648
        %v4861 = vmul.f32 %v4853, 1.442695
        %v4862 = vpow.pop %v4861
        %v4863 = vmul.f32 %v4854, 1.442695
        %v4864 = vpow.pop %v4863
        %v4865 = vmul.f32 %v4855, 1.442695
        %v4866 = vpow.pop %v4865
        %v4867 = vmul.f32 %v4856, 1.442695
        %v4868 = vpow.pop %v4867
        %v4869 = vmul.f32 %v4857, 1.442695
        %v4870 = vpow.pop %v4869
        %v4871 = vmul.f32 %v4858, 1.442695
        %v4872 = vpow.pop %v4871
        %v4873 = vmul.f32 %v4859, 1.442695
        %v4874 = vpow.pop %v4873
        %v4875 = vmul.f32 %v4860, 1.442695
        %v4876 = vpow.pop %v4875
        %v4877 = vadd.f32 %v4862, 1.0
        %v4878 = vadd.f32 %v4864, 1.0
        %v4879 = vadd.f32 %v4866, 1.0
        %v4880 = vadd.f32 %v4868, 1.0
        %v4881 = vadd.f32 %v4870, 1.0
        %v4882 = vadd.f32 %v4872, 1.0
        %v4883 = vadd.f32 %v4874, 1.0
        %v4884 = vadd.f32 %v4876, 1.0
        %v4885 = vrcp.pop %v4877
        %v4886 = vmul.f32 1.0, %v4885
        %v4887 = vrcp.pop %v4878
        %v4888 = vmul.f32 1.0, %v4887
        %v4889 = vrcp.pop %v4879
        %v4890 = vmul.f32 1.0, %v4889
        %v4891 = vrcp.pop %v4880
        %v4892 = vmul.f32 1.0, %v4891
        %v4893 = vrcp.pop %v4881
        %v4894 = vmul.f32 1.0, %v4893
        %v4895 = vrcp.pop %v4882
        %v4896 = vmul.f32 1.0, %v4895
        %v4897 = vrcp.pop %v4883
        %v4898 = vmul.f32 1.0, %v4897
        %v4899 = vrcp.pop %v4884
        %v4900 = vmul.f32 1.0, %v4899
        %4901 = vmatprep.subr.mxu0 0.0
        %4902 = vmatpush1.msra.mxu0 0.0
        %4903 = vmatprep.subr.mxu0 0.0
        %4904 = vmatpush1.msra.mxu0 0.0
        %4905 = vmatprep.subr.mxu0 0.0
        %4906 = vmatpush1.msra.mxu0 0.0
        %4907 = vmatprep.subr.mxu0 0.0
        %4908 = vmatpush1.msra.mxu0 0.0
        %4909 = vmatprep.subr.mxu0 0.0
        %4910 = vmatpush1.msra.mxu0 0.0
        %4911 = vmatprep.subr.mxu0 0.0
        %4912 = vmatpush1.msra.mxu0 0.0
        %4913 = vmatprep.subr.mxu0 0.0
        %4914 = vmatpush1.msra.mxu0 0.0
        %4915 = vmatprep.subr.mxu0 0.0
        %4916 = vmatpush1.msra.mxu0 0.0
        %4917 = vmatprep.subr.mxu0 0.0
        %4918 = vmatpush1.msra.mxu0 %v768
        %4919 = vmatprep.subr.mxu0 0.0
        %4920 = vmatpush1.msra.mxu0 %v767
        %4921 = vmatprep.subr.mxu0 0.0
        %4922 = vmatpush1.msra.mxu0 %v766
        %4923 = vmatprep.subr.mxu0 0.0
        %4924 = vmatpush1.msra.mxu0 %v765
        %4925 = vmatprep.subr.mxu0 0.0
        %4926 = vmatpush1.msra.mxu0 %v764
        %4927 = vmatprep.subr.mxu0 0.0
        %4928 = vmatpush1.msra.mxu0 %v763
        %4929 = vmatprep.subr.mxu0 0.0
        %4930 = vmatpush1.msra.mxu0 %v762
        %4931 = vmatprep.subr.mxu0 0.0
        %4932 = vmatpush1.msra.mxu0 %v761
        %4933 = vmatprep.subr.mxu0 0.0
        %4934 = vmatpush2.msra.mxu0 0.0
        %4935 = vmatprep.subr.mxu0 0.0
        %4936 = vmatpush2.msra.mxu0 0.0
        %4937 = vmatprep.subr.mxu0 0.0
        %4938 = vmatpush2.msra.mxu0 0.0
        %4939 = vmatprep.subr.mxu0 0.0
        %4940 = vmatpush2.msra.mxu0 0.0
        %4941 = vmatprep.subr.mxu0 0.0
        %4942 = vmatpush2.msra.mxu0 0.0
        %4943 = vmatprep.subr.mxu0 0.0
        %4944 = vmatpush2.msra.mxu0 0.0
        %4945 = vmatprep.subr.mxu0 0.0
        %4946 = vmatpush2.msra.mxu0 0.0
        %4947 = vmatprep.subr.mxu0 0.0
        %4948 = vmatpush2.msra.mxu0 0.0
        %4949 = vmatprep.subr.mxu0 0.0
        %4950 = vmatpush2.msra.mxu0 0.0
        %4951 = vmatprep.subr.mxu0 0.0
        %4952 = vmatpush2.msra.mxu0 0.0
        %4953 = vmatprep.subr.mxu0 0.0
        %4954 = vmatpush2.msra.mxu0 0.0
        %4955 = vmatprep.subr.mxu0 0.0
        %4956 = vmatpush2.msra.mxu0 0.0
        %4957 = vmatprep.subr.mxu0 0.0
        %4958 = vmatpush2.msra.mxu0 0.0
        %4959 = vmatprep.subr.mxu0 0.0
        %4960 = vmatpush2.msra.mxu0 0.0
        %4961 = vmatprep.subr.mxu0 0.0
        %4962 = vmatpush2.msra.mxu0 0.0
        %4963 = vmatprep.subr.mxu0 0.0
        %4964 = vmatpush2.msra.mxu0 0.0
        %4965 = vmatprep.mubr.f32.mxu0 0.0
        %4966 = vmatmul.mubr.f32.gmra.mxu0 %v4757
        %v4967 = vpop.f32.mrf.mxu0
        %v4968 = vadd.f32 0.0, %v4967
        %v4969 = vpop.f32.mrf.mxu0
        %4970 = vdwg.mxu0
        %v4972 = vcombine.high %v4968, %v4968
        %v4973 = vrot.slane %v4968, 6
        %v4974 = vrot.slane %v4968, 7
        %v4975 = vrot.slane %v4968, 1
        %v4976 = vrot.slane %v4972, 6
        %v4977 = vrot.slane %v4972, 7
        %v4978 = vrot.slane %v4972, 1
        %v4987 = vadd.f32 %v1312, %v4973
        %v4988 = vadd.f32 %v1252, %v4974
        %v4989 = vadd.f32 %v1315, %v4968
        %v4990 = vadd.f32 %v1267, %v4975
        %v4991 = vadd.f32 %v1318, %v4976
        %v4992 = vadd.f32 %v1282, %v4977
        %v4993 = vadd.f32 %v1321, %v4972
        %v4994 = vadd.f32 %v1297, %v4978
        %v4995 = vxor.u32 %v4987, 2147483648
        %v4996 = vxor.u32 %v4988, 2147483648
        %v4997 = vxor.u32 %v4989, 2147483648
        %v4998 = vxor.u32 %v4990, 2147483648
        %v4999 = vxor.u32 %v4991, 2147483648
        %v5000 = vxor.u32 %v4992, 2147483648
        %v5001 = vxor.u32 %v4993, 2147483648
        %v5002 = vxor.u32 %v4994, 2147483648
        %v5003 = vmul.f32 %v4995, 1.442695
        %v5004 = vpow.pop %v5003
        %v5005 = vmul.f32 %v4996, 1.442695
        %v5006 = vpow.pop %v5005
        %v5007 = vmul.f32 %v4997, 1.442695
        %v5008 = vpow.pop %v5007
        %v5009 = vmul.f32 %v4998, 1.442695
        %v5010 = vpow.pop %v5009
        %v5011 = vmul.f32 %v4999, 1.442695
        %v5012 = vpow.pop %v5011
        %v5013 = vmul.f32 %v5000, 1.442695
        %v5014 = vpow.pop %v5013
        %v5015 = vmul.f32 %v5001, 1.442695
        %v5016 = vpow.pop %v5015
        %v5017 = vmul.f32 %v5002, 1.442695
        %v5018 = vpow.pop %v5017
        %v5019 = vadd.f32 %v5004, 1.0
        %v5020 = vadd.f32 %v5006, 1.0
        %v5021 = vadd.f32 %v5008, 1.0
        %v5022 = vadd.f32 %v5010, 1.0
        %v5023 = vadd.f32 %v5012, 1.0
        %v5024 = vadd.f32 %v5014, 1.0
        %v5025 = vadd.f32 %v5016, 1.0
        %v5026 = vadd.f32 %v5018, 1.0
        %v5027 = vrcp.pop %v5019
        %v5028 = vmul.f32 1.0, %v5027
        %v5029 = vrcp.pop %v5020
        %v5030 = vmul.f32 1.0, %v5029
        %v5031 = vrcp.pop %v5021
        %v5032 = vmul.f32 1.0, %v5031
        %v5033 = vrcp.pop %v5022
        %v5034 = vmul.f32 1.0, %v5033
        %v5035 = vrcp.pop %v5023
        %v5036 = vmul.f32 1.0, %v5035
        %v5037 = vrcp.pop %v5024
        %v5038 = vmul.f32 1.0, %v5037
        %v5039 = vrcp.pop %v5025
        %v5040 = vmul.f32 1.0, %v5039
        %v5041 = vrcp.pop %v5026
        %v5042 = vmul.f32 1.0, %v5041
        %5043 = vmatprep.subr.mxu0 0.0
        %5044 = vmatpush1.msra.mxu0 0.0
        %5045 = vmatprep.subr.mxu0 0.0
        %5046 = vmatpush1.msra.mxu0 0.0
        %5047 = vmatprep.subr.mxu0 0.0
        %5048 = vmatpush1.msra.mxu0 0.0
        %5049 = vmatprep.subr.mxu0 0.0
        %5050 = vmatpush1.msra.mxu0 0.0
        %5051 = vmatprep.subr.mxu0 0.0
        %5052 = vmatpush1.msra.mxu0 0.0
        %5053 = vmatprep.subr.mxu0 0.0
        %5054 = vmatpush1.msra.mxu0 0.0
        %5055 = vmatprep.subr.mxu0 0.0
        %5056 = vmatpush1.msra.mxu0 0.0
        %5057 = vmatprep.subr.mxu0 0.0
        %5058 = vmatpush1.msra.mxu0 0.0
        %5059 = vmatprep.subr.mxu0 0.0
        %5060 = vmatpush1.msra.mxu0 %v776
        %5061 = vmatprep.subr.mxu0 0.0
        %5062 = vmatpush1.msra.mxu0 %v775
        %5063 = vmatprep.subr.mxu0 0.0
        %5064 = vmatpush1.msra.mxu0 %v774
        %5065 = vmatprep.subr.mxu0 0.0
        %5066 = vmatpush1.msra.mxu0 %v773
        %5067 = vmatprep.subr.mxu0 0.0
        %5068 = vmatpush1.msra.mxu0 %v772
        %5069 = vmatprep.subr.mxu0 0.0
        %5070 = vmatpush1.msra.mxu0 %v771
        %5071 = vmatprep.subr.mxu0 0.0
        %5072 = vmatpush1.msra.mxu0 %v770
        %5073 = vmatprep.subr.mxu0 0.0
        %5074 = vmatpush1.msra.mxu0 %v769
        %5075 = vmatprep.subr.mxu0 0.0
        %5076 = vmatpush2.msra.mxu0 0.0
        %5077 = vmatprep.subr.mxu0 0.0
        %5078 = vmatpush2.msra.mxu0 0.0
        %5079 = vmatprep.subr.mxu0 0.0
        %5080 = vmatpush2.msra.mxu0 0.0
        %5081 = vmatprep.subr.mxu0 0.0
        %5082 = vmatpush2.msra.mxu0 0.0
        %5083 = vmatprep.subr.mxu0 0.0
        %5084 = vmatpush2.msra.mxu0 0.0
        %5085 = vmatprep.subr.mxu0 0.0
        %5086 = vmatpush2.msra.mxu0 0.0
        %5087 = vmatprep.subr.mxu0 0.0
        %5088 = vmatpush2.msra.mxu0 0.0
        %5089 = vmatprep.subr.mxu0 0.0
        %5090 = vmatpush2.msra.mxu0 0.0
        %5091 = vmatprep.subr.mxu0 0.0
        %5092 = vmatpush2.msra.mxu0 0.0
        %5093 = vmatprep.subr.mxu0 0.0
        %5094 = vmatpush2.msra.mxu0 0.0
        %5095 = vmatprep.subr.mxu0 0.0
        %5096 = vmatpush2.msra.mxu0 0.0
        %5097 = vmatprep.subr.mxu0 0.0
        %5098 = vmatpush2.msra.mxu0 0.0
        %5099 = vmatprep.subr.mxu0 0.0
        %5100 = vmatpush2.msra.mxu0 0.0
        %5101 = vmatprep.subr.mxu0 0.0
        %5102 = vmatpush2.msra.mxu0 0.0
        %5103 = vmatprep.subr.mxu0 0.0
        %5104 = vmatpush2.msra.mxu0 0.0
        %5105 = vmatprep.subr.mxu0 0.0
        %5106 = vmatpush2.msra.mxu0 0.0
        %5107 = vmatprep.mubr.f32.mxu0 0.0
        %5108 = vmatmul.mubr.f32.gmra.mxu0 %v4757
        %v5109 = vpop.f32.mrf.mxu0
        %v5110 = vadd.f32 %v1795, %v5109
        %v5111 = vpop.f32.mrf.mxu0
        %5112 = vdwg.mxu0
        %v5114 = vcombine.high %v5110, %v5110
        %v5115 = vrot.slane %v5110, 6
        %v5116 = vrot.slane %v5110, 7
        %v5117 = vrot.slane %v5110, 1
        %v5118 = vrot.slane %v5114, 6
        %v5119 = vrot.slane %v5114, 7
        %v5120 = vrot.slane %v5114, 1
        %v5129 = vmul.f32 %v4886, %v5115
        %v5130 = vmul.f32 %v4888, %v5116
        %v5131 = vmul.f32 %v4890, %v5110
        %v5132 = vmul.f32 %v4892, %v5117
        %v5133 = vmul.f32 %v4894, %v5118
        %v5134 = vmul.f32 %v4896, %v5119
        %v5135 = vmul.f32 %v4898, %v5114
        %v5136 = vmul.f32 %v4900, %v5120
        %v5137 = vadd.f32 %v1479, %v5129
        %v5138 = vadd.f32 %v1419, %v5130
        %v5139 = vadd.f32 %v1482, %v5131
        %v5140 = vadd.f32 %v1434, %v5132
        %v5141 = vadd.f32 %v1485, %v5133
        %v5142 = vadd.f32 %v1449, %v5134
        %v5143 = vadd.f32 %v1488, %v5135
        %v5144 = vadd.f32 %v1464, %v5136
        %v5145 = vtanh.pop %v5137
        %v5146 = vtanh.pop %v5138
        %v5147 = vtanh.pop %v5139
        %v5148 = vtanh.pop %v5140
        %v5149 = vtanh.pop %v5141
        %v5150 = vtanh.pop %v5142
        %v5151 = vtanh.pop %v5143
        %v5152 = vtanh.pop %v5144
        %v5153 = vsub.f32 1.0, %v5028
        %v5154 = vsub.f32 1.0, %v5030
        %v5155 = vsub.f32 1.0, %v5032
        %v5156 = vsub.f32 1.0, %v5034
        %v5157 = vsub.f32 1.0, %v5036
        %v5158 = vsub.f32 1.0, %v5038
        %v5159 = vsub.f32 1.0, %v5040
        %v5160 = vsub.f32 1.0, %v5042
        %v5161 = vmul.f32 %v5153, %v5145
        %v5162 = vmul.f32 %v5154, %v5146
        %v5163 = vmul.f32 %v5155, %v5147
        %v5164 = vmul.f32 %v5156, %v5148
        %v5165 = vmul.f32 %v5157, %v5149
        %v5166 = vmul.f32 %v5158, %v5150
        %v5167 = vmul.f32 %v5159, %v5151
        %v5168 = vmul.f32 %v5160, %v5152
        %v5169 = vrot.slane %v4702, 7
        %v5170 = vrot.slane %v4703, 7
        %v5171 = vrot.slane %v4704, 7
        %v5172 = vrot.slane %v4705, 7
        %v5173 = vrot.slane %v4706, 7
        %v5174 = vrot.slane %v4707, 7
        %v5175 = vrot.slane %v4708, 7
        %v5176 = vrot.slane %v4709, 7
        %v5185 = vmul.f32 %v5028, %v5169
        %v5186 = vmul.f32 %v5030, %v5170
        %v5187 = vmul.f32 %v5032, %v5171
        %v5188 = vmul.f32 %v5034, %v5172
        %v5189 = vmul.f32 %v5036, %v5173
        %v5190 = vmul.f32 %v5038, %v5174
        %v5191 = vmul.f32 %v5040, %v5175
        %v5192 = vmul.f32 %v5042, %v5176
        %v5193 = vadd.f32 %v5161, %v5185
        %v5194 = vadd.f32 %v5162, %v5186
        %v5195 = vadd.f32 %v5163, %v5187
        %v5196 = vadd.f32 %v5164, %v5188
        %v5197 = vadd.f32 %v5165, %v5189
        %v5198 = vadd.f32 %v5166, %v5190
        %v5199 = vadd.f32 %v5167, %v5191
        %v5200 = vadd.f32 %v5168, %v5192
        %p5201 = scmp.gt.s32.totalorder %s704, 6
        %s5202 = scalar_select %p5201, 1, 0
        %s5203 = scvt.s32.f32 %s5202
        %v5204 = vstv %s5203
        %v5205 = vmul.f32 %v5204, %v5193
        %v5206 = vmul.f32 %v5204, %v5194
        %v5207 = vmul.f32 %v5204, %v5195
        %v5208 = vmul.f32 %v5204, %v5196
        %v5209 = vmul.f32 %v5204, %v5197
        %v5210 = vmul.f32 %v5204, %v5198
        %v5211 = vmul.f32 %v5204, %v5199
        %v5212 = vmul.f32 %v5204, %v5200
        %s5213 = ssub.f32 1.0, %s5203
        %v5214 = vstv %s5213
        %v5215 = vmul.f32 %v5214, %v4702
        %v5216 = vmul.f32 %v5214, %v4703
        %v5217 = vmul.f32 %v5214, %v4704
        %v5218 = vmul.f32 %v5214, %v4705
        %v5219 = vmul.f32 %v5214, %v4706
        %v5220 = vmul.f32 %v5214, %v4707
        %v5221 = vmul.f32 %v5214, %v4708
        %v5222 = vmul.f32 %v5214, %v4709
        %v5231 = vrot.slane %v5215, 7
        %v5232 = vrot.slane %v5216, 7
        %v5233 = vrot.slane %v5217, 7
        %v5234 = vrot.slane %v5218, 7
        %v5235 = vrot.slane %v5219, 7
        %v5236 = vrot.slane %v5220, 7
        %v5237 = vrot.slane %v5221, 7
        %v5238 = vrot.slane %v5222, 7
        %v5247 = vadd.f32 %v5205, %v5231
        %v5248 = vadd.f32 %v5206, %v5232
        %v5249 = vadd.f32 %v5207, %v5233
        %v5250 = vadd.f32 %v5208, %v5234
        %v5251 = vadd.f32 %v5209, %v5235
        %v5252 = vadd.f32 %v5210, %v5236
        %v5253 = vadd.f32 %v5211, %v5237
        %v5254 = vadd.f32 %v5212, %v5238
        %v5263 = vlaneseq
        %v5264 = vshrl.u32 %v5263, 7
        %v5265 = vsub.s32 2, %v5264
        %v5266 = vrot.slane %v5247, %v5265
        %v5267 = vlaneseq
        %v5268 = vshrl.u32 %v5267, 7
        %v5269 = vsub.s32 2, %v5268
        %v5270 = vrot.slane %v5248, %v5269
        %v5271 = vlaneseq
        %v5272 = vshrl.u32 %v5271, 7
        %v5273 = vsub.s32 2, %v5272
        %v5274 = vrot.slane %v5249, %v5273
        %v5275 = vlaneseq
        %v5276 = vshrl.u32 %v5275, 7
        %v5277 = vsub.s32 2, %v5276
        %v5278 = vrot.slane %v5250, %v5277
        %v5279 = vlaneseq
        %v5280 = vshrl.u32 %v5279, 7
        %v5281 = vsub.s32 2, %v5280
        %v5282 = vrot.slane %v5251, %v5281
        %v5283 = vlaneseq
        %v5284 = vshrl.u32 %v5283, 7
        %v5285 = vsub.s32 2, %v5284
        %v5286 = vrot.slane %v5252, %v5285
        %v5287 = vlaneseq
        %v5288 = vshrl.u32 %v5287, 7
        %v5289 = vsub.s32 2, %v5288
        %v5290 = vrot.slane %v5253, %v5289
        %v5291 = vlaneseq
        %v5292 = vshrl.u32 %v5291, 7
        %v5293 = vsub.s32 2, %v5292
        %v5294 = vrot.slane %v5254, %v5293
        %v5295 = vsel %vm2002, %v5270, %v5266
        %v5296 = vsel %vm2004, %v5274, %v5295
        %v5297 = vsel %vm2006, %v5278, %v5296
        %v5298 = vsel %vm2008, %v5282, %v5297
        %v5299 = vsel %vm2010, %v5286, %v5298
        %v5300 = vsel %vm2012, %v5290, %v5299
        %v5301 = vsel %vm2014, %v5294, %v5300
        %v5302 = vsel %vm1503, %v5301, 0
        %5304 = vmatprep.subr.mxu0 0.0
        %5305 = vmatpush1.msra.mxu0 0.0
        %5306 = vmatprep.subr.mxu0 0.0
        %5307 = vmatpush1.msra.mxu0 0.0
        %5308 = vmatprep.subr.mxu0 0.0
        %5309 = vmatpush1.msra.mxu0 0.0
        %5310 = vmatprep.subr.mxu0 0.0
        %5311 = vmatpush1.msra.mxu0 0.0
        %5312 = vmatprep.subr.mxu0 0.0
        %5313 = vmatpush1.msra.mxu0 0.0
        %5314 = vmatprep.subr.mxu0 0.0
        %5315 = vmatpush1.msra.mxu0 0.0
        %5316 = vmatprep.subr.mxu0 0.0
        %5317 = vmatpush1.msra.mxu0 0.0
        %5318 = vmatprep.subr.mxu0 0.0
        %5319 = vmatpush1.msra.mxu0 0.0
        %5320 = vmatprep.subr.mxu0 0.0
        %5321 = vmatpush1.msra.mxu0 %v760
        %5322 = vmatprep.subr.mxu0 0.0
        %5323 = vmatpush1.msra.mxu0 %v759
        %5324 = vmatprep.subr.mxu0 0.0
        %5325 = vmatpush1.msra.mxu0 %v758
        %5326 = vmatprep.subr.mxu0 0.0
        %5327 = vmatpush1.msra.mxu0 %v757
        %5328 = vmatprep.subr.mxu0 0.0
        %5329 = vmatpush1.msra.mxu0 %v756
        %5330 = vmatprep.subr.mxu0 0.0
        %5331 = vmatpush1.msra.mxu0 %v755
        %5332 = vmatprep.subr.mxu0 0.0
        %5333 = vmatpush1.msra.mxu0 %v754
        %5334 = vmatprep.subr.mxu0 0.0
        %5335 = vmatpush1.msra.mxu0 %v753
        %5336 = vmatprep.subr.mxu0 0.0
        %5337 = vmatpush2.msra.mxu0 0.0
        %5338 = vmatprep.subr.mxu0 0.0
        %5339 = vmatpush2.msra.mxu0 0.0
        %5340 = vmatprep.subr.mxu0 0.0
        %5341 = vmatpush2.msra.mxu0 0.0
        %5342 = vmatprep.subr.mxu0 0.0
        %5343 = vmatpush2.msra.mxu0 0.0
        %5344 = vmatprep.subr.mxu0 0.0
        %5345 = vmatpush2.msra.mxu0 0.0
        %5346 = vmatprep.subr.mxu0 0.0
        %5347 = vmatpush2.msra.mxu0 0.0
        %5348 = vmatprep.subr.mxu0 0.0
        %5349 = vmatpush2.msra.mxu0 0.0
        %5350 = vmatprep.subr.mxu0 0.0
        %5351 = vmatpush2.msra.mxu0 0.0
        %5352 = vmatprep.subr.mxu0 0.0
        %5353 = vmatpush2.msra.mxu0 0.0
        %5354 = vmatprep.subr.mxu0 0.0
        %5355 = vmatpush2.msra.mxu0 0.0
        %5356 = vmatprep.subr.mxu0 0.0
        %5357 = vmatpush2.msra.mxu0 0.0
        %5358 = vmatprep.subr.mxu0 0.0
        %5359 = vmatpush2.msra.mxu0 0.0
        %5360 = vmatprep.subr.mxu0 0.0
        %5361 = vmatpush2.msra.mxu0 0.0
        %5362 = vmatprep.subr.mxu0 0.0
        %5363 = vmatpush2.msra.mxu0 0.0
        %5364 = vmatprep.subr.mxu0 0.0
        %5365 = vmatpush2.msra.mxu0 0.0
        %5366 = vmatprep.subr.mxu0 0.0
        %5367 = vmatpush2.msra.mxu0 0.0
        %5368 = vmatprep.mubr.f32.mxu0 0.0
        %5369 = vmatmul.mubr.f32.gmra.mxu0 %v5302
        %v5370 = vpop.f32.mrf.mxu0
        %v5371 = vadd.f32 0.0, %v5370
        %v5372 = vpop.f32.mrf.mxu0
        %5373 = vdwg.mxu0
        %v5375 = vcombine.high %v5371, %v5371
        %v5376 = vrot.slane %v5371, 5
        %v5377 = vrot.slane %v5371, 6
        %v5378 = vrot.slane %v5371, 7
        %v5379 = vrot.slane %v5375, 5
        %v5380 = vrot.slane %v5375, 6
        %v5381 = vrot.slane %v5375, 7
        %v5390 = vadd.f32 %v1145, %v5376
        %v5391 = vadd.f32 %v1085, %v5377
        %v5392 = vadd.f32 %v1148, %v5378
        %v5393 = vadd.f32 %v1100, %v5371
        %v5394 = vadd.f32 %v1151, %v5379
        %v5395 = vadd.f32 %v1115, %v5380
        %v5396 = vadd.f32 %v1154, %v5381
        %v5397 = vadd.f32 %v1130, %v5375
        %v5398 = vxor.u32 %v5390, 2147483648
        %v5399 = vxor.u32 %v5391, 2147483648
        %v5400 = vxor.u32 %v5392, 2147483648
        %v5401 = vxor.u32 %v5393, 2147483648
        %v5402 = vxor.u32 %v5394, 2147483648
        %v5403 = vxor.u32 %v5395, 2147483648
        %v5404 = vxor.u32 %v5396, 2147483648
        %v5405 = vxor.u32 %v5397, 2147483648
        %v5406 = vmul.f32 %v5398, 1.442695
        %v5407 = vpow.pop %v5406
        %v5408 = vmul.f32 %v5399, 1.442695
        %v5409 = vpow.pop %v5408
        %v5410 = vmul.f32 %v5400, 1.442695
        %v5411 = vpow.pop %v5410
        %v5412 = vmul.f32 %v5401, 1.442695
        %v5413 = vpow.pop %v5412
        %v5414 = vmul.f32 %v5402, 1.442695
        %v5415 = vpow.pop %v5414
        %v5416 = vmul.f32 %v5403, 1.442695
        %v5417 = vpow.pop %v5416
        %v5418 = vmul.f32 %v5404, 1.442695
        %v5419 = vpow.pop %v5418
        %v5420 = vmul.f32 %v5405, 1.442695
        %v5421 = vpow.pop %v5420
        %v5422 = vadd.f32 %v5407, 1.0
        %v5423 = vadd.f32 %v5409, 1.0
        %v5424 = vadd.f32 %v5411, 1.0
        %v5425 = vadd.f32 %v5413, 1.0
        %v5426 = vadd.f32 %v5415, 1.0
        %v5427 = vadd.f32 %v5417, 1.0
        %v5428 = vadd.f32 %v5419, 1.0
        %v5429 = vadd.f32 %v5421, 1.0
        %v5430 = vrcp.pop %v5422
        %v5431 = vmul.f32 1.0, %v5430
        %v5432 = vrcp.pop %v5423
        %v5433 = vmul.f32 1.0, %v5432
        %v5434 = vrcp.pop %v5424
        %v5435 = vmul.f32 1.0, %v5434
        %v5436 = vrcp.pop %v5425
        %v5437 = vmul.f32 1.0, %v5436
        %v5438 = vrcp.pop %v5426
        %v5439 = vmul.f32 1.0, %v5438
        %v5440 = vrcp.pop %v5427
        %v5441 = vmul.f32 1.0, %v5440
        %v5442 = vrcp.pop %v5428
        %v5443 = vmul.f32 1.0, %v5442
        %v5444 = vrcp.pop %v5429
        %v5445 = vmul.f32 1.0, %v5444
        %5446 = vmatprep.subr.mxu0 0.0
        %5447 = vmatpush1.msra.mxu0 0.0
        %5448 = vmatprep.subr.mxu0 0.0
        %5449 = vmatpush1.msra.mxu0 0.0
        %5450 = vmatprep.subr.mxu0 0.0
        %5451 = vmatpush1.msra.mxu0 0.0
        %5452 = vmatprep.subr.mxu0 0.0
        %5453 = vmatpush1.msra.mxu0 0.0
        %5454 = vmatprep.subr.mxu0 0.0
        %5455 = vmatpush1.msra.mxu0 0.0
        %5456 = vmatprep.subr.mxu0 0.0
        %5457 = vmatpush1.msra.mxu0 0.0
        %5458 = vmatprep.subr.mxu0 0.0
        %5459 = vmatpush1.msra.mxu0 0.0
        %5460 = vmatprep.subr.mxu0 0.0
        %5461 = vmatpush1.msra.mxu0 0.0
        %5462 = vmatprep.subr.mxu0 0.0
        %5463 = vmatpush1.msra.mxu0 %v768
        %5464 = vmatprep.subr.mxu0 0.0
        %5465 = vmatpush1.msra.mxu0 %v767
        %5466 = vmatprep.subr.mxu0 0.0
        %5467 = vmatpush1.msra.mxu0 %v766
        %5468 = vmatprep.subr.mxu0 0.0
        %5469 = vmatpush1.msra.mxu0 %v765
        %5470 = vmatprep.subr.mxu0 0.0
        %5471 = vmatpush1.msra.mxu0 %v764
        %5472 = vmatprep.subr.mxu0 0.0
        %5473 = vmatpush1.msra.mxu0 %v763
        %5474 = vmatprep.subr.mxu0 0.0
        %5475 = vmatpush1.msra.mxu0 %v762
        %5476 = vmatprep.subr.mxu0 0.0
        %5477 = vmatpush1.msra.mxu0 %v761
        %5478 = vmatprep.subr.mxu0 0.0
        %5479 = vmatpush2.msra.mxu0 0.0
        %5480 = vmatprep.subr.mxu0 0.0
        %5481 = vmatpush2.msra.mxu0 0.0
        %5482 = vmatprep.subr.mxu0 0.0
        %5483 = vmatpush2.msra.mxu0 0.0
        %5484 = vmatprep.subr.mxu0 0.0
        %5485 = vmatpush2.msra.mxu0 0.0
        %5486 = vmatprep.subr.mxu0 0.0
        %5487 = vmatpush2.msra.mxu0 0.0
        %5488 = vmatprep.subr.mxu0 0.0
        %5489 = vmatpush2.msra.mxu0 0.0
        %5490 = vmatprep.subr.mxu0 0.0
        %5491 = vmatpush2.msra.mxu0 0.0
        %5492 = vmatprep.subr.mxu0 0.0
        %5493 = vmatpush2.msra.mxu0 0.0
        %5494 = vmatprep.subr.mxu0 0.0
        %5495 = vmatpush2.msra.mxu0 0.0
        %5496 = vmatprep.subr.mxu0 0.0
        %5497 = vmatpush2.msra.mxu0 0.0
        %5498 = vmatprep.subr.mxu0 0.0
        %5499 = vmatpush2.msra.mxu0 0.0
        %5500 = vmatprep.subr.mxu0 0.0
        %5501 = vmatpush2.msra.mxu0 0.0
        %5502 = vmatprep.subr.mxu0 0.0
        %5503 = vmatpush2.msra.mxu0 0.0
        %5504 = vmatprep.subr.mxu0 0.0
        %5505 = vmatpush2.msra.mxu0 0.0
        %5506 = vmatprep.subr.mxu0 0.0
        %5507 = vmatpush2.msra.mxu0 0.0
        %5508 = vmatprep.subr.mxu0 0.0
        %5509 = vmatpush2.msra.mxu0 0.0
        %5510 = vmatprep.mubr.f32.mxu0 0.0
        %5511 = vmatmul.mubr.f32.gmra.mxu0 %v5302
        %v5512 = vpop.f32.mrf.mxu0
        %v5513 = vadd.f32 0.0, %v5512
        %v5514 = vpop.f32.mrf.mxu0
        %5515 = vdwg.mxu0
        %v5517 = vcombine.high %v5513, %v5513
        %v5518 = vrot.slane %v5513, 5
        %v5519 = vrot.slane %v5513, 6
        %v5520 = vrot.slane %v5513, 7
        %v5521 = vrot.slane %v5517, 5
        %v5522 = vrot.slane %v5517, 6
        %v5523 = vrot.slane %v5517, 7
        %v5532 = vadd.f32 %v1312, %v5518
        %v5533 = vadd.f32 %v1252, %v5519
        %v5534 = vadd.f32 %v1315, %v5520
        %v5535 = vadd.f32 %v1267, %v5513
        %v5536 = vadd.f32 %v1318, %v5521
        %v5537 = vadd.f32 %v1282, %v5522
        %v5538 = vadd.f32 %v1321, %v5523
        %v5539 = vadd.f32 %v1297, %v5517
        %v5540 = vxor.u32 %v5532, 2147483648
        %v5541 = vxor.u32 %v5533, 2147483648
        %v5542 = vxor.u32 %v5534, 2147483648
        %v5543 = vxor.u32 %v5535, 2147483648
        %v5544 = vxor.u32 %v5536, 2147483648
        %v5545 = vxor.u32 %v5537, 2147483648
        %v5546 = vxor.u32 %v5538, 2147483648
        %v5547 = vxor.u32 %v5539, 2147483648
        %v5548 = vmul.f32 %v5540, 1.442695
        %v5549 = vpow.pop %v5548
        %v5550 = vmul.f32 %v5541, 1.442695
        %v5551 = vpow.pop %v5550
        %v5552 = vmul.f32 %v5542, 1.442695
        %v5553 = vpow.pop %v5552
        %v5554 = vmul.f32 %v5543, 1.442695
        %v5555 = vpow.pop %v5554
        %v5556 = vmul.f32 %v5544, 1.442695
        %v5557 = vpow.pop %v5556
        %v5558 = vmul.f32 %v5545, 1.442695
        %v5559 = vpow.pop %v5558
        %v5560 = vmul.f32 %v5546, 1.442695
        %v5561 = vpow.pop %v5560
        %v5562 = vmul.f32 %v5547, 1.442695
        %v5563 = vpow.pop %v5562
        %v5564 = vadd.f32 %v5549, 1.0
        %v5565 = vadd.f32 %v5551, 1.0
        %v5566 = vadd.f32 %v5553, 1.0
        %v5567 = vadd.f32 %v5555, 1.0
        %v5568 = vadd.f32 %v5557, 1.0
        %v5569 = vadd.f32 %v5559, 1.0
        %v5570 = vadd.f32 %v5561, 1.0
        %v5571 = vadd.f32 %v5563, 1.0
        %v5572 = vrcp.pop %v5564
        %v5573 = vmul.f32 1.0, %v5572
        %v5574 = vrcp.pop %v5565
        %v5575 = vmul.f32 1.0, %v5574
        %v5576 = vrcp.pop %v5566
        %v5577 = vmul.f32 1.0, %v5576
        %v5578 = vrcp.pop %v5567
        %v5579 = vmul.f32 1.0, %v5578
        %v5580 = vrcp.pop %v5568
        %v5581 = vmul.f32 1.0, %v5580
        %v5582 = vrcp.pop %v5569
        %v5583 = vmul.f32 1.0, %v5582
        %v5584 = vrcp.pop %v5570
        %v5585 = vmul.f32 1.0, %v5584
        %v5586 = vrcp.pop %v5571
        %v5587 = vmul.f32 1.0, %v5586
        %5588 = vmatprep.subr.mxu0 0.0
        %5589 = vmatpush1.msra.mxu0 0.0
        %5590 = vmatprep.subr.mxu0 0.0
        %5591 = vmatpush1.msra.mxu0 0.0
        %5592 = vmatprep.subr.mxu0 0.0
        %5593 = vmatpush1.msra.mxu0 0.0
        %5594 = vmatprep.subr.mxu0 0.0
        %5595 = vmatpush1.msra.mxu0 0.0
        %5596 = vmatprep.subr.mxu0 0.0
        %5597 = vmatpush1.msra.mxu0 0.0
        %5598 = vmatprep.subr.mxu0 0.0
        %5599 = vmatpush1.msra.mxu0 0.0
        %5600 = vmatprep.subr.mxu0 0.0
        %5601 = vmatpush1.msra.mxu0 0.0
        %5602 = vmatprep.subr.mxu0 0.0
        %5603 = vmatpush1.msra.mxu0 0.0
        %5604 = vmatprep.subr.mxu0 0.0
        %5605 = vmatpush1.msra.mxu0 %v776
        %5606 = vmatprep.subr.mxu0 0.0
        %5607 = vmatpush1.msra.mxu0 %v775
        %5608 = vmatprep.subr.mxu0 0.0
        %5609 = vmatpush1.msra.mxu0 %v774
        %5610 = vmatprep.subr.mxu0 0.0
        %5611 = vmatpush1.msra.mxu0 %v773
        %5612 = vmatprep.subr.mxu0 0.0
        %5613 = vmatpush1.msra.mxu0 %v772
        %5614 = vmatprep.subr.mxu0 0.0
        %5615 = vmatpush1.msra.mxu0 %v771
        %5616 = vmatprep.subr.mxu0 0.0
        %5617 = vmatpush1.msra.mxu0 %v770
        %5618 = vmatprep.subr.mxu0 0.0
        %5619 = vmatpush1.msra.mxu0 %v769
        %5620 = vmatprep.subr.mxu0 0.0
        %5621 = vmatpush2.msra.mxu0 0.0
        %5622 = vmatprep.subr.mxu0 0.0
        %5623 = vmatpush2.msra.mxu0 0.0
        %5624 = vmatprep.subr.mxu0 0.0
        %5625 = vmatpush2.msra.mxu0 0.0
        %5626 = vmatprep.subr.mxu0 0.0
        %5627 = vmatpush2.msra.mxu0 0.0
        %5628 = vmatprep.subr.mxu0 0.0
        %5629 = vmatpush2.msra.mxu0 0.0
        %5630 = vmatprep.subr.mxu0 0.0
        %5631 = vmatpush2.msra.mxu0 0.0
        %5632 = vmatprep.subr.mxu0 0.0
        %5633 = vmatpush2.msra.mxu0 0.0
        %5634 = vmatprep.subr.mxu0 0.0
        %5635 = vmatpush2.msra.mxu0 0.0
        %5636 = vmatprep.subr.mxu0 0.0
        %5637 = vmatpush2.msra.mxu0 0.0
        %5638 = vmatprep.subr.mxu0 0.0
        %5639 = vmatpush2.msra.mxu0 0.0
        %5640 = vmatprep.subr.mxu0 0.0
        %5641 = vmatpush2.msra.mxu0 0.0
        %5642 = vmatprep.subr.mxu0 0.0
        %5643 = vmatpush2.msra.mxu0 0.0
        %5644 = vmatprep.subr.mxu0 0.0
        %5645 = vmatpush2.msra.mxu0 0.0
        %5646 = vmatprep.subr.mxu0 0.0
        %5647 = vmatpush2.msra.mxu0 0.0
        %5648 = vmatprep.subr.mxu0 0.0
        %5649 = vmatpush2.msra.mxu0 0.0
        %5650 = vmatprep.subr.mxu0 0.0
        %5651 = vmatpush2.msra.mxu0 0.0
        %5652 = vmatprep.mubr.f32.mxu0 0.0
        %5653 = vmatmul.mubr.f32.gmra.mxu0 %v5302
        %v5654 = vpop.f32.mrf.mxu0
        %v5655 = vadd.f32 %v1795, %v5654
        %v5656 = vpop.f32.mrf.mxu0
        %5657 = vdwg.mxu0
        %v5659 = vcombine.high %v5655, %v5655
        %v5660 = vrot.slane %v5655, 5
        %v5661 = vrot.slane %v5655, 6
        %v5662 = vrot.slane %v5655, 7
        %v5663 = vrot.slane %v5659, 5
        %v5664 = vrot.slane %v5659, 6
        %v5665 = vrot.slane %v5659, 7
        %v5674 = vmul.f32 %v5431, %v5660
        %v5675 = vmul.f32 %v5433, %v5661
        %v5676 = vmul.f32 %v5435, %v5662
        %v5677 = vmul.f32 %v5437, %v5655
        %v5678 = vmul.f32 %v5439, %v5663
        %v5679 = vmul.f32 %v5441, %v5664
        %v5680 = vmul.f32 %v5443, %v5665
        %v5681 = vmul.f32 %v5445, %v5659
        %v5682 = vadd.f32 %v1479, %v5674
        %v5683 = vadd.f32 %v1419, %v5675
        %v5684 = vadd.f32 %v1482, %v5676
        %v5685 = vadd.f32 %v1434, %v5677
        %v5686 = vadd.f32 %v1485, %v5678
        %v5687 = vadd.f32 %v1449, %v5679
        %v5688 = vadd.f32 %v1488, %v5680
        %v5689 = vadd.f32 %v1464, %v5681
        %v5690 = vtanh.pop %v5682
        %v5691 = vtanh.pop %v5683
        %v5692 = vtanh.pop %v5684
        %v5693 = vtanh.pop %v5685
        %v5694 = vtanh.pop %v5686
        %v5695 = vtanh.pop %v5687
        %v5696 = vtanh.pop %v5688
        %v5697 = vtanh.pop %v5689
        %v5698 = vsub.f32 1.0, %v5573
        %v5699 = vsub.f32 1.0, %v5575
        %v5700 = vsub.f32 1.0, %v5577
        %v5701 = vsub.f32 1.0, %v5579
        %v5702 = vsub.f32 1.0, %v5581
        %v5703 = vsub.f32 1.0, %v5583
        %v5704 = vsub.f32 1.0, %v5585
        %v5705 = vsub.f32 1.0, %v5587
        %v5706 = vmul.f32 %v5698, %v5690
        %v5707 = vmul.f32 %v5699, %v5691
        %v5708 = vmul.f32 %v5700, %v5692
        %v5709 = vmul.f32 %v5701, %v5693
        %v5710 = vmul.f32 %v5702, %v5694
        %v5711 = vmul.f32 %v5703, %v5695
        %v5712 = vmul.f32 %v5704, %v5696
        %v5713 = vmul.f32 %v5705, %v5697
        %v5714 = vrot.slane %v5247, 7
        %v5715 = vrot.slane %v5248, 7
        %v5716 = vrot.slane %v5249, 7
        %v5717 = vrot.slane %v5250, 7
        %v5718 = vrot.slane %v5251, 7
        %v5719 = vrot.slane %v5252, 7
        %v5720 = vrot.slane %v5253, 7
        %v5721 = vrot.slane %v5254, 7
        %v5730 = vmul.f32 %v5573, %v5714
        %v5731 = vmul.f32 %v5575, %v5715
        %v5732 = vmul.f32 %v5577, %v5716
        %v5733 = vmul.f32 %v5579, %v5717
        %v5734 = vmul.f32 %v5581, %v5718
        %v5735 = vmul.f32 %v5583, %v5719
        %v5736 = vmul.f32 %v5585, %v5720
        %v5737 = vmul.f32 %v5587, %v5721
        %v5738 = vadd.f32 %v5706, %v5730
        %v5739 = vadd.f32 %v5707, %v5731
        %v5740 = vadd.f32 %v5708, %v5732
        %v5741 = vadd.f32 %v5709, %v5733
        %v5742 = vadd.f32 %v5710, %v5734
        %v5743 = vadd.f32 %v5711, %v5735
        %v5744 = vadd.f32 %v5712, %v5736
        %v5745 = vadd.f32 %v5713, %v5737
        %p5746 = scmp.gt.s32.totalorder %s704, 7
        %s5747 = scalar_select %p5746, 1, 0
        %s5748 = scvt.s32.f32 %s5747
        %v5749 = vstv %s5748
        %v5750 = vmul.f32 %v5749, %v5738
        %v5751 = vmul.f32 %v5749, %v5739
        %v5752 = vmul.f32 %v5749, %v5740
        %v5753 = vmul.f32 %v5749, %v5741
        %v5754 = vmul.f32 %v5749, %v5742
        %v5755 = vmul.f32 %v5749, %v5743
        %v5756 = vmul.f32 %v5749, %v5744
        %v5757 = vmul.f32 %v5749, %v5745
        %s5758 = ssub.f32 1.0, %s5748
        %v5759 = vstv %s5758
        %v5760 = vmul.f32 %v5759, %v5247
        %v5761 = vmul.f32 %v5759, %v5248
        %v5762 = vmul.f32 %v5759, %v5249
        %v5763 = vmul.f32 %v5759, %v5250
        %v5764 = vmul.f32 %v5759, %v5251
        %v5765 = vmul.f32 %v5759, %v5252
        %v5766 = vmul.f32 %v5759, %v5253
        %v5767 = vmul.f32 %v5759, %v5254
        %v5776 = vrot.slane %v5760, 7
        %v5777 = vrot.slane %v5761, 7
        %v5778 = vrot.slane %v5762, 7
        %v5779 = vrot.slane %v5763, 7
        %v5780 = vrot.slane %v5764, 7
        %v5781 = vrot.slane %v5765, 7
        %v5782 = vrot.slane %v5766, 7
        %v5783 = vrot.slane %v5767, 7
        %v5792 = vadd.f32 %v5750, %v5776
        %v5793 = vadd.f32 %v5751, %v5777
        %v5794 = vadd.f32 %v5752, %v5778
        %v5795 = vadd.f32 %v5753, %v5779
        %v5796 = vadd.f32 %v5754, %v5780
        %v5797 = vadd.f32 %v5755, %v5781
        %v5798 = vadd.f32 %v5756, %v5782
        %v5799 = vadd.f32 %v5757, %v5783
        %v5808 = vlaneseq
        %v5809 = vshrl.u32 %v5808, 7
        %v5810 = vsub.s32 3, %v5809
        %v5811 = vrot.slane %v5792, %v5810
        %v5812 = vlaneseq
        %v5813 = vshrl.u32 %v5812, 7
        %v5814 = vsub.s32 3, %v5813
        %v5815 = vrot.slane %v5793, %v5814
        %v5816 = vlaneseq
        %v5817 = vshrl.u32 %v5816, 7
        %v5818 = vsub.s32 3, %v5817
        %v5819 = vrot.slane %v5794, %v5818
        %v5820 = vlaneseq
        %v5821 = vshrl.u32 %v5820, 7
        %v5822 = vsub.s32 3, %v5821
        %v5823 = vrot.slane %v5795, %v5822
        %v5824 = vlaneseq
        %v5825 = vshrl.u32 %v5824, 7
        %v5826 = vsub.s32 3, %v5825
        %v5827 = vrot.slane %v5796, %v5826
        %v5828 = vlaneseq
        %v5829 = vshrl.u32 %v5828, 7
        %v5830 = vsub.s32 3, %v5829
        %v5831 = vrot.slane %v5797, %v5830
        %v5832 = vlaneseq
        %v5833 = vshrl.u32 %v5832, 7
        %v5834 = vsub.s32 3, %v5833
        %v5835 = vrot.slane %v5798, %v5834
        %v5836 = vlaneseq
        %v5837 = vshrl.u32 %v5836, 7
        %v5838 = vsub.s32 3, %v5837
        %v5839 = vrot.slane %v5799, %v5838
        %v5840 = vsel %vm2002, %v5815, %v5811
        %v5841 = vsel %vm2004, %v5819, %v5840
        %v5842 = vsel %vm2006, %v5823, %v5841
        %v5843 = vsel %vm2008, %v5827, %v5842
        %v5844 = vsel %vm2010, %v5831, %v5843
        %v5845 = vsel %vm2012, %v5835, %v5844
        %v5846 = vsel %vm2014, %v5839, %v5845
        %v5847 = vsel %vm1503, %v5846, 0
        %5849 = vmatprep.subr.mxu0 0.0
        %5850 = vmatpush1.msra.mxu0 0.0
        %5851 = vmatprep.subr.mxu0 0.0
        %5852 = vmatpush1.msra.mxu0 0.0
        %5853 = vmatprep.subr.mxu0 0.0
        %5854 = vmatpush1.msra.mxu0 0.0
        %5855 = vmatprep.subr.mxu0 0.0
        %5856 = vmatpush1.msra.mxu0 0.0
        %5857 = vmatprep.subr.mxu0 0.0
        %5858 = vmatpush1.msra.mxu0 0.0
        %5859 = vmatprep.subr.mxu0 0.0
        %5860 = vmatpush1.msra.mxu0 0.0
        %5861 = vmatprep.subr.mxu0 0.0
        %5862 = vmatpush1.msra.mxu0 0.0
        %5863 = vmatprep.subr.mxu0 0.0
        %5864 = vmatpush1.msra.mxu0 0.0
        %5865 = vmatprep.subr.mxu0 0.0
        %5866 = vmatpush1.msra.mxu0 %v760
        %5867 = vmatprep.subr.mxu0 0.0
        %5868 = vmatpush1.msra.mxu0 %v759
        %5869 = vmatprep.subr.mxu0 0.0
        %5870 = vmatpush1.msra.mxu0 %v758
        %5871 = vmatprep.subr.mxu0 0.0
        %5872 = vmatpush1.msra.mxu0 %v757
        %5873 = vmatprep.subr.mxu0 0.0
        %5874 = vmatpush1.msra.mxu0 %v756
        %5875 = vmatprep.subr.mxu0 0.0
        %5876 = vmatpush1.msra.mxu0 %v755
        %5877 = vmatprep.subr.mxu0 0.0
        %5878 = vmatpush1.msra.mxu0 %v754
        %5879 = vmatprep.subr.mxu0 0.0
        %5880 = vmatpush1.msra.mxu0 %v753
        %5881 = vmatprep.subr.mxu0 0.0
        %5882 = vmatpush2.msra.mxu0 0.0
        %5883 = vmatprep.subr.mxu0 0.0
        %5884 = vmatpush2.msra.mxu0 0.0
        %5885 = vmatprep.subr.mxu0 0.0
        %5886 = vmatpush2.msra.mxu0 0.0
        %5887 = vmatprep.subr.mxu0 0.0
        %5888 = vmatpush2.msra.mxu0 0.0
        %5889 = vmatprep.subr.mxu0 0.0
        %5890 = vmatpush2.msra.mxu0 0.0
        %5891 = vmatprep.subr.mxu0 0.0
        %5892 = vmatpush2.msra.mxu0 0.0
        %5893 = vmatprep.subr.mxu0 0.0
        %5894 = vmatpush2.msra.mxu0 0.0
        %5895 = vmatprep.subr.mxu0 0.0
        %5896 = vmatpush2.msra.mxu0 0.0
        %5897 = vmatprep.subr.mxu0 0.0
        %5898 = vmatpush2.msra.mxu0 0.0
        %5899 = vmatprep.subr.mxu0 0.0
        %5900 = vmatpush2.msra.mxu0 0.0
        %5901 = vmatprep.subr.mxu0 0.0
        %5902 = vmatpush2.msra.mxu0 0.0
        %5903 = vmatprep.subr.mxu0 0.0
        %5904 = vmatpush2.msra.mxu0 0.0
        %5905 = vmatprep.subr.mxu0 0.0
        %5906 = vmatpush2.msra.mxu0 0.0
        %5907 = vmatprep.subr.mxu0 0.0
        %5908 = vmatpush2.msra.mxu0 0.0
        %5909 = vmatprep.subr.mxu0 0.0
        %5910 = vmatpush2.msra.mxu0 0.0
        %5911 = vmatprep.subr.mxu0 0.0
        %5912 = vmatpush2.msra.mxu0 0.0
        %5913 = vmatprep.mubr.f32.mxu0 0.0
        %5914 = vmatmul.mubr.f32.gmra.mxu0 %v5847
        %v5915 = vpop.f32.mrf.mxu0
        %v5916 = vadd.f32 0.0, %v5915
        %v5917 = vpop.f32.mrf.mxu0
        %5918 = vdwg.mxu0
        %v5920 = vcombine.high %v5916, %v5916
        %v5921 = vrot.slane %v5916, 1
        %v5922 = vrot.slane %v5916, 2
        %v5923 = vrot.slane %v5916, 3
        %v5924 = vrot.slane %v5920, 1
        %v5925 = vrot.slane %v5920, 2
        %v5926 = vrot.slane %v5920, 3
        %v5935 = vadd.f32 %v1080, %v5916
        %v5936 = vadd.f32 %v1147, %v5921
        %v5937 = vadd.f32 %v1095, %v5922
        %v5938 = vadd.f32 %v1150, %v5923
        %v5939 = vadd.f32 %v1110, %v5920
        %v5940 = vadd.f32 %v1153, %v5924
        %v5941 = vadd.f32 %v1125, %v5925
        %v5942 = vadd.f32 %v1156, %v5926
        %v5943 = vxor.u32 %v5935, 2147483648
        %v5944 = vxor.u32 %v5936, 2147483648
        %v5945 = vxor.u32 %v5937, 2147483648
        %v5946 = vxor.u32 %v5938, 2147483648
        %v5947 = vxor.u32 %v5939, 2147483648
        %v5948 = vxor.u32 %v5940, 2147483648
        %v5949 = vxor.u32 %v5941, 2147483648
        %v5950 = vxor.u32 %v5942, 2147483648
        %v5951 = vmul.f32 %v5943, 1.442695
        %v5952 = vpow.pop %v5951
        %v5953 = vmul.f32 %v5944, 1.442695
        %v5954 = vpow.pop %v5953
        %v5955 = vmul.f32 %v5945, 1.442695
        %v5956 = vpow.pop %v5955
        %v5957 = vmul.f32 %v5946, 1.442695
        %v5958 = vpow.pop %v5957
        %v5959 = vmul.f32 %v5947, 1.442695
        %v5960 = vpow.pop %v5959
        %v5961 = vmul.f32 %v5948, 1.442695
        %v5962 = vpow.pop %v5961
        %v5963 = vmul.f32 %v5949, 1.442695
        %v5964 = vpow.pop %v5963
        %v5965 = vmul.f32 %v5950, 1.442695
        %v5966 = vpow.pop %v5965
        %v5967 = vadd.f32 %v5952, 1.0
        %v5968 = vadd.f32 %v5954, 1.0
        %v5969 = vadd.f32 %v5956, 1.0
        %v5970 = vadd.f32 %v5958, 1.0
        %v5971 = vadd.f32 %v5960, 1.0
        %v5972 = vadd.f32 %v5962, 1.0
        %v5973 = vadd.f32 %v5964, 1.0
        %v5974 = vadd.f32 %v5966, 1.0
        %v5975 = vrcp.pop %v5967
        %v5976 = vmul.f32 1.0, %v5975
        %v5977 = vrcp.pop %v5968
        %v5978 = vmul.f32 1.0, %v5977
        %v5979 = vrcp.pop %v5969
        %v5980 = vmul.f32 1.0, %v5979
        %v5981 = vrcp.pop %v5970
        %v5982 = vmul.f32 1.0, %v5981
        %v5983 = vrcp.pop %v5971
        %v5984 = vmul.f32 1.0, %v5983
        %v5985 = vrcp.pop %v5972
        %v5986 = vmul.f32 1.0, %v5985
        %v5987 = vrcp.pop %v5973
        %v5988 = vmul.f32 1.0, %v5987
        %v5989 = vrcp.pop %v5974
        %v5990 = vmul.f32 1.0, %v5989
        %5991 = vmatprep.subr.mxu0 0.0
        %5992 = vmatpush1.msra.mxu0 0.0
        %5993 = vmatprep.subr.mxu0 0.0
        %5994 = vmatpush1.msra.mxu0 0.0
        %5995 = vmatprep.subr.mxu0 0.0
        %5996 = vmatpush1.msra.mxu0 0.0
        %5997 = vmatprep.subr.mxu0 0.0
        %5998 = vmatpush1.msra.mxu0 0.0
        %5999 = vmatprep.subr.mxu0 0.0
        %6000 = vmatpush1.msra.mxu0 0.0
        %6001 = vmatprep.subr.mxu0 0.0
        %6002 = vmatpush1.msra.mxu0 0.0
        %6003 = vmatprep.subr.mxu0 0.0
        %6004 = vmatpush1.msra.mxu0 0.0
        %6005 = vmatprep.subr.mxu0 0.0
        %6006 = vmatpush1.msra.mxu0 0.0
        %6007 = vmatprep.subr.mxu0 0.0
        %6008 = vmatpush1.msra.mxu0 %v768
        %6009 = vmatprep.subr.mxu0 0.0
        %6010 = vmatpush1.msra.mxu0 %v767
        %6011 = vmatprep.subr.mxu0 0.0
        %6012 = vmatpush1.msra.mxu0 %v766
        %6013 = vmatprep.subr.mxu0 0.0
        %6014 = vmatpush1.msra.mxu0 %v765
        %6015 = vmatprep.subr.mxu0 0.0
        %6016 = vmatpush1.msra.mxu0 %v764
        %6017 = vmatprep.subr.mxu0 0.0
        %6018 = vmatpush1.msra.mxu0 %v763
        %6019 = vmatprep.subr.mxu0 0.0
        %6020 = vmatpush1.msra.mxu0 %v762
        %6021 = vmatprep.subr.mxu0 0.0
        %6022 = vmatpush1.msra.mxu0 %v761
        %6023 = vmatprep.subr.mxu0 0.0
        %6024 = vmatpush2.msra.mxu0 0.0
        %6025 = vmatprep.subr.mxu0 0.0
        %6026 = vmatpush2.msra.mxu0 0.0
        %6027 = vmatprep.subr.mxu0 0.0
        %6028 = vmatpush2.msra.mxu0 0.0
        %6029 = vmatprep.subr.mxu0 0.0
        %6030 = vmatpush2.msra.mxu0 0.0
        %6031 = vmatprep.subr.mxu0 0.0
        %6032 = vmatpush2.msra.mxu0 0.0
        %6033 = vmatprep.subr.mxu0 0.0
        %6034 = vmatpush2.msra.mxu0 0.0
        %6035 = vmatprep.subr.mxu0 0.0
        %6036 = vmatpush2.msra.mxu0 0.0
        %6037 = vmatprep.subr.mxu0 0.0
        %6038 = vmatpush2.msra.mxu0 0.0
        %6039 = vmatprep.subr.mxu0 0.0
        %6040 = vmatpush2.msra.mxu0 0.0
        %6041 = vmatprep.subr.mxu0 0.0
        %6042 = vmatpush2.msra.mxu0 0.0
        %6043 = vmatprep.subr.mxu0 0.0
        %6044 = vmatpush2.msra.mxu0 0.0
        %6045 = vmatprep.subr.mxu0 0.0
        %6046 = vmatpush2.msra.mxu0 0.0
        %6047 = vmatprep.subr.mxu0 0.0
        %6048 = vmatpush2.msra.mxu0 0.0
        %6049 = vmatprep.subr.mxu0 0.0
        %6050 = vmatpush2.msra.mxu0 0.0
        %6051 = vmatprep.subr.mxu0 0.0
        %6052 = vmatpush2.msra.mxu0 0.0
        %6053 = vmatprep.subr.mxu0 0.0
        %6054 = vmatpush2.msra.mxu0 0.0
        %6055 = vmatprep.mubr.f32.mxu0 0.0
        %6056 = vmatmul.mubr.f32.gmra.mxu0 %v5847
        %v6057 = vpop.f32.mrf.mxu0
        %v6058 = vadd.f32 0.0, %v6057
        %v6059 = vpop.f32.mrf.mxu0
        %6060 = vdwg.mxu0
        %v6062 = vcombine.high %v6058, %v6058
        %v6063 = vrot.slane %v6058, 1
        %v6064 = vrot.slane %v6058, 2
        %v6065 = vrot.slane %v6058, 3
        %v6066 = vrot.slane %v6062, 1
        %v6067 = vrot.slane %v6062, 2
        %v6068 = vrot.slane %v6062, 3
        %v6077 = vadd.f32 %v1247, %v6058
        %v6078 = vadd.f32 %v1314, %v6063
        %v6079 = vadd.f32 %v1262, %v6064
        %v6080 = vadd.f32 %v1317, %v6065
        %v6081 = vadd.f32 %v1277, %v6062
        %v6082 = vadd.f32 %v1320, %v6066
        %v6083 = vadd.f32 %v1292, %v6067
        %v6084 = vadd.f32 %v1323, %v6068
        %v6085 = vxor.u32 %v6077, 2147483648
        %v6086 = vxor.u32 %v6078, 2147483648
        %v6087 = vxor.u32 %v6079, 2147483648
        %v6088 = vxor.u32 %v6080, 2147483648
        %v6089 = vxor.u32 %v6081, 2147483648
        %v6090 = vxor.u32 %v6082, 2147483648
        %v6091 = vxor.u32 %v6083, 2147483648
        %v6092 = vxor.u32 %v6084, 2147483648
        %v6093 = vmul.f32 %v6085, 1.442695
        %v6094 = vpow.pop %v6093
        %v6095 = vmul.f32 %v6086, 1.442695
        %v6096 = vpow.pop %v6095
        %v6097 = vmul.f32 %v6087, 1.442695
        %v6098 = vpow.pop %v6097
        %v6099 = vmul.f32 %v6088, 1.442695
        %v6100 = vpow.pop %v6099
        %v6101 = vmul.f32 %v6089, 1.442695
        %v6102 = vpow.pop %v6101
        %v6103 = vmul.f32 %v6090, 1.442695
        %v6104 = vpow.pop %v6103
        %v6105 = vmul.f32 %v6091, 1.442695
        %v6106 = vpow.pop %v6105
        %v6107 = vmul.f32 %v6092, 1.442695
        %v6108 = vpow.pop %v6107
        %v6109 = vadd.f32 %v6094, 1.0
        %v6110 = vadd.f32 %v6096, 1.0
        %v6111 = vadd.f32 %v6098, 1.0
        %v6112 = vadd.f32 %v6100, 1.0
        %v6113 = vadd.f32 %v6102, 1.0
        %v6114 = vadd.f32 %v6104, 1.0
        %v6115 = vadd.f32 %v6106, 1.0
        %v6116 = vadd.f32 %v6108, 1.0
        %v6117 = vrcp.pop %v6109
        %v6118 = vmul.f32 1.0, %v6117
        %v6119 = vrcp.pop %v6110
        %v6120 = vmul.f32 1.0, %v6119
        %v6121 = vrcp.pop %v6111
        %v6122 = vmul.f32 1.0, %v6121
        %v6123 = vrcp.pop %v6112
        %v6124 = vmul.f32 1.0, %v6123
        %v6125 = vrcp.pop %v6113
        %v6126 = vmul.f32 1.0, %v6125
        %v6127 = vrcp.pop %v6114
        %v6128 = vmul.f32 1.0, %v6127
        %v6129 = vrcp.pop %v6115
        %v6130 = vmul.f32 1.0, %v6129
        %v6131 = vrcp.pop %v6116
        %v6132 = vmul.f32 1.0, %v6131
        %6133 = vmatprep.subr.mxu0 0.0
        %6134 = vmatpush1.msra.mxu0 0.0
        %6135 = vmatprep.subr.mxu0 0.0
        %6136 = vmatpush1.msra.mxu0 0.0
        %6137 = vmatprep.subr.mxu0 0.0
        %6138 = vmatpush1.msra.mxu0 0.0
        %6139 = vmatprep.subr.mxu0 0.0
        %6140 = vmatpush1.msra.mxu0 0.0
        %6141 = vmatprep.subr.mxu0 0.0
        %6142 = vmatpush1.msra.mxu0 0.0
        %6143 = vmatprep.subr.mxu0 0.0
        %6144 = vmatpush1.msra.mxu0 0.0
        %6145 = vmatprep.subr.mxu0 0.0
        %6146 = vmatpush1.msra.mxu0 0.0
        %6147 = vmatprep.subr.mxu0 0.0
        %6148 = vmatpush1.msra.mxu0 0.0
        %6149 = vmatprep.subr.mxu0 0.0
        %6150 = vmatpush1.msra.mxu0 %v776
        %6151 = vmatprep.subr.mxu0 0.0
        %6152 = vmatpush1.msra.mxu0 %v775
        %6153 = vmatprep.subr.mxu0 0.0
        %6154 = vmatpush1.msra.mxu0 %v774
        %6155 = vmatprep.subr.mxu0 0.0
        %6156 = vmatpush1.msra.mxu0 %v773
        %6157 = vmatprep.subr.mxu0 0.0
        %6158 = vmatpush1.msra.mxu0 %v772
        %6159 = vmatprep.subr.mxu0 0.0
        %6160 = vmatpush1.msra.mxu0 %v771
        %6161 = vmatprep.subr.mxu0 0.0
        %6162 = vmatpush1.msra.mxu0 %v770
        %6163 = vmatprep.subr.mxu0 0.0
        %6164 = vmatpush1.msra.mxu0 %v769
        %6165 = vmatprep.subr.mxu0 0.0
        %6166 = vmatpush2.msra.mxu0 0.0
        %6167 = vmatprep.subr.mxu0 0.0
        %6168 = vmatpush2.msra.mxu0 0.0
        %6169 = vmatprep.subr.mxu0 0.0
        %6170 = vmatpush2.msra.mxu0 0.0
        %6171 = vmatprep.subr.mxu0 0.0
        %6172 = vmatpush2.msra.mxu0 0.0
        %6173 = vmatprep.subr.mxu0 0.0
        %6174 = vmatpush2.msra.mxu0 0.0
        %6175 = vmatprep.subr.mxu0 0.0
        %6176 = vmatpush2.msra.mxu0 0.0
        %6177 = vmatprep.subr.mxu0 0.0
        %6178 = vmatpush2.msra.mxu0 0.0
        %6179 = vmatprep.subr.mxu0 0.0
        %6180 = vmatpush2.msra.mxu0 0.0
        %6181 = vmatprep.subr.mxu0 0.0
        %6182 = vmatpush2.msra.mxu0 0.0
        %6183 = vmatprep.subr.mxu0 0.0
        %6184 = vmatpush2.msra.mxu0 0.0
        %6185 = vmatprep.subr.mxu0 0.0
        %6186 = vmatpush2.msra.mxu0 0.0
        %6187 = vmatprep.subr.mxu0 0.0
        %6188 = vmatpush2.msra.mxu0 0.0
        %6189 = vmatprep.subr.mxu0 0.0
        %6190 = vmatpush2.msra.mxu0 0.0
        %6191 = vmatprep.subr.mxu0 0.0
        %6192 = vmatpush2.msra.mxu0 0.0
        %6193 = vmatprep.subr.mxu0 0.0
        %6194 = vmatpush2.msra.mxu0 0.0
        %6195 = vmatprep.subr.mxu0 0.0
        %6196 = vmatpush2.msra.mxu0 0.0
        %6197 = vmatprep.mubr.f32.mxu0 0.0
        %6198 = vmatmul.mubr.f32.gmra.mxu0 %v5847
        %v6199 = vpop.f32.mrf.mxu0
        %v6200 = vadd.f32 %v1795, %v6199
        %v6201 = vpop.f32.mrf.mxu0
        %6202 = vdwg.mxu0
        %v6204 = vcombine.high %v6200, %v6200
        %v6205 = vrot.slane %v6200, 1
        %v6206 = vrot.slane %v6200, 2
        %v6207 = vrot.slane %v6200, 3
        %v6208 = vrot.slane %v6204, 1
        %v6209 = vrot.slane %v6204, 2
        %v6210 = vrot.slane %v6204, 3
        %v6219 = vmul.f32 %v5976, %v6200
        %v6220 = vmul.f32 %v5978, %v6205
        %v6221 = vmul.f32 %v5980, %v6206
        %v6222 = vmul.f32 %v5982, %v6207
        %v6223 = vmul.f32 %v5984, %v6204
        %v6224 = vmul.f32 %v5986, %v6208
        %v6225 = vmul.f32 %v5988, %v6209
        %v6226 = vmul.f32 %v5990, %v6210
        %v6227 = vadd.f32 %v1414, %v6219
        %v6228 = vadd.f32 %v1481, %v6220
        %v6229 = vadd.f32 %v1429, %v6221
        %v6230 = vadd.f32 %v1484, %v6222
        %v6231 = vadd.f32 %v1444, %v6223
        %v6232 = vadd.f32 %v1487, %v6224
        %v6233 = vadd.f32 %v1459, %v6225
        %v6234 = vadd.f32 %v1490, %v6226
        %v6235 = vtanh.pop %v6227
        %v6236 = vtanh.pop %v6228
        %v6237 = vtanh.pop %v6229
        %v6238 = vtanh.pop %v6230
        %v6239 = vtanh.pop %v6231
        %v6240 = vtanh.pop %v6232
        %v6241 = vtanh.pop %v6233
        %v6242 = vtanh.pop %v6234
        %v6243 = vsub.f32 1.0, %v6118
        %v6244 = vsub.f32 1.0, %v6120
        %v6245 = vsub.f32 1.0, %v6122
        %v6246 = vsub.f32 1.0, %v6124
        %v6247 = vsub.f32 1.0, %v6126
        %v6248 = vsub.f32 1.0, %v6128
        %v6249 = vsub.f32 1.0, %v6130
        %v6250 = vsub.f32 1.0, %v6132
        %v6251 = vmul.f32 %v6243, %v6235
        %v6252 = vmul.f32 %v6244, %v6236
        %v6253 = vmul.f32 %v6245, %v6237
        %v6254 = vmul.f32 %v6246, %v6238
        %v6255 = vmul.f32 %v6247, %v6239
        %v6256 = vmul.f32 %v6248, %v6240
        %v6257 = vmul.f32 %v6249, %v6241
        %v6258 = vmul.f32 %v6250, %v6242
        %v6259 = vrot.slane %v5792, 7
        %v6260 = vrot.slane %v6259, 4
        %v6261 = vrot.slane %v5793, 7
        %v6262 = vrot.slane %v6261, 4
        %v6263 = vrot.slane %v5794, 7
        %v6264 = vrot.slane %v6263, 4
        %v6265 = vrot.slane %v5795, 7
        %v6266 = vrot.slane %v6265, 4
        %v6267 = vrot.slane %v5796, 7
        %v6268 = vrot.slane %v6267, 4
        %v6269 = vrot.slane %v5797, 7
        %v6270 = vrot.slane %v6269, 4
        %v6271 = vrot.slane %v5798, 7
        %v6272 = vrot.slane %v6271, 4
        %v6273 = vrot.slane %v5799, 7
        %v6274 = vrot.slane %v6273, 4
        %v6283 = vmul.f32 %v6118, %v6260
        %v6284 = vmul.f32 %v6120, %v6262
        %v6285 = vmul.f32 %v6122, %v6264
        %v6286 = vmul.f32 %v6124, %v6266
        %v6287 = vmul.f32 %v6126, %v6268
        %v6288 = vmul.f32 %v6128, %v6270
        %v6289 = vmul.f32 %v6130, %v6272
        %v6290 = vmul.f32 %v6132, %v6274
        %v6291 = vadd.f32 %v6251, %v6283
        %v6292 = vadd.f32 %v6252, %v6284
        %v6293 = vadd.f32 %v6253, %v6285
        %v6294 = vadd.f32 %v6254, %v6286
        %v6295 = vadd.f32 %v6255, %v6287
        %v6296 = vadd.f32 %v6256, %v6288
        %v6297 = vadd.f32 %v6257, %v6289
        %v6298 = vadd.f32 %v6258, %v6290
        %p6299 = scmp.gt.s32.totalorder %s704, 8
        %s6300 = scalar_select %p6299, 1, 0
        %s6301 = scvt.s32.f32 %s6300
        %v6302 = vstv %s6301
        %v6303 = vmul.f32 %v6302, %v6291
        %v6304 = vmul.f32 %v6302, %v6292
        %v6305 = vmul.f32 %v6302, %v6293
        %v6306 = vmul.f32 %v6302, %v6294
        %v6307 = vmul.f32 %v6302, %v6295
        %v6308 = vmul.f32 %v6302, %v6296
        %v6309 = vmul.f32 %v6302, %v6297
        %v6310 = vmul.f32 %v6302, %v6298
        %s6311 = ssub.f32 1.0, %s6301
        %v6312 = vstv %s6311
        %v6313 = vmul.f32 %v6312, %v5792
        %v6314 = vmul.f32 %v6312, %v5793
        %v6315 = vmul.f32 %v6312, %v5794
        %v6316 = vmul.f32 %v6312, %v5795
        %v6317 = vmul.f32 %v6312, %v5796
        %v6318 = vmul.f32 %v6312, %v5797
        %v6319 = vmul.f32 %v6312, %v5798
        %v6320 = vmul.f32 %v6312, %v5799
        %v6329 = vrot.slane %v6313, 7
        %v6330 = vrot.slane %v6329, 4
        %v6331 = vrot.slane %v6314, 7
        %v6332 = vrot.slane %v6331, 4
        %v6333 = vrot.slane %v6315, 7
        %v6334 = vrot.slane %v6333, 4
        %v6335 = vrot.slane %v6316, 7
        %v6336 = vrot.slane %v6335, 4
        %v6337 = vrot.slane %v6317, 7
        %v6338 = vrot.slane %v6337, 4
        %v6339 = vrot.slane %v6318, 7
        %v6340 = vrot.slane %v6339, 4
        %v6341 = vrot.slane %v6319, 7
        %v6342 = vrot.slane %v6341, 4
        %v6343 = vrot.slane %v6320, 7
        %v6344 = vrot.slane %v6343, 4
        %v6353 = vadd.f32 %v6303, %v6330
        %v6354 = vadd.f32 %v6304, %v6332
        %v6355 = vadd.f32 %v6305, %v6334
        %v6356 = vadd.f32 %v6306, %v6336
        %v6357 = vadd.f32 %v6307, %v6338
        %v6358 = vadd.f32 %v6308, %v6340
        %v6359 = vadd.f32 %v6309, %v6342
        %v6360 = vadd.f32 %v6310, %v6344
        %v6369 = vlaneseq
        %v6370 = vshrl.u32 %v6369, 7
        %v6371 = vsub.s32 0, %v6370
        %v6372 = vrot.slane %v6353, %v6371
        %v6373 = vlaneseq
        %v6374 = vshrl.u32 %v6373, 7
        %v6375 = vsub.s32 0, %v6374
        %v6376 = vrot.slane %v6354, %v6375
        %v6377 = vlaneseq
        %v6378 = vshrl.u32 %v6377, 7
        %v6379 = vsub.s32 0, %v6378
        %v6380 = vrot.slane %v6355, %v6379
        %v6381 = vlaneseq
        %v6382 = vshrl.u32 %v6381, 7
        %v6383 = vsub.s32 0, %v6382
        %v6384 = vrot.slane %v6356, %v6383
        %v6385 = vlaneseq
        %v6386 = vshrl.u32 %v6385, 7
        %v6387 = vsub.s32 0, %v6386
        %v6388 = vrot.slane %v6357, %v6387
        %v6389 = vlaneseq
        %v6390 = vshrl.u32 %v6389, 7
        %v6391 = vsub.s32 0, %v6390
        %v6392 = vrot.slane %v6358, %v6391
        %v6393 = vlaneseq
        %v6394 = vshrl.u32 %v6393, 7
        %v6395 = vsub.s32 0, %v6394
        %v6396 = vrot.slane %v6359, %v6395
        %v6397 = vlaneseq
        %v6398 = vshrl.u32 %v6397, 7
        %v6399 = vsub.s32 0, %v6398
        %v6400 = vrot.slane %v6360, %v6399
        %v6401 = vsel %vm2002, %v6376, %v6372
        %v6402 = vsel %vm2004, %v6380, %v6401
        %v6403 = vsel %vm2006, %v6384, %v6402
        %v6404 = vsel %vm2008, %v6388, %v6403
        %v6405 = vsel %vm2010, %v6392, %v6404
        %v6406 = vsel %vm2012, %v6396, %v6405
        %v6407 = vsel %vm2014, %v6400, %v6406
        %v6408 = vsel %vm1503, %v6407, 0
        %6410 = vmatprep.subr.mxu0 0.0
        %6411 = vmatpush1.msra.mxu0 0.0
        %6412 = vmatprep.subr.mxu0 0.0
        %6413 = vmatpush1.msra.mxu0 0.0
        %6414 = vmatprep.subr.mxu0 0.0
        %6415 = vmatpush1.msra.mxu0 0.0
        %6416 = vmatprep.subr.mxu0 0.0
        %6417 = vmatpush1.msra.mxu0 0.0
        %6418 = vmatprep.subr.mxu0 0.0
        %6419 = vmatpush1.msra.mxu0 0.0
        %6420 = vmatprep.subr.mxu0 0.0
        %6421 = vmatpush1.msra.mxu0 0.0
        %6422 = vmatprep.subr.mxu0 0.0
        %6423 = vmatpush1.msra.mxu0 0.0
        %6424 = vmatprep.subr.mxu0 0.0
        %6425 = vmatpush1.msra.mxu0 0.0
        %6426 = vmatprep.subr.mxu0 0.0
        %6427 = vmatpush1.msra.mxu0 %v760
        %6428 = vmatprep.subr.mxu0 0.0
        %6429 = vmatpush1.msra.mxu0 %v759
        %6430 = vmatprep.subr.mxu0 0.0
        %6431 = vmatpush1.msra.mxu0 %v758
        %6432 = vmatprep.subr.mxu0 0.0
        %6433 = vmatpush1.msra.mxu0 %v757
        %6434 = vmatprep.subr.mxu0 0.0
        %6435 = vmatpush1.msra.mxu0 %v756
        %6436 = vmatprep.subr.mxu0 0.0
        %6437 = vmatpush1.msra.mxu0 %v755
        %6438 = vmatprep.subr.mxu0 0.0
        %6439 = vmatpush1.msra.mxu0 %v754
        %6440 = vmatprep.subr.mxu0 0.0
        %6441 = vmatpush1.msra.mxu0 %v753
        %6442 = vmatprep.subr.mxu0 0.0
        %6443 = vmatpush2.msra.mxu0 0.0
        %6444 = vmatprep.subr.mxu0 0.0
        %6445 = vmatpush2.msra.mxu0 0.0
        %6446 = vmatprep.subr.mxu0 0.0
        %6447 = vmatpush2.msra.mxu0 0.0
        %6448 = vmatprep.subr.mxu0 0.0
        %6449 = vmatpush2.msra.mxu0 0.0
        %6450 = vmatprep.subr.mxu0 0.0
        %6451 = vmatpush2.msra.mxu0 0.0
        %6452 = vmatprep.subr.mxu0 0.0
        %6453 = vmatpush2.msra.mxu0 0.0
        %6454 = vmatprep.subr.mxu0 0.0
        %6455 = vmatpush2.msra.mxu0 0.0
        %6456 = vmatprep.subr.mxu0 0.0
        %6457 = vmatpush2.msra.mxu0 0.0
        %6458 = vmatprep.subr.mxu0 0.0
        %6459 = vmatpush2.msra.mxu0 0.0
        %6460 = vmatprep.subr.mxu0 0.0
        %6461 = vmatpush2.msra.mxu0 0.0
        %6462 = vmatprep.subr.mxu0 0.0
        %6463 = vmatpush2.msra.mxu0 0.0
        %6464 = vmatprep.subr.mxu0 0.0
        %6465 = vmatpush2.msra.mxu0 0.0
        %6466 = vmatprep.subr.mxu0 0.0
        %6467 = vmatpush2.msra.mxu0 0.0
        %6468 = vmatprep.subr.mxu0 0.0
        %6469 = vmatpush2.msra.mxu0 0.0
        %6470 = vmatprep.subr.mxu0 0.0
        %6471 = vmatpush2.msra.mxu0 0.0
        %6472 = vmatprep.subr.mxu0 0.0
        %6473 = vmatpush2.msra.mxu0 0.0
        %6474 = vmatprep.mubr.f32.mxu0 0.0
        %6475 = vmatmul.mubr.f32.gmra.mxu0 %v6408
        %v6476 = vpop.f32.mrf.mxu0
        %v6477 = vadd.f32 0.0, %v6476
        %v6478 = vpop.f32.mrf.mxu0
        %6479 = vdwg.mxu0
        %v6481 = vcombine.high %v6477, %v6477
        %v6482 = vrot.slane %v6477, 7
        %v6483 = vrot.slane %v6477, 1
        %v6484 = vrot.slane %v6477, 2
        %v6485 = vrot.slane %v6481, 7
        %v6486 = vrot.slane %v6481, 1
        %v6487 = vrot.slane %v6481, 2
        %v6496 = vadd.f32 %v1080, %v6482
        %v6497 = vadd.f32 %v1147, %v6477
        %v6498 = vadd.f32 %v1095, %v6483
        %v6499 = vadd.f32 %v1150, %v6484
        %v6500 = vadd.f32 %v1110, %v6485
        %v6501 = vadd.f32 %v1153, %v6481
        %v6502 = vadd.f32 %v1125, %v6486
        %v6503 = vadd.f32 %v1156, %v6487
        %v6504 = vxor.u32 %v6496, 2147483648
        %v6505 = vxor.u32 %v6497, 2147483648
        %v6506 = vxor.u32 %v6498, 2147483648
        %v6507 = vxor.u32 %v6499, 2147483648
        %v6508 = vxor.u32 %v6500, 2147483648
        %v6509 = vxor.u32 %v6501, 2147483648
        %v6510 = vxor.u32 %v6502, 2147483648
        %v6511 = vxor.u32 %v6503, 2147483648
        %v6512 = vmul.f32 %v6504, 1.442695
        %v6513 = vpow.pop %v6512
        %v6514 = vmul.f32 %v6505, 1.442695
        %v6515 = vpow.pop %v6514
        %v6516 = vmul.f32 %v6506, 1.442695
        %v6517 = vpow.pop %v6516
        %v6518 = vmul.f32 %v6507, 1.442695
        %v6519 = vpow.pop %v6518
        %v6520 = vmul.f32 %v6508, 1.442695
        %v6521 = vpow.pop %v6520
        %v6522 = vmul.f32 %v6509, 1.442695
        %v6523 = vpow.pop %v6522
        %v6524 = vmul.f32 %v6510, 1.442695
        %v6525 = vpow.pop %v6524
        %v6526 = vmul.f32 %v6511, 1.442695
        %v6527 = vpow.pop %v6526
        %v6528 = vadd.f32 %v6513, 1.0
        %v6529 = vadd.f32 %v6515, 1.0
        %v6530 = vadd.f32 %v6517, 1.0
        %v6531 = vadd.f32 %v6519, 1.0
        %v6532 = vadd.f32 %v6521, 1.0
        %v6533 = vadd.f32 %v6523, 1.0
        %v6534 = vadd.f32 %v6525, 1.0
        %v6535 = vadd.f32 %v6527, 1.0
        %v6536 = vrcp.pop %v6528
        %v6537 = vmul.f32 1.0, %v6536
        %v6538 = vrcp.pop %v6529
        %v6539 = vmul.f32 1.0, %v6538
        %v6540 = vrcp.pop %v6530
        %v6541 = vmul.f32 1.0, %v6540
        %v6542 = vrcp.pop %v6531
        %v6543 = vmul.f32 1.0, %v6542
        %v6544 = vrcp.pop %v6532
        %v6545 = vmul.f32 1.0, %v6544
        %v6546 = vrcp.pop %v6533
        %v6547 = vmul.f32 1.0, %v6546
        %v6548 = vrcp.pop %v6534
        %v6549 = vmul.f32 1.0, %v6548
        %v6550 = vrcp.pop %v6535
        %v6551 = vmul.f32 1.0, %v6550
        %6552 = vmatprep.subr.mxu0 0.0
        %6553 = vmatpush1.msra.mxu0 0.0
        %6554 = vmatprep.subr.mxu0 0.0
        %6555 = vmatpush1.msra.mxu0 0.0
        %6556 = vmatprep.subr.mxu0 0.0
        %6557 = vmatpush1.msra.mxu0 0.0
        %6558 = vmatprep.subr.mxu0 0.0
        %6559 = vmatpush1.msra.mxu0 0.0
        %6560 = vmatprep.subr.mxu0 0.0
        %6561 = vmatpush1.msra.mxu0 0.0
        %6562 = vmatprep.subr.mxu0 0.0
        %6563 = vmatpush1.msra.mxu0 0.0
        %6564 = vmatprep.subr.mxu0 0.0
        %6565 = vmatpush1.msra.mxu0 0.0
        %6566 = vmatprep.subr.mxu0 0.0
        %6567 = vmatpush1.msra.mxu0 0.0
        %6568 = vmatprep.subr.mxu0 0.0
        %6569 = vmatpush1.msra.mxu0 %v768
        %6570 = vmatprep.subr.mxu0 0.0
        %6571 = vmatpush1.msra.mxu0 %v767
        %6572 = vmatprep.subr.mxu0 0.0
        %6573 = vmatpush1.msra.mxu0 %v766
        %6574 = vmatprep.subr.mxu0 0.0
        %6575 = vmatpush1.msra.mxu0 %v765
        %6576 = vmatprep.subr.mxu0 0.0
        %6577 = vmatpush1.msra.mxu0 %v764
        %6578 = vmatprep.subr.mxu0 0.0
        %6579 = vmatpush1.msra.mxu0 %v763
        %6580 = vmatprep.subr.mxu0 0.0
        %6581 = vmatpush1.msra.mxu0 %v762
        %6582 = vmatprep.subr.mxu0 0.0
        %6583 = vmatpush1.msra.mxu0 %v761
        %6584 = vmatprep.subr.mxu0 0.0
        %6585 = vmatpush2.msra.mxu0 0.0
        %6586 = vmatprep.subr.mxu0 0.0
        %6587 = vmatpush2.msra.mxu0 0.0
        %6588 = vmatprep.subr.mxu0 0.0
        %6589 = vmatpush2.msra.mxu0 0.0
        %6590 = vmatprep.subr.mxu0 0.0
        %6591 = vmatpush2.msra.mxu0 0.0
        %6592 = vmatprep.subr.mxu0 0.0
        %6593 = vmatpush2.msra.mxu0 0.0
        %6594 = vmatprep.subr.mxu0 0.0
        %6595 = vmatpush2.msra.mxu0 0.0
        %6596 = vmatprep.subr.mxu0 0.0
        %6597 = vmatpush2.msra.mxu0 0.0
        %6598 = vmatprep.subr.mxu0 0.0
        %6599 = vmatpush2.msra.mxu0 0.0
        %6600 = vmatprep.subr.mxu0 0.0
        %6601 = vmatpush2.msra.mxu0 0.0
        %6602 = vmatprep.subr.mxu0 0.0
        %6603 = vmatpush2.msra.mxu0 0.0
        %6604 = vmatprep.subr.mxu0 0.0
        %6605 = vmatpush2.msra.mxu0 0.0
        %6606 = vmatprep.subr.mxu0 0.0
        %6607 = vmatpush2.msra.mxu0 0.0
        %6608 = vmatprep.subr.mxu0 0.0
        %6609 = vmatpush2.msra.mxu0 0.0
        %6610 = vmatprep.subr.mxu0 0.0
        %6611 = vmatpush2.msra.mxu0 0.0
        %6612 = vmatprep.subr.mxu0 0.0
        %6613 = vmatpush2.msra.mxu0 0.0
        %6614 = vmatprep.subr.mxu0 0.0
        %6615 = vmatpush2.msra.mxu0 0.0
        %6616 = vmatprep.mubr.f32.mxu0 0.0
        %6617 = vmatmul.mubr.f32.gmra.mxu0 %v6408
        %v6618 = vpop.f32.mrf.mxu0
        %v6619 = vadd.f32 0.0, %v6618
        %v6620 = vpop.f32.mrf.mxu0
        %6621 = vdwg.mxu0
        %v6623 = vcombine.high %v6619, %v6619
        %v6624 = vrot.slane %v6619, 7
        %v6625 = vrot.slane %v6619, 1
        %v6626 = vrot.slane %v6619, 2
        %v6627 = vrot.slane %v6623, 7
        %v6628 = vrot.slane %v6623, 1
        %v6629 = vrot.slane %v6623, 2
        %v6638 = vadd.f32 %v1247, %v6624
        %v6639 = vadd.f32 %v1314, %v6619
        %v6640 = vadd.f32 %v1262, %v6625
        %v6641 = vadd.f32 %v1317, %v6626
        %v6642 = vadd.f32 %v1277, %v6627
        %v6643 = vadd.f32 %v1320, %v6623
        %v6644 = vadd.f32 %v1292, %v6628
        %v6645 = vadd.f32 %v1323, %v6629
        %v6646 = vxor.u32 %v6638, 2147483648
        %v6647 = vxor.u32 %v6639, 2147483648
        %v6648 = vxor.u32 %v6640, 2147483648
        %v6649 = vxor.u32 %v6641, 2147483648
        %v6650 = vxor.u32 %v6642, 2147483648
        %v6651 = vxor.u32 %v6643, 2147483648
        %v6652 = vxor.u32 %v6644, 2147483648
        %v6653 = vxor.u32 %v6645, 2147483648
        %v6654 = vmul.f32 %v6646, 1.442695
        %v6655 = vpow.pop %v6654
        %v6656 = vmul.f32 %v6647, 1.442695
        %v6657 = vpow.pop %v6656
        %v6658 = vmul.f32 %v6648, 1.442695
        %v6659 = vpow.pop %v6658
        %v6660 = vmul.f32 %v6649, 1.442695
        %v6661 = vpow.pop %v6660
        %v6662 = vmul.f32 %v6650, 1.442695
        %v6663 = vpow.pop %v6662
        %v6664 = vmul.f32 %v6651, 1.442695
        %v6665 = vpow.pop %v6664
        %v6666 = vmul.f32 %v6652, 1.442695
        %v6667 = vpow.pop %v6666
        %v6668 = vmul.f32 %v6653, 1.442695
        %v6669 = vpow.pop %v6668
        %v6670 = vadd.f32 %v6655, 1.0
        %v6671 = vadd.f32 %v6657, 1.0
        %v6672 = vadd.f32 %v6659, 1.0
        %v6673 = vadd.f32 %v6661, 1.0
        %v6674 = vadd.f32 %v6663, 1.0
        %v6675 = vadd.f32 %v6665, 1.0
        %v6676 = vadd.f32 %v6667, 1.0
        %v6677 = vadd.f32 %v6669, 1.0
        %v6678 = vrcp.pop %v6670
        %v6679 = vmul.f32 1.0, %v6678
        %v6680 = vrcp.pop %v6671
        %v6681 = vmul.f32 1.0, %v6680
        %v6682 = vrcp.pop %v6672
        %v6683 = vmul.f32 1.0, %v6682
        %v6684 = vrcp.pop %v6673
        %v6685 = vmul.f32 1.0, %v6684
        %v6686 = vrcp.pop %v6674
        %v6687 = vmul.f32 1.0, %v6686
        %v6688 = vrcp.pop %v6675
        %v6689 = vmul.f32 1.0, %v6688
        %v6690 = vrcp.pop %v6676
        %v6691 = vmul.f32 1.0, %v6690
        %v6692 = vrcp.pop %v6677
        %v6693 = vmul.f32 1.0, %v6692
        %6694 = vmatprep.subr.mxu0 0.0
        %6695 = vmatpush1.msra.mxu0 0.0
        %6696 = vmatprep.subr.mxu0 0.0
        %6697 = vmatpush1.msra.mxu0 0.0
        %6698 = vmatprep.subr.mxu0 0.0
        %6699 = vmatpush1.msra.mxu0 0.0
        %6700 = vmatprep.subr.mxu0 0.0
        %6701 = vmatpush1.msra.mxu0 0.0
        %6702 = vmatprep.subr.mxu0 0.0
        %6703 = vmatpush1.msra.mxu0 0.0
        %6704 = vmatprep.subr.mxu0 0.0
        %6705 = vmatpush1.msra.mxu0 0.0
        %6706 = vmatprep.subr.mxu0 0.0
        %6707 = vmatpush1.msra.mxu0 0.0
        %6708 = vmatprep.subr.mxu0 0.0
        %6709 = vmatpush1.msra.mxu0 0.0
        %6710 = vmatprep.subr.mxu0 0.0
        %6711 = vmatpush1.msra.mxu0 %v776
        %6712 = vmatprep.subr.mxu0 0.0
        %6713 = vmatpush1.msra.mxu0 %v775
        %6714 = vmatprep.subr.mxu0 0.0
        %6715 = vmatpush1.msra.mxu0 %v774
        %6716 = vmatprep.subr.mxu0 0.0
        %6717 = vmatpush1.msra.mxu0 %v773
        %6718 = vmatprep.subr.mxu0 0.0
        %6719 = vmatpush1.msra.mxu0 %v772
        %6720 = vmatprep.subr.mxu0 0.0
        %6721 = vmatpush1.msra.mxu0 %v771
        %6722 = vmatprep.subr.mxu0 0.0
        %6723 = vmatpush1.msra.mxu0 %v770
        %6724 = vmatprep.subr.mxu0 0.0
        %6725 = vmatpush1.msra.mxu0 %v769
        %6726 = vmatprep.subr.mxu0 0.0
        %6727 = vmatpush2.msra.mxu0 0.0
        %6728 = vmatprep.subr.mxu0 0.0
        %6729 = vmatpush2.msra.mxu0 0.0
        %6730 = vmatprep.subr.mxu0 0.0
        %6731 = vmatpush2.msra.mxu0 0.0
        %6732 = vmatprep.subr.mxu0 0.0
        %6733 = vmatpush2.msra.mxu0 0.0
        %6734 = vmatprep.subr.mxu0 0.0
        %6735 = vmatpush2.msra.mxu0 0.0
        %6736 = vmatprep.subr.mxu0 0.0
        %6737 = vmatpush2.msra.mxu0 0.0
        %6738 = vmatprep.subr.mxu0 0.0
        %6739 = vmatpush2.msra.mxu0 0.0
        %6740 = vmatprep.subr.mxu0 0.0
        %6741 = vmatpush2.msra.mxu0 0.0
        %6742 = vmatprep.subr.mxu0 0.0
        %6743 = vmatpush2.msra.mxu0 0.0
        %6744 = vmatprep.subr.mxu0 0.0
        %6745 = vmatpush2.msra.mxu0 0.0
        %6746 = vmatprep.subr.mxu0 0.0
        %6747 = vmatpush2.msra.mxu0 0.0
        %6748 = vmatprep.subr.mxu0 0.0
        %6749 = vmatpush2.msra.mxu0 0.0
        %6750 = vmatprep.subr.mxu0 0.0
        %6751 = vmatpush2.msra.mxu0 0.0
        %6752 = vmatprep.subr.mxu0 0.0
        %6753 = vmatpush2.msra.mxu0 0.0
        %6754 = vmatprep.subr.mxu0 0.0
        %6755 = vmatpush2.msra.mxu0 0.0
        %6756 = vmatprep.subr.mxu0 0.0
        %6757 = vmatpush2.msra.mxu0 0.0
        %6758 = vmatprep.mubr.f32.mxu0 0.0
        %6759 = vmatmul.mubr.f32.gmra.mxu0 %v6408
        %v6760 = vpop.f32.mrf.mxu0
        %v6761 = vadd.f32 %v1795, %v6760
        %v6762 = vpop.f32.mrf.mxu0
        %6763 = vdwg.mxu0
        %v6765 = vcombine.high %v6761, %v6761
        %v6766 = vrot.slane %v6761, 7
        %v6767 = vrot.slane %v6761, 1
        %v6768 = vrot.slane %v6761, 2
        %v6769 = vrot.slane %v6765, 7
        %v6770 = vrot.slane %v6765, 1
        %v6771 = vrot.slane %v6765, 2
        %v6780 = vmul.f32 %v6537, %v6766
        %v6781 = vmul.f32 %v6539, %v6761
        %v6782 = vmul.f32 %v6541, %v6767
        %v6783 = vmul.f32 %v6543, %v6768
        %v6784 = vmul.f32 %v6545, %v6769
        %v6785 = vmul.f32 %v6547, %v6765
        %v6786 = vmul.f32 %v6549, %v6770
        %v6787 = vmul.f32 %v6551, %v6771
        %v6788 = vadd.f32 %v1414, %v6780
        %v6789 = vadd.f32 %v1481, %v6781
        %v6790 = vadd.f32 %v1429, %v6782
        %v6791 = vadd.f32 %v1484, %v6783
        %v6792 = vadd.f32 %v1444, %v6784
        %v6793 = vadd.f32 %v1487, %v6785
        %v6794 = vadd.f32 %v1459, %v6786
        %v6795 = vadd.f32 %v1490, %v6787
        %v6796 = vtanh.pop %v6788
        %v6797 = vtanh.pop %v6789
        %v6798 = vtanh.pop %v6790
        %v6799 = vtanh.pop %v6791
        %v6800 = vtanh.pop %v6792
        %v6801 = vtanh.pop %v6793
        %v6802 = vtanh.pop %v6794
        %v6803 = vtanh.pop %v6795
        %v6804 = vsub.f32 1.0, %v6679
        %v6805 = vsub.f32 1.0, %v6681
        %v6806 = vsub.f32 1.0, %v6683
        %v6807 = vsub.f32 1.0, %v6685
        %v6808 = vsub.f32 1.0, %v6687
        %v6809 = vsub.f32 1.0, %v6689
        %v6810 = vsub.f32 1.0, %v6691
        %v6811 = vsub.f32 1.0, %v6693
        %v6812 = vmul.f32 %v6804, %v6796
        %v6813 = vmul.f32 %v6805, %v6797
        %v6814 = vmul.f32 %v6806, %v6798
        %v6815 = vmul.f32 %v6807, %v6799
        %v6816 = vmul.f32 %v6808, %v6800
        %v6817 = vmul.f32 %v6809, %v6801
        %v6818 = vmul.f32 %v6810, %v6802
        %v6819 = vmul.f32 %v6811, %v6803
        %v6820 = vrot.slane %v6353, 7
        %v6821 = vrot.slane %v6354, 7
        %v6822 = vrot.slane %v6355, 7
        %v6823 = vrot.slane %v6356, 7
        %v6824 = vrot.slane %v6357, 7
        %v6825 = vrot.slane %v6358, 7
        %v6826 = vrot.slane %v6359, 7
        %v6827 = vrot.slane %v6360, 7
        %v6836 = vmul.f32 %v6679, %v6820
        %v6837 = vmul.f32 %v6681, %v6821
        %v6838 = vmul.f32 %v6683, %v6822
        %v6839 = vmul.f32 %v6685, %v6823
        %v6840 = vmul.f32 %v6687, %v6824
        %v6841 = vmul.f32 %v6689, %v6825
        %v6842 = vmul.f32 %v6691, %v6826
        %v6843 = vmul.f32 %v6693, %v6827
        %v6844 = vadd.f32 %v6812, %v6836
        %v6845 = vadd.f32 %v6813, %v6837
        %v6846 = vadd.f32 %v6814, %v6838
        %v6847 = vadd.f32 %v6815, %v6839
        %v6848 = vadd.f32 %v6816, %v6840
        %v6849 = vadd.f32 %v6817, %v6841
        %v6850 = vadd.f32 %v6818, %v6842
        %v6851 = vadd.f32 %v6819, %v6843
        %p6852 = scmp.gt.s32.totalorder %s704, 9
        %s6853 = scalar_select %p6852, 1, 0
        %s6854 = scvt.s32.f32 %s6853
        %v6855 = vstv %s6854
        %v6856 = vmul.f32 %v6855, %v6844
        %v6857 = vmul.f32 %v6855, %v6845
        %v6858 = vmul.f32 %v6855, %v6846
        %v6859 = vmul.f32 %v6855, %v6847
        %v6860 = vmul.f32 %v6855, %v6848
        %v6861 = vmul.f32 %v6855, %v6849
        %v6862 = vmul.f32 %v6855, %v6850
        %v6863 = vmul.f32 %v6855, %v6851
        %s6864 = ssub.f32 1.0, %s6854
        %v6865 = vstv %s6864
        %v6866 = vmul.f32 %v6865, %v6353
        %v6867 = vmul.f32 %v6865, %v6354
        %v6868 = vmul.f32 %v6865, %v6355
        %v6869 = vmul.f32 %v6865, %v6356
        %v6870 = vmul.f32 %v6865, %v6357
        %v6871 = vmul.f32 %v6865, %v6358
        %v6872 = vmul.f32 %v6865, %v6359
        %v6873 = vmul.f32 %v6865, %v6360
        %v6882 = vrot.slane %v6866, 7
        %v6883 = vrot.slane %v6867, 7
        %v6884 = vrot.slane %v6868, 7
        %v6885 = vrot.slane %v6869, 7
        %v6886 = vrot.slane %v6870, 7
        %v6887 = vrot.slane %v6871, 7
        %v6888 = vrot.slane %v6872, 7
        %v6889 = vrot.slane %v6873, 7
        %v6898 = vadd.f32 %v6856, %v6882
        %v6899 = vadd.f32 %v6857, %v6883
        %v6900 = vadd.f32 %v6858, %v6884
        %v6901 = vadd.f32 %v6859, %v6885
        %v6902 = vadd.f32 %v6860, %v6886
        %v6903 = vadd.f32 %v6861, %v6887
        %v6904 = vadd.f32 %v6862, %v6888
        %v6905 = vadd.f32 %v6863, %v6889
        %v6914 = vlaneseq
        %v6915 = vshrl.u32 %v6914, 7
        %v6916 = vsub.s32 1, %v6915
        %v6917 = vrot.slane %v6898, %v6916
        %v6918 = vlaneseq
        %v6919 = vshrl.u32 %v6918, 7
        %v6920 = vsub.s32 1, %v6919
        %v6921 = vrot.slane %v6899, %v6920
        %v6922 = vlaneseq
        %v6923 = vshrl.u32 %v6922, 7
        %v6924 = vsub.s32 1, %v6923
        %v6925 = vrot.slane %v6900, %v6924
        %v6926 = vlaneseq
        %v6927 = vshrl.u32 %v6926, 7
        %v6928 = vsub.s32 1, %v6927
        %v6929 = vrot.slane %v6901, %v6928
        %v6930 = vlaneseq
        %v6931 = vshrl.u32 %v6930, 7
        %v6932 = vsub.s32 1, %v6931
        %v6933 = vrot.slane %v6902, %v6932
        %v6934 = vlaneseq
        %v6935 = vshrl.u32 %v6934, 7
        %v6936 = vsub.s32 1, %v6935
        %v6937 = vrot.slane %v6903, %v6936
        %v6938 = vlaneseq
        %v6939 = vshrl.u32 %v6938, 7
        %v6940 = vsub.s32 1, %v6939
        %v6941 = vrot.slane %v6904, %v6940
        %v6942 = vlaneseq
        %v6943 = vshrl.u32 %v6942, 7
        %v6944 = vsub.s32 1, %v6943
        %v6945 = vrot.slane %v6905, %v6944
        %v6946 = vsel %vm2002, %v6921, %v6917
        %v6947 = vsel %vm2004, %v6925, %v6946
        %v6948 = vsel %vm2006, %v6929, %v6947
        %v6949 = vsel %vm2008, %v6933, %v6948
        %v6950 = vsel %vm2010, %v6937, %v6949
        %v6951 = vsel %vm2012, %v6941, %v6950
        %v6952 = vsel %vm2014, %v6945, %v6951
        %v6953 = vsel %vm1503, %v6952, 0
        %6955 = vmatprep.subr.mxu0 0.0
        %6956 = vmatpush1.msra.mxu0 0.0
        %6957 = vmatprep.subr.mxu0 0.0
        %6958 = vmatpush1.msra.mxu0 0.0
        %6959 = vmatprep.subr.mxu0 0.0
        %6960 = vmatpush1.msra.mxu0 0.0
        %6961 = vmatprep.subr.mxu0 0.0
        %6962 = vmatpush1.msra.mxu0 0.0
        %6963 = vmatprep.subr.mxu0 0.0
        %6964 = vmatpush1.msra.mxu0 0.0
        %6965 = vmatprep.subr.mxu0 0.0
        %6966 = vmatpush1.msra.mxu0 0.0
        %6967 = vmatprep.subr.mxu0 0.0
        %6968 = vmatpush1.msra.mxu0 0.0
        %6969 = vmatprep.subr.mxu0 0.0
        %6970 = vmatpush1.msra.mxu0 0.0
        %6971 = vmatprep.subr.mxu0 0.0
        %6972 = vmatpush1.msra.mxu0 %v760
        %6973 = vmatprep.subr.mxu0 0.0
        %6974 = vmatpush1.msra.mxu0 %v759
        %6975 = vmatprep.subr.mxu0 0.0
        %6976 = vmatpush1.msra.mxu0 %v758
        %6977 = vmatprep.subr.mxu0 0.0
        %6978 = vmatpush1.msra.mxu0 %v757
        %6979 = vmatprep.subr.mxu0 0.0
        %6980 = vmatpush1.msra.mxu0 %v756
        %6981 = vmatprep.subr.mxu0 0.0
        %6982 = vmatpush1.msra.mxu0 %v755
        %6983 = vmatprep.subr.mxu0 0.0
        %6984 = vmatpush1.msra.mxu0 %v754
        %6985 = vmatprep.subr.mxu0 0.0
        %6986 = vmatpush1.msra.mxu0 %v753
        %6987 = vmatprep.subr.mxu0 0.0
        %6988 = vmatpush2.msra.mxu0 0.0
        %6989 = vmatprep.subr.mxu0 0.0
        %6990 = vmatpush2.msra.mxu0 0.0
        %6991 = vmatprep.subr.mxu0 0.0
        %6992 = vmatpush2.msra.mxu0 0.0
        %6993 = vmatprep.subr.mxu0 0.0
        %6994 = vmatpush2.msra.mxu0 0.0
        %6995 = vmatprep.subr.mxu0 0.0
        %6996 = vmatpush2.msra.mxu0 0.0
        %6997 = vmatprep.subr.mxu0 0.0
        %6998 = vmatpush2.msra.mxu0 0.0
        %6999 = vmatprep.subr.mxu0 0.0
        %7000 = vmatpush2.msra.mxu0 0.0
        %7001 = vmatprep.subr.mxu0 0.0
        %7002 = vmatpush2.msra.mxu0 0.0
        %7003 = vmatprep.subr.mxu0 0.0
        %7004 = vmatpush2.msra.mxu0 0.0
        %7005 = vmatprep.subr.mxu0 0.0
        %7006 = vmatpush2.msra.mxu0 0.0
        %7007 = vmatprep.subr.mxu0 0.0
        %7008 = vmatpush2.msra.mxu0 0.0
        %7009 = vmatprep.subr.mxu0 0.0
        %7010 = vmatpush2.msra.mxu0 0.0
        %7011 = vmatprep.subr.mxu0 0.0
        %7012 = vmatpush2.msra.mxu0 0.0
        %7013 = vmatprep.subr.mxu0 0.0
        %7014 = vmatpush2.msra.mxu0 0.0
        %7015 = vmatprep.subr.mxu0 0.0
        %7016 = vmatpush2.msra.mxu0 0.0
        %7017 = vmatprep.subr.mxu0 0.0
        %7018 = vmatpush2.msra.mxu0 0.0
        %7019 = vmatprep.mubr.f32.mxu0 0.0
        %7020 = vmatmul.mubr.f32.gmra.mxu0 %v6953
        %v7021 = vpop.f32.mrf.mxu0
        %v7022 = vadd.f32 0.0, %v7021
        %v7023 = vpop.f32.mrf.mxu0
        %7024 = vdwg.mxu0
        %v7026 = vcombine.high %v7022, %v7022
        %v7027 = vrot.slane %v7022, 6
        %v7028 = vrot.slane %v7022, 7
        %v7029 = vrot.slane %v7022, 1
        %v7030 = vrot.slane %v7026, 6
        %v7031 = vrot.slane %v7026, 7
        %v7032 = vrot.slane %v7026, 1
        %v7041 = vadd.f32 %v1080, %v7027
        %v7042 = vadd.f32 %v1147, %v7028
        %v7043 = vadd.f32 %v1095, %v7022
        %v7044 = vadd.f32 %v1150, %v7029
        %v7045 = vadd.f32 %v1110, %v7030
        %v7046 = vadd.f32 %v1153, %v7031
        %v7047 = vadd.f32 %v1125, %v7026
        %v7048 = vadd.f32 %v1156, %v7032
        %v7049 = vxor.u32 %v7041, 2147483648
        %v7050 = vxor.u32 %v7042, 2147483648
        %v7051 = vxor.u32 %v7043, 2147483648
        %v7052 = vxor.u32 %v7044, 2147483648
        %v7053 = vxor.u32 %v7045, 2147483648
        %v7054 = vxor.u32 %v7046, 2147483648
        %v7055 = vxor.u32 %v7047, 2147483648
        %v7056 = vxor.u32 %v7048, 2147483648
        %v7057 = vmul.f32 %v7049, 1.442695
        %v7058 = vpow.pop %v7057
        %v7059 = vmul.f32 %v7050, 1.442695
        %v7060 = vpow.pop %v7059
        %v7061 = vmul.f32 %v7051, 1.442695
        %v7062 = vpow.pop %v7061
        %v7063 = vmul.f32 %v7052, 1.442695
        %v7064 = vpow.pop %v7063
        %v7065 = vmul.f32 %v7053, 1.442695
        %v7066 = vpow.pop %v7065
        %v7067 = vmul.f32 %v7054, 1.442695
        %v7068 = vpow.pop %v7067
        %v7069 = vmul.f32 %v7055, 1.442695
        %v7070 = vpow.pop %v7069
        %v7071 = vmul.f32 %v7056, 1.442695
        %v7072 = vpow.pop %v7071
        %v7073 = vadd.f32 %v7058, 1.0
        %v7074 = vadd.f32 %v7060, 1.0
        %v7075 = vadd.f32 %v7062, 1.0
        %v7076 = vadd.f32 %v7064, 1.0
        %v7077 = vadd.f32 %v7066, 1.0
        %v7078 = vadd.f32 %v7068, 1.0
        %v7079 = vadd.f32 %v7070, 1.0
        %v7080 = vadd.f32 %v7072, 1.0
        %v7081 = vrcp.pop %v7073
        %v7082 = vmul.f32 1.0, %v7081
        %v7083 = vrcp.pop %v7074
        %v7084 = vmul.f32 1.0, %v7083
        %v7085 = vrcp.pop %v7075
        %v7086 = vmul.f32 1.0, %v7085
        %v7087 = vrcp.pop %v7076
        %v7088 = vmul.f32 1.0, %v7087
        %v7089 = vrcp.pop %v7077
        %v7090 = vmul.f32 1.0, %v7089
        %v7091 = vrcp.pop %v7078
        %v7092 = vmul.f32 1.0, %v7091
        %v7093 = vrcp.pop %v7079
        %v7094 = vmul.f32 1.0, %v7093
        %v7095 = vrcp.pop %v7080
        %v7096 = vmul.f32 1.0, %v7095
        %7097 = vmatprep.subr.mxu0 0.0
        %7098 = vmatpush1.msra.mxu0 0.0
        %7099 = vmatprep.subr.mxu0 0.0
        %7100 = vmatpush1.msra.mxu0 0.0
        %7101 = vmatprep.subr.mxu0 0.0
        %7102 = vmatpush1.msra.mxu0 0.0
        %7103 = vmatprep.subr.mxu0 0.0
        %7104 = vmatpush1.msra.mxu0 0.0
        %7105 = vmatprep.subr.mxu0 0.0
        %7106 = vmatpush1.msra.mxu0 0.0
        %7107 = vmatprep.subr.mxu0 0.0
        %7108 = vmatpush1.msra.mxu0 0.0
        %7109 = vmatprep.subr.mxu0 0.0
        %7110 = vmatpush1.msra.mxu0 0.0
        %7111 = vmatprep.subr.mxu0 0.0
        %7112 = vmatpush1.msra.mxu0 0.0
        %7113 = vmatprep.subr.mxu0 0.0
        %7114 = vmatpush1.msra.mxu0 %v768
        %7115 = vmatprep.subr.mxu0 0.0
        %7116 = vmatpush1.msra.mxu0 %v767
        %7117 = vmatprep.subr.mxu0 0.0
        %7118 = vmatpush1.msra.mxu0 %v766
        %7119 = vmatprep.subr.mxu0 0.0
        %7120 = vmatpush1.msra.mxu0 %v765
        %7121 = vmatprep.subr.mxu0 0.0
        %7122 = vmatpush1.msra.mxu0 %v764
        %7123 = vmatprep.subr.mxu0 0.0
        %7124 = vmatpush1.msra.mxu0 %v763
        %7125 = vmatprep.subr.mxu0 0.0
        %7126 = vmatpush1.msra.mxu0 %v762
        %7127 = vmatprep.subr.mxu0 0.0
        %7128 = vmatpush1.msra.mxu0 %v761
        %7129 = vmatprep.subr.mxu0 0.0
        %7130 = vmatpush2.msra.mxu0 0.0
        %7131 = vmatprep.subr.mxu0 0.0
        %7132 = vmatpush2.msra.mxu0 0.0
        %7133 = vmatprep.subr.mxu0 0.0
        %7134 = vmatpush2.msra.mxu0 0.0
        %7135 = vmatprep.subr.mxu0 0.0
        %7136 = vmatpush2.msra.mxu0 0.0
        %7137 = vmatprep.subr.mxu0 0.0
        %7138 = vmatpush2.msra.mxu0 0.0
        %7139 = vmatprep.subr.mxu0 0.0
        %7140 = vmatpush2.msra.mxu0 0.0
        %7141 = vmatprep.subr.mxu0 0.0
        %7142 = vmatpush2.msra.mxu0 0.0
        %7143 = vmatprep.subr.mxu0 0.0
        %7144 = vmatpush2.msra.mxu0 0.0
        %7145 = vmatprep.subr.mxu0 0.0
        %7146 = vmatpush2.msra.mxu0 0.0
        %7147 = vmatprep.subr.mxu0 0.0
        %7148 = vmatpush2.msra.mxu0 0.0
        %7149 = vmatprep.subr.mxu0 0.0
        %7150 = vmatpush2.msra.mxu0 0.0
        %7151 = vmatprep.subr.mxu0 0.0
        %7152 = vmatpush2.msra.mxu0 0.0
        %7153 = vmatprep.subr.mxu0 0.0
        %7154 = vmatpush2.msra.mxu0 0.0
        %7155 = vmatprep.subr.mxu0 0.0
        %7156 = vmatpush2.msra.mxu0 0.0
        %7157 = vmatprep.subr.mxu0 0.0
        %7158 = vmatpush2.msra.mxu0 0.0
        %7159 = vmatprep.subr.mxu0 0.0
        %7160 = vmatpush2.msra.mxu0 0.0
        %7161 = vmatprep.mubr.f32.mxu0 0.0
        %7162 = vmatmul.mubr.f32.gmra.mxu0 %v6953
        %v7163 = vpop.f32.mrf.mxu0
        %v7164 = vadd.f32 0.0, %v7163
        %v7165 = vpop.f32.mrf.mxu0
        %7166 = vdwg.mxu0
        %v7168 = vcombine.high %v7164, %v7164
        %v7169 = vrot.slane %v7164, 6
        %v7170 = vrot.slane %v7164, 7
        %v7171 = vrot.slane %v7164, 1
        %v7172 = vrot.slane %v7168, 6
        %v7173 = vrot.slane %v7168, 7
        %v7174 = vrot.slane %v7168, 1
        %v7183 = vadd.f32 %v1247, %v7169
        %v7184 = vadd.f32 %v1314, %v7170
        %v7185 = vadd.f32 %v1262, %v7164
        %v7186 = vadd.f32 %v1317, %v7171
        %v7187 = vadd.f32 %v1277, %v7172
        %v7188 = vadd.f32 %v1320, %v7173
        %v7189 = vadd.f32 %v1292, %v7168
        %v7190 = vadd.f32 %v1323, %v7174
        %v7191 = vxor.u32 %v7183, 2147483648
        %v7192 = vxor.u32 %v7184, 2147483648
        %v7193 = vxor.u32 %v7185, 2147483648
        %v7194 = vxor.u32 %v7186, 2147483648
        %v7195 = vxor.u32 %v7187, 2147483648
        %v7196 = vxor.u32 %v7188, 2147483648
        %v7197 = vxor.u32 %v7189, 2147483648
        %v7198 = vxor.u32 %v7190, 2147483648
        %v7199 = vmul.f32 %v7191, 1.442695
        %v7200 = vpow.pop %v7199
        %v7201 = vmul.f32 %v7192, 1.442695
        %v7202 = vpow.pop %v7201
        %v7203 = vmul.f32 %v7193, 1.442695
        %v7204 = vpow.pop %v7203
        %v7205 = vmul.f32 %v7194, 1.442695
        %v7206 = vpow.pop %v7205
        %v7207 = vmul.f32 %v7195, 1.442695
        %v7208 = vpow.pop %v7207
        %v7209 = vmul.f32 %v7196, 1.442695
        %v7210 = vpow.pop %v7209
        %v7211 = vmul.f32 %v7197, 1.442695
        %v7212 = vpow.pop %v7211
        %v7213 = vmul.f32 %v7198, 1.442695
        %v7214 = vpow.pop %v7213
        %v7215 = vadd.f32 %v7200, 1.0
        %v7216 = vadd.f32 %v7202, 1.0
        %v7217 = vadd.f32 %v7204, 1.0
        %v7218 = vadd.f32 %v7206, 1.0
        %v7219 = vadd.f32 %v7208, 1.0
        %v7220 = vadd.f32 %v7210, 1.0
        %v7221 = vadd.f32 %v7212, 1.0
        %v7222 = vadd.f32 %v7214, 1.0
        %v7223 = vrcp.pop %v7215
        %v7224 = vmul.f32 1.0, %v7223
        %v7225 = vrcp.pop %v7216
        %v7226 = vmul.f32 1.0, %v7225
        %v7227 = vrcp.pop %v7217
        %v7228 = vmul.f32 1.0, %v7227
        %v7229 = vrcp.pop %v7218
        %v7230 = vmul.f32 1.0, %v7229
        %v7231 = vrcp.pop %v7219
        %v7232 = vmul.f32 1.0, %v7231
        %v7233 = vrcp.pop %v7220
        %v7234 = vmul.f32 1.0, %v7233
        %v7235 = vrcp.pop %v7221
        %v7236 = vmul.f32 1.0, %v7235
        %v7237 = vrcp.pop %v7222
        %v7238 = vmul.f32 1.0, %v7237
        %7239 = vmatprep.subr.mxu0 0.0
        %7240 = vmatpush1.msra.mxu0 0.0
        %7241 = vmatprep.subr.mxu0 0.0
        %7242 = vmatpush1.msra.mxu0 0.0
        %7243 = vmatprep.subr.mxu0 0.0
        %7244 = vmatpush1.msra.mxu0 0.0
        %7245 = vmatprep.subr.mxu0 0.0
        %7246 = vmatpush1.msra.mxu0 0.0
        %7247 = vmatprep.subr.mxu0 0.0
        %7248 = vmatpush1.msra.mxu0 0.0
        %7249 = vmatprep.subr.mxu0 0.0
        %7250 = vmatpush1.msra.mxu0 0.0
        %7251 = vmatprep.subr.mxu0 0.0
        %7252 = vmatpush1.msra.mxu0 0.0
        %7253 = vmatprep.subr.mxu0 0.0
        %7254 = vmatpush1.msra.mxu0 0.0
        %7255 = vmatprep.subr.mxu0 0.0
        %7256 = vmatpush1.msra.mxu0 %v776
        %7257 = vmatprep.subr.mxu0 0.0
        %7258 = vmatpush1.msra.mxu0 %v775
        %7259 = vmatprep.subr.mxu0 0.0
        %7260 = vmatpush1.msra.mxu0 %v774
        %7261 = vmatprep.subr.mxu0 0.0
        %7262 = vmatpush1.msra.mxu0 %v773
        %7263 = vmatprep.subr.mxu0 0.0
        %7264 = vmatpush1.msra.mxu0 %v772
        %7265 = vmatprep.subr.mxu0 0.0
        %7266 = vmatpush1.msra.mxu0 %v771
        %7267 = vmatprep.subr.mxu0 0.0
        %7268 = vmatpush1.msra.mxu0 %v770
        %7269 = vmatprep.subr.mxu0 0.0
        %7270 = vmatpush1.msra.mxu0 %v769
        %7271 = vmatprep.subr.mxu0 0.0
        %7272 = vmatpush2.msra.mxu0 0.0
        %7273 = vmatprep.subr.mxu0 0.0
        %7274 = vmatpush2.msra.mxu0 0.0
        %7275 = vmatprep.subr.mxu0 0.0
        %7276 = vmatpush2.msra.mxu0 0.0
        %7277 = vmatprep.subr.mxu0 0.0
        %7278 = vmatpush2.msra.mxu0 0.0
        %7279 = vmatprep.subr.mxu0 0.0
        %7280 = vmatpush2.msra.mxu0 0.0
        %7281 = vmatprep.subr.mxu0 0.0
        %7282 = vmatpush2.msra.mxu0 0.0
        %7283 = vmatprep.subr.mxu0 0.0
        %7284 = vmatpush2.msra.mxu0 0.0
        %7285 = vmatprep.subr.mxu0 0.0
        %7286 = vmatpush2.msra.mxu0 0.0
        %7287 = vmatprep.subr.mxu0 0.0
        %7288 = vmatpush2.msra.mxu0 0.0
        %7289 = vmatprep.subr.mxu0 0.0
        %7290 = vmatpush2.msra.mxu0 0.0
        %7291 = vmatprep.subr.mxu0 0.0
        %7292 = vmatpush2.msra.mxu0 0.0
        %7293 = vmatprep.subr.mxu0 0.0
        %7294 = vmatpush2.msra.mxu0 0.0
        %7295 = vmatprep.subr.mxu0 0.0
        %7296 = vmatpush2.msra.mxu0 0.0
        %7297 = vmatprep.subr.mxu0 0.0
        %7298 = vmatpush2.msra.mxu0 0.0
        %7299 = vmatprep.subr.mxu0 0.0
        %7300 = vmatpush2.msra.mxu0 0.0
        %7301 = vmatprep.subr.mxu0 0.0
        %7302 = vmatpush2.msra.mxu0 0.0
        %7303 = vmatprep.mubr.f32.mxu0 0.0
        %7304 = vmatmul.mubr.f32.gmra.mxu0 %v6953
        %v7305 = vpop.f32.mrf.mxu0
        %v7306 = vadd.f32 %v1795, %v7305
        %v7307 = vpop.f32.mrf.mxu0
        %7308 = vdwg.mxu0
        %v7310 = vcombine.high %v7306, %v7306
        %v7311 = vrot.slane %v7306, 6
        %v7312 = vrot.slane %v7306, 7
        %v7313 = vrot.slane %v7306, 1
        %v7314 = vrot.slane %v7310, 6
        %v7315 = vrot.slane %v7310, 7
        %v7316 = vrot.slane %v7310, 1
        %v7325 = vmul.f32 %v7082, %v7311
        %v7326 = vmul.f32 %v7084, %v7312
        %v7327 = vmul.f32 %v7086, %v7306
        %v7328 = vmul.f32 %v7088, %v7313
        %v7329 = vmul.f32 %v7090, %v7314
        %v7330 = vmul.f32 %v7092, %v7315
        %v7331 = vmul.f32 %v7094, %v7310
        %v7332 = vmul.f32 %v7096, %v7316
        %v7333 = vadd.f32 %v1414, %v7325
        %v7334 = vadd.f32 %v1481, %v7326
        %v7335 = vadd.f32 %v1429, %v7327
        %v7336 = vadd.f32 %v1484, %v7328
        %v7337 = vadd.f32 %v1444, %v7329
        %v7338 = vadd.f32 %v1487, %v7330
        %v7339 = vadd.f32 %v1459, %v7331
        %v7340 = vadd.f32 %v1490, %v7332
        %v7341 = vtanh.pop %v7333
        %v7342 = vtanh.pop %v7334
        %v7343 = vtanh.pop %v7335
        %v7344 = vtanh.pop %v7336
        %v7345 = vtanh.pop %v7337
        %v7346 = vtanh.pop %v7338
        %v7347 = vtanh.pop %v7339
        %v7348 = vtanh.pop %v7340
        %v7349 = vsub.f32 1.0, %v7224
        %v7350 = vsub.f32 1.0, %v7226
        %v7351 = vsub.f32 1.0, %v7228
        %v7352 = vsub.f32 1.0, %v7230
        %v7353 = vsub.f32 1.0, %v7232
        %v7354 = vsub.f32 1.0, %v7234
        %v7355 = vsub.f32 1.0, %v7236
        %v7356 = vsub.f32 1.0, %v7238
        %v7357 = vmul.f32 %v7349, %v7341
        %v7358 = vmul.f32 %v7350, %v7342
        %v7359 = vmul.f32 %v7351, %v7343
        %v7360 = vmul.f32 %v7352, %v7344
        %v7361 = vmul.f32 %v7353, %v7345
        %v7362 = vmul.f32 %v7354, %v7346
        %v7363 = vmul.f32 %v7355, %v7347
        %v7364 = vmul.f32 %v7356, %v7348
        %v7365 = vrot.slane %v6898, 7
        %v7366 = vrot.slane %v6899, 7
        %v7367 = vrot.slane %v6900, 7
        %v7368 = vrot.slane %v6901, 7
        %v7369 = vrot.slane %v6902, 7
        %v7370 = vrot.slane %v6903, 7
        %v7371 = vrot.slane %v6904, 7
        %v7372 = vrot.slane %v6905, 7
        %v7381 = vmul.f32 %v7224, %v7365
        %v7382 = vmul.f32 %v7226, %v7366
        %v7383 = vmul.f32 %v7228, %v7367
        %v7384 = vmul.f32 %v7230, %v7368
        %v7385 = vmul.f32 %v7232, %v7369
        %v7386 = vmul.f32 %v7234, %v7370
        %v7387 = vmul.f32 %v7236, %v7371
        %v7388 = vmul.f32 %v7238, %v7372
        %v7389 = vadd.f32 %v7357, %v7381
        %v7390 = vadd.f32 %v7358, %v7382
        %v7391 = vadd.f32 %v7359, %v7383
        %v7392 = vadd.f32 %v7360, %v7384
        %v7393 = vadd.f32 %v7361, %v7385
        %v7394 = vadd.f32 %v7362, %v7386
        %v7395 = vadd.f32 %v7363, %v7387
        %v7396 = vadd.f32 %v7364, %v7388
        %p7397 = scmp.gt.s32.totalorder %s704, 10
        %s7398 = scalar_select %p7397, 1, 0
        %s7399 = scvt.s32.f32 %s7398
        %v7400 = vstv %s7399
        %v7401 = vmul.f32 %v7400, %v7389
        %v7402 = vmul.f32 %v7400, %v7390
        %v7403 = vmul.f32 %v7400, %v7391
        %v7404 = vmul.f32 %v7400, %v7392
        %v7405 = vmul.f32 %v7400, %v7393
        %v7406 = vmul.f32 %v7400, %v7394
        %v7407 = vmul.f32 %v7400, %v7395
        %v7408 = vmul.f32 %v7400, %v7396
        %s7409 = ssub.f32 1.0, %s7399
        %v7410 = vstv %s7409
        %v7411 = vmul.f32 %v7410, %v6898
        %v7412 = vmul.f32 %v7410, %v6899
        %v7413 = vmul.f32 %v7410, %v6900
        %v7414 = vmul.f32 %v7410, %v6901
        %v7415 = vmul.f32 %v7410, %v6902
        %v7416 = vmul.f32 %v7410, %v6903
        %v7417 = vmul.f32 %v7410, %v6904
        %v7418 = vmul.f32 %v7410, %v6905
        %v7427 = vrot.slane %v7411, 7
        %v7428 = vrot.slane %v7412, 7
        %v7429 = vrot.slane %v7413, 7
        %v7430 = vrot.slane %v7414, 7
        %v7431 = vrot.slane %v7415, 7
        %v7432 = vrot.slane %v7416, 7
        %v7433 = vrot.slane %v7417, 7
        %v7434 = vrot.slane %v7418, 7
        %v7443 = vadd.f32 %v7401, %v7427
        %v7444 = vadd.f32 %v7402, %v7428
        %v7445 = vadd.f32 %v7403, %v7429
        %v7446 = vadd.f32 %v7404, %v7430
        %v7447 = vadd.f32 %v7405, %v7431
        %v7448 = vadd.f32 %v7406, %v7432
        %v7449 = vadd.f32 %v7407, %v7433
        %v7450 = vadd.f32 %v7408, %v7434
        %v7459 = vlaneseq
        %v7460 = vshrl.u32 %v7459, 7
        %v7461 = vsub.s32 2, %v7460
        %v7462 = vrot.slane %v7443, %v7461
        %v7463 = vlaneseq
        %v7464 = vshrl.u32 %v7463, 7
        %v7465 = vsub.s32 2, %v7464
        %v7466 = vrot.slane %v7444, %v7465
        %v7467 = vlaneseq
        %v7468 = vshrl.u32 %v7467, 7
        %v7469 = vsub.s32 2, %v7468
        %v7470 = vrot.slane %v7445, %v7469
        %v7471 = vlaneseq
        %v7472 = vshrl.u32 %v7471, 7
        %v7473 = vsub.s32 2, %v7472
        %v7474 = vrot.slane %v7446, %v7473
        %v7475 = vlaneseq
        %v7476 = vshrl.u32 %v7475, 7
        %v7477 = vsub.s32 2, %v7476
        %v7478 = vrot.slane %v7447, %v7477
        %v7479 = vlaneseq
        %v7480 = vshrl.u32 %v7479, 7
        %v7481 = vsub.s32 2, %v7480
        %v7482 = vrot.slane %v7448, %v7481
        %v7483 = vlaneseq
        %v7484 = vshrl.u32 %v7483, 7
        %v7485 = vsub.s32 2, %v7484
        %v7486 = vrot.slane %v7449, %v7485
        %v7487 = vlaneseq
        %v7488 = vshrl.u32 %v7487, 7
        %v7489 = vsub.s32 2, %v7488
        %v7490 = vrot.slane %v7450, %v7489
        %v7491 = vsel %vm2002, %v7466, %v7462
        %v7492 = vsel %vm2004, %v7470, %v7491
        %v7493 = vsel %vm2006, %v7474, %v7492
        %v7494 = vsel %vm2008, %v7478, %v7493
        %v7495 = vsel %vm2010, %v7482, %v7494
        %v7496 = vsel %vm2012, %v7486, %v7495
        %v7497 = vsel %vm2014, %v7490, %v7496
        %v7498 = vsel %vm1503, %v7497, 0
        %7500 = vmatprep.subr.mxu0 0.0
        %7501 = vmatpush1.msra.mxu0 0.0
        %7502 = vmatprep.subr.mxu0 0.0
        %7503 = vmatpush1.msra.mxu0 0.0
        %7504 = vmatprep.subr.mxu0 0.0
        %7505 = vmatpush1.msra.mxu0 0.0
        %7506 = vmatprep.subr.mxu0 0.0
        %7507 = vmatpush1.msra.mxu0 0.0
        %7508 = vmatprep.subr.mxu0 0.0
        %7509 = vmatpush1.msra.mxu0 0.0
        %7510 = vmatprep.subr.mxu0 0.0
        %7511 = vmatpush1.msra.mxu0 0.0
        %7512 = vmatprep.subr.mxu0 0.0
        %7513 = vmatpush1.msra.mxu0 0.0
        %7514 = vmatprep.subr.mxu0 0.0
        %7515 = vmatpush1.msra.mxu0 0.0
        %7516 = vmatprep.subr.mxu0 0.0
        %7517 = vmatpush1.msra.mxu0 %v760
        %7518 = vmatprep.subr.mxu0 0.0
        %7519 = vmatpush1.msra.mxu0 %v759
        %7520 = vmatprep.subr.mxu0 0.0
        %7521 = vmatpush1.msra.mxu0 %v758
        %7522 = vmatprep.subr.mxu0 0.0
        %7523 = vmatpush1.msra.mxu0 %v757
        %7524 = vmatprep.subr.mxu0 0.0
        %7525 = vmatpush1.msra.mxu0 %v756
        %7526 = vmatprep.subr.mxu0 0.0
        %7527 = vmatpush1.msra.mxu0 %v755
        %7528 = vmatprep.subr.mxu0 0.0
        %7529 = vmatpush1.msra.mxu0 %v754
        %7530 = vmatprep.subr.mxu0 0.0
        %7531 = vmatpush1.msra.mxu0 %v753
        %7532 = vmatprep.subr.mxu0 0.0
        %7533 = vmatpush2.msra.mxu0 0.0
        %7534 = vmatprep.subr.mxu0 0.0
        %7535 = vmatpush2.msra.mxu0 0.0
        %7536 = vmatprep.subr.mxu0 0.0
        %7537 = vmatpush2.msra.mxu0 0.0
        %7538 = vmatprep.subr.mxu0 0.0
        %7539 = vmatpush2.msra.mxu0 0.0
        %7540 = vmatprep.subr.mxu0 0.0
        %7541 = vmatpush2.msra.mxu0 0.0
        %7542 = vmatprep.subr.mxu0 0.0
        %7543 = vmatpush2.msra.mxu0 0.0
        %7544 = vmatprep.subr.mxu0 0.0
        %7545 = vmatpush2.msra.mxu0 0.0
        %7546 = vmatprep.subr.mxu0 0.0
        %7547 = vmatpush2.msra.mxu0 0.0
        %7548 = vmatprep.subr.mxu0 0.0
        %7549 = vmatpush2.msra.mxu0 0.0
        %7550 = vmatprep.subr.mxu0 0.0
        %7551 = vmatpush2.msra.mxu0 0.0
        %7552 = vmatprep.subr.mxu0 0.0
        %7553 = vmatpush2.msra.mxu0 0.0
        %7554 = vmatprep.subr.mxu0 0.0
        %7555 = vmatpush2.msra.mxu0 0.0
        %7556 = vmatprep.subr.mxu0 0.0
        %7557 = vmatpush2.msra.mxu0 0.0
        %7558 = vmatprep.subr.mxu0 0.0
        %7559 = vmatpush2.msra.mxu0 0.0
        %7560 = vmatprep.subr.mxu0 0.0
        %7561 = vmatpush2.msra.mxu0 0.0
        %7562 = vmatprep.subr.mxu0 0.0
        %7563 = vmatpush2.msra.mxu0 0.0
        %7564 = vmatprep.mubr.f32.mxu0 0.0
        %7565 = vmatmul.mubr.f32.gmra.mxu0 %v7498
        %v7566 = vpop.f32.mrf.mxu0
        %v7567 = vadd.f32 0.0, %v7566
        %v7568 = vpop.f32.mrf.mxu0
        %7569 = vdwg.mxu0
        %v7571 = vcombine.high %v7567, %v7567
        %v7572 = vrot.slane %v7567, 5
        %v7573 = vrot.slane %v7567, 6
        %v7574 = vrot.slane %v7567, 7
        %v7575 = vrot.slane %v7571, 5
        %v7576 = vrot.slane %v7571, 6
        %v7577 = vrot.slane %v7571, 7
        %v7586 = vadd.f32 %v1080, %v7572
        %v7587 = vadd.f32 %v1147, %v7573
        %v7588 = vadd.f32 %v1095, %v7574
        %v7589 = vadd.f32 %v1150, %v7567
        %v7590 = vadd.f32 %v1110, %v7575
        %v7591 = vadd.f32 %v1153, %v7576
        %v7592 = vadd.f32 %v1125, %v7577
        %v7593 = vadd.f32 %v1156, %v7571
        %v7594 = vxor.u32 %v7586, 2147483648
        %v7595 = vxor.u32 %v7587, 2147483648
        %v7596 = vxor.u32 %v7588, 2147483648
        %v7597 = vxor.u32 %v7589, 2147483648
        %v7598 = vxor.u32 %v7590, 2147483648
        %v7599 = vxor.u32 %v7591, 2147483648
        %v7600 = vxor.u32 %v7592, 2147483648
        %v7601 = vxor.u32 %v7593, 2147483648
        %v7602 = vmul.f32 %v7594, 1.442695
        %v7603 = vpow.pop %v7602
        %v7604 = vmul.f32 %v7595, 1.442695
        %v7605 = vpow.pop %v7604
        %v7606 = vmul.f32 %v7596, 1.442695
        %v7607 = vpow.pop %v7606
        %v7608 = vmul.f32 %v7597, 1.442695
        %v7609 = vpow.pop %v7608
        %v7610 = vmul.f32 %v7598, 1.442695
        %v7611 = vpow.pop %v7610
        %v7612 = vmul.f32 %v7599, 1.442695
        %v7613 = vpow.pop %v7612
        %v7614 = vmul.f32 %v7600, 1.442695
        %v7615 = vpow.pop %v7614
        %v7616 = vmul.f32 %v7601, 1.442695
        %v7617 = vpow.pop %v7616
        %v7618 = vadd.f32 %v7603, 1.0
        %v7619 = vadd.f32 %v7605, 1.0
        %v7620 = vadd.f32 %v7607, 1.0
        %v7621 = vadd.f32 %v7609, 1.0
        %v7622 = vadd.f32 %v7611, 1.0
        %v7623 = vadd.f32 %v7613, 1.0
        %v7624 = vadd.f32 %v7615, 1.0
        %v7625 = vadd.f32 %v7617, 1.0
        %v7626 = vrcp.pop %v7618
        %v7627 = vmul.f32 1.0, %v7626
        %v7628 = vrcp.pop %v7619
        %v7629 = vmul.f32 1.0, %v7628
        %v7630 = vrcp.pop %v7620
        %v7631 = vmul.f32 1.0, %v7630
        %v7632 = vrcp.pop %v7621
        %v7633 = vmul.f32 1.0, %v7632
        %v7634 = vrcp.pop %v7622
        %v7635 = vmul.f32 1.0, %v7634
        %v7636 = vrcp.pop %v7623
        %v7637 = vmul.f32 1.0, %v7636
        %v7638 = vrcp.pop %v7624
        %v7639 = vmul.f32 1.0, %v7638
        %v7640 = vrcp.pop %v7625
        %v7641 = vmul.f32 1.0, %v7640
        %7642 = vmatprep.subr.mxu0 0.0
        %7643 = vmatpush1.msra.mxu0 0.0
        %7644 = vmatprep.subr.mxu0 0.0
        %7645 = vmatpush1.msra.mxu0 0.0
        %7646 = vmatprep.subr.mxu0 0.0
        %7647 = vmatpush1.msra.mxu0 0.0
        %7648 = vmatprep.subr.mxu0 0.0
        %7649 = vmatpush1.msra.mxu0 0.0
        %7650 = vmatprep.subr.mxu0 0.0
        %7651 = vmatpush1.msra.mxu0 0.0
        %7652 = vmatprep.subr.mxu0 0.0
        %7653 = vmatpush1.msra.mxu0 0.0
        %7654 = vmatprep.subr.mxu0 0.0
        %7655 = vmatpush1.msra.mxu0 0.0
        %7656 = vmatprep.subr.mxu0 0.0
        %7657 = vmatpush1.msra.mxu0 0.0
        %7658 = vmatprep.subr.mxu0 0.0
        %7659 = vmatpush1.msra.mxu0 %v768
        %7660 = vmatprep.subr.mxu0 0.0
        %7661 = vmatpush1.msra.mxu0 %v767
        %7662 = vmatprep.subr.mxu0 0.0
        %7663 = vmatpush1.msra.mxu0 %v766
        %7664 = vmatprep.subr.mxu0 0.0
        %7665 = vmatpush1.msra.mxu0 %v765
        %7666 = vmatprep.subr.mxu0 0.0
        %7667 = vmatpush1.msra.mxu0 %v764
        %7668 = vmatprep.subr.mxu0 0.0
        %7669 = vmatpush1.msra.mxu0 %v763
        %7670 = vmatprep.subr.mxu0 0.0
        %7671 = vmatpush1.msra.mxu0 %v762
        %7672 = vmatprep.subr.mxu0 0.0
        %7673 = vmatpush1.msra.mxu0 %v761
        %7674 = vmatprep.subr.mxu0 0.0
        %7675 = vmatpush2.msra.mxu0 0.0
        %7676 = vmatprep.subr.mxu0 0.0
        %7677 = vmatpush2.msra.mxu0 0.0
        %7678 = vmatprep.subr.mxu0 0.0
        %7679 = vmatpush2.msra.mxu0 0.0
        %7680 = vmatprep.subr.mxu0 0.0
        %7681 = vmatpush2.msra.mxu0 0.0
        %7682 = vmatprep.subr.mxu0 0.0
        %7683 = vmatpush2.msra.mxu0 0.0
        %7684 = vmatprep.subr.mxu0 0.0
        %7685 = vmatpush2.msra.mxu0 0.0
        %7686 = vmatprep.subr.mxu0 0.0
        %7687 = vmatpush2.msra.mxu0 0.0
        %7688 = vmatprep.subr.mxu0 0.0
        %7689 = vmatpush2.msra.mxu0 0.0
        %7690 = vmatprep.subr.mxu0 0.0
        %7691 = vmatpush2.msra.mxu0 0.0
        %7692 = vmatprep.subr.mxu0 0.0
        %7693 = vmatpush2.msra.mxu0 0.0
        %7694 = vmatprep.subr.mxu0 0.0
        %7695 = vmatpush2.msra.mxu0 0.0
        %7696 = vmatprep.subr.mxu0 0.0
        %7697 = vmatpush2.msra.mxu0 0.0
        %7698 = vmatprep.subr.mxu0 0.0
        %7699 = vmatpush2.msra.mxu0 0.0
        %7700 = vmatprep.subr.mxu0 0.0
        %7701 = vmatpush2.msra.mxu0 0.0
        %7702 = vmatprep.subr.mxu0 0.0
        %7703 = vmatpush2.msra.mxu0 0.0
        %7704 = vmatprep.subr.mxu0 0.0
        %7705 = vmatpush2.msra.mxu0 0.0
        %7706 = vmatprep.mubr.f32.mxu0 0.0
        %7707 = vmatmul.mubr.f32.gmra.mxu0 %v7498
        %v7708 = vpop.f32.mrf.mxu0
        %v7709 = vadd.f32 0.0, %v7708
        %v7710 = vpop.f32.mrf.mxu0
        %7711 = vdwg.mxu0
        %v7713 = vcombine.high %v7709, %v7709
        %v7714 = vrot.slane %v7709, 5
        %v7715 = vrot.slane %v7709, 6
        %v7716 = vrot.slane %v7709, 7
        %v7717 = vrot.slane %v7713, 5
        %v7718 = vrot.slane %v7713, 6
        %v7719 = vrot.slane %v7713, 7
        %v7728 = vadd.f32 %v1247, %v7714
        %v7729 = vadd.f32 %v1314, %v7715
        %v7730 = vadd.f32 %v1262, %v7716
        %v7731 = vadd.f32 %v1317, %v7709
        %v7732 = vadd.f32 %v1277, %v7717
        %v7733 = vadd.f32 %v1320, %v7718
        %v7734 = vadd.f32 %v1292, %v7719
        %v7735 = vadd.f32 %v1323, %v7713
        %v7736 = vxor.u32 %v7728, 2147483648
        %v7737 = vxor.u32 %v7729, 2147483648
        %v7738 = vxor.u32 %v7730, 2147483648
        %v7739 = vxor.u32 %v7731, 2147483648
        %v7740 = vxor.u32 %v7732, 2147483648
        %v7741 = vxor.u32 %v7733, 2147483648
        %v7742 = vxor.u32 %v7734, 2147483648
        %v7743 = vxor.u32 %v7735, 2147483648
        %v7744 = vmul.f32 %v7736, 1.442695
        %v7745 = vpow.pop %v7744
        %v7746 = vmul.f32 %v7737, 1.442695
        %v7747 = vpow.pop %v7746
        %v7748 = vmul.f32 %v7738, 1.442695
        %v7749 = vpow.pop %v7748
        %v7750 = vmul.f32 %v7739, 1.442695
        %v7751 = vpow.pop %v7750
        %v7752 = vmul.f32 %v7740, 1.442695
        %v7753 = vpow.pop %v7752
        %v7754 = vmul.f32 %v7741, 1.442695
        %v7755 = vpow.pop %v7754
        %v7756 = vmul.f32 %v7742, 1.442695
        %v7757 = vpow.pop %v7756
        %v7758 = vmul.f32 %v7743, 1.442695
        %v7759 = vpow.pop %v7758
        %v7760 = vadd.f32 %v7745, 1.0
        %v7761 = vadd.f32 %v7747, 1.0
        %v7762 = vadd.f32 %v7749, 1.0
        %v7763 = vadd.f32 %v7751, 1.0
        %v7764 = vadd.f32 %v7753, 1.0
        %v7765 = vadd.f32 %v7755, 1.0
        %v7766 = vadd.f32 %v7757, 1.0
        %v7767 = vadd.f32 %v7759, 1.0
        %v7768 = vrcp.pop %v7760
        %v7769 = vmul.f32 1.0, %v7768
        %v7770 = vrcp.pop %v7761
        %v7771 = vmul.f32 1.0, %v7770
        %v7772 = vrcp.pop %v7762
        %v7773 = vmul.f32 1.0, %v7772
        %v7774 = vrcp.pop %v7763
        %v7775 = vmul.f32 1.0, %v7774
        %v7776 = vrcp.pop %v7764
        %v7777 = vmul.f32 1.0, %v7776
        %v7778 = vrcp.pop %v7765
        %v7779 = vmul.f32 1.0, %v7778
        %v7780 = vrcp.pop %v7766
        %v7781 = vmul.f32 1.0, %v7780
        %v7782 = vrcp.pop %v7767
        %v7783 = vmul.f32 1.0, %v7782
        %7784 = vmatprep.subr.mxu0 0.0
        %7785 = vmatpush1.msra.mxu0 0.0
        %7786 = vmatprep.subr.mxu0 0.0
        %7787 = vmatpush1.msra.mxu0 0.0
        %7788 = vmatprep.subr.mxu0 0.0
        %7789 = vmatpush1.msra.mxu0 0.0
        %7790 = vmatprep.subr.mxu0 0.0
        %7791 = vmatpush1.msra.mxu0 0.0
        %7792 = vmatprep.subr.mxu0 0.0
        %7793 = vmatpush1.msra.mxu0 0.0
        %7794 = vmatprep.subr.mxu0 0.0
        %7795 = vmatpush1.msra.mxu0 0.0
        %7796 = vmatprep.subr.mxu0 0.0
        %7797 = vmatpush1.msra.mxu0 0.0
        %7798 = vmatprep.subr.mxu0 0.0
        %7799 = vmatpush1.msra.mxu0 0.0
        %7800 = vmatprep.subr.mxu0 0.0
        %7801 = vmatpush1.msra.mxu0 %v776
        %7802 = vmatprep.subr.mxu0 0.0
        %7803 = vmatpush1.msra.mxu0 %v775
        %7804 = vmatprep.subr.mxu0 0.0
        %7805 = vmatpush1.msra.mxu0 %v774
        %7806 = vmatprep.subr.mxu0 0.0
        %7807 = vmatpush1.msra.mxu0 %v773
        %7808 = vmatprep.subr.mxu0 0.0
        %7809 = vmatpush1.msra.mxu0 %v772
        %7810 = vmatprep.subr.mxu0 0.0
        %7811 = vmatpush1.msra.mxu0 %v771
        %7812 = vmatprep.subr.mxu0 0.0
        %7813 = vmatpush1.msra.mxu0 %v770
        %7814 = vmatprep.subr.mxu0 0.0
        %7815 = vmatpush1.msra.mxu0 %v769
        %7816 = vmatprep.subr.mxu0 0.0
        %7817 = vmatpush2.msra.mxu0 0.0
        %7818 = vmatprep.subr.mxu0 0.0
        %7819 = vmatpush2.msra.mxu0 0.0
        %7820 = vmatprep.subr.mxu0 0.0
        %7821 = vmatpush2.msra.mxu0 0.0
        %7822 = vmatprep.subr.mxu0 0.0
        %7823 = vmatpush2.msra.mxu0 0.0
        %7824 = vmatprep.subr.mxu0 0.0
        %7825 = vmatpush2.msra.mxu0 0.0
        %7826 = vmatprep.subr.mxu0 0.0
        %7827 = vmatpush2.msra.mxu0 0.0
        %7828 = vmatprep.subr.mxu0 0.0
        %7829 = vmatpush2.msra.mxu0 0.0
        %7830 = vmatprep.subr.mxu0 0.0
        %7831 = vmatpush2.msra.mxu0 0.0
        %7832 = vmatprep.subr.mxu0 0.0
        %7833 = vmatpush2.msra.mxu0 0.0
        %7834 = vmatprep.subr.mxu0 0.0
        %7835 = vmatpush2.msra.mxu0 0.0
        %7836 = vmatprep.subr.mxu0 0.0
        %7837 = vmatpush2.msra.mxu0 0.0
        %7838 = vmatprep.subr.mxu0 0.0
        %7839 = vmatpush2.msra.mxu0 0.0
        %7840 = vmatprep.subr.mxu0 0.0
        %7841 = vmatpush2.msra.mxu0 0.0
        %7842 = vmatprep.subr.mxu0 0.0
        %7843 = vmatpush2.msra.mxu0 0.0
        %7844 = vmatprep.subr.mxu0 0.0
        %7845 = vmatpush2.msra.mxu0 0.0
        %7846 = vmatprep.subr.mxu0 0.0
        %7847 = vmatpush2.msra.mxu0 0.0
        %7848 = vmatprep.mubr.f32.mxu0 0.0
        %7849 = vmatmul.mubr.f32.gmra.mxu0 %v7498
        %v7850 = vpop.f32.mrf.mxu0
        %v7851 = vadd.f32 %v1795, %v7850
        %v7852 = vpop.f32.mrf.mxu0
        %7853 = vdwg.mxu0
        %v7855 = vcombine.high %v7851, %v7851
        %v7856 = vrot.slane %v7851, 5
        %v7857 = vrot.slane %v7851, 6
        %v7858 = vrot.slane %v7851, 7
        %v7859 = vrot.slane %v7855, 5
        %v7860 = vrot.slane %v7855, 6
        %v7861 = vrot.slane %v7855, 7
        %v7870 = vmul.f32 %v7627, %v7856
        %v7871 = vmul.f32 %v7629, %v7857
        %v7872 = vmul.f32 %v7631, %v7858
        %v7873 = vmul.f32 %v7633, %v7851
        %v7874 = vmul.f32 %v7635, %v7859
        %v7875 = vmul.f32 %v7637, %v7860
        %v7876 = vmul.f32 %v7639, %v7861
        %v7877 = vmul.f32 %v7641, %v7855
        %v7878 = vadd.f32 %v1414, %v7870
        %v7879 = vadd.f32 %v1481, %v7871
        %v7880 = vadd.f32 %v1429, %v7872
        %v7881 = vadd.f32 %v1484, %v7873
        %v7882 = vadd.f32 %v1444, %v7874
        %v7883 = vadd.f32 %v1487, %v7875
        %v7884 = vadd.f32 %v1459, %v7876
        %v7885 = vadd.f32 %v1490, %v7877
        %v7886 = vtanh.pop %v7878
        %v7887 = vtanh.pop %v7879
        %v7888 = vtanh.pop %v7880
        %v7889 = vtanh.pop %v7881
        %v7890 = vtanh.pop %v7882
        %v7891 = vtanh.pop %v7883
        %v7892 = vtanh.pop %v7884
        %v7893 = vtanh.pop %v7885
        %v7894 = vsub.f32 1.0, %v7769
        %v7895 = vsub.f32 1.0, %v7771
        %v7896 = vsub.f32 1.0, %v7773
        %v7897 = vsub.f32 1.0, %v7775
        %v7898 = vsub.f32 1.0, %v7777
        %v7899 = vsub.f32 1.0, %v7779
        %v7900 = vsub.f32 1.0, %v7781
        %v7901 = vsub.f32 1.0, %v7783
        %v7902 = vmul.f32 %v7894, %v7886
        %v7903 = vmul.f32 %v7895, %v7887
        %v7904 = vmul.f32 %v7896, %v7888
        %v7905 = vmul.f32 %v7897, %v7889
        %v7906 = vmul.f32 %v7898, %v7890
        %v7907 = vmul.f32 %v7899, %v7891
        %v7908 = vmul.f32 %v7900, %v7892
        %v7909 = vmul.f32 %v7901, %v7893
        %v7910 = vrot.slane %v7443, 7
        %v7911 = vrot.slane %v7444, 7
        %v7912 = vrot.slane %v7445, 7
        %v7913 = vrot.slane %v7446, 7
        %v7914 = vrot.slane %v7447, 7
        %v7915 = vrot.slane %v7448, 7
        %v7916 = vrot.slane %v7449, 7
        %v7917 = vrot.slane %v7450, 7
        %v7926 = vmul.f32 %v7769, %v7910
        %v7927 = vmul.f32 %v7771, %v7911
        %v7928 = vmul.f32 %v7773, %v7912
        %v7929 = vmul.f32 %v7775, %v7913
        %v7930 = vmul.f32 %v7777, %v7914
        %v7931 = vmul.f32 %v7779, %v7915
        %v7932 = vmul.f32 %v7781, %v7916
        %v7933 = vmul.f32 %v7783, %v7917
        %v7934 = vadd.f32 %v7902, %v7926
        %v7935 = vadd.f32 %v7903, %v7927
        %v7936 = vadd.f32 %v7904, %v7928
        %v7937 = vadd.f32 %v7905, %v7929
        %v7938 = vadd.f32 %v7906, %v7930
        %v7939 = vadd.f32 %v7907, %v7931
        %v7940 = vadd.f32 %v7908, %v7932
        %v7941 = vadd.f32 %v7909, %v7933
        %p7942 = scmp.gt.s32.totalorder %s704, 11
        %s7943 = scalar_select %p7942, 1, 0
        %s7944 = scvt.s32.f32 %s7943
        %v7945 = vstv %s7944
        %v7946 = vmul.f32 %v7945, %v7934
        %v7947 = vmul.f32 %v7945, %v7935
        %v7948 = vmul.f32 %v7945, %v7936
        %v7949 = vmul.f32 %v7945, %v7937
        %v7950 = vmul.f32 %v7945, %v7938
        %v7951 = vmul.f32 %v7945, %v7939
        %v7952 = vmul.f32 %v7945, %v7940
        %v7953 = vmul.f32 %v7945, %v7941
        %s7954 = ssub.f32 1.0, %s7944
        %v7955 = vstv %s7954
        %v7956 = vmul.f32 %v7955, %v7443
        %v7957 = vmul.f32 %v7955, %v7444
        %v7958 = vmul.f32 %v7955, %v7445
        %v7959 = vmul.f32 %v7955, %v7446
        %v7960 = vmul.f32 %v7955, %v7447
        %v7961 = vmul.f32 %v7955, %v7448
        %v7962 = vmul.f32 %v7955, %v7449
        %v7963 = vmul.f32 %v7955, %v7450
        %v7972 = vrot.slane %v7956, 7
        %v7973 = vrot.slane %v7957, 7
        %v7974 = vrot.slane %v7958, 7
        %v7975 = vrot.slane %v7959, 7
        %v7976 = vrot.slane %v7960, 7
        %v7977 = vrot.slane %v7961, 7
        %v7978 = vrot.slane %v7962, 7
        %v7979 = vrot.slane %v7963, 7
        %v7988 = vadd.f32 %v7946, %v7972
        %v7989 = vadd.f32 %v7947, %v7973
        %v7990 = vadd.f32 %v7948, %v7974
        %v7991 = vadd.f32 %v7949, %v7975
        %v7992 = vadd.f32 %v7950, %v7976
        %v7993 = vadd.f32 %v7951, %v7977
        %v7994 = vadd.f32 %v7952, %v7978
        %v7995 = vadd.f32 %v7953, %v7979
        %v8004 = vlaneseq
        %v8005 = vshrl.u32 %v8004, 7
        %v8006 = vsub.s32 3, %v8005
        %v8007 = vrot.slane %v7988, %v8006
        %v8008 = vlaneseq
        %v8009 = vshrl.u32 %v8008, 7
        %v8010 = vsub.s32 3, %v8009
        %v8011 = vrot.slane %v7989, %v8010
        %v8012 = vlaneseq
        %v8013 = vshrl.u32 %v8012, 7
        %v8014 = vsub.s32 3, %v8013
        %v8015 = vrot.slane %v7990, %v8014
        %v8016 = vlaneseq
        %v8017 = vshrl.u32 %v8016, 7
        %v8018 = vsub.s32 3, %v8017
        %v8019 = vrot.slane %v7991, %v8018
        %v8020 = vlaneseq
        %v8021 = vshrl.u32 %v8020, 7
        %v8022 = vsub.s32 3, %v8021
        %v8023 = vrot.slane %v7992, %v8022
        %v8024 = vlaneseq
        %v8025 = vshrl.u32 %v8024, 7
        %v8026 = vsub.s32 3, %v8025
        %v8027 = vrot.slane %v7993, %v8026
        %v8028 = vlaneseq
        %v8029 = vshrl.u32 %v8028, 7
        %v8030 = vsub.s32 3, %v8029
        %v8031 = vrot.slane %v7994, %v8030
        %v8032 = vlaneseq
        %v8033 = vshrl.u32 %v8032, 7
        %v8034 = vsub.s32 3, %v8033
        %v8035 = vrot.slane %v7995, %v8034
        %v8036 = vsel %vm2008, %v8011, %v8007
        %v8037 = vsel %vm2010, %v8015, %v8036
        %v8038 = vsel %vm2012, %v8019, %v8037
        %v8039 = vsel %vm2014, %v8023, %v8038
        %v8040 = vsel %vm2002, %v8031, %v8027
        %v8041 = vsel %vm2004, %v8035, %v8040
        %vm8044 = vcmask 523267
        %8045 = vst.msk [vmem:[%s660 - $0x3] sm:$0xf8] %vm8044, %v8039
        %vm8046 = vcmask 518144
        %8047 = vst.msk [vmem:[%s660 + $0x5] sm:$0x7] %vm8046, %v8041
        %s8048 = sand.u32 %s379, 1
        %s8049 = scalar_lea.sflag [#allocation4], %s8048
        %s8050 = sand.u32 %s379, 1
        %s8051 = smul.addr %s8050, 8
        %s8052 = scalar_lea.vmem [#allocation8], %s8051
        // Predicated region
        $region85: #{tpu_custom_call.1} parent=71 // pred_check
          %p8053 = pneg %p389
        $region86: #{tpu_custom_call.1} parent=71 // pred_check_branch
          %8055 = sbr.rel (%p8053) target = $region88
        $region87: #{tpu_custom_call.1} parent=71 // pred_region
          %s8057 = ssub.s32 128, 128
          %8058 = vsyncadd %s8049, %s8057
          %s8059 = smul.addr %s33, 128
          %s8060 = scalar_lea.hbm %s13, %s8059
          %s8062 = sshll.u32 %s8052, 4
          %s8063 = int_to_ptr.vmem [resolvable:$true] %s8062
          %8065 = dma.vmem_to_hbm [thread:$0]  %s8063, 128, %s8060, %s8049
        $region88: #{tpu_custom_call.1} parent=71 // pred_fallthru
          _
      $region72: #{tpu_custom_call.1} parent=5 // pred_fallthru
        _
      %p8066 = scmp.le.s32.totalorder 2, %s28
      // Predicated region
      $region89: #{tpu_custom_call.1} parent=5 // pred_check
        %p8067 = pneg %p8066
      $region90: #{tpu_custom_call.1} parent=5 // pred_check_branch
        %8069 = sbr.rel (%p8067) target = $region92
      $region91: #{tpu_custom_call.1} parent=5 // pred_region
        %s8070 = ssub.s32 %s28, 2
        // Predicated region
        $region93: #{tpu_custom_call.1} parent=91 // pred_check
          %p8071 = pneg %p395
        $region94: #{tpu_custom_call.1} parent=91 // pred_check_branch
          %8073 = sbr.rel (%p8071) target = $region96
        $region95: #{tpu_custom_call.1} parent=91 // pred_region
          %s8074 = sand.u32 %s380, 1
          %s8075 = scalar_lea.sflag [#allocation4], %s8074
          %s8076 = sand.u32 %s380, 1
          %s8077 = smul.addr %s8076, 8
          %s8078 = scalar_lea.vmem [#allocation8], %s8077
          %8079 = dma.done %s8075, 128
        $region96: #{tpu_custom_call.1} parent=91 // pred_fallthru
          _
      $region92: #{tpu_custom_call.1} parent=5 // pred_fallthru
        _
    $region6: #{tpu_custom_call.1} parent=1 // loop_footer
      %s32 = sadd.s32 1, %s28
    $region7: #{tpu_custom_call.1} parent=1 // loop_footer_branch
      %27 = sbr.rel target = $region3
    $region8: #{tpu_custom_call.1} parent=1 // loop_exit
      _
    %8080 = vsyncpa [#allocation3], 1
    %s8081 = scalar_lea.sflag [#allocation3], 1
    %8082 = vsyncpa %s8081, 1
    %8083 = vsyncpa [#allocation6], 1
    %s8084 = scalar_lea.sflag [#allocation6], 1
    %8085 = vsyncpa %s8084, 1
    %8086 = vsyncpa [#allocation4], 1
    %s8087 = scalar_lea.sflag [#allocation4], 1
    %8088 = vsyncpa %s8087, 1

</llo_original>
